<compile_context>
chip_gen: v7x
topology: tpu7x:2x2x1
jax: 0.10.0
libtpu: 0.0.40
codegen_flags: <defaults>
</compile_context>

<pallas_src>
import functools

import jax
import jax.numpy as jnp
from jax.experimental import pallas as pl
from jax.experimental.pallas import tpu as pltpu

TILE_M = 128


def _round_up(x, m):
    return ((x + m - 1) // m) * m


# ---------------------------------------------------------------------------
# Pallas kernels
# ---------------------------------------------------------------------------
def _matmul_bias_kernel(a_ref, b_ref, bias_ref, o_ref, *, relu):
    acc = jnp.dot(a_ref[...], b_ref[...], preferred_element_type=jnp.float32)
    y = acc + bias_ref[...]
    if relu:
        y = jnp.maximum(y, 0.0)
    o_ref[...] = y


def _matmul_bias_res_kernel(a_ref, b_ref, bias_ref, id_ref, o_ref):
    # conv + folded BN + residual add + ReLU, all in the MXU epilogue
    acc = jnp.dot(a_ref[...], b_ref[...], preferred_element_type=jnp.float32)
    o_ref[...] = jnp.maximum(acc + bias_ref[...] + id_ref[...], 0.0)


def _max9_kernel(*refs):
    o_ref = refs[-1]
    m = refs[0][...]
    for r in refs[1:-1]:
        m = jnp.maximum(m, r[...])
    o_ref[...] = m


# ---------------------------------------------------------------------------
# Dual-branch matmul: a [2, M, K] bf16  x  w [2, K, N] bf16  (+ bias, opt residual,
# opt ReLU).  K and N are pre-padded to multiples of 128 at init time.
# ---------------------------------------------------------------------------
def dual_matmul(a, w, bias, *, relu, residual=None):
    g, M, K = a.shape
    n_out = w.shape[-1]

    m8 = _round_up(M, 8)
    tm = min(TILE_M, m8)
    m_pad = _round_up(m8, tm)
    if m_pad != M:
        a = jnp.pad(a, ((0, 0), (0, m_pad - M), (0, 0)))
        if residual is not None:
            residual = jnp.pad(residual, ((0, 0), (0, m_pad - M), (0, 0)))

    in_specs = [
        pl.BlockSpec((None, tm, K), lambda b, i: (b, i, 0)),      # activations
        pl.BlockSpec((None, K, n_out), lambda b, i: (b, 0, 0)),   # folded weights
        pl.BlockSpec((None, 1, n_out), lambda b, i: (b, 0, 0)),   # folded bias
    ]
    args = [a, w, bias]
    if residual is None:
        kernel = functools.partial(_matmul_bias_kernel, relu=relu)
    else:
        kernel = _matmul_bias_res_kernel
        in_specs.append(pl.BlockSpec((None, tm, n_out), lambda b, i: (b, i, 0)))
        args.append(residual)

    flops = 2 * g * m_pad * K * n_out
    bytes_accessed = (g * m_pad * K * 2 + g * K * n_out * 2 + g * n_out * 4
                      + g * m_pad * n_out * 4
                      + (g * m_pad * n_out * 4 if residual is not None else 0))

    out = pl.pallas_call(
        kernel,
        out_shape=jax.ShapeDtypeStruct((g, m_pad, n_out), jnp.float32),
        grid_spec=pltpu.PrefetchScalarGridSpec(
            num_scalar_prefetch=0,
            grid=(g, m_pad // tm),
            in_specs=in_specs,
            out_specs=pl.BlockSpec((None, tm, n_out), lambda b, i: (b, i, 0)),
        ),
        compiler_params=pltpu.CompilerParams(
            dimension_semantics=("parallel", "parallel"),
            vmem_limit_bytes=32 * 1024 * 1024,
        ),
        cost_estimate=pl.CostEstimate(
            flops=flops, transcendentals=0, bytes_accessed=bytes_accessed),
    )(*args)
    if m_pad != M:
        out = out[:, :M]
    return out


# ---------------------------------------------------------------------------
# Glue: patch extraction, conv+BN(+residual+ReLU), maxpool
# ---------------------------------------------------------------------------
def _extract_patches(x, kh, kw, stride, pad):
    """x: [G, N, H, W, C] -> ([G, N*OH*OW, kh*kw*C], OH, OW); K ordered (kh, kw, c)."""
    g, n, h, w, c = x.shape
    if kh == 1 and kw == 1 and pad == 0:
        if stride == 1:                                   # plain reshape, no copy
            return x.reshape(g, n * h * w, c), h, w
        oh = (h - 1) // stride + 1
        ow = (w - 1) // stride + 1
        xs = x[:, :, ::stride, ::stride, :]               # strided-slice downsample
        return xs.reshape(g, n * oh * ow, c), oh, ow
    if pad > 0:
        x = jnp.pad(x, ((0, 0), (0, 0), (pad, pad), (pad, pad), (0, 0)))
    oh = (h + 2 * pad - kh) // stride + 1
    ow = (w + 2 * pad - kw) // stride + 1
    cols = []
    for i in range(kh):
        for j in range(kw):
            cols.append(x[:, :, i:i + stride * oh:stride, j:j + stride * ow:stride, :])
    patches = jnp.concatenate(cols, axis=-1)              # fused under jit
    return patches.reshape(g, n * oh * ow, kh * kw * c), oh, ow


def conv_bn(x, conv, *, kh, kw, stride, pad, relu, residual=None):
    """x: [2, N, H, W, Cin_phys] f32; conv = {'w': [2,Kp,Np] bf16, 'b': [2,1,Np] f32}."""
    g, n = x.shape[0], x.shape[1]
    w, bias = conv["w"], conv["b"]
    patches, oh, ow = _extract_patches(x, kh, kw, stride, pad)
    k = patches.shape[-1]
    k_pad = w.shape[1]
    if k_pad != k:                                        # only conv1 (147 -> 256)
        patches = jnp.pad(patches, ((0, 0), (0, 0), (0, k_pad - k)))
    patches = patches.astype(jnp.bfloat16)
    res = None
    if residual is not None:
        res = residual.reshape(g, n * oh * ow, residual.shape[-1])
    out = dual_matmul(patches, w, bias, relu=relu, residual=res)
    return out.reshape(g, n, oh, ow, w.shape[-1])


def maxpool_3x3_s2_p1(x):
    # Zero spatial padding is equivalent to -inf here: inputs are post-ReLU (>= 0).
    g, n, h, w, c = x.shape
    xp = jnp.pad(x, ((0, 0), (0, 0), (1, 1), (1, 1), (0, 0)))
    oh = (h + 2 - 3) // 2 + 1
    ow = (w + 2 - 3) // 2 + 1
    M = g * n * oh * ow
    taps = []
    for i in range(3):
        for j in range(3):
            taps.append(xp[:, :, i:i + 2 * oh:2, j:j + 2 * ow:2, :].reshape(M, c))
    tm = min(TILE_M, _round_up(M, 8))
    m_pad = _round_up(_round_up(M, 8), tm)
    if m_pad != M:
        taps = [jnp.pad(t, ((0, m_pad - M), (0, 0))) for t in taps]
    out = pl.pallas_call(
        _max9_kernel,
        out_shape=jax.ShapeDtypeStruct((m_pad, c), x.dtype),
        grid_spec=pltpu.PrefetchScalarGridSpec(
            num_scalar_prefetch=0,
            grid=(m_pad // tm,),
            in_specs=[pl.BlockSpec((tm, c), lambda i: (i, 0))] * 9,
            out_specs=pl.BlockSpec((tm, c), lambda i: (i, 0)),
        ),
        compiler_params=pltpu.CompilerParams(
            dimension_semantics=("parallel",),
            vmem_limit_bytes=32 * 1024 * 1024,
        ),
    )(*taps)
    if m_pad != M:
        out = out[:M]
    return out.reshape(g, n, oh, ow, c)


# ---------------------------------------------------------------------------
# Parameters: deterministic random weights, eval-mode BN folded, padded & bf16
# packed ONCE at init (both branches stacked along a leading axis of size 2).
# ---------------------------------------------------------------------------
def _fold_conv_bn(key, cin, cout, k):
    k1, k2, k3, k4, k5 = jax.random.split(key, 5)
    fan_in = cin * k * k
    w = jax.random.normal(k1, (cout, cin, k, k), jnp.float32) * jnp.sqrt(2.0 / fan_in)
    gamma = 1.0 + 0.1 * jax.random.normal(k2, (cout,), jnp.float32)
    beta = 0.1 * jax.random.normal(k3, (cout,), jnp.float32)
    mean = 0.1 * jax.random.normal(k4, (cout,), jnp.float32)
    var = 0.9 + 0.1 * jnp.abs(jax.random.normal(k5, (cout,), jnp.float32))
    scale = gamma / jnp.sqrt(var + 1e-5)
    return w * scale[:, None, None, None], beta - mean * scale


def _pack_dual_conv(folded_pair, cin_phys, cout_phys):
    w_mats, biases = [], []
    for w, b in folded_pair:
        cout, cin, kh, kw = w.shape
        w = jnp.pad(w, ((0, cout_phys - cout), (0, cin_phys - cin), (0, 0), (0, 0)))
        b = jnp.pad(b, (0, cout_phys - cout))
        wm = jnp.transpose(w, (2, 3, 1, 0)).reshape(kh * kw * cin_phys, cout_phys)
        k_pad = _round_up(wm.shape[0], 128)
        wm = jnp.pad(wm, ((0, k_pad - wm.shape[0]), (0, 0)))
        w_mats.append(wm)
        biases.append(b.reshape(1, cout_phys))
    return {"w": jnp.stack(w_mats).astype(jnp.bfloat16),
            "b": jnp.stack(biases).astype(jnp.float32)}


def make_triplet_params(key):
    key_s, key_p = jax.random.split(key)
    keys_s = iter(jax.random.split(key_s, 64))
    keys_p = iter(jax.random.split(key_p, 64))

    def dual(cin, cout, k, cin_phys=None):
        cin_phys = _round_up(cin, 128) if cin_phys is None else cin_phys
        cout_phys = _round_up(cout, 128)
        fs = _fold_conv_bn(next(keys_s), cin, cout, k)
        fp = _fold_conv_bn(next(keys_p), cin, cout, k)
        return _pack_dual_conv([fs, fp], cin_phys, cout_phys)

    params = {"conv1": dual(3, 64, 7, cin_phys=3)}  # RGB input channels stay 3

    def make_layer(inplanes, planes, n_blocks):
        blocks, inp = [], inplanes
        for bi in range(n_blocks):
            blk = {
                "c1": dual(inp, planes, 1),
                "c2": dual(planes, planes, 3),
                "c3": dual(planes, planes * 4, 1),
            }
            if bi == 0:
                blk["ds"] = dual(inp, planes * 4, 1)
            blocks.append(blk)
            inp = planes * 4
        return blocks

    params["layer1"] = make_layer(64, 64, 3)     # stride 1
    params["layer2"] = make_layer(256, 128, 4)   # first block stride 2
    return params


# ---------------------------------------------------------------------------
# Forward
# ---------------------------------------------------------------------------
def bottleneck(x, blk, stride):
    out = conv_bn(x, blk["c1"], kh=1, kw=1, stride=1, pad=0, relu=True)
    out = conv_bn(out, blk["c2"], kh=3, kw=3, stride=stride, pad=1, relu=True)
    if "ds" in blk:
        identity = conv_bn(x, blk["ds"], kh=1, kw=1, stride=stride, pad=0, relu=False)
    else:
        identity = x
    # residual add + ReLU fused into the c3 matmul epilogue
    return conv_bn(out, blk["c3"], kh=1, kw=1, stride=1, pad=0, relu=True,
                   residual=identity)


def triplet_net_forward(params, sketch_input, photo_input):
    # NCHW x2 -> stacked [branch, N, H, W, C]
    x = jnp.stack([sketch_input, photo_input], axis=0).astype(jnp.float32)
    x = jnp.transpose(x, (0, 1, 3, 4, 2))
    x = conv_bn(x, params["conv1"], kh=7, kw=7, stride=2, pad=3, relu=True)
    x = maxpool_3x3_s2_p1(x)
    for blk in params["layer1"]:
        x = bottleneck(x, blk, stride=1)
    for bi, blk in enumerate(params["layer2"]):
        x = bottleneck(x, blk, stride=2 if bi == 0 else 1)
    out = jnp.transpose(x, (0, 1, 4, 2, 3))   # -> [branch, N, C, H, W]
    return out[0], out[1]


# ---------------------------------------------------------------------------
if __name__ == "__main__":
    key = jax.random.PRNGKey(0)
    k_params, k_in1, k_in2 = jax.random.split(key, 3)

    params = make_triplet_params(k_params)

    # small, module-consistent shapes: batch=2, RGB, 32x32 spatial
    sketch_input = jax.random.normal(k_in1, (2, 3, 32, 32), jnp.float32)
    photo_input = jax.random.normal(k_in2, (2, 3, 32, 32), jnp.float32)

    forward = jax.jit(triplet_net_forward)
    sketch_out, photo_out = forward(params, sketch_input, photo_input)
    jax.block_until_ready(sketch_out)
    jax.block_until_ready(photo_out)

    assert sketch_out.shape == (2, 512, 4, 4), sketch_out.shape
    assert photo_out.shape == (2, 512, 4, 4), photo_out.shape
    assert jnp.all(jnp.isfinite(sketch_out)) and jnp.all(jnp.isfinite(photo_out))
    print("KERNEL_OK")
</pallas_src>

<mosaic_0001>
module attributes {stable_mosaic.version = 11 : i64} {
  func.func @_matmul_bias_kernel(%arg0: i32, %arg1: i32, %arg2: memref<1x128x256xbf16, #tpu.memory_space<vmem>>, %arg3: memref<1x256x128xbf16, #tpu.memory_space<vmem>>, %arg4: memref<1x1x128xf32, #tpu.memory_space<vmem>>, %arg5: memref<1x128x128xf32, #tpu.memory_space<vmem>>) attributes {dimension_semantics = [#tpu.dimension_semantics<parallel>, #tpu.dimension_semantics<parallel>], iteration_bounds = array<i64: 2, 4>, scalar_prefetch = 0 : i64, scratch_operands = 0 : i64, tpu.core_type = #tpu.core_type<tc>, window_params = [{transform_indices = @transform_0, window_bounds = array<i64: 1, 128, 256>}, {transform_indices = @transform_1, window_bounds = array<i64: 1, 256, 128>}, {transform_indices = @transform_2, window_bounds = array<i64: 1, 1, 128>}, {transform_indices = @transform_3, window_bounds = array<i64: 1, 128, 128>}]} {
    %c0 = arith.constant 0 : index
    %c0_0 = arith.constant 0 : index
    %c0_1 = arith.constant 0 : index
    %0 = vector.load %arg2[%c0, %c0_0, %c0_1] : memref<1x128x256xbf16, #tpu.memory_space<vmem>>, vector<1x128x256xbf16>
    %1 = vector.shape_cast %0 : vector<1x128x256xbf16> to vector<128x256xbf16>
    %c0_2 = arith.constant 0 : index
    %c0_3 = arith.constant 0 : index
    %c0_4 = arith.constant 0 : index
    %2 = vector.load %arg3[%c0_2, %c0_3, %c0_4] : memref<1x256x128xbf16, #tpu.memory_space<vmem>>, vector<1x256x128xbf16>
    %3 = vector.shape_cast %2 : vector<1x256x128xbf16> to vector<256x128xbf16>
    %cst = arith.constant dense<0.000000e+00> : vector<128x128xf32>
    %4 = tpu.matmul %1, %3, %cst {dimension_numbers = #tpu.dot_dimension_numbers<[1], [0], [0], [1], [0, 0, 1, 1], [], []>} : vector<128x256xbf16>, vector<256x128xbf16>, vector<128x128xf32> -> vector<128x128xf32>
    %c0_5 = arith.constant 0 : index
    %c0_6 = arith.constant 0 : index
    %c0_7 = arith.constant 0 : index
    %5 = vector.load %arg4[%c0_5, %c0_6, %c0_7] : memref<1x1x128xf32, #tpu.memory_space<vmem>>, vector<1x1x128xf32>
    %6 = vector.shape_cast %5 : vector<1x1x128xf32> to vector<1x128xf32>
    %7 = vector.broadcast %6 : vector<1x128xf32> to vector<128x128xf32>
    %8 = arith.addf %4, %7 : vector<128x128xf32>
    %cst_8 = arith.constant 0.000000e+00 : f32
    %9 = vector.broadcast %cst_8 : f32 to vector<128x128xf32>
    %10 = arith.maximumf %8, %9 : vector<128x128xf32>
    %c0_9 = arith.constant 0 : index
    %c0_10 = arith.constant 0 : index
    %c0_11 = arith.constant 0 : index
    %11 = vector.load %arg5[%c0_9, %c0_10, %c0_11] : memref<1x128x128xf32, #tpu.memory_space<vmem>>, vector<1x128x128xf32>
    %12 = vector.shape_cast %11 : vector<1x128x128xf32> to vector<128x128xf32>
    %13 = vector.shape_cast %10 : vector<128x128xf32> to vector<1x128x128xf32>
    tpu.vector_store %arg5[%c0_9, %c0_10, %c0_11], %13 {strides = array<i32>} : memref<1x128x128xf32, #tpu.memory_space<vmem>>, vector<1x128x128xf32>,
    return
  }
  func.func @transform_0(%arg0: i32, %arg1: i32) -> (i32, i32, i32) {
    %c0_i32 = arith.constant 0 : i32
    %c0_i32_0 = arith.constant 0 : i32
    return %arg0, %arg1, %c0_i32 : i32, i32, i32
  }
  func.func @transform_1(%arg0: i32, %arg1: i32) -> (i32, i32, i32) {
    %c0_i32 = arith.constant 0 : i32
    %c0_i32_0 = arith.constant 0 : i32
    %c0_i32_1 = arith.constant 0 : i32
    return %arg0, %c0_i32, %c0_i32_0 : i32, i32, i32
  }
  func.func @transform_2(%arg0: i32, %arg1: i32) -> (i32, i32, i32) {
    %c0_i32 = arith.constant 0 : i32
    %c0_i32_0 = arith.constant 0 : i32
    %c0_i32_1 = arith.constant 0 : i32
    return %arg0, %c0_i32, %c0_i32_0 : i32, i32, i32
  }
  func.func @transform_3(%arg0: i32, %arg1: i32) -> (i32, i32, i32) {
    %c0_i32 = arith.constant 0 : i32
    %c0_i32_0 = arith.constant 0 : i32
    return %arg0, %arg1, %c0_i32 : i32, i32, i32
  }
}

module attributes {stable_mosaic.version = 11 : i64} {
  func.func @_max9_kernel(%arg0: i32, %arg1: memref<128x128xf32, #tpu.memory_space<vmem>>, %arg2: memref<128x128xf32, #tpu.memory_space<vmem>>, %arg3: memref<128x128xf32, #tpu.memory_space<vmem>>, %arg4: memref<128x128xf32, #tpu.memory_space<vmem>>, %arg5: memref<128x128xf32, #tpu.memory_space<vmem>>, %arg6: memref<128x128xf32, #tpu.memory_space<vmem>>, %arg7: memref<128x128xf32, #tpu.memory_space<vmem>>, %arg8: memref<128x128xf32, #tpu.memory_space<vmem>>, %arg9: memref<128x128xf32, #tpu.memory_space<vmem>>, %arg10: memref<128x128xf32, #tpu.memory_space<vmem>>) attributes {dimension_semantics = [#tpu.dimension_semantics<parallel>], iteration_bounds = array<i64: 2>, scalar_prefetch = 0 : i64, scratch_operands = 0 : i64, tpu.core_type = #tpu.core_type<tc>, window_params = [{transform_indices = @transform_0, window_bounds = array<i64: 128, 128>}, {transform_indices = @transform_1, window_bounds = array<i64: 128, 128>}, {transform_indices = @transform_2, window_bounds = array<i64: 128, 128>}, {transform_indices = @transform_3, window_bounds = array<i64: 128, 128>}, {transform_indices = @transform_4, window_bounds = array<i64: 128, 128>}, {transform_indices = @transform_5, window_bounds = array<i64: 128, 128>}, {transform_indices = @transform_6, window_bounds = array<i64: 128, 128>}, {transform_indices = @transform_7, window_bounds = array<i64: 128, 128>}, {transform_indices = @transform_8, window_bounds = array<i64: 128, 128>}, {transform_indices = @transform_9, window_bounds = array<i64: 128, 128>}]} {
    %c0 = arith.constant 0 : index
    %c0_0 = arith.constant 0 : index
    %0 = vector.load %arg1[%c0, %c0_0] : memref<128x128xf32, #tpu.memory_space<vmem>>, vector<128x128xf32>
    %c0_1 = arith.constant 0 : index
    %c0_2 = arith.constant 0 : index
    %1 = vector.load %arg2[%c0_1, %c0_2] : memref<128x128xf32, #tpu.memory_space<vmem>>, vector<128x128xf32>
    %2 = arith.maximumf %0, %1 : vector<128x128xf32>
    %c0_3 = arith.constant 0 : index
    %c0_4 = arith.constant 0 : index
    %3 = vector.load %arg3[%c0_3, %c0_4] : memref<128x128xf32, #tpu.memory_space<vmem>>, vector<128x128xf32>
    %4 = arith.maximumf %2, %3 : vector<128x128xf32>
    %c0_5 = arith.constant 0 : index
    %c0_6 = arith.constant 0 : index
    %5 = vector.load %arg4[%c0_5, %c0_6] : memref<128x128xf32, #tpu.memory_space<vmem>>, vector<128x128xf32>
    %6 = arith.maximumf %4, %5 : vector<128x128xf32>
    %c0_7 = arith.constant 0 : index
    %c0_8 = arith.constant 0 : index
    %7 = vector.load %arg5[%c0_7, %c0_8] : memref<128x128xf32, #tpu.memory_space<vmem>>, vector<128x128xf32>
    %8 = arith.maximumf %6, %7 : vector<128x128xf32>
    %c0_9 = arith.constant 0 : index
    %c0_10 = arith.constant 0 : index
    %9 = vector.load %arg6[%c0_9, %c0_10] : memref<128x128xf32, #tpu.memory_space<vmem>>, vector<128x128xf32>
    %10 = arith.maximumf %8, %9 : vector<128x128xf32>
    %c0_11 = arith.constant 0 : index
    %c0_12 = arith.constant 0 : index
    %11 = vector.load %arg7[%c0_11, %c0_12] : memref<128x128xf32, #tpu.memory_space<vmem>>, vector<128x128xf32>
    %12 = arith.maximumf %10, %11 : vector<128x128xf32>
    %c0_13 = arith.constant 0 : index
    %c0_14 = arith.constant 0 : index
    %13 = vector.load %arg8[%c0_13, %c0_14] : memref<128x128xf32, #tpu.memory_space<vmem>>, vector<128x128xf32>
    %14 = arith.maximumf %12, %13 : vector<128x128xf32>
    %c0_15 = arith.constant 0 : index
    %c0_16 = arith.constant 0 : index
    %15 = vector.load %arg9[%c0_15, %c0_16] : memref<128x128xf32, #tpu.memory_space<vmem>>, vector<128x128xf32>
    %16 = arith.maximumf %14, %15 : vector<128x128xf32>
    %c0_17 = arith.constant 0 : index
    %c0_18 = arith.constant 0 : index
    %17 = vector.load %arg10[%c0_17, %c0_18] : memref<128x128xf32, #tpu.memory_space<vmem>>, vector<128x128xf32>
    tpu.vector_store %arg10[%c0_17, %c0_18], %16 {strides = array<i32>} : memref<128x128xf32, #tpu.memory_space<vmem>>, vector<128x128xf32>,
    return
  }
  func.func @transform_0(%arg0: i32) -> (i32, i32) {
    %c0_i32 = arith.constant 0 : i32
    %c0_i32_0 = arith.constant 0 : i32
    return %arg0, %c0_i32 : i32, i32
  }
  func.func @transform_1(%arg0: i32) -> (i32, i32) {
    %c0_i32 = arith.constant 0 : i32
    %c0_i32_0 = arith.constant 0 : i32
    return %arg0, %c0_i32 : i32, i32
  }
  func.func @transform_2(%arg0: i32) -> (i32, i32) {
    %c0_i32 = arith.constant 0 : i32
    %c0_i32_0 = arith.constant 0 : i32
    return %arg0, %c0_i32 : i32, i32
  }
  func.func @transform_3(%arg0: i32) -> (i32, i32) {
    %c0_i32 = arith.constant 0 : i32
    %c0_i32_0 = arith.constant 0 : i32
    return %arg0, %c0_i32 : i32, i32
  }
  func.func @transform_4(%arg0: i32) -> (i32, i32) {
    %c0_i32 = arith.constant 0 : i32
    %c0_i32_0 = arith.constant 0 : i32
    return %arg0, %c0_i32 : i32, i32
  }
  func.func @transform_5(%arg0: i32) -> (i32, i32) {
    %c0_i32 = arith.constant 0 : i32
    %c0_i32_0 = arith.constant 0 : i32
    return %arg0, %c0_i32 : i32, i32
  }
  func.func @transform_6(%arg0: i32) -> (i32, i32) {
    %c0_i32 = arith.constant 0 : i32
    %c0_i32_0 = arith.constant 0 : i32
    return %arg0, %c0_i32 : i32, i32
  }
  func.func @transform_7(%arg0: i32) -> (i32, i32) {
    %c0_i32 = arith.constant 0 : i32
    %c0_i32_0 = arith.constant 0 : i32
    return %arg0, %c0_i32 : i32, i32
  }
  func.func @transform_8(%arg0: i32) -> (i32, i32) {
    %c0_i32 = arith.constant 0 : i32
    %c0_i32_0 = arith.constant 0 : i32
    return %arg0, %c0_i32 : i32, i32
  }
  func.func @transform_9(%arg0: i32) -> (i32, i32) {
    %c0_i32 = arith.constant 0 : i32
    %c0_i32_0 = arith.constant 0 : i32
    return %arg0, %c0_i32 : i32, i32
  }
}

module attributes {stable_mosaic.version = 11 : i64} {
  func.func @_matmul_bias_kernel(%arg0: i32, %arg1: i32, %arg2: memref<1x128x128xbf16, #tpu.memory_space<vmem>>, %arg3: memref<1x128x256xbf16, #tpu.memory_space<vmem>>, %arg4: memref<1x1x256xf32, #tpu.memory_space<vmem>>, %arg5: memref<1x128x256xf32, #tpu.memory_space<vmem>>) attributes {dimension_semantics = [#tpu.dimension_semantics<parallel>, #tpu.dimension_semantics<parallel>], iteration_bounds = array<i64: 2, 1>, scalar_prefetch = 0 : i64, scratch_operands = 0 : i64, tpu.core_type = #tpu.core_type<tc>, window_params = [{transform_indices = @transform_0, window_bounds = array<i64: 1, 128, 128>}, {transform_indices = @transform_1, window_bounds = array<i64: 1, 128, 256>}, {transform_indices = @transform_2, window_bounds = array<i64: 1, 1, 256>}, {transform_indices = @transform_3, window_bounds = array<i64: 1, 128, 256>}]} {
    %c0 = arith.constant 0 : index
    %c0_0 = arith.constant 0 : index
    %c0_1 = arith.constant 0 : index
    %0 = vector.load %arg2[%c0, %c0_0, %c0_1] : memref<1x128x128xbf16, #tpu.memory_space<vmem>>, vector<1x128x128xbf16>
    %1 = vector.shape_cast %0 : vector<1x128x128xbf16> to vector<128x128xbf16>
    %c0_2 = arith.constant 0 : index
    %c0_3 = arith.constant 0 : index
    %c0_4 = arith.constant 0 : index
    %2 = vector.load %arg3[%c0_2, %c0_3, %c0_4] : memref<1x128x256xbf16, #tpu.memory_space<vmem>>, vector<1x128x256xbf16>
    %3 = vector.shape_cast %2 : vector<1x128x256xbf16> to vector<128x256xbf16>
    %cst = arith.constant dense<0.000000e+00> : vector<128x256xf32>
    %4 = tpu.matmul %1, %3, %cst {dimension_numbers = #tpu.dot_dimension_numbers<[1], [0], [0], [1], [0, 0, 1, 1], [], []>} : vector<128x128xbf16>, vector<128x256xbf16>, vector<128x256xf32> -> vector<128x256xf32>
    %c0_5 = arith.constant 0 : index
    %c0_6 = arith.constant 0 : index
    %c0_7 = arith.constant 0 : index
    %5 = vector.load %arg4[%c0_5, %c0_6, %c0_7] : memref<1x1x256xf32, #tpu.memory_space<vmem>>, vector<1x1x256xf32>
    %6 = vector.shape_cast %5 : vector<1x1x256xf32> to vector<1x256xf32>
    %7 = vector.broadcast %6 : vector<1x256xf32> to vector<128x256xf32>
    %8 = arith.addf %4, %7 : vector<128x256xf32>
    %c0_8 = arith.constant 0 : index
    %c0_9 = arith.constant 0 : index
    %c0_10 = arith.constant 0 : index
    %9 = vector.load %arg5[%c0_8, %c0_9, %c0_10] : memref<1x128x256xf32, #tpu.memory_space<vmem>>, vector<1x128x256xf32>
    %10 = vector.shape_cast %9 : vector<1x128x256xf32> to vector<128x256xf32>
    %11 = vector.shape_cast %8 : vector<128x256xf32> to vector<1x128x256xf32>
    tpu.vector_store %arg5[%c0_8, %c0_9, %c0_10], %11 {strides = array<i32>} : memref<1x128x256xf32, #tpu.memory_space<vmem>>, vector<1x128x256xf32>,
    return
  }
  func.func @transform_0(%arg0: i32, %arg1: i32) -> (i32, i32, i32) {
    %c0_i32 = arith.constant 0 : i32
    %c0_i32_0 = arith.constant 0 : i32
    return %arg0, %arg1, %c0_i32 : i32, i32, i32
  }
  func.func @transform_1(%arg0: i32, %arg1: i32) -> (i32, i32, i32) {
    %c0_i32 = arith.constant 0 : i32
    %c0_i32_0 = arith.constant 0 : i32
    %c0_i32_1 = arith.constant 0 : i32
    return %arg0, %c0_i32, %c0_i32_0 : i32, i32, i32
  }
  func.func @transform_2(%arg0: i32, %arg1: i32) -> (i32, i32, i32) {
    %c0_i32 = arith.constant 0 : i32
    %c0_i32_0 = arith.constant 0 : i32
    %c0_i32_1 = arith.constant 0 : i32
    return %arg0, %c0_i32, %c0_i32_0 : i32, i32, i32
  }
  func.func @transform_3(%arg0: i32, %arg1: i32) -> (i32, i32, i32) {
    %c0_i32 = arith.constant 0 : i32
    %c0_i32_0 = arith.constant 0 : i32
    return %arg0, %arg1, %c0_i32 : i32, i32, i32
  }
}

module attributes {stable_mosaic.version = 11 : i64} {
  func.func @_matmul_bias_kernel(%arg0: i32, %arg1: i32, %arg2: memref<1x128x128xbf16, #tpu.memory_space<vmem>>, %arg3: memref<1x128x128xbf16, #tpu.memory_space<vmem>>, %arg4: memref<1x1x128xf32, #tpu.memory_space<vmem>>, %arg5: memref<1x128x128xf32, #tpu.memory_space<vmem>>) attributes {dimension_semantics = [#tpu.dimension_semantics<parallel>, #tpu.dimension_semantics<parallel>], iteration_bounds = array<i64: 2, 1>, scalar_prefetch = 0 : i64, scratch_operands = 0 : i64, tpu.core_type = #tpu.core_type<tc>, window_params = [{transform_indices = @transform_0, window_bounds = array<i64: 1, 128, 128>}, {transform_indices = @transform_1, window_bounds = array<i64: 1, 128, 128>}, {transform_indices = @transform_2, window_bounds = array<i64: 1, 1, 128>}, {transform_indices = @transform_3, window_bounds = array<i64: 1, 128, 128>}]} {
    %c0 = arith.constant 0 : index
    %c0_0 = arith.constant 0 : index
    %c0_1 = arith.constant 0 : index
    %0 = vector.load %arg2[%c0, %c0_0, %c0_1] : memref<1x128x128xbf16, #tpu.memory_space<vmem>>, vector<1x128x128xbf16>
    %1 = vector.shape_cast %0 : vector<1x128x128xbf16> to vector<128x128xbf16>
    %c0_2 = arith.constant 0 : index
    %c0_3 = arith.constant 0 : index
    %c0_4 = arith.constant 0 : index
    %2 = vector.load %arg3[%c0_2, %c0_3, %c0_4] : memref<1x128x128xbf16, #tpu.memory_space<vmem>>, vector<1x128x128xbf16>
    %3 = vector.shape_cast %2 : vector<1x128x128xbf16> to vector<128x128xbf16>
    %cst = arith.constant dense<0.000000e+00> : vector<128x128xf32>
    %4 = tpu.matmul %1, %3, %cst {dimension_numbers = #tpu.dot_dimension_numbers<[1], [0], [0], [1], [0, 0, 1, 1], [], []>} : vector<128x128xbf16>, vector<128x128xbf16>, vector<128x128xf32> -> vector<128x128xf32>
    %c0_5 = arith.constant 0 : index
    %c0_6 = arith.constant 0 : index
    %c0_7 = arith.constant 0 : index
    %5 = vector.load %arg4[%c0_5, %c0_6, %c0_7] : memref<1x1x128xf32, #tpu.memory_space<vmem>>, vector<1x1x128xf32>
    %6 = vector.shape_cast %5 : vector<1x1x128xf32> to vector<1x128xf32>
    %7 = vector.broadcast %6 : vector<1x128xf32> to vector<128x128xf32>
    %8 = arith.addf %4, %7 : vector<128x128xf32>
    %cst_8 = arith.constant 0.000000e+00 : f32
    %9 = vector.broadcast %cst_8 : f32 to vector<128x128xf32>
    %10 = arith.maximumf %8, %9 : vector<128x128xf32>
    %c0_9 = arith.constant 0 : index
    %c0_10 = arith.constant 0 : index
    %c0_11 = arith.constant 0 : index
    %11 = vector.load %arg5[%c0_9, %c0_10, %c0_11] : memref<1x128x128xf32, #tpu.memory_space<vmem>>, vector<1x128x128xf32>
    %12 = vector.shape_cast %11 : vector<1x128x128xf32> to vector<128x128xf32>
    %13 = vector.shape_cast %10 : vector<128x128xf32> to vector<1x128x128xf32>
    tpu.vector_store %arg5[%c0_9, %c0_10, %c0_11], %13 {strides = array<i32>} : memref<1x128x128xf32, #tpu.memory_space<vmem>>, vector<1x128x128xf32>,
    return
  }
  func.func @transform_0(%arg0: i32, %arg1: i32) -> (i32, i32, i32) {
    %c0_i32 = arith.constant 0 : i32
    %c0_i32_0 = arith.constant 0 : i32
    return %arg0, %arg1, %c0_i32 : i32, i32, i32
  }
  func.func @transform_1(%arg0: i32, %arg1: i32) -> (i32, i32, i32) {
    %c0_i32 = arith.constant 0 : i32
    %c0_i32_0 = arith.constant 0 : i32
    %c0_i32_1 = arith.constant 0 : i32
    return %arg0, %c0_i32, %c0_i32_0 : i32, i32, i32
  }
  func.func @transform_2(%arg0: i32, %arg1: i32) -> (i32, i32, i32) {
    %c0_i32 = arith.constant 0 : i32
    %c0_i32_0 = arith.constant 0 : i32
    %c0_i32_1 = arith.constant 0 : i32
    return %arg0, %c0_i32, %c0_i32_0 : i32, i32, i32
  }
  func.func @transform_3(%arg0: i32, %arg1: i32) -> (i32, i32, i32) {
    %c0_i32 = arith.constant 0 : i32
    %c0_i32_0 = arith.constant 0 : i32
    return %arg0, %arg1, %c0_i32 : i32, i32, i32
  }
}

module attributes {stable_mosaic.version = 11 : i64} {
  func.func @_matmul_bias_res_kernel(%arg0: i32, %arg1: i32, %arg2: memref<1x128x128xbf16, #tpu.memory_space<vmem>>, %arg3: memref<1x128x256xbf16, #tpu.memory_space<vmem>>, %arg4: memref<1x1x256xf32, #tpu.memory_space<vmem>>, %arg5: memref<1x128x256xf32, #tpu.memory_space<vmem>>, %arg6: memref<1x128x256xf32, #tpu.memory_space<vmem>>) attributes {dimension_semantics = [#tpu.dimension_semantics<parallel>, #tpu.dimension_semantics<parallel>], iteration_bounds = array<i64: 2, 1>, scalar_prefetch = 0 : i64, scratch_operands = 0 : i64, tpu.core_type = #tpu.core_type<tc>, window_params = [{transform_indices = @transform_0, window_bounds = array<i64: 1, 128, 128>}, {transform_indices = @transform_1, window_bounds = array<i64: 1, 128, 256>}, {transform_indices = @transform_2, window_bounds = array<i64: 1, 1, 256>}, {transform_indices = @transform_3, window_bounds = array<i64: 1, 128, 256>}, {transform_indices = @transform_4, window_bounds = array<i64: 1, 128, 256>}]} {
    %c0 = arith.constant 0 : index
    %c0_0 = arith.constant 0 : index
    %c0_1 = arith.constant 0 : index
    %0 = vector.load %arg2[%c0, %c0_0, %c0_1] : memref<1x128x128xbf16, #tpu.memory_space<vmem>>, vector<1x128x128xbf16>
    %1 = vector.shape_cast %0 : vector<1x128x128xbf16> to vector<128x128xbf16>
    %c0_2 = arith.constant 0 : index
    %c0_3 = arith.constant 0 : index
    %c0_4 = arith.constant 0 : index
    %2 = vector.load %arg3[%c0_2, %c0_3, %c0_4] : memref<1x128x256xbf16, #tpu.memory_space<vmem>>, vector<1x128x256xbf16>
    %3 = vector.shape_cast %2 : vector<1x128x256xbf16> to vector<128x256xbf16>
    %cst = arith.constant dense<0.000000e+00> : vector<128x256xf32>
    %4 = tpu.matmul %1, %3, %cst {dimension_numbers = #tpu.dot_dimension_numbers<[1], [0], [0], [1], [0, 0, 1, 1], [], []>} : vector<128x128xbf16>, vector<128x256xbf16>, vector<128x256xf32> -> vector<128x256xf32>
    %c0_5 = arith.constant 0 : index
    %c0_6 = arith.constant 0 : index
    %c0_7 = arith.constant 0 : index
    %5 = vector.load %arg4[%c0_5, %c0_6, %c0_7] : memref<1x1x256xf32, #tpu.memory_space<vmem>>, vector<1x1x256xf32>
    %6 = vector.shape_cast %5 : vector<1x1x256xf32> to vector<1x256xf32>
    %7 = vector.broadcast %6 : vector<1x256xf32> to vector<128x256xf32>
    %8 = arith.addf %4, %7 : vector<128x256xf32>
    %c0_8 = arith.constant 0 : index
    %c0_9 = arith.constant 0 : index
    %c0_10 = arith.constant 0 : index
    %9 = vector.load %arg5[%c0_8, %c0_9, %c0_10] : memref<1x128x256xf32, #tpu.memory_space<vmem>>, vector<1x128x256xf32>
    %10 = vector.shape_cast %9 : vector<1x128x256xf32> to vector<128x256xf32>
    %11 = arith.addf %8, %10 : vector<128x256xf32>
    %cst_11 = arith.constant 0.000000e+00 : f32
    %12 = vector.broadcast %cst_11 : f32 to vector<128x256xf32>
    %13 = arith.maximumf %11, %12 : vector<128x256xf32>
    %c0_12 = arith.constant 0 : index
    %c0_13 = arith.constant 0 : index
    %c0_14 = arith.constant 0 : index
    %14 = vector.load %arg6[%c0_12, %c0_13, %c0_14] : memref<1x128x256xf32, #tpu.memory_space<vmem>>, vector<1x128x256xf32>
    %15 = vector.shape_cast %14 : vector<1x128x256xf32> to vector<128x256xf32>
    %16 = vector.shape_cast %13 : vector<128x256xf32> to vector<1x128x256xf32>
    tpu.vector_store %arg6[%c0_12, %c0_13, %c0_14], %16 {strides = array<i32>} : memref<1x128x256xf32, #tpu.memory_space<vmem>>, vector<1x128x256xf32>,
    return
  }
  func.func @transform_0(%arg0: i32, %arg1: i32) -> (i32, i32, i32) {
    %c0_i32 = arith.constant 0 : i32
    %c0_i32_0 = arith.constant 0 : i32
    return %arg0, %arg1, %c0_i32 : i32, i32, i32
  }
  func.func @transform_1(%arg0: i32, %arg1: i32) -> (i32, i32, i32) {
    %c0_i32 = arith.constant 0 : i32
    %c0_i32_0 = arith.constant 0 : i32
    %c0_i32_1 = arith.constant 0 : i32
    return %arg0, %c0_i32, %c0_i32_0 : i32, i32, i32
  }
  func.func @transform_2(%arg0: i32, %arg1: i32) -> (i32, i32, i32) {
    %c0_i32 = arith.constant 0 : i32
    %c0_i32_0 = arith.constant 0 : i32
    %c0_i32_1 = arith.constant 0 : i32
    return %arg0, %c0_i32, %c0_i32_0 : i32, i32, i32
  }
  func.func @transform_3(%arg0: i32, %arg1: i32) -> (i32, i32, i32) {
    %c0_i32 = arith.constant 0 : i32
    %c0_i32_0 = arith.constant 0 : i32
    return %arg0, %arg1, %c0_i32 : i32, i32, i32
  }
  func.func @transform_4(%arg0: i32, %arg1: i32) -> (i32, i32, i32) {
    %c0_i32 = arith.constant 0 : i32
    %c0_i32_0 = arith.constant 0 : i32
    return %arg0, %arg1, %c0_i32 : i32, i32, i32
  }
}

module attributes {stable_mosaic.version = 11 : i64} {
  func.func @_matmul_bias_kernel(%arg0: i32, %arg1: i32, %arg2: memref<1x128x1152xbf16, #tpu.memory_space<vmem>>, %arg3: memref<1x1152x128xbf16, #tpu.memory_space<vmem>>, %arg4: memref<1x1x128xf32, #tpu.memory_space<vmem>>, %arg5: memref<1x128x128xf32, #tpu.memory_space<vmem>>) attributes {dimension_semantics = [#tpu.dimension_semantics<parallel>, #tpu.dimension_semantics<parallel>], iteration_bounds = array<i64: 2, 1>, scalar_prefetch = 0 : i64, scratch_operands = 0 : i64, tpu.core_type = #tpu.core_type<tc>, window_params = [{transform_indices = @transform_0, window_bounds = array<i64: 1, 128, 1152>}, {transform_indices = @transform_1, window_bounds = array<i64: 1, 1152, 128>}, {transform_indices = @transform_2, window_bounds = array<i64: 1, 1, 128>}, {transform_indices = @transform_3, window_bounds = array<i64: 1, 128, 128>}]} {
    %c0 = arith.constant 0 : index
    %c0_0 = arith.constant 0 : index
    %c0_1 = arith.constant 0 : index
    %0 = vector.load %arg2[%c0, %c0_0, %c0_1] : memref<1x128x1152xbf16, #tpu.memory_space<vmem>>, vector<1x128x1152xbf16>
    %1 = vector.shape_cast %0 : vector<1x128x1152xbf16> to vector<128x1152xbf16>
    %c0_2 = arith.constant 0 : index
    %c0_3 = arith.constant 0 : index
    %c0_4 = arith.constant 0 : index
    %2 = vector.load %arg3[%c0_2, %c0_3, %c0_4] : memref<1x1152x128xbf16, #tpu.memory_space<vmem>>, vector<1x1152x128xbf16>
    %3 = vector.shape_cast %2 : vector<1x1152x128xbf16> to vector<1152x128xbf16>
    %cst = arith.constant dense<0.000000e+00> : vector<128x128xf32>
    %4 = tpu.matmul %1, %3, %cst {dimension_numbers = #tpu.dot_dimension_numbers<[1], [0], [0], [1], [0, 0, 1, 1], [], []>} : vector<128x1152xbf16>, vector<1152x128xbf16>, vector<128x128xf32> -> vector<128x128xf32>
    %c0_5 = arith.constant 0 : index
    %c0_6 = arith.constant 0 : index
    %c0_7 = arith.constant 0 : index
    %5 = vector.load %arg4[%c0_5, %c0_6, %c0_7] : memref<1x1x128xf32, #tpu.memory_space<vmem>>, vector<1x1x128xf32>
    %6 = vector.shape_cast %5 : vector<1x1x128xf32> to vector<1x128xf32>
    %7 = vector.broadcast %6 : vector<1x128xf32> to vector<128x128xf32>
    %8 = arith.addf %4, %7 : vector<128x128xf32>
    %cst_8 = arith.constant 0.000000e+00 : f32
    %9 = vector.broadcast %cst_8 : f32 to vector<128x128xf32>
    %10 = arith.maximumf %8, %9 : vector<128x128xf32>
    %c0_9 = arith.constant 0 : index
    %c0_10 = arith.constant 0 : index
    %c0_11 = arith.constant 0 : index
    %11 = vector.load %arg5[%c0_9, %c0_10, %c0_11] : memref<1x128x128xf32, #tpu.memory_space<vmem>>, vector<1x128x128xf32>
    %12 = vector.shape_cast %11 : vector<1x128x128xf32> to vector<128x128xf32>
    %13 = vector.shape_cast %10 : vector<128x128xf32> to vector<1x128x128xf32>
    tpu.vector_store %arg5[%c0_9, %c0_10, %c0_11], %13 {strides = array<i32>} : memref<1x128x128xf32, #tpu.memory_space<vmem>>, vector<1x128x128xf32>,
    return
  }
  func.func @transform_0(%arg0: i32, %arg1: i32) -> (i32, i32, i32) {
    %c0_i32 = arith.constant 0 : i32
    %c0_i32_0 = arith.constant 0 : i32
    return %arg0, %arg1, %c0_i32 : i32, i32, i32
  }
  func.func @transform_1(%arg0: i32, %arg1: i32) -> (i32, i32, i32) {
    %c0_i32 = arith.constant 0 : i32
    %c0_i32_0 = arith.constant 0 : i32
    %c0_i32_1 = arith.constant 0 : i32
    return %arg0, %c0_i32, %c0_i32_0 : i32, i32, i32
  }
  func.func @transform_2(%arg0: i32, %arg1: i32) -> (i32, i32, i32) {
    %c0_i32 = arith.constant 0 : i32
    %c0_i32_0 = arith.constant 0 : i32
    %c0_i32_1 = arith.constant 0 : i32
    return %arg0, %c0_i32, %c0_i32_0 : i32, i32, i32
  }
  func.func @transform_3(%arg0: i32, %arg1: i32) -> (i32, i32, i32) {
    %c0_i32 = arith.constant 0 : i32
    %c0_i32_0 = arith.constant 0 : i32
    return %arg0, %arg1, %c0_i32 : i32, i32, i32
  }
}

module attributes {stable_mosaic.version = 11 : i64} {
  func.func @_matmul_bias_kernel(%arg0: i32, %arg1: i32, %arg2: memref<1x128x256xbf16, #tpu.memory_space<vmem>>, %arg3: memref<1x256x128xbf16, #tpu.memory_space<vmem>>, %arg4: memref<1x1x128xf32, #tpu.memory_space<vmem>>, %arg5: memref<1x128x128xf32, #tpu.memory_space<vmem>>) attributes {dimension_semantics = [#tpu.dimension_semantics<parallel>, #tpu.dimension_semantics<parallel>], iteration_bounds = array<i64: 2, 1>, scalar_prefetch = 0 : i64, scratch_operands = 0 : i64, tpu.core_type = #tpu.core_type<tc>, window_params = [{transform_indices = @transform_0, window_bounds = array<i64: 1, 128, 256>}, {transform_indices = @transform_1, window_bounds = array<i64: 1, 256, 128>}, {transform_indices = @transform_2, window_bounds = array<i64: 1, 1, 128>}, {transform_indices = @transform_3, window_bounds = array<i64: 1, 128, 128>}]} {
    %c0 = arith.constant 0 : index
    %c0_0 = arith.constant 0 : index
    %c0_1 = arith.constant 0 : index
    %0 = vector.load %arg2[%c0, %c0_0, %c0_1] : memref<1x128x256xbf16, #tpu.memory_space<vmem>>, vector<1x128x256xbf16>
    %1 = vector.shape_cast %0 : vector<1x128x256xbf16> to vector<128x256xbf16>
    %c0_2 = arith.constant 0 : index
    %c0_3 = arith.constant 0 : index
    %c0_4 = arith.constant 0 : index
    %2 = vector.load %arg3[%c0_2, %c0_3, %c0_4] : memref<1x256x128xbf16, #tpu.memory_space<vmem>>, vector<1x256x128xbf16>
    %3 = vector.shape_cast %2 : vector<1x256x128xbf16> to vector<256x128xbf16>
    %cst = arith.constant dense<0.000000e+00> : vector<128x128xf32>
    %4 = tpu.matmul %1, %3, %cst {dimension_numbers = #tpu.dot_dimension_numbers<[1], [0], [0], [1], [0, 0, 1, 1], [], []>} : vector<128x256xbf16>, vector<256x128xbf16>, vector<128x128xf32> -> vector<128x128xf32>
    %c0_5 = arith.constant 0 : index
    %c0_6 = arith.constant 0 : index
    %c0_7 = arith.constant 0 : index
    %5 = vector.load %arg4[%c0_5, %c0_6, %c0_7] : memref<1x1x128xf32, #tpu.memory_space<vmem>>, vector<1x1x128xf32>
    %6 = vector.shape_cast %5 : vector<1x1x128xf32> to vector<1x128xf32>
    %7 = vector.broadcast %6 : vector<1x128xf32> to vector<128x128xf32>
    %8 = arith.addf %4, %7 : vector<128x128xf32>
    %cst_8 = arith.constant 0.000000e+00 : f32
    %9 = vector.broadcast %cst_8 : f32 to vector<128x128xf32>
    %10 = arith.maximumf %8, %9 : vector<128x128xf32>
    %c0_9 = arith.constant 0 : index
    %c0_10 = arith.constant 0 : index
    %c0_11 = arith.constant 0 : index
    %11 = vector.load %arg5[%c0_9, %c0_10, %c0_11] : memref<1x128x128xf32, #tpu.memory_space<vmem>>, vector<1x128x128xf32>
    %12 = vector.shape_cast %11 : vector<1x128x128xf32> to vector<128x128xf32>
    %13 = vector.shape_cast %10 : vector<128x128xf32> to vector<1x128x128xf32>
    tpu.vector_store %arg5[%c0_9, %c0_10, %c0_11], %13 {strides = array<i32>} : memref<1x128x128xf32, #tpu.memory_space<vmem>>, vector<1x128x128xf32>,
    return
  }
  func.func @transform_0(%arg0: i32, %arg1: i32) -> (i32, i32, i32) {
    %c0_i32 = arith.constant 0 : i32
    %c0_i32_0 = arith.constant 0 : i32
    return %arg0, %arg1, %c0_i32 : i32, i32, i32
  }
  func.func @transform_1(%arg0: i32, %arg1: i32) -> (i32, i32, i32) {
    %c0_i32 = arith.constant 0 : i32
    %c0_i32_0 = arith.constant 0 : i32
    %c0_i32_1 = arith.constant 0 : i32
    return %arg0, %c0_i32, %c0_i32_0 : i32, i32, i32
  }
  func.func @transform_2(%arg0: i32, %arg1: i32) -> (i32, i32, i32) {
    %c0_i32 = arith.constant 0 : i32
    %c0_i32_0 = arith.constant 0 : i32
    %c0_i32_1 = arith.constant 0 : i32
    return %arg0, %c0_i32, %c0_i32_0 : i32, i32, i32
  }
  func.func @transform_3(%arg0: i32, %arg1: i32) -> (i32, i32, i32) {
    %c0_i32 = arith.constant 0 : i32
    %c0_i32_0 = arith.constant 0 : i32
    return %arg0, %arg1, %c0_i32 : i32, i32, i32
  }
}

module attributes {stable_mosaic.version = 11 : i64} {
  func.func @_matmul_bias_kernel(%arg0: i32, %arg1: i32, %arg2: memref<1x32x256xbf16, #tpu.memory_space<vmem>>, %arg3: memref<1x256x512xbf16, #tpu.memory_space<vmem>>, %arg4: memref<1x1x512xf32, #tpu.memory_space<vmem>>, %arg5: memref<1x32x512xf32, #tpu.memory_space<vmem>>) attributes {dimension_semantics = [#tpu.dimension_semantics<parallel>, #tpu.dimension_semantics<parallel>], iteration_bounds = array<i64: 2, 1>, scalar_prefetch = 0 : i64, scratch_operands = 0 : i64, tpu.core_type = #tpu.core_type<tc>, window_params = [{transform_indices = @transform_0, window_bounds = array<i64: 1, 32, 256>}, {transform_indices = @transform_1, window_bounds = array<i64: 1, 256, 512>}, {transform_indices = @transform_2, window_bounds = array<i64: 1, 1, 512>}, {transform_indices = @transform_3, window_bounds = array<i64: 1, 32, 512>}]} {
    %c0 = arith.constant 0 : index
    %c0_0 = arith.constant 0 : index
    %c0_1 = arith.constant 0 : index
    %0 = vector.load %arg2[%c0, %c0_0, %c0_1] : memref<1x32x256xbf16, #tpu.memory_space<vmem>>, vector<1x32x256xbf16>
    %1 = vector.shape_cast %0 : vector<1x32x256xbf16> to vector<32x256xbf16>
    %c0_2 = arith.constant 0 : index
    %c0_3 = arith.constant 0 : index
    %c0_4 = arith.constant 0 : index
    %2 = vector.load %arg3[%c0_2, %c0_3, %c0_4] : memref<1x256x512xbf16, #tpu.memory_space<vmem>>, vector<1x256x512xbf16>
    %3 = vector.shape_cast %2 : vector<1x256x512xbf16> to vector<256x512xbf16>
    %cst = arith.constant dense<0.000000e+00> : vector<32x512xf32>
    %4 = tpu.matmul %1, %3, %cst {dimension_numbers = #tpu.dot_dimension_numbers<[1], [0], [0], [1], [0, 0, 1, 1], [], []>} : vector<32x256xbf16>, vector<256x512xbf16>, vector<32x512xf32> -> vector<32x512xf32>
    %c0_5 = arith.constant 0 : index
    %c0_6 = arith.constant 0 : index
    %c0_7 = arith.constant 0 : index
    %5 = vector.load %arg4[%c0_5, %c0_6, %c0_7] : memref<1x1x512xf32, #tpu.memory_space<vmem>>, vector<1x1x512xf32>
    %6 = vector.shape_cast %5 : vector<1x1x512xf32> to vector<1x512xf32>
    %7 = vector.broadcast %6 : vector<1x512xf32> to vector<32x512xf32>
    %8 = arith.addf %4, %7 : vector<32x512xf32>
    %c0_8 = arith.constant 0 : index
    %c0_9 = arith.constant 0 : index
    %c0_10 = arith.constant 0 : index
    %9 = vector.load %arg5[%c0_8, %c0_9, %c0_10] : memref<1x32x512xf32, #tpu.memory_space<vmem>>, vector<1x32x512xf32>
    %10 = vector.shape_cast %9 : vector<1x32x512xf32> to vector<32x512xf32>
    %11 = vector.shape_cast %8 : vector<32x512xf32> to vector<1x32x512xf32>
    tpu.vector_store %arg5[%c0_8, %c0_9, %c0_10], %11 {strides = array<i32>} : memref<1x32x512xf32, #tpu.memory_space<vmem>>, vector<1x32x512xf32>,
    return
  }
  func.func @transform_0(%arg0: i32, %arg1: i32) -> (i32, i32, i32) {
    %c0_i32 = arith.constant 0 : i32
    %c0_i32_0 = arith.constant 0 : i32
    return %arg0, %arg1, %c0_i32 : i32, i32, i32
  }
  func.func @transform_1(%arg0: i32, %arg1: i32) -> (i32, i32, i32) {
    %c0_i32 = arith.constant 0 : i32
    %c0_i32_0 = arith.constant 0 : i32
    %c0_i32_1 = arith.constant 0 : i32
    return %arg0, %c0_i32, %c0_i32_0 : i32, i32, i32
  }
  func.func @transform_2(%arg0: i32, %arg1: i32) -> (i32, i32, i32) {
    %c0_i32 = arith.constant 0 : i32
    %c0_i32_0 = arith.constant 0 : i32
    %c0_i32_1 = arith.constant 0 : i32
    return %arg0, %c0_i32, %c0_i32_0 : i32, i32, i32
  }
  func.func @transform_3(%arg0: i32, %arg1: i32) -> (i32, i32, i32) {
    %c0_i32 = arith.constant 0 : i32
    %c0_i32_0 = arith.constant 0 : i32
    return %arg0, %arg1, %c0_i32 : i32, i32, i32
  }
}

module attributes {stable_mosaic.version = 11 : i64} {
  func.func @_matmul_bias_res_kernel(%arg0: i32, %arg1: i32, %arg2: memref<1x32x128xbf16, #tpu.memory_space<vmem>>, %arg3: memref<1x128x512xbf16, #tpu.memory_space<vmem>>, %arg4: memref<1x1x512xf32, #tpu.memory_space<vmem>>, %arg5: memref<1x32x512xf32, #tpu.memory_space<vmem>>, %arg6: memref<1x32x512xf32, #tpu.memory_space<vmem>>) attributes {dimension_semantics = [#tpu.dimension_semantics<parallel>, #tpu.dimension_semantics<parallel>], iteration_bounds = array<i64: 2, 1>, scalar_prefetch = 0 : i64, scratch_operands = 0 : i64, tpu.core_type = #tpu.core_type<tc>, window_params = [{transform_indices = @transform_0, window_bounds = array<i64: 1, 32, 128>}, {transform_indices = @transform_1, window_bounds = array<i64: 1, 128, 512>}, {transform_indices = @transform_2, window_bounds = array<i64: 1, 1, 512>}, {transform_indices = @transform_3, window_bounds = array<i64: 1, 32, 512>}, {transform_indices = @transform_4, window_bounds = array<i64: 1, 32, 512>}]} {
    %c0 = arith.constant 0 : index
    %c0_0 = arith.constant 0 : index
    %c0_1 = arith.constant 0 : index
    %0 = vector.load %arg2[%c0, %c0_0, %c0_1] : memref<1x32x128xbf16, #tpu.memory_space<vmem>>, vector<1x32x128xbf16>
    %1 = vector.shape_cast %0 : vector<1x32x128xbf16> to vector<32x128xbf16>
    %c0_2 = arith.constant 0 : index
    %c0_3 = arith.constant 0 : index
    %c0_4 = arith.constant 0 : index
    %2 = vector.load %arg3[%c0_2, %c0_3, %c0_4] : memref<1x128x512xbf16, #tpu.memory_space<vmem>>, vector<1x128x512xbf16>
    %3 = vector.shape_cast %2 : vector<1x128x512xbf16> to vector<128x512xbf16>
    %cst = arith.constant dense<0.000000e+00> : vector<32x512xf32>
    %4 = tpu.matmul %1, %3, %cst {dimension_numbers = #tpu.dot_dimension_numbers<[1], [0], [0], [1], [0, 0, 1, 1], [], []>} : vector<32x128xbf16>, vector<128x512xbf16>, vector<32x512xf32> -> vector<32x512xf32>
    %c0_5 = arith.constant 0 : index
    %c0_6 = arith.constant 0 : index
    %c0_7 = arith.constant 0 : index
    %5 = vector.load %arg4[%c0_5, %c0_6, %c0_7] : memref<1x1x512xf32, #tpu.memory_space<vmem>>, vector<1x1x512xf32>
    %6 = vector.shape_cast %5 : vector<1x1x512xf32> to vector<1x512xf32>
    %7 = vector.broadcast %6 : vector<1x512xf32> to vector<32x512xf32>
    %8 = arith.addf %4, %7 : vector<32x512xf32>
    %c0_8 = arith.constant 0 : index
    %c0_9 = arith.constant 0 : index
    %c0_10 = arith.constant 0 : index
    %9 = vector.load %arg5[%c0_8, %c0_9, %c0_10] : memref<1x32x512xf32, #tpu.memory_space<vmem>>, vector<1x32x512xf32>
    %10 = vector.shape_cast %9 : vector<1x32x512xf32> to vector<32x512xf32>
    %11 = arith.addf %8, %10 : vector<32x512xf32>
    %cst_11 = arith.constant 0.000000e+00 : f32
    %12 = vector.broadcast %cst_11 : f32 to vector<32x512xf32>
    %13 = arith.maximumf %11, %12 : vector<32x512xf32>
    %c0_12 = arith.constant 0 : index
    %c0_13 = arith.constant 0 : index
    %c0_14 = arith.constant 0 : index
    %14 = vector.load %arg6[%c0_12, %c0_13, %c0_14] : memref<1x32x512xf32, #tpu.memory_space<vmem>>, vector<1x32x512xf32>
    %15 = vector.shape_cast %14 : vector<1x32x512xf32> to vector<32x512xf32>
    %16 = vector.shape_cast %13 : vector<32x512xf32> to vector<1x32x512xf32>
    tpu.vector_store %arg6[%c0_12, %c0_13, %c0_14], %16 {strides = array<i32>} : memref<1x32x512xf32, #tpu.memory_space<vmem>>, vector<1x32x512xf32>,
    return
  }
  func.func @transform_0(%arg0: i32, %arg1: i32) -> (i32, i32, i32) {
    %c0_i32 = arith.constant 0 : i32
    %c0_i32_0 = arith.constant 0 : i32
    return %arg0, %arg1, %c0_i32 : i32, i32, i32
  }
  func.func @transform_1(%arg0: i32, %arg1: i32) -> (i32, i32, i32) {
    %c0_i32 = arith.constant 0 : i32
    %c0_i32_0 = arith.constant 0 : i32
    %c0_i32_1 = arith.constant 0 : i32
    return %arg0, %c0_i32, %c0_i32_0 : i32, i32, i32
  }
  func.func @transform_2(%arg0: i32, %arg1: i32) -> (i32, i32, i32) {
    %c0_i32 = arith.constant 0 : i32
    %c0_i32_0 = arith.constant 0 : i32
    %c0_i32_1 = arith.constant 0 : i32
    return %arg0, %c0_i32, %c0_i32_0 : i32, i32, i32
  }
  func.func @transform_3(%arg0: i32, %arg1: i32) -> (i32, i32, i32) {
    %c0_i32 = arith.constant 0 : i32
    %c0_i32_0 = arith.constant 0 : i32
    return %arg0, %arg1, %c0_i32 : i32, i32, i32
  }
  func.func @transform_4(%arg0: i32, %arg1: i32) -> (i32, i32, i32) {
    %c0_i32 = arith.constant 0 : i32
    %c0_i32_0 = arith.constant 0 : i32
    return %arg0, %arg1, %c0_i32 : i32, i32, i32
  }
}

module attributes {stable_mosaic.version = 11 : i64} {
  func.func @_matmul_bias_kernel(%arg0: i32, %arg1: i32, %arg2: memref<1x32x1152xbf16, #tpu.memory_space<vmem>>, %arg3: memref<1x1152x128xbf16, #tpu.memory_space<vmem>>, %arg4: memref<1x1x128xf32, #tpu.memory_space<vmem>>, %arg5: memref<1x32x128xf32, #tpu.memory_space<vmem>>) attributes {dimension_semantics = [#tpu.dimension_semantics<parallel>, #tpu.dimension_semantics<parallel>], iteration_bounds = array<i64: 2, 1>, scalar_prefetch = 0 : i64, scratch_operands = 0 : i64, tpu.core_type = #tpu.core_type<tc>, window_params = [{transform_indices = @transform_0, window_bounds = array<i64: 1, 32, 1152>}, {transform_indices = @transform_1, window_bounds = array<i64: 1, 1152, 128>}, {transform_indices = @transform_2, window_bounds = array<i64: 1, 1, 128>}, {transform_indices = @transform_3, window_bounds = array<i64: 1, 32, 128>}]} {
    %c0 = arith.constant 0 : index
    %c0_0 = arith.constant 0 : index
    %c0_1 = arith.constant 0 : index
    %0 = vector.load %arg2[%c0, %c0_0, %c0_1] : memref<1x32x1152xbf16, #tpu.memory_space<vmem>>, vector<1x32x1152xbf16>
    %1 = vector.shape_cast %0 : vector<1x32x1152xbf16> to vector<32x1152xbf16>
    %c0_2 = arith.constant 0 : index
    %c0_3 = arith.constant 0 : index
    %c0_4 = arith.constant 0 : index
    %2 = vector.load %arg3[%c0_2, %c0_3, %c0_4] : memref<1x1152x128xbf16, #tpu.memory_space<vmem>>, vector<1x1152x128xbf16>
    %3 = vector.shape_cast %2 : vector<1x1152x128xbf16> to vector<1152x128xbf16>
    %cst = arith.constant dense<0.000000e+00> : vector<32x128xf32>
    %4 = tpu.matmul %1, %3, %cst {dimension_numbers = #tpu.dot_dimension_numbers<[1], [0], [0], [1], [0, 0, 1, 1], [], []>} : vector<32x1152xbf16>, vector<1152x128xbf16>, vector<32x128xf32> -> vector<32x128xf32>
    %c0_5 = arith.constant 0 : index
    %c0_6 = arith.constant 0 : index
    %c0_7 = arith.constant 0 : index
    %5 = vector.load %arg4[%c0_5, %c0_6, %c0_7] : memref<1x1x128xf32, #tpu.memory_space<vmem>>, vector<1x1x128xf32>
    %6 = vector.shape_cast %5 : vector<1x1x128xf32> to vector<1x128xf32>
    %7 = vector.broadcast %6 : vector<1x128xf32> to vector<32x128xf32>
    %8 = arith.addf %4, %7 : vector<32x128xf32>
    %cst_8 = arith.constant 0.000000e+00 : f32
    %9 = vector.broadcast %cst_8 : f32 to vector<32x128xf32>
    %10 = arith.maximumf %8, %9 : vector<32x128xf32>
    %c0_9 = arith.constant 0 : index
    %c0_10 = arith.constant 0 : index
    %c0_11 = arith.constant 0 : index
    %11 = vector.load %arg5[%c0_9, %c0_10, %c0_11] : memref<1x32x128xf32, #tpu.memory_space<vmem>>, vector<1x32x128xf32>
    %12 = vector.shape_cast %11 : vector<1x32x128xf32> to vector<32x128xf32>
    %13 = vector.shape_cast %10 : vector<32x128xf32> to vector<1x32x128xf32>
    tpu.vector_store %arg5[%c0_9, %c0_10, %c0_11], %13 {strides = array<i32>} : memref<1x32x128xf32, #tpu.memory_space<vmem>>, vector<1x32x128xf32>,
    return
  }
  func.func @transform_0(%arg0: i32, %arg1: i32) -> (i32, i32, i32) {
    %c0_i32 = arith.constant 0 : i32
    %c0_i32_0 = arith.constant 0 : i32
    return %arg0, %arg1, %c0_i32 : i32, i32, i32
  }
  func.func @transform_1(%arg0: i32, %arg1: i32) -> (i32, i32, i32) {
    %c0_i32 = arith.constant 0 : i32
    %c0_i32_0 = arith.constant 0 : i32
    %c0_i32_1 = arith.constant 0 : i32
    return %arg0, %c0_i32, %c0_i32_0 : i32, i32, i32
  }
  func.func @transform_2(%arg0: i32, %arg1: i32) -> (i32, i32, i32) {
    %c0_i32 = arith.constant 0 : i32
    %c0_i32_0 = arith.constant 0 : i32
    %c0_i32_1 = arith.constant 0 : i32
    return %arg0, %c0_i32, %c0_i32_0 : i32, i32, i32
  }
  func.func @transform_3(%arg0: i32, %arg1: i32) -> (i32, i32, i32) {
    %c0_i32 = arith.constant 0 : i32
    %c0_i32_0 = arith.constant 0 : i32
    return %arg0, %arg1, %c0_i32 : i32, i32, i32
  }
}

module attributes {stable_mosaic.version = 11 : i64} {
  func.func @_matmul_bias_kernel(%arg0: i32, %arg1: i32, %arg2: memref<1x32x512xbf16, #tpu.memory_space<vmem>>, %arg3: memref<1x512x128xbf16, #tpu.memory_space<vmem>>, %arg4: memref<1x1x128xf32, #tpu.memory_space<vmem>>, %arg5: memref<1x32x128xf32, #tpu.memory_space<vmem>>) attributes {dimension_semantics = [#tpu.dimension_semantics<parallel>, #tpu.dimension_semantics<parallel>], iteration_bounds = array<i64: 2, 1>, scalar_prefetch = 0 : i64, scratch_operands = 0 : i64, tpu.core_type = #tpu.core_type<tc>, window_params = [{transform_indices = @transform_0, window_bounds = array<i64: 1, 32, 512>}, {transform_indices = @transform_1, window_bounds = array<i64: 1, 512, 128>}, {transform_indices = @transform_2, window_bounds = array<i64: 1, 1, 128>}, {transform_indices = @transform_3, window_bounds = array<i64: 1, 32, 128>}]} {
    %c0 = arith.constant 0 : index
    %c0_0 = arith.constant 0 : index
    %c0_1 = arith.constant 0 : index
    %0 = vector.load %arg2[%c0, %c0_0, %c0_1] : memref<1x32x512xbf16, #tpu.memory_space<vmem>>, vector<1x32x512xbf16>
    %1 = vector.shape_cast %0 : vector<1x32x512xbf16> to vector<32x512xbf16>
    %c0_2 = arith.constant 0 : index
    %c0_3 = arith.constant 0 : index
    %c0_4 = arith.constant 0 : index
    %2 = vector.load %arg3[%c0_2, %c0_3, %c0_4] : memref<1x512x128xbf16, #tpu.memory_space<vmem>>, vector<1x512x128xbf16>
    %3 = vector.shape_cast %2 : vector<1x512x128xbf16> to vector<512x128xbf16>
    %cst = arith.constant dense<0.000000e+00> : vector<32x128xf32>
    %4 = tpu.matmul %1, %3, %cst {dimension_numbers = #tpu.dot_dimension_numbers<[1], [0], [0], [1], [0, 0, 1, 1], [], []>} : vector<32x512xbf16>, vector<512x128xbf16>, vector<32x128xf32> -> vector<32x128xf32>
    %c0_5 = arith.constant 0 : index
    %c0_6 = arith.constant 0 : index
    %c0_7 = arith.constant 0 : index
    %5 = vector.load %arg4[%c0_5, %c0_6, %c0_7] : memref<1x1x128xf32, #tpu.memory_space<vmem>>, vector<1x1x128xf32>
    %6 = vector.shape_cast %5 : vector<1x1x128xf32> to vector<1x128xf32>
    %7 = vector.broadcast %6 : vector<1x128xf32> to vector<32x128xf32>
    %8 = arith.addf %4, %7 : vector<32x128xf32>
    %cst_8 = arith.constant 0.000000e+00 : f32
    %9 = vector.broadcast %cst_8 : f32 to vector<32x128xf32>
    %10 = arith.maximumf %8, %9 : vector<32x128xf32>
    %c0_9 = arith.constant 0 : index
    %c0_10 = arith.constant 0 : index
    %c0_11 = arith.constant 0 : index
    %11 = vector.load %arg5[%c0_9, %c0_10, %c0_11] : memref<1x32x128xf32, #tpu.memory_space<vmem>>, vector<1x32x128xf32>
    %12 = vector.shape_cast %11 : vector<1x32x128xf32> to vector<32x128xf32>
    %13 = vector.shape_cast %10 : vector<32x128xf32> to vector<1x32x128xf32>
    tpu.vector_store %arg5[%c0_9, %c0_10, %c0_11], %13 {strides = array<i32>} : memref<1x32x128xf32, #tpu.memory_space<vmem>>, vector<1x32x128xf32>,
    return
  }
  func.func @transform_0(%arg0: i32, %arg1: i32) -> (i32, i32, i32) {
    %c0_i32 = arith.constant 0 : i32
    %c0_i32_0 = arith.constant 0 : i32
    return %arg0, %arg1, %c0_i32 : i32, i32, i32
  }
  func.func @transform_1(%arg0: i32, %arg1: i32) -> (i32, i32, i32) {
    %c0_i32 = arith.constant 0 : i32
    %c0_i32_0 = arith.constant 0 : i32
    %c0_i32_1 = arith.constant 0 : i32
    return %arg0, %c0_i32, %c0_i32_0 : i32, i32, i32
  }
  func.func @transform_2(%arg0: i32, %arg1: i32) -> (i32, i32, i32) {
    %c0_i32 = arith.constant 0 : i32
    %c0_i32_0 = arith.constant 0 : i32
    %c0_i32_1 = arith.constant 0 : i32
    return %arg0, %c0_i32, %c0_i32_0 : i32, i32, i32
  }
  func.func @transform_3(%arg0: i32, %arg1: i32) -> (i32, i32, i32) {
    %c0_i32 = arith.constant 0 : i32
    %c0_i32_0 = arith.constant 0 : i32
    return %arg0, %arg1, %c0_i32 : i32, i32, i32
  }
}

</mosaic_0001>

<llo_original>
// kernel: triplet_net_forward.26
$region0: #{triplet_net_forward.26}
  #allocation0 [shape = 'u32[]', space=smem, size = 0x4, offset = 0x4, fixed_abs, tag = 'smem constant byte address 0x4 - core index']
  #allocation1 [shape = 'u32[144,128]{1,0:T(1,128)}', space=vmem, size = 0x12000, scoped, tag = 'internal scratch']
  %s0 = inlined_call_operand.vmem [shape: f32[256,128], index: 0, kind: input, shape index: {}]
  %s1 = inlined_call_operand.vmem [shape: f32[256,128], index: 1, kind: input, shape index: {}]
  %s2 = inlined_call_operand.vmem [shape: f32[256,128], index: 2, kind: input, shape index: {}]
  %s3 = inlined_call_operand.vmem [shape: f32[256,128], index: 3, kind: input, shape index: {}]
  %s4 = inlined_call_operand.vmem [shape: f32[256,128], index: 4, kind: input, shape index: {}]
  %s5 = inlined_call_operand.vmem [shape: f32[256,128], index: 5, kind: input, shape index: {}]
  %s6 = inlined_call_operand.vmem [shape: f32[256,128], index: 6, kind: input, shape index: {}]
  %s7 = inlined_call_operand.vmem [shape: f32[256,128], index: 7, kind: input, shape index: {}]
  %s8 = inlined_call_operand.vmem [shape: f32[256,128], index: 8, kind: input, shape index: {}]
  %s9 = inlined_call_operand.vmem [shape: f32[256,128], index: 9, kind: output, shape index: {}]
  %s10 = sld [smem:[#allocation0]]
  $region69: #{triplet_net_forward.26} parent=0
    _
  %s12 = ssub.s32 1, %s10
  %s13 = scalar_select 0, %s12, %s10
  loop: start=0, step=1, limit=4
  $region2: #{triplet_net_forward.26} parent=0 // loop_pre_header
    _
  $region3: #{triplet_net_forward.26} parent=0 // loop_header
    %s15 = sphi 0, %s19
    %p16 = scmp.ge.s32.totalorder %s15, 4
    %s25 = sphi 0, %s27
    %s28 = sphi 0, %s25
    %s29 = sphi 0, %s28
    %s45 = sphi 0, %s29
    %s51 = sphi 0, %s53
    %s54 = sphi 0, %s51
    %s55 = sphi 0, %s54
    %s71 = sphi 0, %s55
    %s77 = sphi 0, %s79
    %s80 = sphi 0, %s77
    %s81 = sphi 0, %s80
    %s97 = sphi 0, %s81
    %s103 = sphi 0, %s105
    %s106 = sphi 0, %s103
    %s107 = sphi 0, %s106
    %s123 = sphi 0, %s107
    %s129 = sphi 0, %s131
    %s132 = sphi 0, %s129
    %s133 = sphi 0, %s132
    %s149 = sphi 0, %s133
    %s155 = sphi 0, %s157
    %s158 = sphi 0, %s155
    %s159 = sphi 0, %s158
    %s175 = sphi 0, %s159
    %s181 = sphi 0, %s183
    %s184 = sphi 0, %s181
    %s185 = sphi 0, %s184
    %s201 = sphi 0, %s185
    %s207 = sphi 0, %s209
    %s210 = sphi 0, %s207
    %s211 = sphi 0, %s210
    %s227 = sphi 0, %s211
    %s233 = sphi 0, %s235
    %s236 = sphi 0, %s233
    %s237 = sphi 0, %s236
    %s253 = sphi 0, %s237
    %s259 = sphi 0, %s261
    %s262 = sphi 0, %s259
    %s263 = sphi 0, %s262
    %s279 = sphi 0, %s263
  $region4: #{triplet_net_forward.26} parent=0 // loop_header_branch
    %18 = sbr.rel (%p16) target = $region8
  $region5: #{triplet_net_forward.26} parent=0 // loop_body
    %s20 = ssub.s32 %s15, 1
    %s21 = ssub.s32 %s15, 2
    %s22 = sadd.s32 %s15, 1
    %s23 = ssub.s32 %s15, %s22
    %p24 = scmp.eq.s32.totalorder %s23, 0
    %s26 = sadd.s32 %s25, 1
    %s27 = scalar_select %p24, %s25, %s26
    %p30 = pneg %p24
    %p31 = scmp.eq.s32.totalorder %s15, 1
    %p32 = por %p30, %p31
    %p33 = scmp.ne.s32.totalorder %s25, %s28
    %p34 = scmp.eq.s32.totalorder %s15, 0
    %p35 = por %p33, %p34
    %p36 = scmp.ne.s32.totalorder %s25, %s28
    %p37 = scmp.eq.s32.totalorder %s20, 1
    %p38 = por %p36, %p37
    %p39 = scmp.ne.s32.totalorder %s28, %s29
    %p40 = scmp.eq.s32.totalorder %s20, 0
    %p41 = por %p39, %p40
    %p42 = scmp.ne.s32.totalorder %s28, %s29
    %p43 = scmp.eq.s32.totalorder %s21, 1
    %p44 = por %p42, %p43
    %p46 = scmp.ne.s32.totalorder %s29, %s45
    %p47 = scmp.eq.s32.totalorder %s21, 0
    %p48 = por %p46, %p47
    %s49 = ssub.s32 %s15, %s22
    %p50 = scmp.eq.s32.totalorder %s49, 0
    %s52 = sadd.s32 %s51, 1
    %s53 = scalar_select %p50, %s51, %s52
    %p56 = pneg %p50
    %p57 = scmp.eq.s32.totalorder %s15, 1
    %p58 = por %p56, %p57
    %p59 = scmp.ne.s32.totalorder %s51, %s54
    %p60 = scmp.eq.s32.totalorder %s15, 0
    %p61 = por %p59, %p60
    %p62 = scmp.ne.s32.totalorder %s51, %s54
    %p63 = scmp.eq.s32.totalorder %s20, 1
    %p64 = por %p62, %p63
    %p65 = scmp.ne.s32.totalorder %s54, %s55
    %p66 = scmp.eq.s32.totalorder %s20, 0
    %p67 = por %p65, %p66
    %p68 = scmp.ne.s32.totalorder %s54, %s55
    %p69 = scmp.eq.s32.totalorder %s21, 1
    %p70 = por %p68, %p69
    %p72 = scmp.ne.s32.totalorder %s55, %s71
    %p73 = scmp.eq.s32.totalorder %s21, 0
    %p74 = por %p72, %p73
    %s75 = ssub.s32 %s15, %s22
    %p76 = scmp.eq.s32.totalorder %s75, 0
    %s78 = sadd.s32 %s77, 1
    %s79 = scalar_select %p76, %s77, %s78
    %p82 = pneg %p76
    %p83 = scmp.eq.s32.totalorder %s15, 1
    %p84 = por %p82, %p83
    %p85 = scmp.ne.s32.totalorder %s77, %s80
    %p86 = scmp.eq.s32.totalorder %s15, 0
    %p87 = por %p85, %p86
    %p88 = scmp.ne.s32.totalorder %s77, %s80
    %p89 = scmp.eq.s32.totalorder %s20, 1
    %p90 = por %p88, %p89
    %p91 = scmp.ne.s32.totalorder %s80, %s81
    %p92 = scmp.eq.s32.totalorder %s20, 0
    %p93 = por %p91, %p92
    %p94 = scmp.ne.s32.totalorder %s80, %s81
    %p95 = scmp.eq.s32.totalorder %s21, 1
    %p96 = por %p94, %p95
    %p98 = scmp.ne.s32.totalorder %s81, %s97
    %p99 = scmp.eq.s32.totalorder %s21, 0
    %p100 = por %p98, %p99
    %s101 = ssub.s32 %s15, %s22
    %p102 = scmp.eq.s32.totalorder %s101, 0
    %s104 = sadd.s32 %s103, 1
    %s105 = scalar_select %p102, %s103, %s104
    %p108 = pneg %p102
    %p109 = scmp.eq.s32.totalorder %s15, 1
    %p110 = por %p108, %p109
    %p111 = scmp.ne.s32.totalorder %s103, %s106
    %p112 = scmp.eq.s32.totalorder %s15, 0
    %p113 = por %p111, %p112
    %p114 = scmp.ne.s32.totalorder %s103, %s106
    %p115 = scmp.eq.s32.totalorder %s20, 1
    %p116 = por %p114, %p115
    %p117 = scmp.ne.s32.totalorder %s106, %s107
    %p118 = scmp.eq.s32.totalorder %s20, 0
    %p119 = por %p117, %p118
    %p120 = scmp.ne.s32.totalorder %s106, %s107
    %p121 = scmp.eq.s32.totalorder %s21, 1
    %p122 = por %p120, %p121
    %p124 = scmp.ne.s32.totalorder %s107, %s123
    %p125 = scmp.eq.s32.totalorder %s21, 0
    %p126 = por %p124, %p125
    %s127 = ssub.s32 %s15, %s22
    %p128 = scmp.eq.s32.totalorder %s127, 0
    %s130 = sadd.s32 %s129, 1
    %s131 = scalar_select %p128, %s129, %s130
    %p134 = pneg %p128
    %p135 = scmp.eq.s32.totalorder %s15, 1
    %p136 = por %p134, %p135
    %p137 = scmp.ne.s32.totalorder %s129, %s132
    %p138 = scmp.eq.s32.totalorder %s15, 0
    %p139 = por %p137, %p138
    %p140 = scmp.ne.s32.totalorder %s129, %s132
    %p141 = scmp.eq.s32.totalorder %s20, 1
    %p142 = por %p140, %p141
    %p143 = scmp.ne.s32.totalorder %s132, %s133
    %p144 = scmp.eq.s32.totalorder %s20, 0
    %p145 = por %p143, %p144
    %p146 = scmp.ne.s32.totalorder %s132, %s133
    %p147 = scmp.eq.s32.totalorder %s21, 1
    %p148 = por %p146, %p147
    %p150 = scmp.ne.s32.totalorder %s133, %s149
    %p151 = scmp.eq.s32.totalorder %s21, 0
    %p152 = por %p150, %p151
    %s153 = ssub.s32 %s15, %s22
    %p154 = scmp.eq.s32.totalorder %s153, 0
    %s156 = sadd.s32 %s155, 1
    %s157 = scalar_select %p154, %s155, %s156
    %p160 = pneg %p154
    %p161 = scmp.eq.s32.totalorder %s15, 1
    %p162 = por %p160, %p161
    %p163 = scmp.ne.s32.totalorder %s155, %s158
    %p164 = scmp.eq.s32.totalorder %s15, 0
    %p165 = por %p163, %p164
    %p166 = scmp.ne.s32.totalorder %s155, %s158
    %p167 = scmp.eq.s32.totalorder %s20, 1
    %p168 = por %p166, %p167
    %p169 = scmp.ne.s32.totalorder %s158, %s159
    %p170 = scmp.eq.s32.totalorder %s20, 0
    %p171 = por %p169, %p170
    %p172 = scmp.ne.s32.totalorder %s158, %s159
    %p173 = scmp.eq.s32.totalorder %s21, 1
    %p174 = por %p172, %p173
    %p176 = scmp.ne.s32.totalorder %s159, %s175
    %p177 = scmp.eq.s32.totalorder %s21, 0
    %p178 = por %p176, %p177
    %s179 = ssub.s32 %s15, %s22
    %p180 = scmp.eq.s32.totalorder %s179, 0
    %s182 = sadd.s32 %s181, 1
    %s183 = scalar_select %p180, %s181, %s182
    %p186 = pneg %p180
    %p187 = scmp.eq.s32.totalorder %s15, 1
    %p188 = por %p186, %p187
    %p189 = scmp.ne.s32.totalorder %s181, %s184
    %p190 = scmp.eq.s32.totalorder %s15, 0
    %p191 = por %p189, %p190
    %p192 = scmp.ne.s32.totalorder %s181, %s184
    %p193 = scmp.eq.s32.totalorder %s20, 1
    %p194 = por %p192, %p193
    %p195 = scmp.ne.s32.totalorder %s184, %s185
    %p196 = scmp.eq.s32.totalorder %s20, 0
    %p197 = por %p195, %p196
    %p198 = scmp.ne.s32.totalorder %s184, %s185
    %p199 = scmp.eq.s32.totalorder %s21, 1
    %p200 = por %p198, %p199
    %p202 = scmp.ne.s32.totalorder %s185, %s201
    %p203 = scmp.eq.s32.totalorder %s21, 0
    %p204 = por %p202, %p203
    %s205 = ssub.s32 %s15, %s22
    %p206 = scmp.eq.s32.totalorder %s205, 0
    %s208 = sadd.s32 %s207, 1
    %s209 = scalar_select %p206, %s207, %s208
    %p212 = pneg %p206
    %p213 = scmp.eq.s32.totalorder %s15, 1
    %p214 = por %p212, %p213
    %p215 = scmp.ne.s32.totalorder %s207, %s210
    %p216 = scmp.eq.s32.totalorder %s15, 0
    %p217 = por %p215, %p216
    %p218 = scmp.ne.s32.totalorder %s207, %s210
    %p219 = scmp.eq.s32.totalorder %s20, 1
    %p220 = por %p218, %p219
    %p221 = scmp.ne.s32.totalorder %s210, %s211
    %p222 = scmp.eq.s32.totalorder %s20, 0
    %p223 = por %p221, %p222
    %p224 = scmp.ne.s32.totalorder %s210, %s211
    %p225 = scmp.eq.s32.totalorder %s21, 1
    %p226 = por %p224, %p225
    %p228 = scmp.ne.s32.totalorder %s211, %s227
    %p229 = scmp.eq.s32.totalorder %s21, 0
    %p230 = por %p228, %p229
    %s231 = ssub.s32 %s15, %s22
    %p232 = scmp.eq.s32.totalorder %s231, 0
    %s234 = sadd.s32 %s233, 1
    %s235 = scalar_select %p232, %s233, %s234
    %p238 = pneg %p232
    %p239 = scmp.eq.s32.totalorder %s15, 1
    %p240 = por %p238, %p239
    %p241 = scmp.ne.s32.totalorder %s233, %s236
    %p242 = scmp.eq.s32.totalorder %s15, 0
    %p243 = por %p241, %p242
    %p244 = scmp.ne.s32.totalorder %s233, %s236
    %p245 = scmp.eq.s32.totalorder %s20, 1
    %p246 = por %p244, %p245
    %p247 = scmp.ne.s32.totalorder %s236, %s237
    %p248 = scmp.eq.s32.totalorder %s20, 0
    %p249 = por %p247, %p248
    %p250 = scmp.ne.s32.totalorder %s236, %s237
    %p251 = scmp.eq.s32.totalorder %s21, 1
    %p252 = por %p250, %p251
    %p254 = scmp.ne.s32.totalorder %s237, %s253
    %p255 = scmp.eq.s32.totalorder %s21, 0
    %p256 = por %p254, %p255
    %s257 = ssub.s32 %s15, %s22
    %p258 = scmp.eq.s32.totalorder %s257, 0
    %s260 = sadd.s32 %s259, 1
    %s261 = scalar_select %p258, %s259, %s260
    %p264 = pneg %p258
    %p265 = scmp.eq.s32.totalorder %s15, 1
    %p266 = por %p264, %p265
    %p267 = scmp.ne.s32.totalorder %s259, %s262
    %p268 = scmp.eq.s32.totalorder %s15, 0
    %p269 = por %p267, %p268
    %p270 = scmp.ne.s32.totalorder %s259, %s262
    %p271 = scmp.eq.s32.totalorder %s20, 1
    %p272 = por %p270, %p271
    %p273 = scmp.ne.s32.totalorder %s262, %s263
    %p274 = scmp.eq.s32.totalorder %s20, 0
    %p275 = por %p273, %p274
    %p276 = scmp.ne.s32.totalorder %s262, %s263
    %p277 = scmp.eq.s32.totalorder %s21, 1
    %p278 = por %p276, %p277
    %p280 = scmp.ne.s32.totalorder %s263, %s279
    %p281 = scmp.eq.s32.totalorder %s21, 0
    %p282 = por %p280, %p281
    %p283 = scmp.le.s32.totalorder 1, %s15
    %p284 = scmp.lt.s32.totalorder %s15, 3
    %p285 = pnand %p283, %p284
    %p286 = pneg %p285
    // Predicated region
    $region9: #{triplet_net_forward.26} parent=5 // pred_check
      _
    $region10: #{triplet_net_forward.26} parent=5 // pred_check_branch
      %288 = sbr.rel (%p285) target = $region12
    $region11: #{triplet_net_forward.26} parent=5 // pred_region
      %s289 = ssub.s32 %s15, 1
    $region12: #{triplet_net_forward.26} parent=5 // pred_fallthru
      _
    %p290 = scmp.lt.s32.totalorder %s15, 2
    // Predicated region
    $region13: #{triplet_net_forward.26} parent=5 // pred_check
      %p291 = pneg %p290
    $region14: #{triplet_net_forward.26} parent=5 // pred_check_branch
      %293 = sbr.rel (%p291) target = $region16
    $region15: #{triplet_net_forward.26} parent=5 // pred_region
      // Predicated region
      $region17: #{triplet_net_forward.26} parent=15 // pred_check
        %p294 = pneg %p35
      $region18: #{triplet_net_forward.26} parent=15 // pred_check_branch
        %296 = sbr.rel (%p294) target = $region20
      $region19: #{triplet_net_forward.26} parent=15 // pred_region
        %s297 = smul.u32 16, %s15
        %p298 = scmp.lt.s32.totalorder %s297, 31
        %s299 = scalar_select %p298, %s297, 31
        %s300 = smul.addr %s299, 8
        %s301 = scalar_lea.vmem %s0, %s300
        %s302 = smul.u32 16, %s15
      $region20: #{triplet_net_forward.26} parent=15 // pred_fallthru
        _
      // Predicated region
      $region21: #{triplet_net_forward.26} parent=15 // pred_check
        %p303 = pneg %p61
      $region22: #{triplet_net_forward.26} parent=15 // pred_check_branch
        %305 = sbr.rel (%p303) target = $region24
      $region23: #{triplet_net_forward.26} parent=15 // pred_region
        %s306 = smul.u32 16, %s15
        %p307 = scmp.lt.s32.totalorder %s306, 31
        %s308 = scalar_select %p307, %s306, 31
        %s309 = smul.addr %s308, 8
        %s310 = scalar_lea.vmem %s1, %s309
        %s311 = smul.u32 16, %s15
      $region24: #{triplet_net_forward.26} parent=15 // pred_fallthru
        _
      // Predicated region
      $region25: #{triplet_net_forward.26} parent=15 // pred_check
        %p312 = pneg %p87
      $region26: #{triplet_net_forward.26} parent=15 // pred_check_branch
        %314 = sbr.rel (%p312) target = $region28
      $region27: #{triplet_net_forward.26} parent=15 // pred_region
        %s315 = smul.u32 16, %s15
        %p316 = scmp.lt.s32.totalorder %s315, 31
        %s317 = scalar_select %p316, %s315, 31
        %s318 = smul.addr %s317, 8
        %s319 = scalar_lea.vmem %s2, %s318
        %s320 = smul.u32 16, %s15
      $region28: #{triplet_net_forward.26} parent=15 // pred_fallthru
        _
      // Predicated region
      $region29: #{triplet_net_forward.26} parent=15 // pred_check
        %p321 = pneg %p113
      $region30: #{triplet_net_forward.26} parent=15 // pred_check_branch
        %323 = sbr.rel (%p321) target = $region32
      $region31: #{triplet_net_forward.26} parent=15 // pred_region
        %s324 = smul.u32 16, %s15
        %p325 = scmp.lt.s32.totalorder %s324, 31
        %s326 = scalar_select %p325, %s324, 31
        %s327 = smul.addr %s326, 8
        %s328 = scalar_lea.vmem %s3, %s327
        %s329 = smul.u32 16, %s15
      $region32: #{triplet_net_forward.26} parent=15 // pred_fallthru
        _
      // Predicated region
      $region33: #{triplet_net_forward.26} parent=15 // pred_check
        %p330 = pneg %p139
      $region34: #{triplet_net_forward.26} parent=15 // pred_check_branch
        %332 = sbr.rel (%p330) target = $region36
      $region35: #{triplet_net_forward.26} parent=15 // pred_region
        %s333 = smul.u32 16, %s15
        %p334 = scmp.lt.s32.totalorder %s333, 31
        %s335 = scalar_select %p334, %s333, 31
        %s336 = smul.addr %s335, 8
        %s337 = scalar_lea.vmem %s4, %s336
        %s338 = smul.u32 16, %s15
      $region36: #{triplet_net_forward.26} parent=15 // pred_fallthru
        _
      // Predicated region
      $region37: #{triplet_net_forward.26} parent=15 // pred_check
        %p339 = pneg %p165
      $region38: #{triplet_net_forward.26} parent=15 // pred_check_branch
        %341 = sbr.rel (%p339) target = $region40
      $region39: #{triplet_net_forward.26} parent=15 // pred_region
        %s342 = smul.u32 16, %s15
        %p343 = scmp.lt.s32.totalorder %s342, 31
        %s344 = scalar_select %p343, %s342, 31
        %s345 = smul.addr %s344, 8
        %s346 = scalar_lea.vmem %s5, %s345
        %s347 = smul.u32 16, %s15
      $region40: #{triplet_net_forward.26} parent=15 // pred_fallthru
        _
      // Predicated region
      $region41: #{triplet_net_forward.26} parent=15 // pred_check
        %p348 = pneg %p191
      $region42: #{triplet_net_forward.26} parent=15 // pred_check_branch
        %350 = sbr.rel (%p348) target = $region44
      $region43: #{triplet_net_forward.26} parent=15 // pred_region
        %s351 = smul.u32 16, %s15
        %p352 = scmp.lt.s32.totalorder %s351, 31
        %s353 = scalar_select %p352, %s351, 31
        %s354 = smul.addr %s353, 8
        %s355 = scalar_lea.vmem %s6, %s354
        %s356 = smul.u32 16, %s15
      $region44: #{triplet_net_forward.26} parent=15 // pred_fallthru
        _
      // Predicated region
      $region45: #{triplet_net_forward.26} parent=15 // pred_check
        %p357 = pneg %p217
      $region46: #{triplet_net_forward.26} parent=15 // pred_check_branch
        %359 = sbr.rel (%p357) target = $region48
      $region47: #{triplet_net_forward.26} parent=15 // pred_region
        %s360 = smul.u32 16, %s15
        %p361 = scmp.lt.s32.totalorder %s360, 31
        %s362 = scalar_select %p361, %s360, 31
        %s363 = smul.addr %s362, 8
        %s364 = scalar_lea.vmem %s7, %s363
        %s365 = smul.u32 16, %s15
      $region48: #{triplet_net_forward.26} parent=15 // pred_fallthru
        _
      // Predicated region
      $region49: #{triplet_net_forward.26} parent=15 // pred_check
        %p366 = pneg %p243
      $region50: #{triplet_net_forward.26} parent=15 // pred_check_branch
        %368 = sbr.rel (%p366) target = $region52
      $region51: #{triplet_net_forward.26} parent=15 // pred_region
        %s369 = smul.u32 16, %s15
        %p370 = scmp.lt.s32.totalorder %s369, 31
        %s371 = scalar_select %p370, %s369, 31
        %s372 = smul.addr %s371, 8
        %s373 = scalar_lea.vmem %s8, %s372
        %s374 = smul.u32 16, %s15
      $region52: #{triplet_net_forward.26} parent=15 // pred_fallthru
        _
    $region16: #{triplet_net_forward.26} parent=5 // pred_fallthru
      _
    %p375 = scmp.le.s32.totalorder 1, %s15
    %p376 = scmp.lt.s32.totalorder %s15, 3
    %p377 = pnand %p375, %p376
    %p378 = pneg %p377
    // Predicated region
    $region53: #{triplet_net_forward.26} parent=5 // pred_check
      _
    $region54: #{triplet_net_forward.26} parent=5 // pred_check_branch
      %380 = sbr.rel (%p377) target = $region56
    $region55: #{triplet_net_forward.26} parent=5 // pred_region
      %s381 = ssub.s32 %s15, 1
      %s382 = smul.u32 16, %s20
      %p383 = scmp.lt.s32.totalorder %s382, 31
      %s384 = scalar_select %p383, %s382, 31
      %s385 = smul.addr %s384, 8
      %s386 = scalar_lea.vmem %s0, %s385
      %p387 = pneg %p41
      %p388 = pneg %p38
      %s389 = smul.u32 16, %s20
      %p390 = scmp.lt.s32.totalorder %s389, 31
      %s391 = scalar_select %p390, %s389, 31
      %s392 = smul.addr %s391, 8
      %s393 = scalar_lea.vmem %s1, %s392
      %p394 = pneg %p67
      %p395 = pneg %p64
      %s396 = smul.u32 16, %s20
      %p397 = scmp.lt.s32.totalorder %s396, 31
      %s398 = scalar_select %p397, %s396, 31
      %s399 = smul.addr %s398, 8
      %s400 = scalar_lea.vmem %s2, %s399
      %p401 = pneg %p93
      %p402 = pneg %p90
      %s403 = smul.u32 16, %s20
      %p404 = scmp.lt.s32.totalorder %s403, 31
      %s405 = scalar_select %p404, %s403, 31
      %s406 = smul.addr %s405, 8
      %s407 = scalar_lea.vmem %s3, %s406
      %p408 = pneg %p119
      %p409 = pneg %p116
      %s410 = smul.u32 16, %s20
      %p411 = scmp.lt.s32.totalorder %s410, 31
      %s412 = scalar_select %p411, %s410, 31
      %s413 = smul.addr %s412, 8
      %s414 = scalar_lea.vmem %s4, %s413
      %p415 = pneg %p145
      %p416 = pneg %p142
      %s417 = smul.u32 16, %s20
      %p418 = scmp.lt.s32.totalorder %s417, 31
      %s419 = scalar_select %p418, %s417, 31
      %s420 = smul.addr %s419, 8
      %s421 = scalar_lea.vmem %s5, %s420
      %p422 = pneg %p171
      %p423 = pneg %p168
      %s424 = smul.u32 16, %s20
      %p425 = scmp.lt.s32.totalorder %s424, 31
      %s426 = scalar_select %p425, %s424, 31
      %s427 = smul.addr %s426, 8
      %s428 = scalar_lea.vmem %s6, %s427
      %p429 = pneg %p197
      %p430 = pneg %p194
      %s431 = smul.u32 16, %s20
      %p432 = scmp.lt.s32.totalorder %s431, 31
      %s433 = scalar_select %p432, %s431, 31
      %s434 = smul.addr %s433, 8
      %s435 = scalar_lea.vmem %s7, %s434
      %p436 = pneg %p223
      %p437 = pneg %p220
      %s438 = smul.u32 16, %s20
      %p439 = scmp.lt.s32.totalorder %s438, 31
      %s440 = scalar_select %p439, %s438, 31
      %s441 = smul.addr %s440, 8
      %s442 = scalar_lea.vmem %s8, %s441
      %p443 = pneg %p249
      %p444 = pneg %p246
      %p445 = pneg %p275
      %p446 = pneg %p272
      %s447 = smul.u32 16, %s20
      %p448 = scmp.lt.s32.totalorder %s447, 31
      %s449 = scalar_select %p448, %s447, 31
      %s450 = smul.addr %s449, 8
      %s451 = scalar_lea.vmem %s9, %s450
      %s452 = smul.u32 16, %s20
      %p453 = scmp.lt.s32.totalorder %s452, 31
      %s454 = scalar_select %p453, %s452, 31
      %s455 = smul.addr %s454, 8
      %s456 = scalar_lea.vmem %s0, %s455
      %s457 = smul.u32 16, %s20
      %s458 = smul.u32 16, %s20
      %p459 = scmp.lt.s32.totalorder %s458, 31
      %s460 = scalar_select %p459, %s458, 31
      %s461 = smul.addr %s460, 8
      %s462 = scalar_lea.vmem %s1, %s461
      %s463 = smul.u32 16, %s20
      %s464 = smul.u32 16, %s20
      %p465 = scmp.lt.s32.totalorder %s464, 31
      %s466 = scalar_select %p465, %s464, 31
      %s467 = smul.addr %s466, 8
      %s468 = scalar_lea.vmem %s2, %s467
      %s469 = smul.u32 16, %s20
      %s470 = smul.u32 16, %s20
      %p471 = scmp.lt.s32.totalorder %s470, 31
      %s472 = scalar_select %p471, %s470, 31
      %s473 = smul.addr %s472, 8
      %s474 = scalar_lea.vmem %s3, %s473
      %s475 = smul.u32 16, %s20
      %s476 = smul.u32 16, %s20
      %p477 = scmp.lt.s32.totalorder %s476, 31
      %s478 = scalar_select %p477, %s476, 31
      %s479 = smul.addr %s478, 8
      %s480 = scalar_lea.vmem %s4, %s479
      %s481 = smul.u32 16, %s20
      %s482 = smul.u32 16, %s20
      %p483 = scmp.lt.s32.totalorder %s482, 31
      %s484 = scalar_select %p483, %s482, 31
      %s485 = smul.addr %s484, 8
      %s486 = scalar_lea.vmem %s5, %s485
      %s487 = smul.u32 16, %s20
      %s488 = smul.u32 16, %s20
      %p489 = scmp.lt.s32.totalorder %s488, 31
      %s490 = scalar_select %p489, %s488, 31
      %s491 = smul.addr %s490, 8
      %s492 = scalar_lea.vmem %s6, %s491
      %s493 = smul.u32 16, %s20
      %s494 = smul.u32 16, %s20
      %p495 = scmp.lt.s32.totalorder %s494, 31
      %s496 = scalar_select %p495, %s494, 31
      %s497 = smul.addr %s496, 8
      %s498 = scalar_lea.vmem %s7, %s497
      %s499 = smul.u32 16, %s20
      %s500 = smul.u32 16, %s20
      %p501 = scmp.lt.s32.totalorder %s500, 31
      %s502 = scalar_select %p501, %s500, 31
      %s503 = smul.addr %s502, 8
      %s504 = scalar_lea.vmem %s8, %s503
      %s505 = smul.u32 16, %s20
      %s506 = smul.u32 16, %s20
      %p507 = scmp.lt.s32.totalorder %s506, 31
      %s508 = scalar_select %p507, %s506, 31
      %s509 = smul.addr %s508, 8
      %s510 = scalar_lea.vmem %s9, %s509
      %s511 = smul.u32 16, %s20
      %v512 = vld [vmem:[%s456] sm:$0xff]
      %v513 = vld [vmem:[%s456 + $0x8] sm:$0xff]
      %v514 = vld [vmem:[%s456 + $0x10] sm:$0xff]
      %v515 = vld [vmem:[%s456 + $0x18] sm:$0xff]
      %v516 = vld [vmem:[%s456 + $0x20] sm:$0xff]
      %v517 = vld [vmem:[%s456 + $0x28] sm:$0xff]
      %v518 = vld [vmem:[%s456 + $0x30] sm:$0xff]
      %v519 = vld [vmem:[%s456 + $0x38] sm:$0xff]
      %v520 = vld [vmem:[%s456 + $0x40] sm:$0xff]
      %v521 = vld [vmem:[%s456 + $0x48] sm:$0xff]
      %v522 = vld [vmem:[%s456 + $0x50] sm:$0xff]
      %v523 = vld [vmem:[%s456 + $0x58] sm:$0xff]
      %v524 = vld [vmem:[%s456 + $0x60] sm:$0xff]
      %v525 = vld [vmem:[%s456 + $0x68] sm:$0xff]
      %v526 = vld [vmem:[%s456 + $0x70] sm:$0xff]
      %v527 = vld [vmem:[%s456 + $0x78] sm:$0xff]
      %v528 = vld [vmem:[%s462] sm:$0xff]
      %v529 = vld [vmem:[%s462 + $0x8] sm:$0xff]
      %v530 = vld [vmem:[%s462 + $0x10] sm:$0xff]
      %v531 = vld [vmem:[%s462 + $0x18] sm:$0xff]
      %v532 = vld [vmem:[%s462 + $0x20] sm:$0xff]
      %v533 = vld [vmem:[%s462 + $0x28] sm:$0xff]
      %v534 = vld [vmem:[%s462 + $0x30] sm:$0xff]
      %v535 = vld [vmem:[%s462 + $0x38] sm:$0xff]
      %v536 = vld [vmem:[%s462 + $0x40] sm:$0xff]
      %v537 = vld [vmem:[%s462 + $0x48] sm:$0xff]
      %v538 = vld [vmem:[%s462 + $0x50] sm:$0xff]
      %v539 = vld [vmem:[%s462 + $0x58] sm:$0xff]
      %v540 = vld [vmem:[%s462 + $0x60] sm:$0xff]
      %v541 = vld [vmem:[%s462 + $0x68] sm:$0xff]
      %v542 = vld [vmem:[%s462 + $0x70] sm:$0xff]
      %v543 = vld [vmem:[%s462 + $0x78] sm:$0xff]
      %v544 = vmax.f32 %v512, %v528
      %v545 = vmax.f32 %v513, %v529
      %v546 = vmax.f32 %v514, %v530
      %v547 = vmax.f32 %v515, %v531
      %v548 = vmax.f32 %v516, %v532
      %v549 = vmax.f32 %v517, %v533
      %v550 = vmax.f32 %v518, %v534
      %v551 = vmax.f32 %v519, %v535
      %v552 = vmax.f32 %v520, %v536
      %v553 = vmax.f32 %v521, %v537
      %v554 = vmax.f32 %v522, %v538
      %v555 = vmax.f32 %v523, %v539
      %v556 = vmax.f32 %v524, %v540
      %v557 = vmax.f32 %v525, %v541
      %v558 = vmax.f32 %v526, %v542
      %v559 = vmax.f32 %v527, %v543
      %v560 = vld [vmem:[%s468] sm:$0xff]
      %v561 = vld [vmem:[%s468 + $0x8] sm:$0xff]
      %v562 = vld [vmem:[%s468 + $0x10] sm:$0xff]
      %v563 = vld [vmem:[%s468 + $0x18] sm:$0xff]
      %v564 = vld [vmem:[%s468 + $0x20] sm:$0xff]
      %v565 = vld [vmem:[%s468 + $0x28] sm:$0xff]
      %v566 = vld [vmem:[%s468 + $0x30] sm:$0xff]
      %v567 = vld [vmem:[%s468 + $0x38] sm:$0xff]
      %v568 = vld [vmem:[%s468 + $0x40] sm:$0xff]
      %v569 = vld [vmem:[%s468 + $0x48] sm:$0xff]
      %v570 = vld [vmem:[%s468 + $0x50] sm:$0xff]
      %v571 = vld [vmem:[%s468 + $0x58] sm:$0xff]
      %v572 = vld [vmem:[%s468 + $0x60] sm:$0xff]
      %v573 = vld [vmem:[%s468 + $0x68] sm:$0xff]
      %v574 = vld [vmem:[%s468 + $0x70] sm:$0xff]
      %v575 = vld [vmem:[%s468 + $0x78] sm:$0xff]
      %v576 = vmax.f32 %v544, %v560
      %v577 = vmax.f32 %v545, %v561
      %v578 = vmax.f32 %v546, %v562
      %v579 = vmax.f32 %v547, %v563
      %v580 = vmax.f32 %v548, %v564
      %v581 = vmax.f32 %v549, %v565
      %v582 = vmax.f32 %v550, %v566
      %v583 = vmax.f32 %v551, %v567
      %v584 = vmax.f32 %v552, %v568
      %v585 = vmax.f32 %v553, %v569
      %v586 = vmax.f32 %v554, %v570
      %v587 = vmax.f32 %v555, %v571
      %v588 = vmax.f32 %v556, %v572
      %v589 = vmax.f32 %v557, %v573
      %v590 = vmax.f32 %v558, %v574
      %v591 = vmax.f32 %v559, %v575
      %v592 = vld [vmem:[%s474] sm:$0xff]
      %v593 = vld [vmem:[%s474 + $0x8] sm:$0xff]
      %v594 = vld [vmem:[%s474 + $0x10] sm:$0xff]
      %v595 = vld [vmem:[%s474 + $0x18] sm:$0xff]
      %v596 = vld [vmem:[%s474 + $0x20] sm:$0xff]
      %v597 = vld [vmem:[%s474 + $0x28] sm:$0xff]
      %v598 = vld [vmem:[%s474 + $0x30] sm:$0xff]
      %v599 = vld [vmem:[%s474 + $0x38] sm:$0xff]
      %v600 = vld [vmem:[%s474 + $0x40] sm:$0xff]
      %v601 = vld [vmem:[%s474 + $0x48] sm:$0xff]
      %v602 = vld [vmem:[%s474 + $0x50] sm:$0xff]
      %v603 = vld [vmem:[%s474 + $0x58] sm:$0xff]
      %v604 = vld [vmem:[%s474 + $0x60] sm:$0xff]
      %v605 = vld [vmem:[%s474 + $0x68] sm:$0xff]
      %v606 = vld [vmem:[%s474 + $0x70] sm:$0xff]
      %v607 = vld [vmem:[%s474 + $0x78] sm:$0xff]
      %v608 = vmax.f32 %v576, %v592
      %v609 = vmax.f32 %v577, %v593
      %v610 = vmax.f32 %v578, %v594
      %v611 = vmax.f32 %v579, %v595
      %v612 = vmax.f32 %v580, %v596
      %v613 = vmax.f32 %v581, %v597
      %v614 = vmax.f32 %v582, %v598
      %v615 = vmax.f32 %v583, %v599
      %v616 = vmax.f32 %v584, %v600
      %v617 = vmax.f32 %v585, %v601
      %v618 = vmax.f32 %v586, %v602
      %v619 = vmax.f32 %v587, %v603
      %v620 = vmax.f32 %v588, %v604
      %v621 = vmax.f32 %v589, %v605
      %v622 = vmax.f32 %v590, %v606
      %v623 = vmax.f32 %v591, %v607
      %v624 = vld [vmem:[%s480] sm:$0xff]
      %v625 = vld [vmem:[%s480 + $0x8] sm:$0xff]
      %v626 = vld [vmem:[%s480 + $0x10] sm:$0xff]
      %v627 = vld [vmem:[%s480 + $0x18] sm:$0xff]
      %v628 = vld [vmem:[%s480 + $0x20] sm:$0xff]
      %v629 = vld [vmem:[%s480 + $0x28] sm:$0xff]
      %v630 = vld [vmem:[%s480 + $0x30] sm:$0xff]
      %v631 = vld [vmem:[%s480 + $0x38] sm:$0xff]
      %v632 = vld [vmem:[%s480 + $0x40] sm:$0xff]
      %v633 = vld [vmem:[%s480 + $0x48] sm:$0xff]
      %v634 = vld [vmem:[%s480 + $0x50] sm:$0xff]
      %v635 = vld [vmem:[%s480 + $0x58] sm:$0xff]
      %v636 = vld [vmem:[%s480 + $0x60] sm:$0xff]
      %v637 = vld [vmem:[%s480 + $0x68] sm:$0xff]
      %v638 = vld [vmem:[%s480 + $0x70] sm:$0xff]
      %v639 = vld [vmem:[%s480 + $0x78] sm:$0xff]
      %v640 = vmax.f32 %v608, %v624
      %v641 = vmax.f32 %v609, %v625
      %v642 = vmax.f32 %v610, %v626
      %v643 = vmax.f32 %v611, %v627
      %v644 = vmax.f32 %v612, %v628
      %v645 = vmax.f32 %v613, %v629
      %v646 = vmax.f32 %v614, %v630
      %v647 = vmax.f32 %v615, %v631
      %v648 = vmax.f32 %v616, %v632
      %v649 = vmax.f32 %v617, %v633
      %v650 = vmax.f32 %v618, %v634
      %v651 = vmax.f32 %v619, %v635
      %v652 = vmax.f32 %v620, %v636
      %v653 = vmax.f32 %v621, %v637
      %v654 = vmax.f32 %v622, %v638
      %v655 = vmax.f32 %v623, %v639
      %v656 = vld [vmem:[%s486] sm:$0xff]
      %v657 = vld [vmem:[%s486 + $0x8] sm:$0xff]
      %v658 = vld [vmem:[%s486 + $0x10] sm:$0xff]
      %v659 = vld [vmem:[%s486 + $0x18] sm:$0xff]
      %v660 = vld [vmem:[%s486 + $0x20] sm:$0xff]
      %v661 = vld [vmem:[%s486 + $0x28] sm:$0xff]
      %v662 = vld [vmem:[%s486 + $0x30] sm:$0xff]
      %v663 = vld [vmem:[%s486 + $0x38] sm:$0xff]
      %v664 = vld [vmem:[%s486 + $0x40] sm:$0xff]
      %v665 = vld [vmem:[%s486 + $0x48] sm:$0xff]
      %v666 = vld [vmem:[%s486 + $0x50] sm:$0xff]
      %v667 = vld [vmem:[%s486 + $0x58] sm:$0xff]
      %v668 = vld [vmem:[%s486 + $0x60] sm:$0xff]
      %v669 = vld [vmem:[%s486 + $0x68] sm:$0xff]
      %v670 = vld [vmem:[%s486 + $0x70] sm:$0xff]
      %v671 = vld [vmem:[%s486 + $0x78] sm:$0xff]
      %v672 = vmax.f32 %v640, %v656
      %v673 = vmax.f32 %v641, %v657
      %v674 = vmax.f32 %v642, %v658
      %v675 = vmax.f32 %v643, %v659
      %v676 = vmax.f32 %v644, %v660
      %v677 = vmax.f32 %v645, %v661
      %v678 = vmax.f32 %v646, %v662
      %v679 = vmax.f32 %v647, %v663
      %v680 = vmax.f32 %v648, %v664
      %v681 = vmax.f32 %v649, %v665
      %v682 = vmax.f32 %v650, %v666
      %v683 = vmax.f32 %v651, %v667
      %v684 = vmax.f32 %v652, %v668
      %v685 = vmax.f32 %v653, %v669
      %v686 = vmax.f32 %v654, %v670
      %v687 = vmax.f32 %v655, %v671
      %v688 = vld [vmem:[%s492] sm:$0xff]
      %v689 = vld [vmem:[%s492 + $0x8] sm:$0xff]
      %v690 = vld [vmem:[%s492 + $0x10] sm:$0xff]
      %v691 = vld [vmem:[%s492 + $0x18] sm:$0xff]
      %v692 = vld [vmem:[%s492 + $0x20] sm:$0xff]
      %v693 = vld [vmem:[%s492 + $0x28] sm:$0xff]
      %v694 = vld [vmem:[%s492 + $0x30] sm:$0xff]
      %v695 = vld [vmem:[%s492 + $0x38] sm:$0xff]
      %v696 = vld [vmem:[%s492 + $0x40] sm:$0xff]
      %v697 = vld [vmem:[%s492 + $0x48] sm:$0xff]
      %v698 = vld [vmem:[%s492 + $0x50] sm:$0xff]
      %v699 = vld [vmem:[%s492 + $0x58] sm:$0xff]
      %v700 = vld [vmem:[%s492 + $0x60] sm:$0xff]
      %v701 = vld [vmem:[%s492 + $0x68] sm:$0xff]
      %v702 = vld [vmem:[%s492 + $0x70] sm:$0xff]
      %v703 = vld [vmem:[%s492 + $0x78] sm:$0xff]
      %v704 = vmax.f32 %v672, %v688
      %v705 = vmax.f32 %v673, %v689
      %v706 = vmax.f32 %v674, %v690
      %v707 = vmax.f32 %v675, %v691
      %v708 = vmax.f32 %v676, %v692
      %v709 = vmax.f32 %v677, %v693
      %v710 = vmax.f32 %v678, %v694
      %v711 = vmax.f32 %v679, %v695
      %v712 = vmax.f32 %v680, %v696
      %v713 = vmax.f32 %v681, %v697
      %v714 = vmax.f32 %v682, %v698
      %v715 = vmax.f32 %v683, %v699
      %v716 = vmax.f32 %v684, %v700
      %v717 = vmax.f32 %v685, %v701
      %v718 = vmax.f32 %v686, %v702
      %v719 = vmax.f32 %v687, %v703
      %v720 = vld [vmem:[%s498] sm:$0xff]
      %v721 = vld [vmem:[%s498 + $0x8] sm:$0xff]
      %v722 = vld [vmem:[%s498 + $0x10] sm:$0xff]
      %v723 = vld [vmem:[%s498 + $0x18] sm:$0xff]
      %v724 = vld [vmem:[%s498 + $0x20] sm:$0xff]
      %v725 = vld [vmem:[%s498 + $0x28] sm:$0xff]
      %v726 = vld [vmem:[%s498 + $0x30] sm:$0xff]
      %v727 = vld [vmem:[%s498 + $0x38] sm:$0xff]
      %v728 = vld [vmem:[%s498 + $0x40] sm:$0xff]
      %v729 = vld [vmem:[%s498 + $0x48] sm:$0xff]
      %v730 = vld [vmem:[%s498 + $0x50] sm:$0xff]
      %v731 = vld [vmem:[%s498 + $0x58] sm:$0xff]
      %v732 = vld [vmem:[%s498 + $0x60] sm:$0xff]
      %v733 = vld [vmem:[%s498 + $0x68] sm:$0xff]
      %v734 = vld [vmem:[%s498 + $0x70] sm:$0xff]
      %v735 = vld [vmem:[%s498 + $0x78] sm:$0xff]
      %v736 = vmax.f32 %v704, %v720
      %v737 = vmax.f32 %v705, %v721
      %v738 = vmax.f32 %v706, %v722
      %v739 = vmax.f32 %v707, %v723
      %v740 = vmax.f32 %v708, %v724
      %v741 = vmax.f32 %v709, %v725
      %v742 = vmax.f32 %v710, %v726
      %v743 = vmax.f32 %v711, %v727
      %v744 = vmax.f32 %v712, %v728
      %v745 = vmax.f32 %v713, %v729
      %v746 = vmax.f32 %v714, %v730
      %v747 = vmax.f32 %v715, %v731
      %v748 = vmax.f32 %v716, %v732
      %v749 = vmax.f32 %v717, %v733
      %v750 = vmax.f32 %v718, %v734
      %v751 = vmax.f32 %v719, %v735
      %v752 = vld [vmem:[%s504] sm:$0xff]
      %v753 = vld [vmem:[%s504 + $0x8] sm:$0xff]
      %v754 = vld [vmem:[%s504 + $0x10] sm:$0xff]
      %v755 = vld [vmem:[%s504 + $0x18] sm:$0xff]
      %v756 = vld [vmem:[%s504 + $0x20] sm:$0xff]
      %v757 = vld [vmem:[%s504 + $0x28] sm:$0xff]
      %v758 = vld [vmem:[%s504 + $0x30] sm:$0xff]
      %v759 = vld [vmem:[%s504 + $0x38] sm:$0xff]
      %v760 = vld [vmem:[%s504 + $0x40] sm:$0xff]
      %v761 = vld [vmem:[%s504 + $0x48] sm:$0xff]
      %v762 = vld [vmem:[%s504 + $0x50] sm:$0xff]
      %v763 = vld [vmem:[%s504 + $0x58] sm:$0xff]
      %v764 = vld [vmem:[%s504 + $0x60] sm:$0xff]
      %v765 = vld [vmem:[%s504 + $0x68] sm:$0xff]
      %v766 = vld [vmem:[%s504 + $0x70] sm:$0xff]
      %v767 = vld [vmem:[%s504 + $0x78] sm:$0xff]
      %v768 = vmax.f32 %v736, %v752
      %v769 = vmax.f32 %v737, %v753
      %v770 = vmax.f32 %v738, %v754
      %v771 = vmax.f32 %v739, %v755
      %v772 = vmax.f32 %v740, %v756
      %v773 = vmax.f32 %v741, %v757
      %v774 = vmax.f32 %v742, %v758
      %v775 = vmax.f32 %v743, %v759
      %v776 = vmax.f32 %v744, %v760
      %v777 = vmax.f32 %v745, %v761
      %v778 = vmax.f32 %v746, %v762
      %v779 = vmax.f32 %v747, %v763
      %v780 = vmax.f32 %v748, %v764
      %v781 = vmax.f32 %v749, %v765
      %v782 = vmax.f32 %v750, %v766
      %v783 = vmax.f32 %v751, %v767
      %784 = vst [vmem:[%s510] sm:$0xff] %v768
      %785 = vst [vmem:[%s510 + $0x8] sm:$0xff] %v769
      %786 = vst [vmem:[%s510 + $0x10] sm:$0xff] %v770
      %787 = vst [vmem:[%s510 + $0x18] sm:$0xff] %v771
      %788 = vst [vmem:[%s510 + $0x20] sm:$0xff] %v772
      %789 = vst [vmem:[%s510 + $0x28] sm:$0xff] %v773
      %790 = vst [vmem:[%s510 + $0x30] sm:$0xff] %v774
      %791 = vst [vmem:[%s510 + $0x38] sm:$0xff] %v775
      %792 = vst [vmem:[%s510 + $0x40] sm:$0xff] %v776
      %793 = vst [vmem:[%s510 + $0x48] sm:$0xff] %v777
      %794 = vst [vmem:[%s510 + $0x50] sm:$0xff] %v778
      %795 = vst [vmem:[%s510 + $0x58] sm:$0xff] %v779
      %796 = vst [vmem:[%s510 + $0x60] sm:$0xff] %v780
      %797 = vst [vmem:[%s510 + $0x68] sm:$0xff] %v781
      %798 = vst [vmem:[%s510 + $0x70] sm:$0xff] %v782
      %799 = vst [vmem:[%s510 + $0x78] sm:$0xff] %v783
      %s800 = smul.u32 16, %s20
      %p801 = scmp.lt.s32.totalorder %s800, 31
      %s802 = scalar_select %p801, %s800, 31
      %s803 = smul.addr %s802, 8
      %s804 = scalar_lea.vmem %s9, %s803
      // Predicated region
      $region57: #{triplet_net_forward.26} parent=55 // pred_check
        %p805 = pneg %p272
      $region58: #{triplet_net_forward.26} parent=55 // pred_check_branch
        %807 = sbr.rel (%p805) target = $region60
      $region59: #{triplet_net_forward.26} parent=55 // pred_region
        %s808 = smul.u32 16, %s20
      $region60: #{triplet_net_forward.26} parent=55 // pred_fallthru
        _
    $region56: #{triplet_net_forward.26} parent=5 // pred_fallthru
      _
    %p809 = scmp.le.s32.totalorder 2, %s15
    // Predicated region
    $region61: #{triplet_net_forward.26} parent=5 // pred_check
      %p810 = pneg %p809
    $region62: #{triplet_net_forward.26} parent=5 // pred_check_branch
      %812 = sbr.rel (%p810) target = $region64
    $region63: #{triplet_net_forward.26} parent=5 // pred_region
      %s813 = ssub.s32 %s15, 2
      // Predicated region
      $region65: #{triplet_net_forward.26} parent=63 // pred_check
        %p814 = pneg %p278
      $region66: #{triplet_net_forward.26} parent=63 // pred_check_branch
        %816 = sbr.rel (%p814) target = $region68
      $region67: #{triplet_net_forward.26} parent=63 // pred_region
        %s817 = smul.u32 16, %s21
        %p818 = scmp.lt.s32.totalorder %s817, 31
        %s819 = scalar_select %p818, %s817, 31
        %s820 = smul.addr %s819, 8
        %s821 = scalar_lea.vmem %s9, %s820
      $region68: #{triplet_net_forward.26} parent=63 // pred_fallthru
        _
    $region64: #{triplet_net_forward.26} parent=5 // pred_fallthru
      _
  $region6: #{triplet_net_forward.26} parent=0 // loop_footer
    %s19 = sadd.s32 1, %s15
  $region7: #{triplet_net_forward.26} parent=0 // loop_footer_branch
    %14 = sbr.rel target = $region3
  $region8: #{triplet_net_forward.26} parent=0 // loop_exit
    _

// kernel: triplet_net_forward.25
$region0: #{triplet_net_forward.25}
  #allocation0 [shape = 'u32[]', space=smem, size = 0x4, offset = 0x4, fixed_abs, tag = 'smem constant byte address 0x4 - core index']
  #allocation1 [shape = 'u32[144,128]{1,0:T(1,128)}', space=vmem, size = 0x12000, scoped, tag = 'internal scratch']
  %s0 = inlined_call_operand.vmem [shape: bf16[2,512,256], index: 0, kind: input, shape index: {}]
  %s1 = inlined_call_operand.vmem [shape: bf16[2,256,128], index: 1, kind: input, shape index: {}]
  %s2 = inlined_call_operand.vmem [shape: f32[2,1,128], index: 2, kind: input, shape index: {}]
  %s3 = inlined_call_operand.vmem [shape: f32[2,512,128], index: 3, kind: output, shape index: {}]
  %s4 = sld [smem:[#allocation0]]
  $region45: #{triplet_net_forward.25} parent=0
    _
  %s6 = ssub.s32 1, %s4
  %s7 = scalar_select 0, %s6, %s4
  loop: start=0, step=1, limit=10
  $region2: #{triplet_net_forward.25} parent=0 // loop_pre_header
    _
  $region3: #{triplet_net_forward.25} parent=0 // loop_header
    %s9 = sphi 0, %s13
    %p10 = scmp.ge.s32.totalorder %s9, 10
    %s16 = sphi 0, %s28
    %s17 = sphi 0, %s24
    %s18 = sphi 0, %s16
    %s19 = sphi 0, %s17
    %s20 = sphi 0, %s18
    %s21 = sphi 0, %s19
    %s33 = sphi 0, %s35
    %s36 = sphi 0, %s33
    %s37 = sphi 0, %s36
    %s53 = sphi 0, %s37
    %s59 = sphi 0, %s61
    %s62 = sphi 0, %s59
    %s63 = sphi 0, %s62
    %s79 = sphi 0, %s63
    %s85 = sphi 0, %s87
    %s88 = sphi 0, %s85
    %s89 = sphi 0, %s88
    %s105 = sphi 0, %s89
    %s113 = sphi 0, %s115
    %s116 = sphi 0, %s113
    %s117 = sphi 0, %s116
    %s133 = sphi 0, %s117
  $region4: #{triplet_net_forward.25} parent=0 // loop_header_branch
    %12 = sbr.rel (%p10) target = $region8
  $region5: #{triplet_net_forward.25} parent=0 // loop_body
    %s14 = ssub.s32 %s9, 1
    %s15 = ssub.s32 %s9, 2
    %s22 = sadd.s32 1, %s17
    %p23 = scmp.ge.s32.totalorder %s22, 4
    %s24 = scalar_select %p23, 0, %s22
    %s25 = sadd.s32 1, %s16
    %s26 = scalar_select %p23, %s25, %s16
    %p27 = scmp.ge.s32.totalorder %s26, 2
    %s28 = scalar_select %p27, 0, %s26
    %s29 = ssub.s32 %s16, %s28
    %s30 = ssub.s32 %s17, %s24
    %s31 = sor.u32 %s29, %s30
    %p32 = scmp.eq.s32.totalorder %s31, 0
    %s34 = sadd.s32 %s33, 1
    %s35 = scalar_select %p32, %s33, %s34
    %p38 = pneg %p32
    %p39 = scmp.eq.s32.totalorder %s9, 7
    %p40 = por %p38, %p39
    %p41 = scmp.ne.s32.totalorder %s33, %s36
    %p42 = scmp.eq.s32.totalorder %s9, 0
    %p43 = por %p41, %p42
    %p44 = scmp.ne.s32.totalorder %s33, %s36
    %p45 = scmp.eq.s32.totalorder %s14, 7
    %p46 = por %p44, %p45
    %p47 = scmp.ne.s32.totalorder %s36, %s37
    %p48 = scmp.eq.s32.totalorder %s14, 0
    %p49 = por %p47, %p48
    %p50 = scmp.ne.s32.totalorder %s36, %s37
    %p51 = scmp.eq.s32.totalorder %s15, 7
    %p52 = por %p50, %p51
    %p54 = scmp.ne.s32.totalorder %s37, %s53
    %p55 = scmp.eq.s32.totalorder %s15, 0
    %p56 = por %p54, %p55
    %s57 = ssub.s32 %s16, %s28
    %p58 = scmp.eq.s32.totalorder %s57, 0
    %s60 = sadd.s32 %s59, 1
    %s61 = scalar_select %p58, %s59, %s60
    %p64 = pneg %p58
    %p65 = scmp.eq.s32.totalorder %s9, 7
    %p66 = por %p64, %p65
    %p67 = scmp.ne.s32.totalorder %s59, %s62
    %p68 = scmp.eq.s32.totalorder %s9, 0
    %p69 = por %p67, %p68
    %p70 = scmp.ne.s32.totalorder %s59, %s62
    %p71 = scmp.eq.s32.totalorder %s14, 7
    %p72 = por %p70, %p71
    %p73 = scmp.ne.s32.totalorder %s62, %s63
    %p74 = scmp.eq.s32.totalorder %s14, 0
    %p75 = por %p73, %p74
    %p76 = scmp.ne.s32.totalorder %s62, %s63
    %p77 = scmp.eq.s32.totalorder %s15, 7
    %p78 = por %p76, %p77
    %p80 = scmp.ne.s32.totalorder %s63, %s79
    %p81 = scmp.eq.s32.totalorder %s15, 0
    %p82 = por %p80, %p81
    %s83 = ssub.s32 %s16, %s28
    %p84 = scmp.eq.s32.totalorder %s83, 0
    %s86 = sadd.s32 %s85, 1
    %s87 = scalar_select %p84, %s85, %s86
    %p90 = pneg %p84
    %p91 = scmp.eq.s32.totalorder %s9, 7
    %p92 = por %p90, %p91
    %p93 = scmp.ne.s32.totalorder %s85, %s88
    %p94 = scmp.eq.s32.totalorder %s9, 0
    %p95 = por %p93, %p94
    %p96 = scmp.ne.s32.totalorder %s85, %s88
    %p97 = scmp.eq.s32.totalorder %s14, 7
    %p98 = por %p96, %p97
    %p99 = scmp.ne.s32.totalorder %s88, %s89
    %p100 = scmp.eq.s32.totalorder %s14, 0
    %p101 = por %p99, %p100
    %p102 = scmp.ne.s32.totalorder %s88, %s89
    %p103 = scmp.eq.s32.totalorder %s15, 7
    %p104 = por %p102, %p103
    %p106 = scmp.ne.s32.totalorder %s89, %s105
    %p107 = scmp.eq.s32.totalorder %s15, 0
    %p108 = por %p106, %p107
    %s109 = ssub.s32 %s16, %s28
    %s110 = ssub.s32 %s17, %s24
    %s111 = sor.u32 %s109, %s110
    %p112 = scmp.eq.s32.totalorder %s111, 0
    %s114 = sadd.s32 %s113, 1
    %s115 = scalar_select %p112, %s113, %s114
    %p118 = pneg %p112
    %p119 = scmp.eq.s32.totalorder %s9, 7
    %p120 = por %p118, %p119
    %p121 = scmp.ne.s32.totalorder %s113, %s116
    %p122 = scmp.eq.s32.totalorder %s9, 0
    %p123 = por %p121, %p122
    %p124 = scmp.ne.s32.totalorder %s113, %s116
    %p125 = scmp.eq.s32.totalorder %s14, 7
    %p126 = por %p124, %p125
    %p127 = scmp.ne.s32.totalorder %s116, %s117
    %p128 = scmp.eq.s32.totalorder %s14, 0
    %p129 = por %p127, %p128
    %p130 = scmp.ne.s32.totalorder %s116, %s117
    %p131 = scmp.eq.s32.totalorder %s15, 7
    %p132 = por %p130, %p131
    %p134 = scmp.ne.s32.totalorder %s117, %s133
    %p135 = scmp.eq.s32.totalorder %s15, 0
    %p136 = por %p134, %p135
    %p137 = scmp.le.s32.totalorder 1, %s9
    %p138 = scmp.lt.s32.totalorder %s9, 9
    %p139 = pnand %p137, %p138
    %p140 = pneg %p139
    // Predicated region
    $region9: #{triplet_net_forward.25} parent=5 // pred_check
      _
    $region10: #{triplet_net_forward.25} parent=5 // pred_check_branch
      %142 = sbr.rel (%p139) target = $region12
    $region11: #{triplet_net_forward.25} parent=5 // pred_region
      %s143 = ssub.s32 %s9, 1
    $region12: #{triplet_net_forward.25} parent=5 // pred_fallthru
      _
    %p144 = scmp.lt.s32.totalorder %s9, 8
    // Predicated region
    $region13: #{triplet_net_forward.25} parent=5 // pred_check
      %p145 = pneg %p144
    $region14: #{triplet_net_forward.25} parent=5 // pred_check_branch
      %147 = sbr.rel (%p145) target = $region16
    $region15: #{triplet_net_forward.25} parent=5 // pred_region
      // Predicated region
      $region17: #{triplet_net_forward.25} parent=15 // pred_check
        %p148 = pneg %p43
      $region18: #{triplet_net_forward.25} parent=15 // pred_check_branch
        %150 = sbr.rel (%p148) target = $region20
      $region19: #{triplet_net_forward.25} parent=15 // pred_region
        %s151 = smul.u32 16, %s17
        %p152 = scmp.lt.s32.totalorder %s16, 1
        %s153 = scalar_select %p152, %s16, 1
        %p154 = scmp.lt.s32.totalorder %s151, 63
        %s155 = scalar_select %p154, %s151, 63
        %s156 = smul.addr %s155, 2
        %s157 = smul.addr %s153, 128
        %s158 = sadd.s32 %s156, %s157
        %s159 = smul.addr %s158, 4
        %s160 = scalar_lea.vmem %s0, %s159
        %s161 = smul.u32 16, %s17
      $region20: #{triplet_net_forward.25} parent=15 // pred_fallthru
        _
      // Predicated region
      $region21: #{triplet_net_forward.25} parent=15 // pred_check
        %p162 = pneg %p69
      $region22: #{triplet_net_forward.25} parent=15 // pred_check_branch
        %164 = sbr.rel (%p162) target = $region24
      $region23: #{triplet_net_forward.25} parent=15 // pred_region
        %p165 = scmp.lt.s32.totalorder %s16, 1
        %s166 = scalar_select %p165, %s16, 1
        %s167 = smul.addr %s166, 32
        %s168 = smul.addr %s167, 4
        %s169 = scalar_lea.vmem %s1, %s168
      $region24: #{triplet_net_forward.25} parent=15 // pred_fallthru
        _
      // Predicated region
      $region25: #{triplet_net_forward.25} parent=15 // pred_check
        %p170 = pneg %p95
      $region26: #{triplet_net_forward.25} parent=15 // pred_check_branch
        %172 = sbr.rel (%p170) target = $region28
      $region27: #{triplet_net_forward.25} parent=15 // pred_region
        %p173 = scmp.lt.s32.totalorder %s16, 1
        %s174 = scalar_select %p173, %s16, 1
        %s175 = scalar_lea.vmem %s2, %s174
      $region28: #{triplet_net_forward.25} parent=15 // pred_fallthru
        _
    $region16: #{triplet_net_forward.25} parent=5 // pred_fallthru
      _
    %p176 = scmp.le.s32.totalorder 1, %s9
    %p177 = scmp.lt.s32.totalorder %s9, 9
    %p178 = pnand %p176, %p177
    %p179 = pneg %p178
    // Predicated region
    $region29: #{triplet_net_forward.25} parent=5 // pred_check
      _
    $region30: #{triplet_net_forward.25} parent=5 // pred_check_branch
      %181 = sbr.rel (%p178) target = $region32
    $region31: #{triplet_net_forward.25} parent=5 // pred_region
      %s182 = ssub.s32 %s9, 1
      %s183 = smul.u32 16, %s19
      %p184 = scmp.lt.s32.totalorder %s18, 1
      %s185 = scalar_select %p184, %s18, 1
      %p186 = scmp.lt.s32.totalorder %s183, 63
      %s187 = scalar_select %p186, %s183, 63
      %s188 = smul.addr %s187, 2
      %s189 = smul.addr %s185, 128
      %s190 = sadd.s32 %s188, %s189
      %s191 = smul.addr %s190, 4
      %s192 = scalar_lea.vmem %s0, %s191
      %p193 = pneg %p49
      %p194 = pneg %p46
      %p195 = scmp.lt.s32.totalorder %s18, 1
      %s196 = scalar_select %p195, %s18, 1
      %s197 = smul.addr %s196, 32
      %s198 = smul.addr %s197, 4
      %s199 = scalar_lea.vmem %s1, %s198
      %p200 = pneg %p75
      %p201 = pneg %p72
      %p202 = scmp.lt.s32.totalorder %s18, 1
      %s203 = scalar_select %p202, %s18, 1
      %s204 = scalar_lea.vmem %s2, %s203
      %p205 = pneg %p101
      %p206 = pneg %p98
      %p207 = pneg %p129
      %p208 = pneg %p126
      %s209 = smul.u32 16, %s19
      %p210 = scmp.lt.s32.totalorder %s18, 1
      %s211 = scalar_select %p210, %s18, 1
      %p212 = scmp.lt.s32.totalorder %s209, 63
      %s213 = scalar_select %p212, %s209, 63
      %s214 = smul.addr %s211, 64
      %s215 = sadd.s32 %s213, %s214
      %s216 = smul.addr %s215, 8
      %s217 = scalar_lea.vmem %s3, %s216
      %s218 = smul.u32 16, %s19
      %p219 = scmp.lt.s32.totalorder %s18, 1
      %s220 = scalar_select %p219, %s18, 1
      %p221 = scmp.lt.s32.totalorder %s218, 63
      %s222 = scalar_select %p221, %s218, 63
      %s223 = smul.addr %s222, 2
      %s224 = smul.addr %s220, 128
      %s225 = sadd.s32 %s223, %s224
      %s226 = smul.addr %s225, 4
      %s227 = scalar_lea.vmem %s0, %s226
      %s228 = smul.u32 16, %s19
      %p229 = scmp.lt.s32.totalorder %s18, 1
      %s230 = scalar_select %p229, %s18, 1
      %s231 = smul.addr %s230, 32
      %s232 = smul.addr %s231, 4
      %s233 = scalar_lea.vmem %s1, %s232
      %p234 = scmp.lt.s32.totalorder %s18, 1
      %s235 = scalar_select %p234, %s18, 1
      %s236 = scalar_lea.vmem %s2, %s235
      %s237 = smul.u32 16, %s19
      %p238 = scmp.lt.s32.totalorder %s18, 1
      %s239 = scalar_select %p238, %s18, 1
      %p240 = scmp.lt.s32.totalorder %s237, 63
      %s241 = scalar_select %p240, %s237, 63
      %s242 = smul.addr %s239, 64
      %s243 = sadd.s32 %s241, %s242
      %s244 = smul.addr %s243, 8
      %s245 = scalar_lea.vmem %s3, %s244
      %s246 = smul.u32 16, %s19
      %v248 = vld [vmem:[%s227] sm:$0xff]
      %v249 = vld [vmem:[%s227 + $0x8] sm:$0xff]
      %v250 = vld [vmem:[%s227 + $0x10] sm:$0xff]
      %v251 = vld [vmem:[%s227 + $0x18] sm:$0xff]
      %v252 = vld [vmem:[%s227 + $0x20] sm:$0xff]
      %v253 = vld [vmem:[%s227 + $0x28] sm:$0xff]
      %v254 = vld [vmem:[%s227 + $0x30] sm:$0xff]
      %v255 = vld [vmem:[%s227 + $0x38] sm:$0xff]
      %v256 = vld [vmem:[%s227 + $0x40] sm:$0xff]
      %v257 = vld [vmem:[%s227 + $0x48] sm:$0xff]
      %v258 = vld [vmem:[%s227 + $0x50] sm:$0xff]
      %v259 = vld [vmem:[%s227 + $0x58] sm:$0xff]
      %v260 = vld [vmem:[%s227 + $0x60] sm:$0xff]
      %v261 = vld [vmem:[%s227 + $0x68] sm:$0xff]
      %v262 = vld [vmem:[%s227 + $0x70] sm:$0xff]
      %v263 = vld [vmem:[%s227 + $0x78] sm:$0xff]
      %v264 = vld [vmem:[%s233] sm:$0xf]
      %v265 = vld [vmem:[%s233 + $0x4] sm:$0xf]
      %v266 = vld [vmem:[%s233 + $0x8] sm:$0xf]
      %v267 = vld [vmem:[%s233 + $0xc] sm:$0xf]
      %v268 = vld [vmem:[%s233 + $0x10] sm:$0xf]
      %v269 = vld [vmem:[%s233 + $0x14] sm:$0xf]
      %v270 = vld [vmem:[%s233 + $0x18] sm:$0xf]
      %v271 = vld [vmem:[%s233 + $0x1c] sm:$0xf]
      %v272 = vld [vmem:[%s233 + $0x20] sm:$0xf]
      %v273 = vld [vmem:[%s233 + $0x24] sm:$0xf]
      %v274 = vld [vmem:[%s233 + $0x28] sm:$0xf]
      %v275 = vld [vmem:[%s233 + $0x2c] sm:$0xf]
      %v276 = vld [vmem:[%s233 + $0x30] sm:$0xf]
      %v277 = vld [vmem:[%s233 + $0x34] sm:$0xf]
      %v278 = vld [vmem:[%s233 + $0x38] sm:$0xf]
      %v279 = vld [vmem:[%s233 + $0x3c] sm:$0xf]
      %v280 = vld [vmem:[%s233 + $0x40] sm:$0xf]
      %v281 = vld [vmem:[%s233 + $0x44] sm:$0xf]
      %v282 = vld [vmem:[%s233 + $0x48] sm:$0xf]
      %v283 = vld [vmem:[%s233 + $0x4c] sm:$0xf]
      %v284 = vld [vmem:[%s233 + $0x50] sm:$0xf]
      %v285 = vld [vmem:[%s233 + $0x54] sm:$0xf]
      %v286 = vld [vmem:[%s233 + $0x58] sm:$0xf]
      %v287 = vld [vmem:[%s233 + $0x5c] sm:$0xf]
      %v288 = vld [vmem:[%s233 + $0x60] sm:$0xf]
      %v289 = vld [vmem:[%s233 + $0x64] sm:$0xf]
      %v290 = vld [vmem:[%s233 + $0x68] sm:$0xf]
      %v291 = vld [vmem:[%s233 + $0x6c] sm:$0xf]
      %v292 = vld [vmem:[%s233 + $0x70] sm:$0xf]
      %v293 = vld [vmem:[%s233 + $0x74] sm:$0xf]
      %v294 = vld [vmem:[%s233 + $0x78] sm:$0xf]
      %v295 = vld [vmem:[%s233 + $0x7c] sm:$0xf]
      %v296 = vld [vmem:[%s236] sm:$0x1]
      %v298 = vlaneseq
      %v299 = vshrl.u32 %v298, 7
      %v300 = vsub.s32 0, %v299
      %v301 = vrot.slane %v296, %v300
      %v319 = vunpack.c.l.b16 %v248
      %v320 = vunpack.c.h.b16 %v248
      %v321 = vunpack.c.l.b16 %v249
      %v322 = vunpack.c.h.b16 %v249
      %v323 = vunpack.c.l.b16 %v250
      %v324 = vunpack.c.h.b16 %v250
      %v325 = vunpack.c.l.b16 %v251
      %v326 = vunpack.c.h.b16 %v251
      %v327 = vunpack.c.l.b16 %v252
      %v328 = vunpack.c.h.b16 %v252
      %v329 = vunpack.c.l.b16 %v253
      %v330 = vunpack.c.h.b16 %v253
      %v331 = vunpack.c.l.b16 %v254
      %v332 = vunpack.c.h.b16 %v254
      %v333 = vunpack.c.l.b16 %v255
      %v334 = vunpack.c.h.b16 %v255
      %v335 = vunpack.c.l.b16 %v256
      %v336 = vunpack.c.h.b16 %v256
      %v337 = vunpack.c.l.b16 %v257
      %v338 = vunpack.c.h.b16 %v257
      %v339 = vunpack.c.l.b16 %v258
      %v340 = vunpack.c.h.b16 %v258
      %v341 = vunpack.c.l.b16 %v259
      %v342 = vunpack.c.h.b16 %v259
      %v343 = vunpack.c.l.b16 %v260
      %v344 = vunpack.c.h.b16 %v260
      %v345 = vunpack.c.l.b16 %v261
      %v346 = vunpack.c.h.b16 %v261
      %v347 = vunpack.c.l.b16 %v262
      %v348 = vunpack.c.h.b16 %v262
      %v349 = vunpack.c.l.b16 %v263
      %v350 = vunpack.c.h.b16 %v263
      %v351 = vpack.c.b16 %v321, %v319
      %v352 = vpack.c.b16 %v322, %v320
      %v353 = vpack.c.b16 %v325, %v323
      %v354 = vpack.c.b16 %v326, %v324
      %v355 = vpack.c.b16 %v329, %v327
      %v356 = vpack.c.b16 %v330, %v328
      %v357 = vpack.c.b16 %v333, %v331
      %v358 = vpack.c.b16 %v334, %v332
      %v359 = vpack.c.b16 %v337, %v335
      %v360 = vpack.c.b16 %v338, %v336
      %v361 = vpack.c.b16 %v341, %v339
      %v362 = vpack.c.b16 %v342, %v340
      %v363 = vpack.c.b16 %v345, %v343
      %v364 = vpack.c.b16 %v346, %v344
      %v365 = vpack.c.b16 %v349, %v347
      %v366 = vpack.c.b16 %v350, %v348
      %v415 = vunpack.c.l.b16 %v264
      %v416 = vunpack.c.l.b16 %v265
      %v417 = vunpack.c.l.b16 %v266
      %v418 = vunpack.c.l.b16 %v267
      %v419 = vunpack.c.l.b16 %v268
      %v420 = vunpack.c.l.b16 %v269
      %v421 = vunpack.c.l.b16 %v270
      %v422 = vunpack.c.l.b16 %v271
      %v423 = vunpack.c.l.b16 %v272
      %v424 = vunpack.c.l.b16 %v273
      %v425 = vunpack.c.l.b16 %v274
      %v426 = vunpack.c.l.b16 %v275
      %v427 = vunpack.c.l.b16 %v276
      %v428 = vunpack.c.l.b16 %v277
      %v429 = vunpack.c.l.b16 %v278
      %v430 = vunpack.c.l.b16 %v279
      %v431 = vunpack.c.l.b16 %v280
      %v432 = vunpack.c.l.b16 %v281
      %v433 = vunpack.c.l.b16 %v282
      %v434 = vunpack.c.l.b16 %v283
      %v435 = vunpack.c.l.b16 %v284
      %v436 = vunpack.c.l.b16 %v285
      %v437 = vunpack.c.l.b16 %v286
      %v438 = vunpack.c.l.b16 %v287
      %v439 = vunpack.c.l.b16 %v288
      %v440 = vunpack.c.l.b16 %v289
      %v441 = vunpack.c.l.b16 %v290
      %v442 = vunpack.c.l.b16 %v291
      %v443 = vunpack.c.l.b16 %v292
      %v444 = vunpack.c.l.b16 %v293
      %v445 = vunpack.c.l.b16 %v294
      %v446 = vunpack.c.l.b16 %v295
      %v447 = vpack.c.b16 %v416, %v415
      %v448 = vpack.c.b16 %v418, %v417
      %v449 = vpack.c.b16 %v420, %v419
      %v450 = vpack.c.b16 %v422, %v421
      %v451 = vpack.c.b16 %v424, %v423
      %v452 = vpack.c.b16 %v426, %v425
      %v453 = vpack.c.b16 %v428, %v427
      %v454 = vpack.c.b16 %v430, %v429
      %v455 = vpack.c.b16 %v432, %v431
      %v456 = vpack.c.b16 %v434, %v433
      %v457 = vpack.c.b16 %v436, %v435
      %v458 = vpack.c.b16 %v438, %v437
      %v459 = vpack.c.b16 %v440, %v439
      %v460 = vpack.c.b16 %v442, %v441
      %v461 = vpack.c.b16 %v444, %v443
      %v462 = vpack.c.b16 %v446, %v445
      %479 = vmatprep.subr.bf16.mxu0 0
      %480 = vmatpush1.bf16.msra.mxu0 %v447
      %481 = vmatprep.subr.bf16.mxu0 0
      %482 = vmatpush1.bf16.msra.mxu0 %v448
      %483 = vmatprep.subr.bf16.mxu0 0
      %484 = vmatpush1.bf16.msra.mxu0 %v449
      %485 = vmatprep.subr.bf16.mxu0 0
      %486 = vmatpush1.bf16.msra.mxu0 %v450
      %487 = vmatprep.subr.bf16.mxu0 0
      %488 = vmatpush1.bf16.msra.mxu0 %v451
      %489 = vmatprep.subr.bf16.mxu0 0
      %490 = vmatpush1.bf16.msra.mxu0 %v452
      %491 = vmatprep.subr.bf16.mxu0 0
      %492 = vmatpush1.bf16.msra.mxu0 %v453
      %493 = vmatprep.subr.bf16.mxu0 0
      %494 = vmatpush1.bf16.msra.mxu0 %v454
      %495 = vmatprep.subr.bf16.mxu0 0
      %496 = vmatpush1.bf16.msra.mxu0 %v455
      %497 = vmatprep.subr.bf16.mxu0 0
      %498 = vmatpush1.bf16.msra.mxu0 %v456
      %499 = vmatprep.subr.bf16.mxu0 0
      %500 = vmatpush1.bf16.msra.mxu0 %v457
      %501 = vmatprep.subr.bf16.mxu0 0
      %502 = vmatpush1.bf16.msra.mxu0 %v458
      %503 = vmatprep.subr.bf16.mxu0 0
      %504 = vmatpush1.bf16.msra.mxu0 %v459
      %505 = vmatprep.subr.bf16.mxu0 0
      %506 = vmatpush1.bf16.msra.mxu0 %v460
      %507 = vmatprep.subr.bf16.mxu0 0
      %508 = vmatpush1.bf16.msra.mxu0 %v461
      %509 = vmatprep.subr.bf16.mxu0 0
      %510 = vmatpush1.bf16.msra.mxu0 %v462
      %511 = vmatprep.mubr.bf16.mxu0 %v352
      %512 = vmatmul.mubr.bf16.gmra.mrb[0].mxu0 %v351
      %v513 = vpop.f32.mrb[0].mxu0
      %v514 = vadd.f32 %v301, %v513
      %v515 = vpop.f32.mrb[0].mxu0
      %v516 = vpop.f32.mrb[0].mxu0
      %v517 = vadd.f32 %v301, %v516
      %v518 = vpop.f32.mrb[0].mxu0
      %519 = vmatprep.mubr.bf16.mxu0 %v354
      %520 = vmatmul.mubr.bf16.gmra.mrb[0].mxu0 %v353
      %v521 = vpop.f32.mrb[0].mxu0
      %v522 = vadd.f32 %v301, %v521
      %v523 = vpop.f32.mrb[0].mxu0
      %v524 = vpop.f32.mrb[0].mxu0
      %v525 = vadd.f32 %v301, %v524
      %v526 = vpop.f32.mrb[0].mxu0
      %527 = vmatprep.mubr.bf16.mxu0 %v356
      %528 = vmatmul.mubr.bf16.gmra.mrb[0].mxu0 %v355
      %v529 = vpop.f32.mrb[0].mxu0
      %v530 = vadd.f32 %v301, %v529
      %v531 = vpop.f32.mrb[0].mxu0
      %v532 = vpop.f32.mrb[0].mxu0
      %v533 = vadd.f32 %v301, %v532
      %v534 = vpop.f32.mrb[0].mxu0
      %535 = vmatprep.mubr.bf16.mxu0 %v358
      %536 = vmatmul.mubr.bf16.gmra.mrb[0].mxu0 %v357
      %v537 = vpop.f32.mrb[0].mxu0
      %v538 = vadd.f32 %v301, %v537
      %v539 = vpop.f32.mrb[0].mxu0
      %v540 = vpop.f32.mrb[0].mxu0
      %v541 = vadd.f32 %v301, %v540
      %v542 = vpop.f32.mrb[0].mxu0
      %543 = vmatprep.mubr.bf16.mxu0 %v360
      %544 = vmatmul.mubr.bf16.gmra.mrb[0].mxu0 %v359
      %v545 = vpop.f32.mrb[0].mxu0
      %v546 = vadd.f32 %v301, %v545
      %v547 = vpop.f32.mrb[0].mxu0
      %v548 = vpop.f32.mrb[0].mxu0
      %v549 = vadd.f32 %v301, %v548
      %v550 = vpop.f32.mrb[0].mxu0
      %551 = vmatprep.mubr.bf16.mxu0 %v362
      %552 = vmatmul.mubr.bf16.gmra.mrb[0].mxu0 %v361
      %v553 = vpop.f32.mrb[0].mxu0
      %v554 = vadd.f32 %v301, %v553
      %v555 = vpop.f32.mrb[0].mxu0
      %v556 = vpop.f32.mrb[0].mxu0
      %v557 = vadd.f32 %v301, %v556
      %v558 = vpop.f32.mrb[0].mxu0
      %559 = vmatprep.mubr.bf16.mxu0 %v364
      %560 = vmatmul.mubr.bf16.gmra.mrb[0].mxu0 %v363
      %v561 = vpop.f32.mrb[0].mxu0
      %v562 = vadd.f32 %v301, %v561
      %v563 = vpop.f32.mrb[0].mxu0
      %v564 = vpop.f32.mrb[0].mxu0
      %v565 = vadd.f32 %v301, %v564
      %v566 = vpop.f32.mrb[0].mxu0
      %567 = vmatprep.mubr.bf16.mxu0 %v366
      %568 = vmatmul.mubr.bf16.gmra.mrb[0].mxu0 %v365
      %v569 = vpop.f32.mrb[0].mxu0
      %v570 = vadd.f32 %v301, %v569
      %v571 = vpop.f32.mrb[0].mxu0
      %v572 = vpop.f32.mrb[0].mxu0
      %v573 = vadd.f32 %v301, %v572
      %v574 = vpop.f32.mrb[0].mxu0
      %575 = vdwg.mxu0
      %v576 = vmax.f32 %v514, 0.0
      %v577 = vmax.f32 %v517, 0.0
      %v578 = vmax.f32 %v522, 0.0
      %v579 = vmax.f32 %v525, 0.0
      %v580 = vmax.f32 %v530, 0.0
      %v581 = vmax.f32 %v533, 0.0
      %v582 = vmax.f32 %v538, 0.0
      %v583 = vmax.f32 %v541, 0.0
      %v584 = vmax.f32 %v546, 0.0
      %v585 = vmax.f32 %v549, 0.0
      %v586 = vmax.f32 %v554, 0.0
      %v587 = vmax.f32 %v557, 0.0
      %v588 = vmax.f32 %v562, 0.0
      %v589 = vmax.f32 %v565, 0.0
      %v590 = vmax.f32 %v570, 0.0
      %v591 = vmax.f32 %v573, 0.0
      %592 = vst [vmem:[%s245] sm:$0xff] %v576
      %593 = vst [vmem:[%s245 + $0x8] sm:$0xff] %v577
      %594 = vst [vmem:[%s245 + $0x10] sm:$0xff] %v578
      %595 = vst [vmem:[%s245 + $0x18] sm:$0xff] %v579
      %596 = vst [vmem:[%s245 + $0x20] sm:$0xff] %v580
      %597 = vst [vmem:[%s245 + $0x28] sm:$0xff] %v581
      %598 = vst [vmem:[%s245 + $0x30] sm:$0xff] %v582
      %599 = vst [vmem:[%s245 + $0x38] sm:$0xff] %v583
      %600 = vst [vmem:[%s245 + $0x40] sm:$0xff] %v584
      %601 = vst [vmem:[%s245 + $0x48] sm:$0xff] %v585
      %602 = vst [vmem:[%s245 + $0x50] sm:$0xff] %v586
      %603 = vst [vmem:[%s245 + $0x58] sm:$0xff] %v587
      %604 = vst [vmem:[%s245 + $0x60] sm:$0xff] %v588
      %605 = vst [vmem:[%s245 + $0x68] sm:$0xff] %v589
      %606 = vst [vmem:[%s245 + $0x70] sm:$0xff] %v590
      %607 = vst [vmem:[%s245 + $0x78] sm:$0xff] %v591
      %s608 = smul.u32 16, %s19
      %p609 = scmp.lt.s32.totalorder %s18, 1
      %s610 = scalar_select %p609, %s18, 1
      %p611 = scmp.lt.s32.totalorder %s608, 63
      %s612 = scalar_select %p611, %s608, 63
      %s613 = smul.addr %s610, 64
      %s614 = sadd.s32 %s612, %s613
      %s615 = smul.addr %s614, 8
      %s616 = scalar_lea.vmem %s3, %s615
      // Predicated region
      $region33: #{triplet_net_forward.25} parent=31 // pred_check
        %p617 = pneg %p126
      $region34: #{triplet_net_forward.25} parent=31 // pred_check_branch
        %619 = sbr.rel (%p617) target = $region36
      $region35: #{triplet_net_forward.25} parent=31 // pred_region
        %s620 = smul.u32 16, %s19
      $region36: #{triplet_net_forward.25} parent=31 // pred_fallthru
        _
    $region32: #{triplet_net_forward.25} parent=5 // pred_fallthru
      _
    %p621 = scmp.le.s32.totalorder 2, %s9
    // Predicated region
    $region37: #{triplet_net_forward.25} parent=5 // pred_check
      %p622 = pneg %p621
    $region38: #{triplet_net_forward.25} parent=5 // pred_check_branch
      %624 = sbr.rel (%p622) target = $region40
    $region39: #{triplet_net_forward.25} parent=5 // pred_region
      %s625 = ssub.s32 %s9, 2
      // Predicated region
      $region41: #{triplet_net_forward.25} parent=39 // pred_check
        %p626 = pneg %p132
      $region42: #{triplet_net_forward.25} parent=39 // pred_check_branch
        %628 = sbr.rel (%p626) target = $region44
      $region43: #{triplet_net_forward.25} parent=39 // pred_region
        %s629 = smul.u32 16, %s21
        %p630 = scmp.lt.s32.totalorder %s20, 1
        %s631 = scalar_select %p630, %s20, 1
        %p632 = scmp.lt.s32.totalorder %s629, 63
        %s633 = scalar_select %p632, %s629, 63
        %s634 = smul.addr %s631, 64
        %s635 = sadd.s32 %s633, %s634
        %s636 = smul.addr %s635, 8
        %s637 = scalar_lea.vmem %s3, %s636
      $region44: #{triplet_net_forward.25} parent=39 // pred_fallthru
        _
    $region40: #{triplet_net_forward.25} parent=5 // pred_fallthru
      _
  $region6: #{triplet_net_forward.25} parent=0 // loop_footer
    %s13 = sadd.s32 1, %s9
  $region7: #{triplet_net_forward.25} parent=0 // loop_footer_branch
    %8 = sbr.rel target = $region3
  $region8: #{triplet_net_forward.25} parent=0 // loop_exit
    _

// kernel: triplet_net_forward.29
$region0: #{triplet_net_forward.29}
  #allocation0 [shape = 'u32[]', space=smem, size = 0x4, offset = 0x4, fixed_abs, tag = 'smem constant byte address 0x4 - core index']
  #allocation1 [shape = 'u32[144,128]{1,0:T(1,128)}', space=vmem, size = 0x12000, scoped, tag = 'internal scratch']
  %s0 = inlined_call_operand.vmem [shape: bf16[2,128,128], index: 0, kind: input, shape index: {}]
  %s1 = inlined_call_operand.vmem [shape: bf16[2,128,256], index: 1, kind: input, shape index: {}]
  %s2 = inlined_call_operand.vmem [shape: f32[2,1,256], index: 2, kind: input, shape index: {}]
  %s3 = inlined_call_operand.vmem [shape: f32[2,128,256], index: 3, kind: output, shape index: {}]
  %s4 = sld [smem:[#allocation0]]
  $region45: #{triplet_net_forward.29} parent=0
    _
  %s6 = ssub.s32 1, %s4
  %s7 = scalar_select 0, %s6, %s4
  loop: start=0, step=1, limit=4
  $region2: #{triplet_net_forward.29} parent=0 // loop_pre_header
    _
  $region3: #{triplet_net_forward.29} parent=0 // loop_header
    %s9 = sphi 0, %s13
    %p10 = scmp.ge.s32.totalorder %s9, 4
    %s16 = sphi 0, %s28
    %s17 = sphi 0, %s24
    %s18 = sphi 0, %s16
    %s19 = sphi 0, %s17
    %s20 = sphi 0, %s18
    %s21 = sphi 0, %s19
    %s33 = sphi 0, %s35
    %s36 = sphi 0, %s33
    %s37 = sphi 0, %s36
    %s53 = sphi 0, %s37
    %s59 = sphi 0, %s61
    %s62 = sphi 0, %s59
    %s63 = sphi 0, %s62
    %s79 = sphi 0, %s63
    %s85 = sphi 0, %s87
    %s88 = sphi 0, %s85
    %s89 = sphi 0, %s88
    %s105 = sphi 0, %s89
    %s113 = sphi 0, %s115
    %s116 = sphi 0, %s113
    %s117 = sphi 0, %s116
    %s133 = sphi 0, %s117
  $region4: #{triplet_net_forward.29} parent=0 // loop_header_branch
    %12 = sbr.rel (%p10) target = $region8
  $region5: #{triplet_net_forward.29} parent=0 // loop_body
    %s14 = ssub.s32 %s9, 1
    %s15 = ssub.s32 %s9, 2
    %s22 = sadd.s32 1, %s17
    %p23 = scmp.ge.s32.totalorder %s22, 1
    %s24 = scalar_select %p23, 0, %s22
    %s25 = sadd.s32 1, %s16
    %s26 = scalar_select %p23, %s25, %s16
    %p27 = scmp.ge.s32.totalorder %s26, 2
    %s28 = scalar_select %p27, 0, %s26
    %s29 = ssub.s32 %s16, %s28
    %s30 = ssub.s32 %s17, %s24
    %s31 = sor.u32 %s29, %s30
    %p32 = scmp.eq.s32.totalorder %s31, 0
    %s34 = sadd.s32 %s33, 1
    %s35 = scalar_select %p32, %s33, %s34
    %p38 = pneg %p32
    %p39 = scmp.eq.s32.totalorder %s9, 1
    %p40 = por %p38, %p39
    %p41 = scmp.ne.s32.totalorder %s33, %s36
    %p42 = scmp.eq.s32.totalorder %s9, 0
    %p43 = por %p41, %p42
    %p44 = scmp.ne.s32.totalorder %s33, %s36
    %p45 = scmp.eq.s32.totalorder %s14, 1
    %p46 = por %p44, %p45
    %p47 = scmp.ne.s32.totalorder %s36, %s37
    %p48 = scmp.eq.s32.totalorder %s14, 0
    %p49 = por %p47, %p48
    %p50 = scmp.ne.s32.totalorder %s36, %s37
    %p51 = scmp.eq.s32.totalorder %s15, 1
    %p52 = por %p50, %p51
    %p54 = scmp.ne.s32.totalorder %s37, %s53
    %p55 = scmp.eq.s32.totalorder %s15, 0
    %p56 = por %p54, %p55
    %s57 = ssub.s32 %s16, %s28
    %p58 = scmp.eq.s32.totalorder %s57, 0
    %s60 = sadd.s32 %s59, 1
    %s61 = scalar_select %p58, %s59, %s60
    %p64 = pneg %p58
    %p65 = scmp.eq.s32.totalorder %s9, 1
    %p66 = por %p64, %p65
    %p67 = scmp.ne.s32.totalorder %s59, %s62
    %p68 = scmp.eq.s32.totalorder %s9, 0
    %p69 = por %p67, %p68
    %p70 = scmp.ne.s32.totalorder %s59, %s62
    %p71 = scmp.eq.s32.totalorder %s14, 1
    %p72 = por %p70, %p71
    %p73 = scmp.ne.s32.totalorder %s62, %s63
    %p74 = scmp.eq.s32.totalorder %s14, 0
    %p75 = por %p73, %p74
    %p76 = scmp.ne.s32.totalorder %s62, %s63
    %p77 = scmp.eq.s32.totalorder %s15, 1
    %p78 = por %p76, %p77
    %p80 = scmp.ne.s32.totalorder %s63, %s79
    %p81 = scmp.eq.s32.totalorder %s15, 0
    %p82 = por %p80, %p81
    %s83 = ssub.s32 %s16, %s28
    %p84 = scmp.eq.s32.totalorder %s83, 0
    %s86 = sadd.s32 %s85, 1
    %s87 = scalar_select %p84, %s85, %s86
    %p90 = pneg %p84
    %p91 = scmp.eq.s32.totalorder %s9, 1
    %p92 = por %p90, %p91
    %p93 = scmp.ne.s32.totalorder %s85, %s88
    %p94 = scmp.eq.s32.totalorder %s9, 0
    %p95 = por %p93, %p94
    %p96 = scmp.ne.s32.totalorder %s85, %s88
    %p97 = scmp.eq.s32.totalorder %s14, 1
    %p98 = por %p96, %p97
    %p99 = scmp.ne.s32.totalorder %s88, %s89
    %p100 = scmp.eq.s32.totalorder %s14, 0
    %p101 = por %p99, %p100
    %p102 = scmp.ne.s32.totalorder %s88, %s89
    %p103 = scmp.eq.s32.totalorder %s15, 1
    %p104 = por %p102, %p103
    %p106 = scmp.ne.s32.totalorder %s89, %s105
    %p107 = scmp.eq.s32.totalorder %s15, 0
    %p108 = por %p106, %p107
    %s109 = ssub.s32 %s16, %s28
    %s110 = ssub.s32 %s17, %s24
    %s111 = sor.u32 %s109, %s110
    %p112 = scmp.eq.s32.totalorder %s111, 0
    %s114 = sadd.s32 %s113, 1
    %s115 = scalar_select %p112, %s113, %s114
    %p118 = pneg %p112
    %p119 = scmp.eq.s32.totalorder %s9, 1
    %p120 = por %p118, %p119
    %p121 = scmp.ne.s32.totalorder %s113, %s116
    %p122 = scmp.eq.s32.totalorder %s9, 0
    %p123 = por %p121, %p122
    %p124 = scmp.ne.s32.totalorder %s113, %s116
    %p125 = scmp.eq.s32.totalorder %s14, 1
    %p126 = por %p124, %p125
    %p127 = scmp.ne.s32.totalorder %s116, %s117
    %p128 = scmp.eq.s32.totalorder %s14, 0
    %p129 = por %p127, %p128
    %p130 = scmp.ne.s32.totalorder %s116, %s117
    %p131 = scmp.eq.s32.totalorder %s15, 1
    %p132 = por %p130, %p131
    %p134 = scmp.ne.s32.totalorder %s117, %s133
    %p135 = scmp.eq.s32.totalorder %s15, 0
    %p136 = por %p134, %p135
    %p137 = scmp.le.s32.totalorder 1, %s9
    %p138 = scmp.lt.s32.totalorder %s9, 3
    %p139 = pnand %p137, %p138
    %p140 = pneg %p139
    // Predicated region
    $region9: #{triplet_net_forward.29} parent=5 // pred_check
      _
    $region10: #{triplet_net_forward.29} parent=5 // pred_check_branch
      %142 = sbr.rel (%p139) target = $region12
    $region11: #{triplet_net_forward.29} parent=5 // pred_region
      %s143 = ssub.s32 %s9, 1
    $region12: #{triplet_net_forward.29} parent=5 // pred_fallthru
      _
    %p144 = scmp.lt.s32.totalorder %s9, 2
    // Predicated region
    $region13: #{triplet_net_forward.29} parent=5 // pred_check
      %p145 = pneg %p144
    $region14: #{triplet_net_forward.29} parent=5 // pred_check_branch
      %147 = sbr.rel (%p145) target = $region16
    $region15: #{triplet_net_forward.29} parent=5 // pred_region
      // Predicated region
      $region17: #{triplet_net_forward.29} parent=15 // pred_check
        %p148 = pneg %p43
      $region18: #{triplet_net_forward.29} parent=15 // pred_check_branch
        %150 = sbr.rel (%p148) target = $region20
      $region19: #{triplet_net_forward.29} parent=15 // pred_region
        %s151 = smul.u32 16, %s17
        %p152 = scmp.lt.s32.totalorder %s16, 1
        %s153 = scalar_select %p152, %s16, 1
        %p154 = scmp.lt.s32.totalorder %s151, 15
        %s155 = scalar_select %p154, %s151, 15
        %s156 = smul.addr %s153, 16
        %s157 = sadd.s32 %s155, %s156
        %s158 = smul.addr %s157, 4
        %s159 = scalar_lea.vmem %s0, %s158
        %s160 = smul.u32 16, %s17
      $region20: #{triplet_net_forward.29} parent=15 // pred_fallthru
        _
      // Predicated region
      $region21: #{triplet_net_forward.29} parent=15 // pred_check
        %p161 = pneg %p69
      $region22: #{triplet_net_forward.29} parent=15 // pred_check_branch
        %163 = sbr.rel (%p161) target = $region24
      $region23: #{triplet_net_forward.29} parent=15 // pred_region
        %p164 = scmp.lt.s32.totalorder %s16, 1
        %s165 = scalar_select %p164, %s16, 1
        %s166 = smul.addr %s165, 32
        %s167 = smul.addr %s166, 4
        %s168 = scalar_lea.vmem %s1, %s167
      $region24: #{triplet_net_forward.29} parent=15 // pred_fallthru
        _
      // Predicated region
      $region25: #{triplet_net_forward.29} parent=15 // pred_check
        %p169 = pneg %p95
      $region26: #{triplet_net_forward.29} parent=15 // pred_check_branch
        %171 = sbr.rel (%p169) target = $region28
      $region27: #{triplet_net_forward.29} parent=15 // pred_region
        %p172 = scmp.lt.s32.totalorder %s16, 1
        %s173 = scalar_select %p172, %s16, 1
        %s174 = smul.addr %s173, 2
        %s175 = scalar_lea.vmem %s2, %s174
      $region28: #{triplet_net_forward.29} parent=15 // pred_fallthru
        _
    $region16: #{triplet_net_forward.29} parent=5 // pred_fallthru
      _
    %p176 = scmp.le.s32.totalorder 1, %s9
    %p177 = scmp.lt.s32.totalorder %s9, 3
    %p178 = pnand %p176, %p177
    %p179 = pneg %p178
    // Predicated region
    $region29: #{triplet_net_forward.29} parent=5 // pred_check
      _
    $region30: #{triplet_net_forward.29} parent=5 // pred_check_branch
      %181 = sbr.rel (%p178) target = $region32
    $region31: #{triplet_net_forward.29} parent=5 // pred_region
      %s182 = ssub.s32 %s9, 1
      %s183 = smul.u32 16, %s19
      %p184 = scmp.lt.s32.totalorder %s18, 1
      %s185 = scalar_select %p184, %s18, 1
      %p186 = scmp.lt.s32.totalorder %s183, 15
      %s187 = scalar_select %p186, %s183, 15
      %s188 = smul.addr %s185, 16
      %s189 = sadd.s32 %s187, %s188
      %s190 = smul.addr %s189, 4
      %s191 = scalar_lea.vmem %s0, %s190
      %p192 = pneg %p49
      %p193 = pneg %p46
      %p194 = scmp.lt.s32.totalorder %s18, 1
      %s195 = scalar_select %p194, %s18, 1
      %s196 = smul.addr %s195, 32
      %s197 = smul.addr %s196, 4
      %s198 = scalar_lea.vmem %s1, %s197
      %p199 = pneg %p75
      %p200 = pneg %p72
      %p201 = scmp.lt.s32.totalorder %s18, 1
      %s202 = scalar_select %p201, %s18, 1
      %s203 = smul.addr %s202, 2
      %s204 = scalar_lea.vmem %s2, %s203
      %p205 = pneg %p101
      %p206 = pneg %p98
      %p207 = pneg %p129
      %p208 = pneg %p126
      %s209 = smul.u32 16, %s19
      %p210 = scmp.lt.s32.totalorder %s18, 1
      %s211 = scalar_select %p210, %s18, 1
      %p212 = scmp.lt.s32.totalorder %s209, 15
      %s213 = scalar_select %p212, %s209, 15
      %s214 = smul.addr %s213, 2
      %s215 = smul.addr %s211, 32
      %s216 = sadd.s32 %s214, %s215
      %s217 = smul.addr %s216, 8
      %s218 = scalar_lea.vmem %s3, %s217
      %s219 = smul.u32 16, %s19
      %p220 = scmp.lt.s32.totalorder %s18, 1
      %s221 = scalar_select %p220, %s18, 1
      %p222 = scmp.lt.s32.totalorder %s219, 15
      %s223 = scalar_select %p222, %s219, 15
      %s224 = smul.addr %s221, 16
      %s225 = sadd.s32 %s223, %s224
      %s226 = smul.addr %s225, 4
      %s227 = scalar_lea.vmem %s0, %s226
      %s228 = smul.u32 16, %s19
      %p229 = scmp.lt.s32.totalorder %s18, 1
      %s230 = scalar_select %p229, %s18, 1
      %s231 = smul.addr %s230, 32
      %s232 = smul.addr %s231, 4
      %s233 = scalar_lea.vmem %s1, %s232
      %p234 = scmp.lt.s32.totalorder %s18, 1
      %s235 = scalar_select %p234, %s18, 1
      %s236 = smul.addr %s235, 2
      %s237 = scalar_lea.vmem %s2, %s236
      %s238 = smul.u32 16, %s19
      %p239 = scmp.lt.s32.totalorder %s18, 1
      %s240 = scalar_select %p239, %s18, 1
      %p241 = scmp.lt.s32.totalorder %s238, 15
      %s242 = scalar_select %p241, %s238, 15
      %s243 = smul.addr %s242, 2
      %s244 = smul.addr %s240, 32
      %s245 = sadd.s32 %s243, %s244
      %s246 = smul.addr %s245, 8
      %s247 = scalar_lea.vmem %s3, %s246
      %s248 = smul.u32 16, %s19
      %v250 = vld [vmem:[%s227] sm:$0xf]
      %v251 = vld [vmem:[%s227 + $0x4] sm:$0xf]
      %v252 = vld [vmem:[%s227 + $0x8] sm:$0xf]
      %v253 = vld [vmem:[%s227 + $0xc] sm:$0xf]
      %v254 = vld [vmem:[%s227 + $0x10] sm:$0xf]
      %v255 = vld [vmem:[%s227 + $0x14] sm:$0xf]
      %v256 = vld [vmem:[%s227 + $0x18] sm:$0xf]
      %v257 = vld [vmem:[%s227 + $0x1c] sm:$0xf]
      %v258 = vld [vmem:[%s227 + $0x20] sm:$0xf]
      %v259 = vld [vmem:[%s227 + $0x24] sm:$0xf]
      %v260 = vld [vmem:[%s227 + $0x28] sm:$0xf]
      %v261 = vld [vmem:[%s227 + $0x2c] sm:$0xf]
      %v262 = vld [vmem:[%s227 + $0x30] sm:$0xf]
      %v263 = vld [vmem:[%s227 + $0x34] sm:$0xf]
      %v264 = vld [vmem:[%s227 + $0x38] sm:$0xf]
      %v265 = vld [vmem:[%s227 + $0x3c] sm:$0xf]
      %v266 = vld [vmem:[%s233] sm:$0xff]
      %v267 = vld [vmem:[%s233 + $0x8] sm:$0xff]
      %v268 = vld [vmem:[%s233 + $0x10] sm:$0xff]
      %v269 = vld [vmem:[%s233 + $0x18] sm:$0xff]
      %v270 = vld [vmem:[%s233 + $0x20] sm:$0xff]
      %v271 = vld [vmem:[%s233 + $0x28] sm:$0xff]
      %v272 = vld [vmem:[%s233 + $0x30] sm:$0xff]
      %v273 = vld [vmem:[%s233 + $0x38] sm:$0xff]
      %v274 = vld [vmem:[%s233 + $0x40] sm:$0xff]
      %v275 = vld [vmem:[%s233 + $0x48] sm:$0xff]
      %v276 = vld [vmem:[%s233 + $0x50] sm:$0xff]
      %v277 = vld [vmem:[%s233 + $0x58] sm:$0xff]
      %v278 = vld [vmem:[%s233 + $0x60] sm:$0xff]
      %v279 = vld [vmem:[%s233 + $0x68] sm:$0xff]
      %v280 = vld [vmem:[%s233 + $0x70] sm:$0xff]
      %v281 = vld [vmem:[%s233 + $0x78] sm:$0xff]
      %v282 = vld [vmem:[%s237] sm:$0x3]
      %v284 = vlaneseq
      %v285 = vshrl.u32 %v284, 7
      %v286 = vsub.s32 0, %v285
      %v287 = vrot.slane %v282, %v286
      %v288 = vlaneseq
      %v289 = vshrl.u32 %v288, 7
      %v290 = vsub.s32 1, %v289
      %v291 = vrot.slane %v282, %v290
      %v310 = vunpack.c.l.b16 %v250
      %v311 = vunpack.c.l.b16 %v251
      %v312 = vunpack.c.l.b16 %v252
      %v313 = vunpack.c.l.b16 %v253
      %v314 = vunpack.c.l.b16 %v254
      %v315 = vunpack.c.l.b16 %v255
      %v316 = vunpack.c.l.b16 %v256
      %v317 = vunpack.c.l.b16 %v257
      %v318 = vunpack.c.l.b16 %v258
      %v319 = vunpack.c.l.b16 %v259
      %v320 = vunpack.c.l.b16 %v260
      %v321 = vunpack.c.l.b16 %v261
      %v322 = vunpack.c.l.b16 %v262
      %v323 = vunpack.c.l.b16 %v263
      %v324 = vunpack.c.l.b16 %v264
      %v325 = vunpack.c.l.b16 %v265
      %v326 = vpack.c.b16 %v311, %v310
      %v327 = vpack.c.b16 %v313, %v312
      %v328 = vpack.c.b16 %v315, %v314
      %v329 = vpack.c.b16 %v317, %v316
      %v330 = vpack.c.b16 %v319, %v318
      %v331 = vpack.c.b16 %v321, %v320
      %v332 = vpack.c.b16 %v323, %v322
      %v333 = vpack.c.b16 %v325, %v324
      %v358 = vunpack.c.l.b16 %v266
      %v359 = vunpack.c.h.b16 %v266
      %v360 = vunpack.c.l.b16 %v267
      %v361 = vunpack.c.h.b16 %v267
      %v362 = vunpack.c.l.b16 %v268
      %v363 = vunpack.c.h.b16 %v268
      %v364 = vunpack.c.l.b16 %v269
      %v365 = vunpack.c.h.b16 %v269
      %v366 = vunpack.c.l.b16 %v270
      %v367 = vunpack.c.h.b16 %v270
      %v368 = vunpack.c.l.b16 %v271
      %v369 = vunpack.c.h.b16 %v271
      %v370 = vunpack.c.l.b16 %v272
      %v371 = vunpack.c.h.b16 %v272
      %v372 = vunpack.c.l.b16 %v273
      %v373 = vunpack.c.h.b16 %v273
      %v374 = vunpack.c.l.b16 %v274
      %v375 = vunpack.c.h.b16 %v274
      %v376 = vunpack.c.l.b16 %v275
      %v377 = vunpack.c.h.b16 %v275
      %v378 = vunpack.c.l.b16 %v276
      %v379 = vunpack.c.h.b16 %v276
      %v380 = vunpack.c.l.b16 %v277
      %v381 = vunpack.c.h.b16 %v277
      %v382 = vunpack.c.l.b16 %v278
      %v383 = vunpack.c.h.b16 %v278
      %v384 = vunpack.c.l.b16 %v279
      %v385 = vunpack.c.h.b16 %v279
      %v386 = vunpack.c.l.b16 %v280
      %v387 = vunpack.c.h.b16 %v280
      %v388 = vunpack.c.l.b16 %v281
      %v389 = vunpack.c.h.b16 %v281
      %v390 = vpack.c.b16 %v360, %v358
      %v391 = vpack.c.b16 %v361, %v359
      %v392 = vpack.c.b16 %v364, %v362
      %v393 = vpack.c.b16 %v365, %v363
      %v394 = vpack.c.b16 %v368, %v366
      %v395 = vpack.c.b16 %v369, %v367
      %v396 = vpack.c.b16 %v372, %v370
      %v397 = vpack.c.b16 %v373, %v371
      %v398 = vpack.c.b16 %v376, %v374
      %v399 = vpack.c.b16 %v377, %v375
      %v400 = vpack.c.b16 %v380, %v378
      %v401 = vpack.c.b16 %v381, %v379
      %v402 = vpack.c.b16 %v384, %v382
      %v403 = vpack.c.b16 %v385, %v383
      %v404 = vpack.c.b16 %v388, %v386
      %v405 = vpack.c.b16 %v389, %v387
      %422 = vmatprep.subr.bf16.mxu0 %v391
      %423 = vmatpush1.bf16.msra.mxu0 %v390
      %424 = vmatprep.subr.bf16.mxu0 %v393
      %425 = vmatpush1.bf16.msra.mxu0 %v392
      %426 = vmatprep.subr.bf16.mxu0 %v395
      %427 = vmatpush1.bf16.msra.mxu0 %v394
      %428 = vmatprep.subr.bf16.mxu0 %v397
      %429 = vmatpush1.bf16.msra.mxu0 %v396
      %430 = vmatprep.subr.bf16.mxu0 %v399
      %431 = vmatpush1.bf16.msra.mxu0 %v398
      %432 = vmatprep.subr.bf16.mxu0 %v401
      %433 = vmatpush1.bf16.msra.mxu0 %v400
      %434 = vmatprep.subr.bf16.mxu0 %v403
      %435 = vmatpush1.bf16.msra.mxu0 %v402
      %436 = vmatprep.subr.bf16.mxu0 %v405
      %437 = vmatpush1.bf16.msra.mxu0 %v404
      %438 = vmatprep.subr.bf16.mxu0 0
      %439 = vmatpush1.bf16.msra.mxu0 0
      %440 = vmatprep.subr.bf16.mxu0 0
      %441 = vmatpush1.bf16.msra.mxu0 0
      %442 = vmatprep.subr.bf16.mxu0 0
      %443 = vmatpush1.bf16.msra.mxu0 0
      %444 = vmatprep.subr.bf16.mxu0 0
      %445 = vmatpush1.bf16.msra.mxu0 0
      %446 = vmatprep.subr.bf16.mxu0 0
      %447 = vmatpush1.bf16.msra.mxu0 0
      %448 = vmatprep.subr.bf16.mxu0 0
      %449 = vmatpush1.bf16.msra.mxu0 0
      %450 = vmatprep.subr.bf16.mxu0 0
      %451 = vmatpush1.bf16.msra.mxu0 0
      %452 = vmatprep.subr.bf16.mxu0 0
      %453 = vmatpush1.bf16.msra.mxu0 0
      %454 = vmatprep.mubr.bf16.mxu0 0
      %455 = vmatmul.mubr.bf16.gmra.mrb[0].mxu0 %v326
      %v456 = vpop.f32.mrb[0].mxu0
      %v457 = vadd.f32 %v287, %v456
      %v458 = vpop.f32.mrb[0].mxu0
      %v459 = vadd.f32 %v291, %v458
      %v460 = vpop.f32.mrb[0].mxu0
      %v461 = vadd.f32 %v287, %v460
      %v462 = vpop.f32.mrb[0].mxu0
      %v463 = vadd.f32 %v291, %v462
      %464 = vmatprep.mubr.bf16.mxu0 0
      %465 = vmatmul.mubr.bf16.gmra.mrb[0].mxu0 %v327
      %v466 = vpop.f32.mrb[0].mxu0
      %v467 = vadd.f32 %v287, %v466
      %v468 = vpop.f32.mrb[0].mxu0
      %v469 = vadd.f32 %v291, %v468
      %v470 = vpop.f32.mrb[0].mxu0
      %v471 = vadd.f32 %v287, %v470
      %v472 = vpop.f32.mrb[0].mxu0
      %v473 = vadd.f32 %v291, %v472
      %474 = vmatprep.mubr.bf16.mxu0 0
      %475 = vmatmul.mubr.bf16.gmra.mrb[0].mxu0 %v328
      %v476 = vpop.f32.mrb[0].mxu0
      %v477 = vadd.f32 %v287, %v476
      %v478 = vpop.f32.mrb[0].mxu0
      %v479 = vadd.f32 %v291, %v478
      %v480 = vpop.f32.mrb[0].mxu0
      %v481 = vadd.f32 %v287, %v480
      %v482 = vpop.f32.mrb[0].mxu0
      %v483 = vadd.f32 %v291, %v482
      %484 = vmatprep.mubr.bf16.mxu0 0
      %485 = vmatmul.mubr.bf16.gmra.mrb[0].mxu0 %v329
      %v486 = vpop.f32.mrb[0].mxu0
      %v487 = vadd.f32 %v287, %v486
      %v488 = vpop.f32.mrb[0].mxu0
      %v489 = vadd.f32 %v291, %v488
      %v490 = vpop.f32.mrb[0].mxu0
      %v491 = vadd.f32 %v287, %v490
      %v492 = vpop.f32.mrb[0].mxu0
      %v493 = vadd.f32 %v291, %v492
      %494 = vmatprep.mubr.bf16.mxu0 0
      %495 = vmatmul.mubr.bf16.gmra.mrb[0].mxu0 %v330
      %v496 = vpop.f32.mrb[0].mxu0
      %v497 = vadd.f32 %v287, %v496
      %v498 = vpop.f32.mrb[0].mxu0
      %v499 = vadd.f32 %v291, %v498
      %v500 = vpop.f32.mrb[0].mxu0
      %v501 = vadd.f32 %v287, %v500
      %v502 = vpop.f32.mrb[0].mxu0
      %v503 = vadd.f32 %v291, %v502
      %504 = vmatprep.mubr.bf16.mxu0 0
      %505 = vmatmul.mubr.bf16.gmra.mrb[0].mxu0 %v331
      %v506 = vpop.f32.mrb[0].mxu0
      %v507 = vadd.f32 %v287, %v506
      %v508 = vpop.f32.mrb[0].mxu0
      %v509 = vadd.f32 %v291, %v508
      %v510 = vpop.f32.mrb[0].mxu0
      %v511 = vadd.f32 %v287, %v510
      %v512 = vpop.f32.mrb[0].mxu0
      %v513 = vadd.f32 %v291, %v512
      %514 = vmatprep.mubr.bf16.mxu0 0
      %515 = vmatmul.mubr.bf16.gmra.mrb[0].mxu0 %v332
      %v516 = vpop.f32.mrb[0].mxu0
      %v517 = vadd.f32 %v287, %v516
      %v518 = vpop.f32.mrb[0].mxu0
      %v519 = vadd.f32 %v291, %v518
      %v520 = vpop.f32.mrb[0].mxu0
      %v521 = vadd.f32 %v287, %v520
      %v522 = vpop.f32.mrb[0].mxu0
      %v523 = vadd.f32 %v291, %v522
      %524 = vmatprep.mubr.bf16.mxu0 0
      %525 = vmatmul.mubr.bf16.gmra.mrb[0].mxu0 %v333
      %v526 = vpop.f32.mrb[0].mxu0
      %v527 = vadd.f32 %v287, %v526
      %v528 = vpop.f32.mrb[0].mxu0
      %v529 = vadd.f32 %v291, %v528
      %v530 = vpop.f32.mrb[0].mxu0
      %v531 = vadd.f32 %v287, %v530
      %v532 = vpop.f32.mrb[0].mxu0
      %v533 = vadd.f32 %v291, %v532
      %534 = vdwg.mxu0
      %535 = vst [vmem:[%s247] sm:$0xff] %v457
      %536 = vst [vmem:[%s247 + $0x8] sm:$0xff] %v459
      %537 = vst [vmem:[%s247 + $0x10] sm:$0xff] %v461
      %538 = vst [vmem:[%s247 + $0x18] sm:$0xff] %v463
      %539 = vst [vmem:[%s247 + $0x20] sm:$0xff] %v467
      %540 = vst [vmem:[%s247 + $0x28] sm:$0xff] %v469
      %541 = vst [vmem:[%s247 + $0x30] sm:$0xff] %v471
      %542 = vst [vmem:[%s247 + $0x38] sm:$0xff] %v473
      %543 = vst [vmem:[%s247 + $0x40] sm:$0xff] %v477
      %544 = vst [vmem:[%s247 + $0x48] sm:$0xff] %v479
      %545 = vst [vmem:[%s247 + $0x50] sm:$0xff] %v481
      %546 = vst [vmem:[%s247 + $0x58] sm:$0xff] %v483
      %547 = vst [vmem:[%s247 + $0x60] sm:$0xff] %v487
      %548 = vst [vmem:[%s247 + $0x68] sm:$0xff] %v489
      %549 = vst [vmem:[%s247 + $0x70] sm:$0xff] %v491
      %550 = vst [vmem:[%s247 + $0x78] sm:$0xff] %v493
      %551 = vst [vmem:[%s247 + $0x80] sm:$0xff] %v497
      %552 = vst [vmem:[%s247 + $0x88] sm:$0xff] %v499
      %553 = vst [vmem:[%s247 + $0x90] sm:$0xff] %v501
      %554 = vst [vmem:[%s247 + $0x98] sm:$0xff] %v503
      %555 = vst [vmem:[%s247 + $0xa0] sm:$0xff] %v507
      %556 = vst [vmem:[%s247 + $0xa8] sm:$0xff] %v509
      %557 = vst [vmem:[%s247 + $0xb0] sm:$0xff] %v511
      %558 = vst [vmem:[%s247 + $0xb8] sm:$0xff] %v513
      %559 = vst [vmem:[%s247 + $0xc0] sm:$0xff] %v517
      %560 = vst [vmem:[%s247 + $0xc8] sm:$0xff] %v519
      %561 = vst [vmem:[%s247 + $0xd0] sm:$0xff] %v521
      %562 = vst [vmem:[%s247 + $0xd8] sm:$0xff] %v523
      %563 = vst [vmem:[%s247 + $0xe0] sm:$0xff] %v527
      %564 = vst [vmem:[%s247 + $0xe8] sm:$0xff] %v529
      %565 = vst [vmem:[%s247 + $0xf0] sm:$0xff] %v531
      %566 = vst [vmem:[%s247 + $0xf8] sm:$0xff] %v533
      %s567 = smul.u32 16, %s19
      %p568 = scmp.lt.s32.totalorder %s18, 1
      %s569 = scalar_select %p568, %s18, 1
      %p570 = scmp.lt.s32.totalorder %s567, 15
      %s571 = scalar_select %p570, %s567, 15
      %s572 = smul.addr %s571, 2
      %s573 = smul.addr %s569, 32
      %s574 = sadd.s32 %s572, %s573
      %s575 = smul.addr %s574, 8
      %s576 = scalar_lea.vmem %s3, %s575
      // Predicated region
      $region33: #{triplet_net_forward.29} parent=31 // pred_check
        %p577 = pneg %p126
      $region34: #{triplet_net_forward.29} parent=31 // pred_check_branch
        %579 = sbr.rel (%p577) target = $region36
      $region35: #{triplet_net_forward.29} parent=31 // pred_region
        %s580 = smul.u32 16, %s19
      $region36: #{triplet_net_forward.29} parent=31 // pred_fallthru
        _
    $region32: #{triplet_net_forward.29} parent=5 // pred_fallthru
      _
    %p581 = scmp.le.s32.totalorder 2, %s9
    // Predicated region
    $region37: #{triplet_net_forward.29} parent=5 // pred_check
      %p582 = pneg %p581
    $region38: #{triplet_net_forward.29} parent=5 // pred_check_branch
      %584 = sbr.rel (%p582) target = $region40
    $region39: #{triplet_net_forward.29} parent=5 // pred_region
      %s585 = ssub.s32 %s9, 2
      // Predicated region
      $region41: #{triplet_net_forward.29} parent=39 // pred_check
        %p586 = pneg %p132
      $region42: #{triplet_net_forward.29} parent=39 // pred_check_branch
        %588 = sbr.rel (%p586) target = $region44
      $region43: #{triplet_net_forward.29} parent=39 // pred_region
        %s589 = smul.u32 16, %s21
        %p590 = scmp.lt.s32.totalorder %s20, 1
        %s591 = scalar_select %p590, %s20, 1
        %p592 = scmp.lt.s32.totalorder %s589, 15
        %s593 = scalar_select %p592, %s589, 15
        %s594 = smul.addr %s593, 2
        %s595 = smul.addr %s591, 32
        %s596 = sadd.s32 %s594, %s595
        %s597 = smul.addr %s596, 8
        %s598 = scalar_lea.vmem %s3, %s597
      $region44: #{triplet_net_forward.29} parent=39 // pred_fallthru
        _
    $region40: #{triplet_net_forward.29} parent=5 // pred_fallthru
      _
  $region6: #{triplet_net_forward.29} parent=0 // loop_footer
    %s13 = sadd.s32 1, %s9
  $region7: #{triplet_net_forward.29} parent=0 // loop_footer_branch
    %8 = sbr.rel target = $region3
  $region8: #{triplet_net_forward.29} parent=0 // loop_exit
    _

// kernel: triplet_net_forward.27
$region0: #{triplet_net_forward.27}
  #allocation0 [shape = 'u32[]', space=smem, size = 0x4, offset = 0x4, fixed_abs, tag = 'smem constant byte address 0x4 - core index']
  #allocation1 [shape = 'u32[144,128]{1,0:T(1,128)}', space=vmem, size = 0x12000, scoped, tag = 'internal scratch']
  %s0 = inlined_call_operand.vmem [shape: bf16[2,128,128], index: 0, kind: input, shape index: {}]
  %s1 = inlined_call_operand.vmem [shape: bf16[2,128,128], index: 1, kind: input, shape index: {}]
  %s2 = inlined_call_operand.vmem [shape: f32[2,1,128], index: 2, kind: input, shape index: {}]
  %s3 = inlined_call_operand.vmem [shape: f32[2,128,128], index: 3, kind: output, shape index: {}]
  %s4 = sld [smem:[#allocation0]]
  $region45: #{triplet_net_forward.27} parent=0
    _
  %s6 = ssub.s32 1, %s4
  %s7 = scalar_select 0, %s6, %s4
  loop: start=0, step=1, limit=4
  $region2: #{triplet_net_forward.27} parent=0 // loop_pre_header
    _
  $region3: #{triplet_net_forward.27} parent=0 // loop_header
    %s9 = sphi 0, %s13
    %p10 = scmp.ge.s32.totalorder %s9, 4
    %s16 = sphi 0, %s28
    %s17 = sphi 0, %s24
    %s18 = sphi 0, %s16
    %s19 = sphi 0, %s17
    %s20 = sphi 0, %s18
    %s21 = sphi 0, %s19
    %s33 = sphi 0, %s35
    %s36 = sphi 0, %s33
    %s37 = sphi 0, %s36
    %s53 = sphi 0, %s37
    %s59 = sphi 0, %s61
    %s62 = sphi 0, %s59
    %s63 = sphi 0, %s62
    %s79 = sphi 0, %s63
    %s85 = sphi 0, %s87
    %s88 = sphi 0, %s85
    %s89 = sphi 0, %s88
    %s105 = sphi 0, %s89
    %s113 = sphi 0, %s115
    %s116 = sphi 0, %s113
    %s117 = sphi 0, %s116
    %s133 = sphi 0, %s117
  $region4: #{triplet_net_forward.27} parent=0 // loop_header_branch
    %12 = sbr.rel (%p10) target = $region8
  $region5: #{triplet_net_forward.27} parent=0 // loop_body
    %s14 = ssub.s32 %s9, 1
    %s15 = ssub.s32 %s9, 2
    %s22 = sadd.s32 1, %s17
    %p23 = scmp.ge.s32.totalorder %s22, 1
    %s24 = scalar_select %p23, 0, %s22
    %s25 = sadd.s32 1, %s16
    %s26 = scalar_select %p23, %s25, %s16
    %p27 = scmp.ge.s32.totalorder %s26, 2
    %s28 = scalar_select %p27, 0, %s26
    %s29 = ssub.s32 %s16, %s28
    %s30 = ssub.s32 %s17, %s24
    %s31 = sor.u32 %s29, %s30
    %p32 = scmp.eq.s32.totalorder %s31, 0
    %s34 = sadd.s32 %s33, 1
    %s35 = scalar_select %p32, %s33, %s34
    %p38 = pneg %p32
    %p39 = scmp.eq.s32.totalorder %s9, 1
    %p40 = por %p38, %p39
    %p41 = scmp.ne.s32.totalorder %s33, %s36
    %p42 = scmp.eq.s32.totalorder %s9, 0
    %p43 = por %p41, %p42
    %p44 = scmp.ne.s32.totalorder %s33, %s36
    %p45 = scmp.eq.s32.totalorder %s14, 1
    %p46 = por %p44, %p45
    %p47 = scmp.ne.s32.totalorder %s36, %s37
    %p48 = scmp.eq.s32.totalorder %s14, 0
    %p49 = por %p47, %p48
    %p50 = scmp.ne.s32.totalorder %s36, %s37
    %p51 = scmp.eq.s32.totalorder %s15, 1
    %p52 = por %p50, %p51
    %p54 = scmp.ne.s32.totalorder %s37, %s53
    %p55 = scmp.eq.s32.totalorder %s15, 0
    %p56 = por %p54, %p55
    %s57 = ssub.s32 %s16, %s28
    %p58 = scmp.eq.s32.totalorder %s57, 0
    %s60 = sadd.s32 %s59, 1
    %s61 = scalar_select %p58, %s59, %s60
    %p64 = pneg %p58
    %p65 = scmp.eq.s32.totalorder %s9, 1
    %p66 = por %p64, %p65
    %p67 = scmp.ne.s32.totalorder %s59, %s62
    %p68 = scmp.eq.s32.totalorder %s9, 0
    %p69 = por %p67, %p68
    %p70 = scmp.ne.s32.totalorder %s59, %s62
    %p71 = scmp.eq.s32.totalorder %s14, 1
    %p72 = por %p70, %p71
    %p73 = scmp.ne.s32.totalorder %s62, %s63
    %p74 = scmp.eq.s32.totalorder %s14, 0
    %p75 = por %p73, %p74
    %p76 = scmp.ne.s32.totalorder %s62, %s63
    %p77 = scmp.eq.s32.totalorder %s15, 1
    %p78 = por %p76, %p77
    %p80 = scmp.ne.s32.totalorder %s63, %s79
    %p81 = scmp.eq.s32.totalorder %s15, 0
    %p82 = por %p80, %p81
    %s83 = ssub.s32 %s16, %s28
    %p84 = scmp.eq.s32.totalorder %s83, 0
    %s86 = sadd.s32 %s85, 1
    %s87 = scalar_select %p84, %s85, %s86
    %p90 = pneg %p84
    %p91 = scmp.eq.s32.totalorder %s9, 1
    %p92 = por %p90, %p91
    %p93 = scmp.ne.s32.totalorder %s85, %s88
    %p94 = scmp.eq.s32.totalorder %s9, 0
    %p95 = por %p93, %p94
    %p96 = scmp.ne.s32.totalorder %s85, %s88
    %p97 = scmp.eq.s32.totalorder %s14, 1
    %p98 = por %p96, %p97
    %p99 = scmp.ne.s32.totalorder %s88, %s89
    %p100 = scmp.eq.s32.totalorder %s14, 0
    %p101 = por %p99, %p100
    %p102 = scmp.ne.s32.totalorder %s88, %s89
    %p103 = scmp.eq.s32.totalorder %s15, 1
    %p104 = por %p102, %p103
    %p106 = scmp.ne.s32.totalorder %s89, %s105
    %p107 = scmp.eq.s32.totalorder %s15, 0
    %p108 = por %p106, %p107
    %s109 = ssub.s32 %s16, %s28
    %s110 = ssub.s32 %s17, %s24
    %s111 = sor.u32 %s109, %s110
    %p112 = scmp.eq.s32.totalorder %s111, 0
    %s114 = sadd.s32 %s113, 1
    %s115 = scalar_select %p112, %s113, %s114
    %p118 = pneg %p112
    %p119 = scmp.eq.s32.totalorder %s9, 1
    %p120 = por %p118, %p119
    %p121 = scmp.ne.s32.totalorder %s113, %s116
    %p122 = scmp.eq.s32.totalorder %s9, 0
    %p123 = por %p121, %p122
    %p124 = scmp.ne.s32.totalorder %s113, %s116
    %p125 = scmp.eq.s32.totalorder %s14, 1
    %p126 = por %p124, %p125
    %p127 = scmp.ne.s32.totalorder %s116, %s117
    %p128 = scmp.eq.s32.totalorder %s14, 0
    %p129 = por %p127, %p128
    %p130 = scmp.ne.s32.totalorder %s116, %s117
    %p131 = scmp.eq.s32.totalorder %s15, 1
    %p132 = por %p130, %p131
    %p134 = scmp.ne.s32.totalorder %s117, %s133
    %p135 = scmp.eq.s32.totalorder %s15, 0
    %p136 = por %p134, %p135
    %p137 = scmp.le.s32.totalorder 1, %s9
    %p138 = scmp.lt.s32.totalorder %s9, 3
    %p139 = pnand %p137, %p138
    %p140 = pneg %p139
    // Predicated region
    $region9: #{triplet_net_forward.27} parent=5 // pred_check
      _
    $region10: #{triplet_net_forward.27} parent=5 // pred_check_branch
      %142 = sbr.rel (%p139) target = $region12
    $region11: #{triplet_net_forward.27} parent=5 // pred_region
      %s143 = ssub.s32 %s9, 1
    $region12: #{triplet_net_forward.27} parent=5 // pred_fallthru
      _
    %p144 = scmp.lt.s32.totalorder %s9, 2
    // Predicated region
    $region13: #{triplet_net_forward.27} parent=5 // pred_check
      %p145 = pneg %p144
    $region14: #{triplet_net_forward.27} parent=5 // pred_check_branch
      %147 = sbr.rel (%p145) target = $region16
    $region15: #{triplet_net_forward.27} parent=5 // pred_region
      // Predicated region
      $region17: #{triplet_net_forward.27} parent=15 // pred_check
        %p148 = pneg %p43
      $region18: #{triplet_net_forward.27} parent=15 // pred_check_branch
        %150 = sbr.rel (%p148) target = $region20
      $region19: #{triplet_net_forward.27} parent=15 // pred_region
        %s151 = smul.u32 16, %s17
        %p152 = scmp.lt.s32.totalorder %s16, 1
        %s153 = scalar_select %p152, %s16, 1
        %p154 = scmp.lt.s32.totalorder %s151, 15
        %s155 = scalar_select %p154, %s151, 15
        %s156 = smul.addr %s153, 16
        %s157 = sadd.s32 %s155, %s156
        %s158 = smul.addr %s157, 4
        %s159 = scalar_lea.vmem %s0, %s158
        %s160 = smul.u32 16, %s17
      $region20: #{triplet_net_forward.27} parent=15 // pred_fallthru
        _
      // Predicated region
      $region21: #{triplet_net_forward.27} parent=15 // pred_check
        %p161 = pneg %p69
      $region22: #{triplet_net_forward.27} parent=15 // pred_check_branch
        %163 = sbr.rel (%p161) target = $region24
      $region23: #{triplet_net_forward.27} parent=15 // pred_region
        %p164 = scmp.lt.s32.totalorder %s16, 1
        %s165 = scalar_select %p164, %s16, 1
        %s166 = smul.addr %s165, 16
        %s167 = smul.addr %s166, 4
        %s168 = scalar_lea.vmem %s1, %s167
      $region24: #{triplet_net_forward.27} parent=15 // pred_fallthru
        _
      // Predicated region
      $region25: #{triplet_net_forward.27} parent=15 // pred_check
        %p169 = pneg %p95
      $region26: #{triplet_net_forward.27} parent=15 // pred_check_branch
        %171 = sbr.rel (%p169) target = $region28
      $region27: #{triplet_net_forward.27} parent=15 // pred_region
        %p172 = scmp.lt.s32.totalorder %s16, 1
        %s173 = scalar_select %p172, %s16, 1
        %s174 = scalar_lea.vmem %s2, %s173
      $region28: #{triplet_net_forward.27} parent=15 // pred_fallthru
        _
    $region16: #{triplet_net_forward.27} parent=5 // pred_fallthru
      _
    %p175 = scmp.le.s32.totalorder 1, %s9
    %p176 = scmp.lt.s32.totalorder %s9, 3
    %p177 = pnand %p175, %p176
    %p178 = pneg %p177
    // Predicated region
    $region29: #{triplet_net_forward.27} parent=5 // pred_check
      _
    $region30: #{triplet_net_forward.27} parent=5 // pred_check_branch
      %180 = sbr.rel (%p177) target = $region32
    $region31: #{triplet_net_forward.27} parent=5 // pred_region
      %s181 = ssub.s32 %s9, 1
      %s182 = smul.u32 16, %s19
      %p183 = scmp.lt.s32.totalorder %s18, 1
      %s184 = scalar_select %p183, %s18, 1
      %p185 = scmp.lt.s32.totalorder %s182, 15
      %s186 = scalar_select %p185, %s182, 15
      %s187 = smul.addr %s184, 16
      %s188 = sadd.s32 %s186, %s187
      %s189 = smul.addr %s188, 4
      %s190 = scalar_lea.vmem %s0, %s189
      %p191 = pneg %p49
      %p192 = pneg %p46
      %p193 = scmp.lt.s32.totalorder %s18, 1
      %s194 = scalar_select %p193, %s18, 1
      %s195 = smul.addr %s194, 16
      %s196 = smul.addr %s195, 4
      %s197 = scalar_lea.vmem %s1, %s196
      %p198 = pneg %p75
      %p199 = pneg %p72
      %p200 = scmp.lt.s32.totalorder %s18, 1
      %s201 = scalar_select %p200, %s18, 1
      %s202 = scalar_lea.vmem %s2, %s201
      %p203 = pneg %p101
      %p204 = pneg %p98
      %p205 = pneg %p129
      %p206 = pneg %p126
      %s207 = smul.u32 16, %s19
      %p208 = scmp.lt.s32.totalorder %s18, 1
      %s209 = scalar_select %p208, %s18, 1
      %p210 = scmp.lt.s32.totalorder %s207, 15
      %s211 = scalar_select %p210, %s207, 15
      %s212 = smul.addr %s209, 16
      %s213 = sadd.s32 %s211, %s212
      %s214 = smul.addr %s213, 8
      %s215 = scalar_lea.vmem %s3, %s214
      %s216 = smul.u32 16, %s19
      %p217 = scmp.lt.s32.totalorder %s18, 1
      %s218 = scalar_select %p217, %s18, 1
      %p219 = scmp.lt.s32.totalorder %s216, 15
      %s220 = scalar_select %p219, %s216, 15
      %s221 = smul.addr %s218, 16
      %s222 = sadd.s32 %s220, %s221
      %s223 = smul.addr %s222, 4
      %s224 = scalar_lea.vmem %s0, %s223
      %s225 = smul.u32 16, %s19
      %p226 = scmp.lt.s32.totalorder %s18, 1
      %s227 = scalar_select %p226, %s18, 1
      %s228 = smul.addr %s227, 16
      %s229 = smul.addr %s228, 4
      %s230 = scalar_lea.vmem %s1, %s229
      %p231 = scmp.lt.s32.totalorder %s18, 1
      %s232 = scalar_select %p231, %s18, 1
      %s233 = scalar_lea.vmem %s2, %s232
      %s234 = smul.u32 16, %s19
      %p235 = scmp.lt.s32.totalorder %s18, 1
      %s236 = scalar_select %p235, %s18, 1
      %p237 = scmp.lt.s32.totalorder %s234, 15
      %s238 = scalar_select %p237, %s234, 15
      %s239 = smul.addr %s236, 16
      %s240 = sadd.s32 %s238, %s239
      %s241 = smul.addr %s240, 8
      %s242 = scalar_lea.vmem %s3, %s241
      %s243 = smul.u32 16, %s19
      %v245 = vld [vmem:[%s224] sm:$0xf]
      %v246 = vld [vmem:[%s224 + $0x4] sm:$0xf]
      %v247 = vld [vmem:[%s224 + $0x8] sm:$0xf]
      %v248 = vld [vmem:[%s224 + $0xc] sm:$0xf]
      %v249 = vld [vmem:[%s224 + $0x10] sm:$0xf]
      %v250 = vld [vmem:[%s224 + $0x14] sm:$0xf]
      %v251 = vld [vmem:[%s224 + $0x18] sm:$0xf]
      %v252 = vld [vmem:[%s224 + $0x1c] sm:$0xf]
      %v253 = vld [vmem:[%s224 + $0x20] sm:$0xf]
      %v254 = vld [vmem:[%s224 + $0x24] sm:$0xf]
      %v255 = vld [vmem:[%s224 + $0x28] sm:$0xf]
      %v256 = vld [vmem:[%s224 + $0x2c] sm:$0xf]
      %v257 = vld [vmem:[%s224 + $0x30] sm:$0xf]
      %v258 = vld [vmem:[%s224 + $0x34] sm:$0xf]
      %v259 = vld [vmem:[%s224 + $0x38] sm:$0xf]
      %v260 = vld [vmem:[%s224 + $0x3c] sm:$0xf]
      %v261 = vld [vmem:[%s230] sm:$0xf]
      %v262 = vld [vmem:[%s230 + $0x4] sm:$0xf]
      %v263 = vld [vmem:[%s230 + $0x8] sm:$0xf]
      %v264 = vld [vmem:[%s230 + $0xc] sm:$0xf]
      %v265 = vld [vmem:[%s230 + $0x10] sm:$0xf]
      %v266 = vld [vmem:[%s230 + $0x14] sm:$0xf]
      %v267 = vld [vmem:[%s230 + $0x18] sm:$0xf]
      %v268 = vld [vmem:[%s230 + $0x1c] sm:$0xf]
      %v269 = vld [vmem:[%s230 + $0x20] sm:$0xf]
      %v270 = vld [vmem:[%s230 + $0x24] sm:$0xf]
      %v271 = vld [vmem:[%s230 + $0x28] sm:$0xf]
      %v272 = vld [vmem:[%s230 + $0x2c] sm:$0xf]
      %v273 = vld [vmem:[%s230 + $0x30] sm:$0xf]
      %v274 = vld [vmem:[%s230 + $0x34] sm:$0xf]
      %v275 = vld [vmem:[%s230 + $0x38] sm:$0xf]
      %v276 = vld [vmem:[%s230 + $0x3c] sm:$0xf]
      %v277 = vld [vmem:[%s233] sm:$0x1]
      %v279 = vlaneseq
      %v280 = vshrl.u32 %v279, 7
      %v281 = vsub.s32 0, %v280
      %v282 = vrot.slane %v277, %v281
      %v300 = vunpack.c.l.b16 %v245
      %v301 = vunpack.c.l.b16 %v246
      %v302 = vunpack.c.l.b16 %v247
      %v303 = vunpack.c.l.b16 %v248
      %v304 = vunpack.c.l.b16 %v249
      %v305 = vunpack.c.l.b16 %v250
      %v306 = vunpack.c.l.b16 %v251
      %v307 = vunpack.c.l.b16 %v252
      %v308 = vunpack.c.l.b16 %v253
      %v309 = vunpack.c.l.b16 %v254
      %v310 = vunpack.c.l.b16 %v255
      %v311 = vunpack.c.l.b16 %v256
      %v312 = vunpack.c.l.b16 %v257
      %v313 = vunpack.c.l.b16 %v258
      %v314 = vunpack.c.l.b16 %v259
      %v315 = vunpack.c.l.b16 %v260
      %v316 = vpack.c.b16 %v301, %v300
      %v317 = vpack.c.b16 %v303, %v302
      %v318 = vpack.c.b16 %v305, %v304
      %v319 = vpack.c.b16 %v307, %v306
      %v320 = vpack.c.b16 %v309, %v308
      %v321 = vpack.c.b16 %v311, %v310
      %v322 = vpack.c.b16 %v313, %v312
      %v323 = vpack.c.b16 %v315, %v314
      %v348 = vunpack.c.l.b16 %v261
      %v349 = vunpack.c.l.b16 %v262
      %v350 = vunpack.c.l.b16 %v263
      %v351 = vunpack.c.l.b16 %v264
      %v352 = vunpack.c.l.b16 %v265
      %v353 = vunpack.c.l.b16 %v266
      %v354 = vunpack.c.l.b16 %v267
      %v355 = vunpack.c.l.b16 %v268
      %v356 = vunpack.c.l.b16 %v269
      %v357 = vunpack.c.l.b16 %v270
      %v358 = vunpack.c.l.b16 %v271
      %v359 = vunpack.c.l.b16 %v272
      %v360 = vunpack.c.l.b16 %v273
      %v361 = vunpack.c.l.b16 %v274
      %v362 = vunpack.c.l.b16 %v275
      %v363 = vunpack.c.l.b16 %v276
      %v364 = vpack.c.b16 %v349, %v348
      %v365 = vpack.c.b16 %v351, %v350
      %v366 = vpack.c.b16 %v353, %v352
      %v367 = vpack.c.b16 %v355, %v354
      %v368 = vpack.c.b16 %v357, %v356
      %v369 = vpack.c.b16 %v359, %v358
      %v370 = vpack.c.b16 %v361, %v360
      %v371 = vpack.c.b16 %v363, %v362
      %380 = vmatprep.subr.bf16.mxu0 0
      %381 = vmatpush1.bf16.msra.mxu0 %v364
      %382 = vmatprep.subr.bf16.mxu0 0
      %383 = vmatpush1.bf16.msra.mxu0 %v365
      %384 = vmatprep.subr.bf16.mxu0 0
      %385 = vmatpush1.bf16.msra.mxu0 %v366
      %386 = vmatprep.subr.bf16.mxu0 0
      %387 = vmatpush1.bf16.msra.mxu0 %v367
      %388 = vmatprep.subr.bf16.mxu0 0
      %389 = vmatpush1.bf16.msra.mxu0 %v368
      %390 = vmatprep.subr.bf16.mxu0 0
      %391 = vmatpush1.bf16.msra.mxu0 %v369
      %392 = vmatprep.subr.bf16.mxu0 0
      %393 = vmatpush1.bf16.msra.mxu0 %v370
      %394 = vmatprep.subr.bf16.mxu0 0
      %395 = vmatpush1.bf16.msra.mxu0 %v371
      %396 = vmatprep.subr.bf16.mxu0 0
      %397 = vmatpush1.bf16.msra.mxu0 0
      %398 = vmatprep.subr.bf16.mxu0 0
      %399 = vmatpush1.bf16.msra.mxu0 0
      %400 = vmatprep.subr.bf16.mxu0 0
      %401 = vmatpush1.bf16.msra.mxu0 0
      %402 = vmatprep.subr.bf16.mxu0 0
      %403 = vmatpush1.bf16.msra.mxu0 0
      %404 = vmatprep.subr.bf16.mxu0 0
      %405 = vmatpush1.bf16.msra.mxu0 0
      %406 = vmatprep.subr.bf16.mxu0 0
      %407 = vmatpush1.bf16.msra.mxu0 0
      %408 = vmatprep.subr.bf16.mxu0 0
      %409 = vmatpush1.bf16.msra.mxu0 0
      %410 = vmatprep.subr.bf16.mxu0 0
      %411 = vmatpush1.bf16.msra.mxu0 0
      %412 = vmatprep.mubr.bf16.mxu0 0
      %413 = vmatmul.mubr.bf16.gmra.mrb[0].mxu0 %v316
      %v414 = vpop.f32.mrb[0].mxu0
      %v415 = vadd.f32 %v282, %v414
      %v416 = vpop.f32.mrb[0].mxu0
      %v417 = vpop.f32.mrb[0].mxu0
      %v418 = vadd.f32 %v282, %v417
      %v419 = vpop.f32.mrb[0].mxu0
      %420 = vmatprep.mubr.bf16.mxu0 0
      %421 = vmatmul.mubr.bf16.gmra.mrb[0].mxu0 %v317
      %v422 = vpop.f32.mrb[0].mxu0
      %v423 = vadd.f32 %v282, %v422
      %v424 = vpop.f32.mrb[0].mxu0
      %v425 = vpop.f32.mrb[0].mxu0
      %v426 = vadd.f32 %v282, %v425
      %v427 = vpop.f32.mrb[0].mxu0
      %428 = vmatprep.mubr.bf16.mxu0 0
      %429 = vmatmul.mubr.bf16.gmra.mrb[0].mxu0 %v318
      %v430 = vpop.f32.mrb[0].mxu0
      %v431 = vadd.f32 %v282, %v430
      %v432 = vpop.f32.mrb[0].mxu0
      %v433 = vpop.f32.mrb[0].mxu0
      %v434 = vadd.f32 %v282, %v433
      %v435 = vpop.f32.mrb[0].mxu0
      %436 = vmatprep.mubr.bf16.mxu0 0
      %437 = vmatmul.mubr.bf16.gmra.mrb[0].mxu0 %v319
      %v438 = vpop.f32.mrb[0].mxu0
      %v439 = vadd.f32 %v282, %v438
      %v440 = vpop.f32.mrb[0].mxu0
      %v441 = vpop.f32.mrb[0].mxu0
      %v442 = vadd.f32 %v282, %v441
      %v443 = vpop.f32.mrb[0].mxu0
      %444 = vmatprep.mubr.bf16.mxu0 0
      %445 = vmatmul.mubr.bf16.gmra.mrb[0].mxu0 %v320
      %v446 = vpop.f32.mrb[0].mxu0
      %v447 = vadd.f32 %v282, %v446
      %v448 = vpop.f32.mrb[0].mxu0
      %v449 = vpop.f32.mrb[0].mxu0
      %v450 = vadd.f32 %v282, %v449
      %v451 = vpop.f32.mrb[0].mxu0
      %452 = vmatprep.mubr.bf16.mxu0 0
      %453 = vmatmul.mubr.bf16.gmra.mrb[0].mxu0 %v321
      %v454 = vpop.f32.mrb[0].mxu0
      %v455 = vadd.f32 %v282, %v454
      %v456 = vpop.f32.mrb[0].mxu0
      %v457 = vpop.f32.mrb[0].mxu0
      %v458 = vadd.f32 %v282, %v457
      %v459 = vpop.f32.mrb[0].mxu0
      %460 = vmatprep.mubr.bf16.mxu0 0
      %461 = vmatmul.mubr.bf16.gmra.mrb[0].mxu0 %v322
      %v462 = vpop.f32.mrb[0].mxu0
      %v463 = vadd.f32 %v282, %v462
      %v464 = vpop.f32.mrb[0].mxu0
      %v465 = vpop.f32.mrb[0].mxu0
      %v466 = vadd.f32 %v282, %v465
      %v467 = vpop.f32.mrb[0].mxu0
      %468 = vmatprep.mubr.bf16.mxu0 0
      %469 = vmatmul.mubr.bf16.gmra.mrb[0].mxu0 %v323
      %v470 = vpop.f32.mrb[0].mxu0
      %v471 = vadd.f32 %v282, %v470
      %v472 = vpop.f32.mrb[0].mxu0
      %v473 = vpop.f32.mrb[0].mxu0
      %v474 = vadd.f32 %v282, %v473
      %v475 = vpop.f32.mrb[0].mxu0
      %476 = vdwg.mxu0
      %v477 = vmax.f32 %v415, 0.0
      %v478 = vmax.f32 %v418, 0.0
      %v479 = vmax.f32 %v423, 0.0
      %v480 = vmax.f32 %v426, 0.0
      %v481 = vmax.f32 %v431, 0.0
      %v482 = vmax.f32 %v434, 0.0
      %v483 = vmax.f32 %v439, 0.0
      %v484 = vmax.f32 %v442, 0.0
      %v485 = vmax.f32 %v447, 0.0
      %v486 = vmax.f32 %v450, 0.0
      %v487 = vmax.f32 %v455, 0.0
      %v488 = vmax.f32 %v458, 0.0
      %v489 = vmax.f32 %v463, 0.0
      %v490 = vmax.f32 %v466, 0.0
      %v491 = vmax.f32 %v471, 0.0
      %v492 = vmax.f32 %v474, 0.0
      %493 = vst [vmem:[%s242] sm:$0xff] %v477
      %494 = vst [vmem:[%s242 + $0x8] sm:$0xff] %v478
      %495 = vst [vmem:[%s242 + $0x10] sm:$0xff] %v479
      %496 = vst [vmem:[%s242 + $0x18] sm:$0xff] %v480
      %497 = vst [vmem:[%s242 + $0x20] sm:$0xff] %v481
      %498 = vst [vmem:[%s242 + $0x28] sm:$0xff] %v482
      %499 = vst [vmem:[%s242 + $0x30] sm:$0xff] %v483
      %500 = vst [vmem:[%s242 + $0x38] sm:$0xff] %v484
      %501 = vst [vmem:[%s242 + $0x40] sm:$0xff] %v485
      %502 = vst [vmem:[%s242 + $0x48] sm:$0xff] %v486
      %503 = vst [vmem:[%s242 + $0x50] sm:$0xff] %v487
      %504 = vst [vmem:[%s242 + $0x58] sm:$0xff] %v488
      %505 = vst [vmem:[%s242 + $0x60] sm:$0xff] %v489
      %506 = vst [vmem:[%s242 + $0x68] sm:$0xff] %v490
      %507 = vst [vmem:[%s242 + $0x70] sm:$0xff] %v491
      %508 = vst [vmem:[%s242 + $0x78] sm:$0xff] %v492
      %s509 = smul.u32 16, %s19
      %p510 = scmp.lt.s32.totalorder %s18, 1
      %s511 = scalar_select %p510, %s18, 1
      %p512 = scmp.lt.s32.totalorder %s509, 15
      %s513 = scalar_select %p512, %s509, 15
      %s514 = smul.addr %s511, 16
      %s515 = sadd.s32 %s513, %s514
      %s516 = smul.addr %s515, 8
      %s517 = scalar_lea.vmem %s3, %s516
      // Predicated region
      $region33: #{triplet_net_forward.27} parent=31 // pred_check
        %p518 = pneg %p126
      $region34: #{triplet_net_forward.27} parent=31 // pred_check_branch
        %520 = sbr.rel (%p518) target = $region36
      $region35: #{triplet_net_forward.27} parent=31 // pred_region
        %s521 = smul.u32 16, %s19
      $region36: #{triplet_net_forward.27} parent=31 // pred_fallthru
        _
    $region32: #{triplet_net_forward.27} parent=5 // pred_fallthru
      _
    %p522 = scmp.le.s32.totalorder 2, %s9
    // Predicated region
    $region37: #{triplet_net_forward.27} parent=5 // pred_check
      %p523 = pneg %p522
    $region38: #{triplet_net_forward.27} parent=5 // pred_check_branch
      %525 = sbr.rel (%p523) target = $region40
    $region39: #{triplet_net_forward.27} parent=5 // pred_region
      %s526 = ssub.s32 %s9, 2
      // Predicated region
      $region41: #{triplet_net_forward.27} parent=39 // pred_check
        %p527 = pneg %p132
      $region42: #{triplet_net_forward.27} parent=39 // pred_check_branch
        %529 = sbr.rel (%p527) target = $region44
      $region43: #{triplet_net_forward.27} parent=39 // pred_region
        %s530 = smul.u32 16, %s21
        %p531 = scmp.lt.s32.totalorder %s20, 1
        %s532 = scalar_select %p531, %s20, 1
        %p533 = scmp.lt.s32.totalorder %s530, 15
        %s534 = scalar_select %p533, %s530, 15
        %s535 = smul.addr %s532, 16
        %s536 = sadd.s32 %s534, %s535
        %s537 = smul.addr %s536, 8
        %s538 = scalar_lea.vmem %s3, %s537
      $region44: #{triplet_net_forward.27} parent=39 // pred_fallthru
        _
    $region40: #{triplet_net_forward.27} parent=5 // pred_fallthru
      _
  $region6: #{triplet_net_forward.27} parent=0 // loop_footer
    %s13 = sadd.s32 1, %s9
  $region7: #{triplet_net_forward.27} parent=0 // loop_footer_branch
    %8 = sbr.rel target = $region3
  $region8: #{triplet_net_forward.27} parent=0 // loop_exit
    _

// kernel: triplet_net_forward.30
$region0: #{triplet_net_forward.30}
  #allocation0 [shape = 'u32[]', space=smem, size = 0x4, offset = 0x4, fixed_abs, tag = 'smem constant byte address 0x4 - core index']
  #allocation1 [shape = 'u32[144,128]{1,0:T(1,128)}', space=vmem, size = 0x12000, scoped, tag = 'internal scratch']
  %s0 = inlined_call_operand.vmem [shape: bf16[2,128,128], index: 0, kind: input, shape index: {}]
  %s1 = inlined_call_operand.vmem [shape: bf16[2,128,256], index: 1, kind: input, shape index: {}]
  %s2 = inlined_call_operand.vmem [shape: f32[2,1,256], index: 2, kind: input, shape index: {}]
  %s3 = inlined_call_operand.vmem [shape: f32[2,128,256], index: 3, kind: input, shape index: {}]
  %s4 = inlined_call_operand.vmem [shape: f32[2,128,256], index: 4, kind: output, shape index: {}]
  %s5 = sld [smem:[#allocation0]]
  $region49: #{triplet_net_forward.30} parent=0
    _
  %s7 = ssub.s32 1, %s5
  %s8 = scalar_select 0, %s7, %s5
  loop: start=0, step=1, limit=4
  $region2: #{triplet_net_forward.30} parent=0 // loop_pre_header
    _
  $region3: #{triplet_net_forward.30} parent=0 // loop_header
    %s10 = sphi 0, %s14
    %p11 = scmp.ge.s32.totalorder %s10, 4
    %s17 = sphi 0, %s29
    %s18 = sphi 0, %s25
    %s19 = sphi 0, %s17
    %s20 = sphi 0, %s18
    %s21 = sphi 0, %s19
    %s22 = sphi 0, %s20
    %s34 = sphi 0, %s36
    %s37 = sphi 0, %s34
    %s38 = sphi 0, %s37
    %s54 = sphi 0, %s38
    %s60 = sphi 0, %s62
    %s63 = sphi 0, %s60
    %s64 = sphi 0, %s63
    %s80 = sphi 0, %s64
    %s86 = sphi 0, %s88
    %s89 = sphi 0, %s86
    %s90 = sphi 0, %s89
    %s106 = sphi 0, %s90
    %s114 = sphi 0, %s116
    %s117 = sphi 0, %s114
    %s118 = sphi 0, %s117
    %s134 = sphi 0, %s118
    %s142 = sphi 0, %s144
    %s145 = sphi 0, %s142
    %s146 = sphi 0, %s145
    %s162 = sphi 0, %s146
  $region4: #{triplet_net_forward.30} parent=0 // loop_header_branch
    %13 = sbr.rel (%p11) target = $region8
  $region5: #{triplet_net_forward.30} parent=0 // loop_body
    %s15 = ssub.s32 %s10, 1
    %s16 = ssub.s32 %s10, 2
    %s23 = sadd.s32 1, %s18
    %p24 = scmp.ge.s32.totalorder %s23, 1
    %s25 = scalar_select %p24, 0, %s23
    %s26 = sadd.s32 1, %s17
    %s27 = scalar_select %p24, %s26, %s17
    %p28 = scmp.ge.s32.totalorder %s27, 2
    %s29 = scalar_select %p28, 0, %s27
    %s30 = ssub.s32 %s17, %s29
    %s31 = ssub.s32 %s18, %s25
    %s32 = sor.u32 %s30, %s31
    %p33 = scmp.eq.s32.totalorder %s32, 0
    %s35 = sadd.s32 %s34, 1
    %s36 = scalar_select %p33, %s34, %s35
    %p39 = pneg %p33
    %p40 = scmp.eq.s32.totalorder %s10, 1
    %p41 = por %p39, %p40
    %p42 = scmp.ne.s32.totalorder %s34, %s37
    %p43 = scmp.eq.s32.totalorder %s10, 0
    %p44 = por %p42, %p43
    %p45 = scmp.ne.s32.totalorder %s34, %s37
    %p46 = scmp.eq.s32.totalorder %s15, 1
    %p47 = por %p45, %p46
    %p48 = scmp.ne.s32.totalorder %s37, %s38
    %p49 = scmp.eq.s32.totalorder %s15, 0
    %p50 = por %p48, %p49
    %p51 = scmp.ne.s32.totalorder %s37, %s38
    %p52 = scmp.eq.s32.totalorder %s16, 1
    %p53 = por %p51, %p52
    %p55 = scmp.ne.s32.totalorder %s38, %s54
    %p56 = scmp.eq.s32.totalorder %s16, 0
    %p57 = por %p55, %p56
    %s58 = ssub.s32 %s17, %s29
    %p59 = scmp.eq.s32.totalorder %s58, 0
    %s61 = sadd.s32 %s60, 1
    %s62 = scalar_select %p59, %s60, %s61
    %p65 = pneg %p59
    %p66 = scmp.eq.s32.totalorder %s10, 1
    %p67 = por %p65, %p66
    %p68 = scmp.ne.s32.totalorder %s60, %s63
    %p69 = scmp.eq.s32.totalorder %s10, 0
    %p70 = por %p68, %p69
    %p71 = scmp.ne.s32.totalorder %s60, %s63
    %p72 = scmp.eq.s32.totalorder %s15, 1
    %p73 = por %p71, %p72
    %p74 = scmp.ne.s32.totalorder %s63, %s64
    %p75 = scmp.eq.s32.totalorder %s15, 0
    %p76 = por %p74, %p75
    %p77 = scmp.ne.s32.totalorder %s63, %s64
    %p78 = scmp.eq.s32.totalorder %s16, 1
    %p79 = por %p77, %p78
    %p81 = scmp.ne.s32.totalorder %s64, %s80
    %p82 = scmp.eq.s32.totalorder %s16, 0
    %p83 = por %p81, %p82
    %s84 = ssub.s32 %s17, %s29
    %p85 = scmp.eq.s32.totalorder %s84, 0
    %s87 = sadd.s32 %s86, 1
    %s88 = scalar_select %p85, %s86, %s87
    %p91 = pneg %p85
    %p92 = scmp.eq.s32.totalorder %s10, 1
    %p93 = por %p91, %p92
    %p94 = scmp.ne.s32.totalorder %s86, %s89
    %p95 = scmp.eq.s32.totalorder %s10, 0
    %p96 = por %p94, %p95
    %p97 = scmp.ne.s32.totalorder %s86, %s89
    %p98 = scmp.eq.s32.totalorder %s15, 1
    %p99 = por %p97, %p98
    %p100 = scmp.ne.s32.totalorder %s89, %s90
    %p101 = scmp.eq.s32.totalorder %s15, 0
    %p102 = por %p100, %p101
    %p103 = scmp.ne.s32.totalorder %s89, %s90
    %p104 = scmp.eq.s32.totalorder %s16, 1
    %p105 = por %p103, %p104
    %p107 = scmp.ne.s32.totalorder %s90, %s106
    %p108 = scmp.eq.s32.totalorder %s16, 0
    %p109 = por %p107, %p108
    %s110 = ssub.s32 %s17, %s29
    %s111 = ssub.s32 %s18, %s25
    %s112 = sor.u32 %s110, %s111
    %p113 = scmp.eq.s32.totalorder %s112, 0
    %s115 = sadd.s32 %s114, 1
    %s116 = scalar_select %p113, %s114, %s115
    %p119 = pneg %p113
    %p120 = scmp.eq.s32.totalorder %s10, 1
    %p121 = por %p119, %p120
    %p122 = scmp.ne.s32.totalorder %s114, %s117
    %p123 = scmp.eq.s32.totalorder %s10, 0
    %p124 = por %p122, %p123
    %p125 = scmp.ne.s32.totalorder %s114, %s117
    %p126 = scmp.eq.s32.totalorder %s15, 1
    %p127 = por %p125, %p126
    %p128 = scmp.ne.s32.totalorder %s117, %s118
    %p129 = scmp.eq.s32.totalorder %s15, 0
    %p130 = por %p128, %p129
    %p131 = scmp.ne.s32.totalorder %s117, %s118
    %p132 = scmp.eq.s32.totalorder %s16, 1
    %p133 = por %p131, %p132
    %p135 = scmp.ne.s32.totalorder %s118, %s134
    %p136 = scmp.eq.s32.totalorder %s16, 0
    %p137 = por %p135, %p136
    %s138 = ssub.s32 %s17, %s29
    %s139 = ssub.s32 %s18, %s25
    %s140 = sor.u32 %s138, %s139
    %p141 = scmp.eq.s32.totalorder %s140, 0
    %s143 = sadd.s32 %s142, 1
    %s144 = scalar_select %p141, %s142, %s143
    %p147 = pneg %p141
    %p148 = scmp.eq.s32.totalorder %s10, 1
    %p149 = por %p147, %p148
    %p150 = scmp.ne.s32.totalorder %s142, %s145
    %p151 = scmp.eq.s32.totalorder %s10, 0
    %p152 = por %p150, %p151
    %p153 = scmp.ne.s32.totalorder %s142, %s145
    %p154 = scmp.eq.s32.totalorder %s15, 1
    %p155 = por %p153, %p154
    %p156 = scmp.ne.s32.totalorder %s145, %s146
    %p157 = scmp.eq.s32.totalorder %s15, 0
    %p158 = por %p156, %p157
    %p159 = scmp.ne.s32.totalorder %s145, %s146
    %p160 = scmp.eq.s32.totalorder %s16, 1
    %p161 = por %p159, %p160
    %p163 = scmp.ne.s32.totalorder %s146, %s162
    %p164 = scmp.eq.s32.totalorder %s16, 0
    %p165 = por %p163, %p164
    %p166 = scmp.le.s32.totalorder 1, %s10
    %p167 = scmp.lt.s32.totalorder %s10, 3
    %p168 = pnand %p166, %p167
    %p169 = pneg %p168
    // Predicated region
    $region9: #{triplet_net_forward.30} parent=5 // pred_check
      _
    $region10: #{triplet_net_forward.30} parent=5 // pred_check_branch
      %171 = sbr.rel (%p168) target = $region12
    $region11: #{triplet_net_forward.30} parent=5 // pred_region
      %s172 = ssub.s32 %s10, 1
    $region12: #{triplet_net_forward.30} parent=5 // pred_fallthru
      _
    %p173 = scmp.lt.s32.totalorder %s10, 2
    // Predicated region
    $region13: #{triplet_net_forward.30} parent=5 // pred_check
      %p174 = pneg %p173
    $region14: #{triplet_net_forward.30} parent=5 // pred_check_branch
      %176 = sbr.rel (%p174) target = $region16
    $region15: #{triplet_net_forward.30} parent=5 // pred_region
      // Predicated region
      $region17: #{triplet_net_forward.30} parent=15 // pred_check
        %p177 = pneg %p44
      $region18: #{triplet_net_forward.30} parent=15 // pred_check_branch
        %179 = sbr.rel (%p177) target = $region20
      $region19: #{triplet_net_forward.30} parent=15 // pred_region
        %s180 = smul.u32 16, %s18
        %p181 = scmp.lt.s32.totalorder %s17, 1
        %s182 = scalar_select %p181, %s17, 1
        %p183 = scmp.lt.s32.totalorder %s180, 15
        %s184 = scalar_select %p183, %s180, 15
        %s185 = smul.addr %s182, 16
        %s186 = sadd.s32 %s184, %s185
        %s187 = smul.addr %s186, 4
        %s188 = scalar_lea.vmem %s0, %s187
        %s189 = smul.u32 16, %s18
      $region20: #{triplet_net_forward.30} parent=15 // pred_fallthru
        _
      // Predicated region
      $region21: #{triplet_net_forward.30} parent=15 // pred_check
        %p190 = pneg %p70
      $region22: #{triplet_net_forward.30} parent=15 // pred_check_branch
        %192 = sbr.rel (%p190) target = $region24
      $region23: #{triplet_net_forward.30} parent=15 // pred_region
        %p193 = scmp.lt.s32.totalorder %s17, 1
        %s194 = scalar_select %p193, %s17, 1
        %s195 = smul.addr %s194, 32
        %s196 = smul.addr %s195, 4
        %s197 = scalar_lea.vmem %s1, %s196
      $region24: #{triplet_net_forward.30} parent=15 // pred_fallthru
        _
      // Predicated region
      $region25: #{triplet_net_forward.30} parent=15 // pred_check
        %p198 = pneg %p96
      $region26: #{triplet_net_forward.30} parent=15 // pred_check_branch
        %200 = sbr.rel (%p198) target = $region28
      $region27: #{triplet_net_forward.30} parent=15 // pred_region
        %p201 = scmp.lt.s32.totalorder %s17, 1
        %s202 = scalar_select %p201, %s17, 1
        %s203 = smul.addr %s202, 2
        %s204 = scalar_lea.vmem %s2, %s203
      $region28: #{triplet_net_forward.30} parent=15 // pred_fallthru
        _
      // Predicated region
      $region29: #{triplet_net_forward.30} parent=15 // pred_check
        %p205 = pneg %p124
      $region30: #{triplet_net_forward.30} parent=15 // pred_check_branch
        %207 = sbr.rel (%p205) target = $region32
      $region31: #{triplet_net_forward.30} parent=15 // pred_region
        %s208 = smul.u32 16, %s18
        %p209 = scmp.lt.s32.totalorder %s17, 1
        %s210 = scalar_select %p209, %s17, 1
        %p211 = scmp.lt.s32.totalorder %s208, 15
        %s212 = scalar_select %p211, %s208, 15
        %s213 = smul.addr %s212, 2
        %s214 = smul.addr %s210, 32
        %s215 = sadd.s32 %s213, %s214
        %s216 = smul.addr %s215, 8
        %s217 = scalar_lea.vmem %s3, %s216
        %s218 = smul.u32 16, %s18
      $region32: #{triplet_net_forward.30} parent=15 // pred_fallthru
        _
    $region16: #{triplet_net_forward.30} parent=5 // pred_fallthru
      _
    %p219 = scmp.le.s32.totalorder 1, %s10
    %p220 = scmp.lt.s32.totalorder %s10, 3
    %p221 = pnand %p219, %p220
    %p222 = pneg %p221
    // Predicated region
    $region33: #{triplet_net_forward.30} parent=5 // pred_check
      _
    $region34: #{triplet_net_forward.30} parent=5 // pred_check_branch
      %224 = sbr.rel (%p221) target = $region36
    $region35: #{triplet_net_forward.30} parent=5 // pred_region
      %s225 = ssub.s32 %s10, 1
      %s226 = smul.u32 16, %s20
      %p227 = scmp.lt.s32.totalorder %s19, 1
      %s228 = scalar_select %p227, %s19, 1
      %p229 = scmp.lt.s32.totalorder %s226, 15
      %s230 = scalar_select %p229, %s226, 15
      %s231 = smul.addr %s228, 16
      %s232 = sadd.s32 %s230, %s231
      %s233 = smul.addr %s232, 4
      %s234 = scalar_lea.vmem %s0, %s233
      %p235 = pneg %p50
      %p236 = pneg %p47
      %p237 = scmp.lt.s32.totalorder %s19, 1
      %s238 = scalar_select %p237, %s19, 1
      %s239 = smul.addr %s238, 32
      %s240 = smul.addr %s239, 4
      %s241 = scalar_lea.vmem %s1, %s240
      %p242 = pneg %p76
      %p243 = pneg %p73
      %p244 = scmp.lt.s32.totalorder %s19, 1
      %s245 = scalar_select %p244, %s19, 1
      %s246 = smul.addr %s245, 2
      %s247 = scalar_lea.vmem %s2, %s246
      %p248 = pneg %p102
      %p249 = pneg %p99
      %s250 = smul.u32 16, %s20
      %p251 = scmp.lt.s32.totalorder %s19, 1
      %s252 = scalar_select %p251, %s19, 1
      %p253 = scmp.lt.s32.totalorder %s250, 15
      %s254 = scalar_select %p253, %s250, 15
      %s255 = smul.addr %s254, 2
      %s256 = smul.addr %s252, 32
      %s257 = sadd.s32 %s255, %s256
      %s258 = smul.addr %s257, 8
      %s259 = scalar_lea.vmem %s3, %s258
      %p260 = pneg %p130
      %p261 = pneg %p127
      %p262 = pneg %p158
      %p263 = pneg %p155
      %s264 = smul.u32 16, %s20
      %p265 = scmp.lt.s32.totalorder %s19, 1
      %s266 = scalar_select %p265, %s19, 1
      %p267 = scmp.lt.s32.totalorder %s264, 15
      %s268 = scalar_select %p267, %s264, 15
      %s269 = smul.addr %s268, 2
      %s270 = smul.addr %s266, 32
      %s271 = sadd.s32 %s269, %s270
      %s272 = smul.addr %s271, 8
      %s273 = scalar_lea.vmem %s4, %s272
      %s274 = smul.u32 16, %s20
      %p275 = scmp.lt.s32.totalorder %s19, 1
      %s276 = scalar_select %p275, %s19, 1
      %p277 = scmp.lt.s32.totalorder %s274, 15
      %s278 = scalar_select %p277, %s274, 15
      %s279 = smul.addr %s276, 16
      %s280 = sadd.s32 %s278, %s279
      %s281 = smul.addr %s280, 4
      %s282 = scalar_lea.vmem %s0, %s281
      %s283 = smul.u32 16, %s20
      %p284 = scmp.lt.s32.totalorder %s19, 1
      %s285 = scalar_select %p284, %s19, 1
      %s286 = smul.addr %s285, 32
      %s287 = smul.addr %s286, 4
      %s288 = scalar_lea.vmem %s1, %s287
      %p289 = scmp.lt.s32.totalorder %s19, 1
      %s290 = scalar_select %p289, %s19, 1
      %s291 = smul.addr %s290, 2
      %s292 = scalar_lea.vmem %s2, %s291
      %s293 = smul.u32 16, %s20
      %p294 = scmp.lt.s32.totalorder %s19, 1
      %s295 = scalar_select %p294, %s19, 1
      %p296 = scmp.lt.s32.totalorder %s293, 15
      %s297 = scalar_select %p296, %s293, 15
      %s298 = smul.addr %s297, 2
      %s299 = smul.addr %s295, 32
      %s300 = sadd.s32 %s298, %s299
      %s301 = smul.addr %s300, 8
      %s302 = scalar_lea.vmem %s3, %s301
      %s303 = smul.u32 16, %s20
      %s304 = smul.u32 16, %s20
      %p305 = scmp.lt.s32.totalorder %s19, 1
      %s306 = scalar_select %p305, %s19, 1
      %p307 = scmp.lt.s32.totalorder %s304, 15
      %s308 = scalar_select %p307, %s304, 15
      %s309 = smul.addr %s308, 2
      %s310 = smul.addr %s306, 32
      %s311 = sadd.s32 %s309, %s310
      %s312 = smul.addr %s311, 8
      %s313 = scalar_lea.vmem %s4, %s312
      %s314 = smul.u32 16, %s20
      %v316 = vld [vmem:[%s282] sm:$0xf]
      %v317 = vld [vmem:[%s282 + $0x4] sm:$0xf]
      %v318 = vld [vmem:[%s282 + $0x8] sm:$0xf]
      %v319 = vld [vmem:[%s282 + $0xc] sm:$0xf]
      %v320 = vld [vmem:[%s282 + $0x10] sm:$0xf]
      %v321 = vld [vmem:[%s282 + $0x14] sm:$0xf]
      %v322 = vld [vmem:[%s282 + $0x18] sm:$0xf]
      %v323 = vld [vmem:[%s282 + $0x1c] sm:$0xf]
      %v324 = vld [vmem:[%s282 + $0x20] sm:$0xf]
      %v325 = vld [vmem:[%s282 + $0x24] sm:$0xf]
      %v326 = vld [vmem:[%s282 + $0x28] sm:$0xf]
      %v327 = vld [vmem:[%s282 + $0x2c] sm:$0xf]
      %v328 = vld [vmem:[%s282 + $0x30] sm:$0xf]
      %v329 = vld [vmem:[%s282 + $0x34] sm:$0xf]
      %v330 = vld [vmem:[%s282 + $0x38] sm:$0xf]
      %v331 = vld [vmem:[%s282 + $0x3c] sm:$0xf]
      %v332 = vld [vmem:[%s288] sm:$0xff]
      %v333 = vld [vmem:[%s288 + $0x8] sm:$0xff]
      %v334 = vld [vmem:[%s288 + $0x10] sm:$0xff]
      %v335 = vld [vmem:[%s288 + $0x18] sm:$0xff]
      %v336 = vld [vmem:[%s288 + $0x20] sm:$0xff]
      %v337 = vld [vmem:[%s288 + $0x28] sm:$0xff]
      %v338 = vld [vmem:[%s288 + $0x30] sm:$0xff]
      %v339 = vld [vmem:[%s288 + $0x38] sm:$0xff]
      %v340 = vld [vmem:[%s288 + $0x40] sm:$0xff]
      %v341 = vld [vmem:[%s288 + $0x48] sm:$0xff]
      %v342 = vld [vmem:[%s288 + $0x50] sm:$0xff]
      %v343 = vld [vmem:[%s288 + $0x58] sm:$0xff]
      %v344 = vld [vmem:[%s288 + $0x60] sm:$0xff]
      %v345 = vld [vmem:[%s288 + $0x68] sm:$0xff]
      %v346 = vld [vmem:[%s288 + $0x70] sm:$0xff]
      %v347 = vld [vmem:[%s288 + $0x78] sm:$0xff]
      %v348 = vld [vmem:[%s292] sm:$0x3]
      %v350 = vlaneseq
      %v351 = vshrl.u32 %v350, 7
      %v352 = vsub.s32 0, %v351
      %v353 = vrot.slane %v348, %v352
      %v354 = vlaneseq
      %v355 = vshrl.u32 %v354, 7
      %v356 = vsub.s32 1, %v355
      %v357 = vrot.slane %v348, %v356
      %v376 = vunpack.c.l.b16 %v316
      %v377 = vunpack.c.l.b16 %v317
      %v378 = vunpack.c.l.b16 %v318
      %v379 = vunpack.c.l.b16 %v319
      %v380 = vunpack.c.l.b16 %v320
      %v381 = vunpack.c.l.b16 %v321
      %v382 = vunpack.c.l.b16 %v322
      %v383 = vunpack.c.l.b16 %v323
      %v384 = vunpack.c.l.b16 %v324
      %v385 = vunpack.c.l.b16 %v325
      %v386 = vunpack.c.l.b16 %v326
      %v387 = vunpack.c.l.b16 %v327
      %v388 = vunpack.c.l.b16 %v328
      %v389 = vunpack.c.l.b16 %v329
      %v390 = vunpack.c.l.b16 %v330
      %v391 = vunpack.c.l.b16 %v331
      %v392 = vpack.c.b16 %v377, %v376
      %v393 = vpack.c.b16 %v379, %v378
      %v394 = vpack.c.b16 %v381, %v380
      %v395 = vpack.c.b16 %v383, %v382
      %v396 = vpack.c.b16 %v385, %v384
      %v397 = vpack.c.b16 %v387, %v386
      %v398 = vpack.c.b16 %v389, %v388
      %v399 = vpack.c.b16 %v391, %v390
      %v424 = vunpack.c.l.b16 %v332
      %v425 = vunpack.c.h.b16 %v332
      %v426 = vunpack.c.l.b16 %v333
      %v427 = vunpack.c.h.b16 %v333
      %v428 = vunpack.c.l.b16 %v334
      %v429 = vunpack.c.h.b16 %v334
      %v430 = vunpack.c.l.b16 %v335
      %v431 = vunpack.c.h.b16 %v335
      %v432 = vunpack.c.l.b16 %v336
      %v433 = vunpack.c.h.b16 %v336
      %v434 = vunpack.c.l.b16 %v337
      %v435 = vunpack.c.h.b16 %v337
      %v436 = vunpack.c.l.b16 %v338
      %v437 = vunpack.c.h.b16 %v338
      %v438 = vunpack.c.l.b16 %v339
      %v439 = vunpack.c.h.b16 %v339
      %v440 = vunpack.c.l.b16 %v340
      %v441 = vunpack.c.h.b16 %v340
      %v442 = vunpack.c.l.b16 %v341
      %v443 = vunpack.c.h.b16 %v341
      %v444 = vunpack.c.l.b16 %v342
      %v445 = vunpack.c.h.b16 %v342
      %v446 = vunpack.c.l.b16 %v343
      %v447 = vunpack.c.h.b16 %v343
      %v448 = vunpack.c.l.b16 %v344
      %v449 = vunpack.c.h.b16 %v344
      %v450 = vunpack.c.l.b16 %v345
      %v451 = vunpack.c.h.b16 %v345
      %v452 = vunpack.c.l.b16 %v346
      %v453 = vunpack.c.h.b16 %v346
      %v454 = vunpack.c.l.b16 %v347
      %v455 = vunpack.c.h.b16 %v347
      %v456 = vpack.c.b16 %v426, %v424
      %v457 = vpack.c.b16 %v427, %v425
      %v458 = vpack.c.b16 %v430, %v428
      %v459 = vpack.c.b16 %v431, %v429
      %v460 = vpack.c.b16 %v434, %v432
      %v461 = vpack.c.b16 %v435, %v433
      %v462 = vpack.c.b16 %v438, %v436
      %v463 = vpack.c.b16 %v439, %v437
      %v464 = vpack.c.b16 %v442, %v440
      %v465 = vpack.c.b16 %v443, %v441
      %v466 = vpack.c.b16 %v446, %v444
      %v467 = vpack.c.b16 %v447, %v445
      %v468 = vpack.c.b16 %v450, %v448
      %v469 = vpack.c.b16 %v451, %v449
      %v470 = vpack.c.b16 %v454, %v452
      %v471 = vpack.c.b16 %v455, %v453
      %488 = vmatprep.subr.bf16.mxu0 %v457
      %489 = vmatpush1.bf16.msra.mxu0 %v456
      %490 = vmatprep.subr.bf16.mxu0 %v459
      %491 = vmatpush1.bf16.msra.mxu0 %v458
      %492 = vmatprep.subr.bf16.mxu0 %v461
      %493 = vmatpush1.bf16.msra.mxu0 %v460
      %494 = vmatprep.subr.bf16.mxu0 %v463
      %495 = vmatpush1.bf16.msra.mxu0 %v462
      %496 = vmatprep.subr.bf16.mxu0 %v465
      %497 = vmatpush1.bf16.msra.mxu0 %v464
      %498 = vmatprep.subr.bf16.mxu0 %v467
      %499 = vmatpush1.bf16.msra.mxu0 %v466
      %500 = vmatprep.subr.bf16.mxu0 %v469
      %501 = vmatpush1.bf16.msra.mxu0 %v468
      %502 = vmatprep.subr.bf16.mxu0 %v471
      %503 = vmatpush1.bf16.msra.mxu0 %v470
      %504 = vmatprep.subr.bf16.mxu0 0
      %505 = vmatpush1.bf16.msra.mxu0 0
      %506 = vmatprep.subr.bf16.mxu0 0
      %507 = vmatpush1.bf16.msra.mxu0 0
      %508 = vmatprep.subr.bf16.mxu0 0
      %509 = vmatpush1.bf16.msra.mxu0 0
      %510 = vmatprep.subr.bf16.mxu0 0
      %511 = vmatpush1.bf16.msra.mxu0 0
      %512 = vmatprep.subr.bf16.mxu0 0
      %513 = vmatpush1.bf16.msra.mxu0 0
      %514 = vmatprep.subr.bf16.mxu0 0
      %515 = vmatpush1.bf16.msra.mxu0 0
      %516 = vmatprep.subr.bf16.mxu0 0
      %517 = vmatpush1.bf16.msra.mxu0 0
      %518 = vmatprep.subr.bf16.mxu0 0
      %519 = vmatpush1.bf16.msra.mxu0 0
      %520 = vmatprep.mubr.bf16.mxu0 0
      %521 = vmatmul.mubr.bf16.gmra.mrb[0].mxu0 %v392
      %v522 = vpop.f32.mrb[0].mxu0
      %v523 = vadd.f32 %v353, %v522
      %v524 = vpop.f32.mrb[0].mxu0
      %v525 = vadd.f32 %v357, %v524
      %v526 = vpop.f32.mrb[0].mxu0
      %v527 = vadd.f32 %v353, %v526
      %v528 = vpop.f32.mrb[0].mxu0
      %v529 = vadd.f32 %v357, %v528
      %530 = vmatprep.mubr.bf16.mxu0 0
      %531 = vmatmul.mubr.bf16.gmra.mrb[0].mxu0 %v393
      %v532 = vpop.f32.mrb[0].mxu0
      %v533 = vadd.f32 %v353, %v532
      %v534 = vpop.f32.mrb[0].mxu0
      %v535 = vadd.f32 %v357, %v534
      %v536 = vpop.f32.mrb[0].mxu0
      %v537 = vadd.f32 %v353, %v536
      %v538 = vpop.f32.mrb[0].mxu0
      %v539 = vadd.f32 %v357, %v538
      %540 = vmatprep.mubr.bf16.mxu0 0
      %541 = vmatmul.mubr.bf16.gmra.mrb[0].mxu0 %v394
      %v542 = vpop.f32.mrb[0].mxu0
      %v543 = vadd.f32 %v353, %v542
      %v544 = vpop.f32.mrb[0].mxu0
      %v545 = vadd.f32 %v357, %v544
      %v546 = vpop.f32.mrb[0].mxu0
      %v547 = vadd.f32 %v353, %v546
      %v548 = vpop.f32.mrb[0].mxu0
      %v549 = vadd.f32 %v357, %v548
      %550 = vmatprep.mubr.bf16.mxu0 0
      %551 = vmatmul.mubr.bf16.gmra.mrb[0].mxu0 %v395
      %v552 = vpop.f32.mrb[0].mxu0
      %v553 = vadd.f32 %v353, %v552
      %v554 = vpop.f32.mrb[0].mxu0
      %v555 = vadd.f32 %v357, %v554
      %v556 = vpop.f32.mrb[0].mxu0
      %v557 = vadd.f32 %v353, %v556
      %v558 = vpop.f32.mrb[0].mxu0
      %v559 = vadd.f32 %v357, %v558
      %560 = vmatprep.mubr.bf16.mxu0 0
      %561 = vmatmul.mubr.bf16.gmra.mrb[0].mxu0 %v396
      %v562 = vpop.f32.mrb[0].mxu0
      %v563 = vadd.f32 %v353, %v562
      %v564 = vpop.f32.mrb[0].mxu0
      %v565 = vadd.f32 %v357, %v564
      %v566 = vpop.f32.mrb[0].mxu0
      %v567 = vadd.f32 %v353, %v566
      %v568 = vpop.f32.mrb[0].mxu0
      %v569 = vadd.f32 %v357, %v568
      %570 = vmatprep.mubr.bf16.mxu0 0
      %571 = vmatmul.mubr.bf16.gmra.mrb[0].mxu0 %v397
      %v572 = vpop.f32.mrb[0].mxu0
      %v573 = vadd.f32 %v353, %v572
      %v574 = vpop.f32.mrb[0].mxu0
      %v575 = vadd.f32 %v357, %v574
      %v576 = vpop.f32.mrb[0].mxu0
      %v577 = vadd.f32 %v353, %v576
      %v578 = vpop.f32.mrb[0].mxu0
      %v579 = vadd.f32 %v357, %v578
      %580 = vmatprep.mubr.bf16.mxu0 0
      %581 = vmatmul.mubr.bf16.gmra.mrb[0].mxu0 %v398
      %v582 = vpop.f32.mrb[0].mxu0
      %v583 = vadd.f32 %v353, %v582
      %v584 = vpop.f32.mrb[0].mxu0
      %v585 = vadd.f32 %v357, %v584
      %v586 = vpop.f32.mrb[0].mxu0
      %v587 = vadd.f32 %v353, %v586
      %v588 = vpop.f32.mrb[0].mxu0
      %v589 = vadd.f32 %v357, %v588
      %590 = vmatprep.mubr.bf16.mxu0 0
      %591 = vmatmul.mubr.bf16.gmra.mrb[0].mxu0 %v399
      %v592 = vpop.f32.mrb[0].mxu0
      %v593 = vadd.f32 %v353, %v592
      %v594 = vpop.f32.mrb[0].mxu0
      %v595 = vadd.f32 %v357, %v594
      %v596 = vpop.f32.mrb[0].mxu0
      %v597 = vadd.f32 %v353, %v596
      %v598 = vpop.f32.mrb[0].mxu0
      %v599 = vadd.f32 %v357, %v598
      %600 = vdwg.mxu0
      %v601 = vld [vmem:[%s302] sm:$0xff]
      %v602 = vld [vmem:[%s302 + $0x8] sm:$0xff]
      %v603 = vld [vmem:[%s302 + $0x10] sm:$0xff]
      %v604 = vld [vmem:[%s302 + $0x18] sm:$0xff]
      %v605 = vld [vmem:[%s302 + $0x20] sm:$0xff]
      %v606 = vld [vmem:[%s302 + $0x28] sm:$0xff]
      %v607 = vld [vmem:[%s302 + $0x30] sm:$0xff]
      %v608 = vld [vmem:[%s302 + $0x38] sm:$0xff]
      %v609 = vld [vmem:[%s302 + $0x40] sm:$0xff]
      %v610 = vld [vmem:[%s302 + $0x48] sm:$0xff]
      %v611 = vld [vmem:[%s302 + $0x50] sm:$0xff]
      %v612 = vld [vmem:[%s302 + $0x58] sm:$0xff]
      %v613 = vld [vmem:[%s302 + $0x60] sm:$0xff]
      %v614 = vld [vmem:[%s302 + $0x68] sm:$0xff]
      %v615 = vld [vmem:[%s302 + $0x70] sm:$0xff]
      %v616 = vld [vmem:[%s302 + $0x78] sm:$0xff]
      %v617 = vld [vmem:[%s302 + $0x80] sm:$0xff]
      %v618 = vld [vmem:[%s302 + $0x88] sm:$0xff]
      %v619 = vld [vmem:[%s302 + $0x90] sm:$0xff]
      %v620 = vld [vmem:[%s302 + $0x98] sm:$0xff]
      %v621 = vld [vmem:[%s302 + $0xa0] sm:$0xff]
      %v622 = vld [vmem:[%s302 + $0xa8] sm:$0xff]
      %v623 = vld [vmem:[%s302 + $0xb0] sm:$0xff]
      %v624 = vld [vmem:[%s302 + $0xb8] sm:$0xff]
      %v625 = vld [vmem:[%s302 + $0xc0] sm:$0xff]
      %v626 = vld [vmem:[%s302 + $0xc8] sm:$0xff]
      %v627 = vld [vmem:[%s302 + $0xd0] sm:$0xff]
      %v628 = vld [vmem:[%s302 + $0xd8] sm:$0xff]
      %v629 = vld [vmem:[%s302 + $0xe0] sm:$0xff]
      %v630 = vld [vmem:[%s302 + $0xe8] sm:$0xff]
      %v631 = vld [vmem:[%s302 + $0xf0] sm:$0xff]
      %v632 = vld [vmem:[%s302 + $0xf8] sm:$0xff]
      %v633 = vadd.f32 %v523, %v601
      %v634 = vadd.f32 %v525, %v602
      %v635 = vadd.f32 %v527, %v603
      %v636 = vadd.f32 %v529, %v604
      %v637 = vadd.f32 %v533, %v605
      %v638 = vadd.f32 %v535, %v606
      %v639 = vadd.f32 %v537, %v607
      %v640 = vadd.f32 %v539, %v608
      %v641 = vadd.f32 %v543, %v609
      %v642 = vadd.f32 %v545, %v610
      %v643 = vadd.f32 %v547, %v611
      %v644 = vadd.f32 %v549, %v612
      %v645 = vadd.f32 %v553, %v613
      %v646 = vadd.f32 %v555, %v614
      %v647 = vadd.f32 %v557, %v615
      %v648 = vadd.f32 %v559, %v616
      %v649 = vadd.f32 %v563, %v617
      %v650 = vadd.f32 %v565, %v618
      %v651 = vadd.f32 %v567, %v619
      %v652 = vadd.f32 %v569, %v620
      %v653 = vadd.f32 %v573, %v621
      %v654 = vadd.f32 %v575, %v622
      %v655 = vadd.f32 %v577, %v623
      %v656 = vadd.f32 %v579, %v624
      %v657 = vadd.f32 %v583, %v625
      %v658 = vadd.f32 %v585, %v626
      %v659 = vadd.f32 %v587, %v627
      %v660 = vadd.f32 %v589, %v628
      %v661 = vadd.f32 %v593, %v629
      %v662 = vadd.f32 %v595, %v630
      %v663 = vadd.f32 %v597, %v631
      %v664 = vadd.f32 %v599, %v632
      %v665 = vmax.f32 %v633, 0.0
      %v666 = vmax.f32 %v634, 0.0
      %v667 = vmax.f32 %v635, 0.0
      %v668 = vmax.f32 %v636, 0.0
      %v669 = vmax.f32 %v637, 0.0
      %v670 = vmax.f32 %v638, 0.0
      %v671 = vmax.f32 %v639, 0.0
      %v672 = vmax.f32 %v640, 0.0
      %v673 = vmax.f32 %v641, 0.0
      %v674 = vmax.f32 %v642, 0.0
      %v675 = vmax.f32 %v643, 0.0
      %v676 = vmax.f32 %v644, 0.0
      %v677 = vmax.f32 %v645, 0.0
      %v678 = vmax.f32 %v646, 0.0
      %v679 = vmax.f32 %v647, 0.0
      %v680 = vmax.f32 %v648, 0.0
      %v681 = vmax.f32 %v649, 0.0
      %v682 = vmax.f32 %v650, 0.0
      %v683 = vmax.f32 %v651, 0.0
      %v684 = vmax.f32 %v652, 0.0
      %v685 = vmax.f32 %v653, 0.0
      %v686 = vmax.f32 %v654, 0.0
      %v687 = vmax.f32 %v655, 0.0
      %v688 = vmax.f32 %v656, 0.0
      %v689 = vmax.f32 %v657, 0.0
      %v690 = vmax.f32 %v658, 0.0
      %v691 = vmax.f32 %v659, 0.0
      %v692 = vmax.f32 %v660, 0.0
      %v693 = vmax.f32 %v661, 0.0
      %v694 = vmax.f32 %v662, 0.0
      %v695 = vmax.f32 %v663, 0.0
      %v696 = vmax.f32 %v664, 0.0
      %697 = vst [vmem:[%s313] sm:$0xff] %v665
      %698 = vst [vmem:[%s313 + $0x8] sm:$0xff] %v666
      %699 = vst [vmem:[%s313 + $0x10] sm:$0xff] %v667
      %700 = vst [vmem:[%s313 + $0x18] sm:$0xff] %v668
      %701 = vst [vmem:[%s313 + $0x20] sm:$0xff] %v669
      %702 = vst [vmem:[%s313 + $0x28] sm:$0xff] %v670
      %703 = vst [vmem:[%s313 + $0x30] sm:$0xff] %v671
      %704 = vst [vmem:[%s313 + $0x38] sm:$0xff] %v672
      %705 = vst [vmem:[%s313 + $0x40] sm:$0xff] %v673
      %706 = vst [vmem:[%s313 + $0x48] sm:$0xff] %v674
      %707 = vst [vmem:[%s313 + $0x50] sm:$0xff] %v675
      %708 = vst [vmem:[%s313 + $0x58] sm:$0xff] %v676
      %709 = vst [vmem:[%s313 + $0x60] sm:$0xff] %v677
      %710 = vst [vmem:[%s313 + $0x68] sm:$0xff] %v678
      %711 = vst [vmem:[%s313 + $0x70] sm:$0xff] %v679
      %712 = vst [vmem:[%s313 + $0x78] sm:$0xff] %v680
      %713 = vst [vmem:[%s313 + $0x80] sm:$0xff] %v681
      %714 = vst [vmem:[%s313 + $0x88] sm:$0xff] %v682
      %715 = vst [vmem:[%s313 + $0x90] sm:$0xff] %v683
      %716 = vst [vmem:[%s313 + $0x98] sm:$0xff] %v684
      %717 = vst [vmem:[%s313 + $0xa0] sm:$0xff] %v685
      %718 = vst [vmem:[%s313 + $0xa8] sm:$0xff] %v686
      %719 = vst [vmem:[%s313 + $0xb0] sm:$0xff] %v687
      %720 = vst [vmem:[%s313 + $0xb8] sm:$0xff] %v688
      %721 = vst [vmem:[%s313 + $0xc0] sm:$0xff] %v689
      %722 = vst [vmem:[%s313 + $0xc8] sm:$0xff] %v690
      %723 = vst [vmem:[%s313 + $0xd0] sm:$0xff] %v691
      %724 = vst [vmem:[%s313 + $0xd8] sm:$0xff] %v692
      %725 = vst [vmem:[%s313 + $0xe0] sm:$0xff] %v693
      %726 = vst [vmem:[%s313 + $0xe8] sm:$0xff] %v694
      %727 = vst [vmem:[%s313 + $0xf0] sm:$0xff] %v695
      %728 = vst [vmem:[%s313 + $0xf8] sm:$0xff] %v696
      %s729 = smul.u32 16, %s20
      %p730 = scmp.lt.s32.totalorder %s19, 1
      %s731 = scalar_select %p730, %s19, 1
      %p732 = scmp.lt.s32.totalorder %s729, 15
      %s733 = scalar_select %p732, %s729, 15
      %s734 = smul.addr %s733, 2
      %s735 = smul.addr %s731, 32
      %s736 = sadd.s32 %s734, %s735
      %s737 = smul.addr %s736, 8
      %s738 = scalar_lea.vmem %s4, %s737
      // Predicated region
      $region37: #{triplet_net_forward.30} parent=35 // pred_check
        %p739 = pneg %p155
      $region38: #{triplet_net_forward.30} parent=35 // pred_check_branch
        %741 = sbr.rel (%p739) target = $region40
      $region39: #{triplet_net_forward.30} parent=35 // pred_region
        %s742 = smul.u32 16, %s20
      $region40: #{triplet_net_forward.30} parent=35 // pred_fallthru
        _
    $region36: #{triplet_net_forward.30} parent=5 // pred_fallthru
      _
    %p743 = scmp.le.s32.totalorder 2, %s10
    // Predicated region
    $region41: #{triplet_net_forward.30} parent=5 // pred_check
      %p744 = pneg %p743
    $region42: #{triplet_net_forward.30} parent=5 // pred_check_branch
      %746 = sbr.rel (%p744) target = $region44
    $region43: #{triplet_net_forward.30} parent=5 // pred_region
      %s747 = ssub.s32 %s10, 2
      // Predicated region
      $region45: #{triplet_net_forward.30} parent=43 // pred_check
        %p748 = pneg %p161
      $region46: #{triplet_net_forward.30} parent=43 // pred_check_branch
        %750 = sbr.rel (%p748) target = $region48
      $region47: #{triplet_net_forward.30} parent=43 // pred_region
        %s751 = smul.u32 16, %s22
        %p752 = scmp.lt.s32.totalorder %s21, 1
        %s753 = scalar_select %p752, %s21, 1
        %p754 = scmp.lt.s32.totalorder %s751, 15
        %s755 = scalar_select %p754, %s751, 15
        %s756 = smul.addr %s755, 2
        %s757 = smul.addr %s753, 32
        %s758 = sadd.s32 %s756, %s757
        %s759 = smul.addr %s758, 8
        %s760 = scalar_lea.vmem %s4, %s759
      $region48: #{triplet_net_forward.30} parent=43 // pred_fallthru
        _
    $region44: #{triplet_net_forward.30} parent=5 // pred_fallthru
      _
  $region6: #{triplet_net_forward.30} parent=0 // loop_footer
    %s14 = sadd.s32 1, %s10
  $region7: #{triplet_net_forward.30} parent=0 // loop_footer_branch
    %9 = sbr.rel target = $region3
  $region8: #{triplet_net_forward.30} parent=0 // loop_exit
    _

// kernel: triplet_net_forward.31
$region0: #{triplet_net_forward.31}
  #allocation0 [shape = 'u32[]', space=smem, size = 0x4, offset = 0x4, fixed_abs, tag = 'smem constant byte address 0x4 - core index']
  #allocation1 [shape = 'u32[144,128]{1,0:T(1,128)}', space=vmem, size = 0x12000, scoped, tag = 'internal scratch']
  %s0 = inlined_call_operand.vmem [shape: bf16[2,128,256], index: 0, kind: input, shape index: {}]
  %s1 = inlined_call_operand.vmem [shape: bf16[2,256,128], index: 1, kind: input, shape index: {}]
  %s2 = inlined_call_operand.vmem [shape: f32[2,1,128], index: 2, kind: input, shape index: {}]
  %s3 = inlined_call_operand.vmem [shape: f32[2,128,128], index: 3, kind: output, shape index: {}]
  %s4 = sld [smem:[#allocation0]]
  $region45: #{triplet_net_forward.31} parent=0
    _
  %s6 = ssub.s32 1, %s4
  %s7 = scalar_select 0, %s6, %s4
  loop: start=0, step=1, limit=4
  $region2: #{triplet_net_forward.31} parent=0 // loop_pre_header
    _
  $region3: #{triplet_net_forward.31} parent=0 // loop_header
    %s9 = sphi 0, %s13
    %p10 = scmp.ge.s32.totalorder %s9, 4
    %s16 = sphi 0, %s28
    %s17 = sphi 0, %s24
    %s18 = sphi 0, %s16
    %s19 = sphi 0, %s17
    %s20 = sphi 0, %s18
    %s21 = sphi 0, %s19
    %s33 = sphi 0, %s35
    %s36 = sphi 0, %s33
    %s37 = sphi 0, %s36
    %s53 = sphi 0, %s37
    %s59 = sphi 0, %s61
    %s62 = sphi 0, %s59
    %s63 = sphi 0, %s62
    %s79 = sphi 0, %s63
    %s85 = sphi 0, %s87
    %s88 = sphi 0, %s85
    %s89 = sphi 0, %s88
    %s105 = sphi 0, %s89
    %s113 = sphi 0, %s115
    %s116 = sphi 0, %s113
    %s117 = sphi 0, %s116
    %s133 = sphi 0, %s117
  $region4: #{triplet_net_forward.31} parent=0 // loop_header_branch
    %12 = sbr.rel (%p10) target = $region8
  $region5: #{triplet_net_forward.31} parent=0 // loop_body
    %s14 = ssub.s32 %s9, 1
    %s15 = ssub.s32 %s9, 2
    %s22 = sadd.s32 1, %s17
    %p23 = scmp.ge.s32.totalorder %s22, 1
    %s24 = scalar_select %p23, 0, %s22
    %s25 = sadd.s32 1, %s16
    %s26 = scalar_select %p23, %s25, %s16
    %p27 = scmp.ge.s32.totalorder %s26, 2
    %s28 = scalar_select %p27, 0, %s26
    %s29 = ssub.s32 %s16, %s28
    %s30 = ssub.s32 %s17, %s24
    %s31 = sor.u32 %s29, %s30
    %p32 = scmp.eq.s32.totalorder %s31, 0
    %s34 = sadd.s32 %s33, 1
    %s35 = scalar_select %p32, %s33, %s34
    %p38 = pneg %p32
    %p39 = scmp.eq.s32.totalorder %s9, 1
    %p40 = por %p38, %p39
    %p41 = scmp.ne.s32.totalorder %s33, %s36
    %p42 = scmp.eq.s32.totalorder %s9, 0
    %p43 = por %p41, %p42
    %p44 = scmp.ne.s32.totalorder %s33, %s36
    %p45 = scmp.eq.s32.totalorder %s14, 1
    %p46 = por %p44, %p45
    %p47 = scmp.ne.s32.totalorder %s36, %s37
    %p48 = scmp.eq.s32.totalorder %s14, 0
    %p49 = por %p47, %p48
    %p50 = scmp.ne.s32.totalorder %s36, %s37
    %p51 = scmp.eq.s32.totalorder %s15, 1
    %p52 = por %p50, %p51
    %p54 = scmp.ne.s32.totalorder %s37, %s53
    %p55 = scmp.eq.s32.totalorder %s15, 0
    %p56 = por %p54, %p55
    %s57 = ssub.s32 %s16, %s28
    %p58 = scmp.eq.s32.totalorder %s57, 0
    %s60 = sadd.s32 %s59, 1
    %s61 = scalar_select %p58, %s59, %s60
    %p64 = pneg %p58
    %p65 = scmp.eq.s32.totalorder %s9, 1
    %p66 = por %p64, %p65
    %p67 = scmp.ne.s32.totalorder %s59, %s62
    %p68 = scmp.eq.s32.totalorder %s9, 0
    %p69 = por %p67, %p68
    %p70 = scmp.ne.s32.totalorder %s59, %s62
    %p71 = scmp.eq.s32.totalorder %s14, 1
    %p72 = por %p70, %p71
    %p73 = scmp.ne.s32.totalorder %s62, %s63
    %p74 = scmp.eq.s32.totalorder %s14, 0
    %p75 = por %p73, %p74
    %p76 = scmp.ne.s32.totalorder %s62, %s63
    %p77 = scmp.eq.s32.totalorder %s15, 1
    %p78 = por %p76, %p77
    %p80 = scmp.ne.s32.totalorder %s63, %s79
    %p81 = scmp.eq.s32.totalorder %s15, 0
    %p82 = por %p80, %p81
    %s83 = ssub.s32 %s16, %s28
    %p84 = scmp.eq.s32.totalorder %s83, 0
    %s86 = sadd.s32 %s85, 1
    %s87 = scalar_select %p84, %s85, %s86
    %p90 = pneg %p84
    %p91 = scmp.eq.s32.totalorder %s9, 1
    %p92 = por %p90, %p91
    %p93 = scmp.ne.s32.totalorder %s85, %s88
    %p94 = scmp.eq.s32.totalorder %s9, 0
    %p95 = por %p93, %p94
    %p96 = scmp.ne.s32.totalorder %s85, %s88
    %p97 = scmp.eq.s32.totalorder %s14, 1
    %p98 = por %p96, %p97
    %p99 = scmp.ne.s32.totalorder %s88, %s89
    %p100 = scmp.eq.s32.totalorder %s14, 0
    %p101 = por %p99, %p100
    %p102 = scmp.ne.s32.totalorder %s88, %s89
    %p103 = scmp.eq.s32.totalorder %s15, 1
    %p104 = por %p102, %p103
    %p106 = scmp.ne.s32.totalorder %s89, %s105
    %p107 = scmp.eq.s32.totalorder %s15, 0
    %p108 = por %p106, %p107
    %s109 = ssub.s32 %s16, %s28
    %s110 = ssub.s32 %s17, %s24
    %s111 = sor.u32 %s109, %s110
    %p112 = scmp.eq.s32.totalorder %s111, 0
    %s114 = sadd.s32 %s113, 1
    %s115 = scalar_select %p112, %s113, %s114
    %p118 = pneg %p112
    %p119 = scmp.eq.s32.totalorder %s9, 1
    %p120 = por %p118, %p119
    %p121 = scmp.ne.s32.totalorder %s113, %s116
    %p122 = scmp.eq.s32.totalorder %s9, 0
    %p123 = por %p121, %p122
    %p124 = scmp.ne.s32.totalorder %s113, %s116
    %p125 = scmp.eq.s32.totalorder %s14, 1
    %p126 = por %p124, %p125
    %p127 = scmp.ne.s32.totalorder %s116, %s117
    %p128 = scmp.eq.s32.totalorder %s14, 0
    %p129 = por %p127, %p128
    %p130 = scmp.ne.s32.totalorder %s116, %s117
    %p131 = scmp.eq.s32.totalorder %s15, 1
    %p132 = por %p130, %p131
    %p134 = scmp.ne.s32.totalorder %s117, %s133
    %p135 = scmp.eq.s32.totalorder %s15, 0
    %p136 = por %p134, %p135
    %p137 = scmp.le.s32.totalorder 1, %s9
    %p138 = scmp.lt.s32.totalorder %s9, 3
    %p139 = pnand %p137, %p138
    %p140 = pneg %p139
    // Predicated region
    $region9: #{triplet_net_forward.31} parent=5 // pred_check
      _
    $region10: #{triplet_net_forward.31} parent=5 // pred_check_branch
      %142 = sbr.rel (%p139) target = $region12
    $region11: #{triplet_net_forward.31} parent=5 // pred_region
      %s143 = ssub.s32 %s9, 1
    $region12: #{triplet_net_forward.31} parent=5 // pred_fallthru
      _
    %p144 = scmp.lt.s32.totalorder %s9, 2
    // Predicated region
    $region13: #{triplet_net_forward.31} parent=5 // pred_check
      %p145 = pneg %p144
    $region14: #{triplet_net_forward.31} parent=5 // pred_check_branch
      %147 = sbr.rel (%p145) target = $region16
    $region15: #{triplet_net_forward.31} parent=5 // pred_region
      // Predicated region
      $region17: #{triplet_net_forward.31} parent=15 // pred_check
        %p148 = pneg %p43
      $region18: #{triplet_net_forward.31} parent=15 // pred_check_branch
        %150 = sbr.rel (%p148) target = $region20
      $region19: #{triplet_net_forward.31} parent=15 // pred_region
        %s151 = smul.u32 16, %s17
        %p152 = scmp.lt.s32.totalorder %s16, 1
        %s153 = scalar_select %p152, %s16, 1
        %p154 = scmp.lt.s32.totalorder %s151, 15
        %s155 = scalar_select %p154, %s151, 15
        %s156 = smul.addr %s155, 2
        %s157 = smul.addr %s153, 32
        %s158 = sadd.s32 %s156, %s157
        %s159 = smul.addr %s158, 4
        %s160 = scalar_lea.vmem %s0, %s159
        %s161 = smul.u32 16, %s17
      $region20: #{triplet_net_forward.31} parent=15 // pred_fallthru
        _
      // Predicated region
      $region21: #{triplet_net_forward.31} parent=15 // pred_check
        %p162 = pneg %p69
      $region22: #{triplet_net_forward.31} parent=15 // pred_check_branch
        %164 = sbr.rel (%p162) target = $region24
      $region23: #{triplet_net_forward.31} parent=15 // pred_region
        %p165 = scmp.lt.s32.totalorder %s16, 1
        %s166 = scalar_select %p165, %s16, 1
        %s167 = smul.addr %s166, 32
        %s168 = smul.addr %s167, 4
        %s169 = scalar_lea.vmem %s1, %s168
      $region24: #{triplet_net_forward.31} parent=15 // pred_fallthru
        _
      // Predicated region
      $region25: #{triplet_net_forward.31} parent=15 // pred_check
        %p170 = pneg %p95
      $region26: #{triplet_net_forward.31} parent=15 // pred_check_branch
        %172 = sbr.rel (%p170) target = $region28
      $region27: #{triplet_net_forward.31} parent=15 // pred_region
        %p173 = scmp.lt.s32.totalorder %s16, 1
        %s174 = scalar_select %p173, %s16, 1
        %s175 = scalar_lea.vmem %s2, %s174
      $region28: #{triplet_net_forward.31} parent=15 // pred_fallthru
        _
    $region16: #{triplet_net_forward.31} parent=5 // pred_fallthru
      _
    %p176 = scmp.le.s32.totalorder 1, %s9
    %p177 = scmp.lt.s32.totalorder %s9, 3
    %p178 = pnand %p176, %p177
    %p179 = pneg %p178
    // Predicated region
    $region29: #{triplet_net_forward.31} parent=5 // pred_check
      _
    $region30: #{triplet_net_forward.31} parent=5 // pred_check_branch
      %181 = sbr.rel (%p178) target = $region32
    $region31: #{triplet_net_forward.31} parent=5 // pred_region
      %s182 = ssub.s32 %s9, 1
      %s183 = smul.u32 16, %s19
      %p184 = scmp.lt.s32.totalorder %s18, 1
      %s185 = scalar_select %p184, %s18, 1
      %p186 = scmp.lt.s32.totalorder %s183, 15
      %s187 = scalar_select %p186, %s183, 15
      %s188 = smul.addr %s187, 2
      %s189 = smul.addr %s185, 32
      %s190 = sadd.s32 %s188, %s189
      %s191 = smul.addr %s190, 4
      %s192 = scalar_lea.vmem %s0, %s191
      %p193 = pneg %p49
      %p194 = pneg %p46
      %p195 = scmp.lt.s32.totalorder %s18, 1
      %s196 = scalar_select %p195, %s18, 1
      %s197 = smul.addr %s196, 32
      %s198 = smul.addr %s197, 4
      %s199 = scalar_lea.vmem %s1, %s198
      %p200 = pneg %p75
      %p201 = pneg %p72
      %p202 = scmp.lt.s32.totalorder %s18, 1
      %s203 = scalar_select %p202, %s18, 1
      %s204 = scalar_lea.vmem %s2, %s203
      %p205 = pneg %p101
      %p206 = pneg %p98
      %p207 = pneg %p129
      %p208 = pneg %p126
      %s209 = smul.u32 16, %s19
      %p210 = scmp.lt.s32.totalorder %s18, 1
      %s211 = scalar_select %p210, %s18, 1
      %p212 = scmp.lt.s32.totalorder %s209, 15
      %s213 = scalar_select %p212, %s209, 15
      %s214 = smul.addr %s211, 16
      %s215 = sadd.s32 %s213, %s214
      %s216 = smul.addr %s215, 8
      %s217 = scalar_lea.vmem %s3, %s216
      %s218 = smul.u32 16, %s19
      %p219 = scmp.lt.s32.totalorder %s18, 1
      %s220 = scalar_select %p219, %s18, 1
      %p221 = scmp.lt.s32.totalorder %s218, 15
      %s222 = scalar_select %p221, %s218, 15
      %s223 = smul.addr %s222, 2
      %s224 = smul.addr %s220, 32
      %s225 = sadd.s32 %s223, %s224
      %s226 = smul.addr %s225, 4
      %s227 = scalar_lea.vmem %s0, %s226
      %s228 = smul.u32 16, %s19
      %p229 = scmp.lt.s32.totalorder %s18, 1
      %s230 = scalar_select %p229, %s18, 1
      %s231 = smul.addr %s230, 32
      %s232 = smul.addr %s231, 4
      %s233 = scalar_lea.vmem %s1, %s232
      %p234 = scmp.lt.s32.totalorder %s18, 1
      %s235 = scalar_select %p234, %s18, 1
      %s236 = scalar_lea.vmem %s2, %s235
      %s237 = smul.u32 16, %s19
      %p238 = scmp.lt.s32.totalorder %s18, 1
      %s239 = scalar_select %p238, %s18, 1
      %p240 = scmp.lt.s32.totalorder %s237, 15
      %s241 = scalar_select %p240, %s237, 15
      %s242 = smul.addr %s239, 16
      %s243 = sadd.s32 %s241, %s242
      %s244 = smul.addr %s243, 8
      %s245 = scalar_lea.vmem %s3, %s244
      %s246 = smul.u32 16, %s19
      %v248 = vld [vmem:[%s227] sm:$0xff]
      %v249 = vld [vmem:[%s227 + $0x8] sm:$0xff]
      %v250 = vld [vmem:[%s227 + $0x10] sm:$0xff]
      %v251 = vld [vmem:[%s227 + $0x18] sm:$0xff]
      %v252 = vld [vmem:[%s227 + $0x20] sm:$0xff]
      %v253 = vld [vmem:[%s227 + $0x28] sm:$0xff]
      %v254 = vld [vmem:[%s227 + $0x30] sm:$0xff]
      %v255 = vld [vmem:[%s227 + $0x38] sm:$0xff]
      %v256 = vld [vmem:[%s227 + $0x40] sm:$0xff]
      %v257 = vld [vmem:[%s227 + $0x48] sm:$0xff]
      %v258 = vld [vmem:[%s227 + $0x50] sm:$0xff]
      %v259 = vld [vmem:[%s227 + $0x58] sm:$0xff]
      %v260 = vld [vmem:[%s227 + $0x60] sm:$0xff]
      %v261 = vld [vmem:[%s227 + $0x68] sm:$0xff]
      %v262 = vld [vmem:[%s227 + $0x70] sm:$0xff]
      %v263 = vld [vmem:[%s227 + $0x78] sm:$0xff]
      %v264 = vld [vmem:[%s233] sm:$0xf]
      %v265 = vld [vmem:[%s233 + $0x4] sm:$0xf]
      %v266 = vld [vmem:[%s233 + $0x8] sm:$0xf]
      %v267 = vld [vmem:[%s233 + $0xc] sm:$0xf]
      %v268 = vld [vmem:[%s233 + $0x10] sm:$0xf]
      %v269 = vld [vmem:[%s233 + $0x14] sm:$0xf]
      %v270 = vld [vmem:[%s233 + $0x18] sm:$0xf]
      %v271 = vld [vmem:[%s233 + $0x1c] sm:$0xf]
      %v272 = vld [vmem:[%s233 + $0x20] sm:$0xf]
      %v273 = vld [vmem:[%s233 + $0x24] sm:$0xf]
      %v274 = vld [vmem:[%s233 + $0x28] sm:$0xf]
      %v275 = vld [vmem:[%s233 + $0x2c] sm:$0xf]
      %v276 = vld [vmem:[%s233 + $0x30] sm:$0xf]
      %v277 = vld [vmem:[%s233 + $0x34] sm:$0xf]
      %v278 = vld [vmem:[%s233 + $0x38] sm:$0xf]
      %v279 = vld [vmem:[%s233 + $0x3c] sm:$0xf]
      %v280 = vld [vmem:[%s233 + $0x40] sm:$0xf]
      %v281 = vld [vmem:[%s233 + $0x44] sm:$0xf]
      %v282 = vld [vmem:[%s233 + $0x48] sm:$0xf]
      %v283 = vld [vmem:[%s233 + $0x4c] sm:$0xf]
      %v284 = vld [vmem:[%s233 + $0x50] sm:$0xf]
      %v285 = vld [vmem:[%s233 + $0x54] sm:$0xf]
      %v286 = vld [vmem:[%s233 + $0x58] sm:$0xf]
      %v287 = vld [vmem:[%s233 + $0x5c] sm:$0xf]
      %v288 = vld [vmem:[%s233 + $0x60] sm:$0xf]
      %v289 = vld [vmem:[%s233 + $0x64] sm:$0xf]
      %v290 = vld [vmem:[%s233 + $0x68] sm:$0xf]
      %v291 = vld [vmem:[%s233 + $0x6c] sm:$0xf]
      %v292 = vld [vmem:[%s233 + $0x70] sm:$0xf]
      %v293 = vld [vmem:[%s233 + $0x74] sm:$0xf]
      %v294 = vld [vmem:[%s233 + $0x78] sm:$0xf]
      %v295 = vld [vmem:[%s233 + $0x7c] sm:$0xf]
      %v296 = vld [vmem:[%s236] sm:$0x1]
      %v298 = vlaneseq
      %v299 = vshrl.u32 %v298, 7
      %v300 = vsub.s32 0, %v299
      %v301 = vrot.slane %v296, %v300
      %v319 = vunpack.c.l.b16 %v248
      %v320 = vunpack.c.h.b16 %v248
      %v321 = vunpack.c.l.b16 %v249
      %v322 = vunpack.c.h.b16 %v249
      %v323 = vunpack.c.l.b16 %v250
      %v324 = vunpack.c.h.b16 %v250
      %v325 = vunpack.c.l.b16 %v251
      %v326 = vunpack.c.h.b16 %v251
      %v327 = vunpack.c.l.b16 %v252
      %v328 = vunpack.c.h.b16 %v252
      %v329 = vunpack.c.l.b16 %v253
      %v330 = vunpack.c.h.b16 %v253
      %v331 = vunpack.c.l.b16 %v254
      %v332 = vunpack.c.h.b16 %v254
      %v333 = vunpack.c.l.b16 %v255
      %v334 = vunpack.c.h.b16 %v255
      %v335 = vunpack.c.l.b16 %v256
      %v336 = vunpack.c.h.b16 %v256
      %v337 = vunpack.c.l.b16 %v257
      %v338 = vunpack.c.h.b16 %v257
      %v339 = vunpack.c.l.b16 %v258
      %v340 = vunpack.c.h.b16 %v258
      %v341 = vunpack.c.l.b16 %v259
      %v342 = vunpack.c.h.b16 %v259
      %v343 = vunpack.c.l.b16 %v260
      %v344 = vunpack.c.h.b16 %v260
      %v345 = vunpack.c.l.b16 %v261
      %v346 = vunpack.c.h.b16 %v261
      %v347 = vunpack.c.l.b16 %v262
      %v348 = vunpack.c.h.b16 %v262
      %v349 = vunpack.c.l.b16 %v263
      %v350 = vunpack.c.h.b16 %v263
      %v351 = vpack.c.b16 %v321, %v319
      %v352 = vpack.c.b16 %v322, %v320
      %v353 = vpack.c.b16 %v325, %v323
      %v354 = vpack.c.b16 %v326, %v324
      %v355 = vpack.c.b16 %v329, %v327
      %v356 = vpack.c.b16 %v330, %v328
      %v357 = vpack.c.b16 %v333, %v331
      %v358 = vpack.c.b16 %v334, %v332
      %v359 = vpack.c.b16 %v337, %v335
      %v360 = vpack.c.b16 %v338, %v336
      %v361 = vpack.c.b16 %v341, %v339
      %v362 = vpack.c.b16 %v342, %v340
      %v363 = vpack.c.b16 %v345, %v343
      %v364 = vpack.c.b16 %v346, %v344
      %v365 = vpack.c.b16 %v349, %v347
      %v366 = vpack.c.b16 %v350, %v348
      %v415 = vunpack.c.l.b16 %v264
      %v416 = vunpack.c.l.b16 %v265
      %v417 = vunpack.c.l.b16 %v266
      %v418 = vunpack.c.l.b16 %v267
      %v419 = vunpack.c.l.b16 %v268
      %v420 = vunpack.c.l.b16 %v269
      %v421 = vunpack.c.l.b16 %v270
      %v422 = vunpack.c.l.b16 %v271
      %v423 = vunpack.c.l.b16 %v272
      %v424 = vunpack.c.l.b16 %v273
      %v425 = vunpack.c.l.b16 %v274
      %v426 = vunpack.c.l.b16 %v275
      %v427 = vunpack.c.l.b16 %v276
      %v428 = vunpack.c.l.b16 %v277
      %v429 = vunpack.c.l.b16 %v278
      %v430 = vunpack.c.l.b16 %v279
      %v431 = vunpack.c.l.b16 %v280
      %v432 = vunpack.c.l.b16 %v281
      %v433 = vunpack.c.l.b16 %v282
      %v434 = vunpack.c.l.b16 %v283
      %v435 = vunpack.c.l.b16 %v284
      %v436 = vunpack.c.l.b16 %v285
      %v437 = vunpack.c.l.b16 %v286
      %v438 = vunpack.c.l.b16 %v287
      %v439 = vunpack.c.l.b16 %v288
      %v440 = vunpack.c.l.b16 %v289
      %v441 = vunpack.c.l.b16 %v290
      %v442 = vunpack.c.l.b16 %v291
      %v443 = vunpack.c.l.b16 %v292
      %v444 = vunpack.c.l.b16 %v293
      %v445 = vunpack.c.l.b16 %v294
      %v446 = vunpack.c.l.b16 %v295
      %v447 = vpack.c.b16 %v416, %v415
      %v448 = vpack.c.b16 %v418, %v417
      %v449 = vpack.c.b16 %v420, %v419
      %v450 = vpack.c.b16 %v422, %v421
      %v451 = vpack.c.b16 %v424, %v423
      %v452 = vpack.c.b16 %v426, %v425
      %v453 = vpack.c.b16 %v428, %v427
      %v454 = vpack.c.b16 %v430, %v429
      %v455 = vpack.c.b16 %v432, %v431
      %v456 = vpack.c.b16 %v434, %v433
      %v457 = vpack.c.b16 %v436, %v435
      %v458 = vpack.c.b16 %v438, %v437
      %v459 = vpack.c.b16 %v440, %v439
      %v460 = vpack.c.b16 %v442, %v441
      %v461 = vpack.c.b16 %v444, %v443
      %v462 = vpack.c.b16 %v446, %v445
      %479 = vmatprep.subr.bf16.mxu0 0
      %480 = vmatpush1.bf16.msra.mxu0 %v447
      %481 = vmatprep.subr.bf16.mxu0 0
      %482 = vmatpush1.bf16.msra.mxu0 %v448
      %483 = vmatprep.subr.bf16.mxu0 0
      %484 = vmatpush1.bf16.msra.mxu0 %v449
      %485 = vmatprep.subr.bf16.mxu0 0
      %486 = vmatpush1.bf16.msra.mxu0 %v450
      %487 = vmatprep.subr.bf16.mxu0 0
      %488 = vmatpush1.bf16.msra.mxu0 %v451
      %489 = vmatprep.subr.bf16.mxu0 0
      %490 = vmatpush1.bf16.msra.mxu0 %v452
      %491 = vmatprep.subr.bf16.mxu0 0
      %492 = vmatpush1.bf16.msra.mxu0 %v453
      %493 = vmatprep.subr.bf16.mxu0 0
      %494 = vmatpush1.bf16.msra.mxu0 %v454
      %495 = vmatprep.subr.bf16.mxu0 0
      %496 = vmatpush1.bf16.msra.mxu0 %v455
      %497 = vmatprep.subr.bf16.mxu0 0
      %498 = vmatpush1.bf16.msra.mxu0 %v456
      %499 = vmatprep.subr.bf16.mxu0 0
      %500 = vmatpush1.bf16.msra.mxu0 %v457
      %501 = vmatprep.subr.bf16.mxu0 0
      %502 = vmatpush1.bf16.msra.mxu0 %v458
      %503 = vmatprep.subr.bf16.mxu0 0
      %504 = vmatpush1.bf16.msra.mxu0 %v459
      %505 = vmatprep.subr.bf16.mxu0 0
      %506 = vmatpush1.bf16.msra.mxu0 %v460
      %507 = vmatprep.subr.bf16.mxu0 0
      %508 = vmatpush1.bf16.msra.mxu0 %v461
      %509 = vmatprep.subr.bf16.mxu0 0
      %510 = vmatpush1.bf16.msra.mxu0 %v462
      %511 = vmatprep.mubr.bf16.mxu0 %v352
      %512 = vmatmul.mubr.bf16.gmra.mrb[0].mxu0 %v351
      %v513 = vpop.f32.mrb[0].mxu0
      %v514 = vadd.f32 %v301, %v513
      %v515 = vpop.f32.mrb[0].mxu0
      %v516 = vpop.f32.mrb[0].mxu0
      %v517 = vadd.f32 %v301, %v516
      %v518 = vpop.f32.mrb[0].mxu0
      %519 = vmatprep.mubr.bf16.mxu0 %v354
      %520 = vmatmul.mubr.bf16.gmra.mrb[0].mxu0 %v353
      %v521 = vpop.f32.mrb[0].mxu0
      %v522 = vadd.f32 %v301, %v521
      %v523 = vpop.f32.mrb[0].mxu0
      %v524 = vpop.f32.mrb[0].mxu0
      %v525 = vadd.f32 %v301, %v524
      %v526 = vpop.f32.mrb[0].mxu0
      %527 = vmatprep.mubr.bf16.mxu0 %v356
      %528 = vmatmul.mubr.bf16.gmra.mrb[0].mxu0 %v355
      %v529 = vpop.f32.mrb[0].mxu0
      %v530 = vadd.f32 %v301, %v529
      %v531 = vpop.f32.mrb[0].mxu0
      %v532 = vpop.f32.mrb[0].mxu0
      %v533 = vadd.f32 %v301, %v532
      %v534 = vpop.f32.mrb[0].mxu0
      %535 = vmatprep.mubr.bf16.mxu0 %v358
      %536 = vmatmul.mubr.bf16.gmra.mrb[0].mxu0 %v357
      %v537 = vpop.f32.mrb[0].mxu0
      %v538 = vadd.f32 %v301, %v537
      %v539 = vpop.f32.mrb[0].mxu0
      %v540 = vpop.f32.mrb[0].mxu0
      %v541 = vadd.f32 %v301, %v540
      %v542 = vpop.f32.mrb[0].mxu0
      %543 = vmatprep.mubr.bf16.mxu0 %v360
      %544 = vmatmul.mubr.bf16.gmra.mrb[0].mxu0 %v359
      %v545 = vpop.f32.mrb[0].mxu0
      %v546 = vadd.f32 %v301, %v545
      %v547 = vpop.f32.mrb[0].mxu0
      %v548 = vpop.f32.mrb[0].mxu0
      %v549 = vadd.f32 %v301, %v548
      %v550 = vpop.f32.mrb[0].mxu0
      %551 = vmatprep.mubr.bf16.mxu0 %v362
      %552 = vmatmul.mubr.bf16.gmra.mrb[0].mxu0 %v361
      %v553 = vpop.f32.mrb[0].mxu0
      %v554 = vadd.f32 %v301, %v553
      %v555 = vpop.f32.mrb[0].mxu0
      %v556 = vpop.f32.mrb[0].mxu0
      %v557 = vadd.f32 %v301, %v556
      %v558 = vpop.f32.mrb[0].mxu0
      %559 = vmatprep.mubr.bf16.mxu0 %v364
      %560 = vmatmul.mubr.bf16.gmra.mrb[0].mxu0 %v363
      %v561 = vpop.f32.mrb[0].mxu0
      %v562 = vadd.f32 %v301, %v561
      %v563 = vpop.f32.mrb[0].mxu0
      %v564 = vpop.f32.mrb[0].mxu0
      %v565 = vadd.f32 %v301, %v564
      %v566 = vpop.f32.mrb[0].mxu0
      %567 = vmatprep.mubr.bf16.mxu0 %v366
      %568 = vmatmul.mubr.bf16.gmra.mrb[0].mxu0 %v365
      %v569 = vpop.f32.mrb[0].mxu0
      %v570 = vadd.f32 %v301, %v569
      %v571 = vpop.f32.mrb[0].mxu0
      %v572 = vpop.f32.mrb[0].mxu0
      %v573 = vadd.f32 %v301, %v572
      %v574 = vpop.f32.mrb[0].mxu0
      %575 = vdwg.mxu0
      %v576 = vmax.f32 %v514, 0.0
      %v577 = vmax.f32 %v517, 0.0
      %v578 = vmax.f32 %v522, 0.0
      %v579 = vmax.f32 %v525, 0.0
      %v580 = vmax.f32 %v530, 0.0
      %v581 = vmax.f32 %v533, 0.0
      %v582 = vmax.f32 %v538, 0.0
      %v583 = vmax.f32 %v541, 0.0
      %v584 = vmax.f32 %v546, 0.0
      %v585 = vmax.f32 %v549, 0.0
      %v586 = vmax.f32 %v554, 0.0
      %v587 = vmax.f32 %v557, 0.0
      %v588 = vmax.f32 %v562, 0.0
      %v589 = vmax.f32 %v565, 0.0
      %v590 = vmax.f32 %v570, 0.0
      %v591 = vmax.f32 %v573, 0.0
      %592 = vst [vmem:[%s245] sm:$0xff] %v576
      %593 = vst [vmem:[%s245 + $0x8] sm:$0xff] %v577
      %594 = vst [vmem:[%s245 + $0x10] sm:$0xff] %v578
      %595 = vst [vmem:[%s245 + $0x18] sm:$0xff] %v579
      %596 = vst [vmem:[%s245 + $0x20] sm:$0xff] %v580
      %597 = vst [vmem:[%s245 + $0x28] sm:$0xff] %v581
      %598 = vst [vmem:[%s245 + $0x30] sm:$0xff] %v582
      %599 = vst [vmem:[%s245 + $0x38] sm:$0xff] %v583
      %600 = vst [vmem:[%s245 + $0x40] sm:$0xff] %v584
      %601 = vst [vmem:[%s245 + $0x48] sm:$0xff] %v585
      %602 = vst [vmem:[%s245 + $0x50] sm:$0xff] %v586
      %603 = vst [vmem:[%s245 + $0x58] sm:$0xff] %v587
      %604 = vst [vmem:[%s245 + $0x60] sm:$0xff] %v588
      %605 = vst [vmem:[%s245 + $0x68] sm:$0xff] %v589
      %606 = vst [vmem:[%s245 + $0x70] sm:$0xff] %v590
      %607 = vst [vmem:[%s245 + $0x78] sm:$0xff] %v591
      %s608 = smul.u32 16, %s19
      %p609 = scmp.lt.s32.totalorder %s18, 1
      %s610 = scalar_select %p609, %s18, 1
      %p611 = scmp.lt.s32.totalorder %s608, 15
      %s612 = scalar_select %p611, %s608, 15
      %s613 = smul.addr %s610, 16
      %s614 = sadd.s32 %s612, %s613
      %s615 = smul.addr %s614, 8
      %s616 = scalar_lea.vmem %s3, %s615
      // Predicated region
      $region33: #{triplet_net_forward.31} parent=31 // pred_check
        %p617 = pneg %p126
      $region34: #{triplet_net_forward.31} parent=31 // pred_check_branch
        %619 = sbr.rel (%p617) target = $region36
      $region35: #{triplet_net_forward.31} parent=31 // pred_region
        %s620 = smul.u32 16, %s19
      $region36: #{triplet_net_forward.31} parent=31 // pred_fallthru
        _
    $region32: #{triplet_net_forward.31} parent=5 // pred_fallthru
      _
    %p621 = scmp.le.s32.totalorder 2, %s9
    // Predicated region
    $region37: #{triplet_net_forward.31} parent=5 // pred_check
      %p622 = pneg %p621
    $region38: #{triplet_net_forward.31} parent=5 // pred_check_branch
      %624 = sbr.rel (%p622) target = $region40
    $region39: #{triplet_net_forward.31} parent=5 // pred_region
      %s625 = ssub.s32 %s9, 2
      // Predicated region
      $region41: #{triplet_net_forward.31} parent=39 // pred_check
        %p626 = pneg %p132
      $region42: #{triplet_net_forward.31} parent=39 // pred_check_branch
        %628 = sbr.rel (%p626) target = $region44
      $region43: #{triplet_net_forward.31} parent=39 // pred_region
        %s629 = smul.u32 16, %s21
        %p630 = scmp.lt.s32.totalorder %s20, 1
        %s631 = scalar_select %p630, %s20, 1
        %p632 = scmp.lt.s32.totalorder %s629, 15
        %s633 = scalar_select %p632, %s629, 15
        %s634 = smul.addr %s631, 16
        %s635 = sadd.s32 %s633, %s634
        %s636 = smul.addr %s635, 8
        %s637 = scalar_lea.vmem %s3, %s636
      $region44: #{triplet_net_forward.31} parent=39 // pred_fallthru
        _
    $region40: #{triplet_net_forward.31} parent=5 // pred_fallthru
      _
  $region6: #{triplet_net_forward.31} parent=0 // loop_footer
    %s13 = sadd.s32 1, %s9
  $region7: #{triplet_net_forward.31} parent=0 // loop_footer_branch
    %8 = sbr.rel target = $region3
  $region8: #{triplet_net_forward.31} parent=0 // loop_exit
    _

// kernel: triplet_net_forward.39
$region0: #{triplet_net_forward.39}
  #allocation0 [shape = 'u32[]', space=smem, size = 0x4, offset = 0x4, fixed_abs, tag = 'smem constant byte address 0x4 - core index']
  #allocation1 [shape = 'u32[144,128]{1,0:T(1,128)}', space=vmem, size = 0x12000, scoped, tag = 'internal scratch']
  %s0 = inlined_call_operand.vmem [shape: bf16[2,32,256], index: 0, kind: input, shape index: {}]
  %s1 = inlined_call_operand.vmem [shape: bf16[2,256,512], index: 1, kind: input, shape index: {}]
  %s2 = inlined_call_operand.vmem [shape: f32[2,1,512], index: 2, kind: input, shape index: {}]
  %s3 = inlined_call_operand.vmem [shape: f32[2,32,512], index: 3, kind: output, shape index: {}]
  %s4 = sld [smem:[#allocation0]]
  $region45: #{triplet_net_forward.39} parent=0
    _
  %s6 = ssub.s32 1, %s4
  %s7 = scalar_select 0, %s6, %s4
  loop: start=0, step=1, limit=4
  $region2: #{triplet_net_forward.39} parent=0 // loop_pre_header
    _
  $region3: #{triplet_net_forward.39} parent=0 // loop_header
    %s9 = sphi 0, %s13
    %p10 = scmp.ge.s32.totalorder %s9, 4
    %s16 = sphi 0, %s28
    %s17 = sphi 0, %s24
    %s18 = sphi 0, %s16
    %s19 = sphi 0, %s17
    %s20 = sphi 0, %s18
    %s21 = sphi 0, %s19
    %s33 = sphi 0, %s35
    %s36 = sphi 0, %s33
    %s37 = sphi 0, %s36
    %s53 = sphi 0, %s37
    %s59 = sphi 0, %s61
    %s62 = sphi 0, %s59
    %s63 = sphi 0, %s62
    %s79 = sphi 0, %s63
    %s85 = sphi 0, %s87
    %s88 = sphi 0, %s85
    %s89 = sphi 0, %s88
    %s105 = sphi 0, %s89
    %s113 = sphi 0, %s115
    %s116 = sphi 0, %s113
    %s117 = sphi 0, %s116
    %s133 = sphi 0, %s117
  $region4: #{triplet_net_forward.39} parent=0 // loop_header_branch
    %12 = sbr.rel (%p10) target = $region8
  $region5: #{triplet_net_forward.39} parent=0 // loop_body
    %s14 = ssub.s32 %s9, 1
    %s15 = ssub.s32 %s9, 2
    %s22 = sadd.s32 1, %s17
    %p23 = scmp.ge.s32.totalorder %s22, 1
    %s24 = scalar_select %p23, 0, %s22
    %s25 = sadd.s32 1, %s16
    %s26 = scalar_select %p23, %s25, %s16
    %p27 = scmp.ge.s32.totalorder %s26, 2
    %s28 = scalar_select %p27, 0, %s26
    %s29 = ssub.s32 %s16, %s28
    %s30 = ssub.s32 %s17, %s24
    %s31 = sor.u32 %s29, %s30
    %p32 = scmp.eq.s32.totalorder %s31, 0
    %s34 = sadd.s32 %s33, 1
    %s35 = scalar_select %p32, %s33, %s34
    %p38 = pneg %p32
    %p39 = scmp.eq.s32.totalorder %s9, 1
    %p40 = por %p38, %p39
    %p41 = scmp.ne.s32.totalorder %s33, %s36
    %p42 = scmp.eq.s32.totalorder %s9, 0
    %p43 = por %p41, %p42
    %p44 = scmp.ne.s32.totalorder %s33, %s36
    %p45 = scmp.eq.s32.totalorder %s14, 1
    %p46 = por %p44, %p45
    %p47 = scmp.ne.s32.totalorder %s36, %s37
    %p48 = scmp.eq.s32.totalorder %s14, 0
    %p49 = por %p47, %p48
    %p50 = scmp.ne.s32.totalorder %s36, %s37
    %p51 = scmp.eq.s32.totalorder %s15, 1
    %p52 = por %p50, %p51
    %p54 = scmp.ne.s32.totalorder %s37, %s53
    %p55 = scmp.eq.s32.totalorder %s15, 0
    %p56 = por %p54, %p55
    %s57 = ssub.s32 %s16, %s28
    %p58 = scmp.eq.s32.totalorder %s57, 0
    %s60 = sadd.s32 %s59, 1
    %s61 = scalar_select %p58, %s59, %s60
    %p64 = pneg %p58
    %p65 = scmp.eq.s32.totalorder %s9, 1
    %p66 = por %p64, %p65
    %p67 = scmp.ne.s32.totalorder %s59, %s62
    %p68 = scmp.eq.s32.totalorder %s9, 0
    %p69 = por %p67, %p68
    %p70 = scmp.ne.s32.totalorder %s59, %s62
    %p71 = scmp.eq.s32.totalorder %s14, 1
    %p72 = por %p70, %p71
    %p73 = scmp.ne.s32.totalorder %s62, %s63
    %p74 = scmp.eq.s32.totalorder %s14, 0
    %p75 = por %p73, %p74
    %p76 = scmp.ne.s32.totalorder %s62, %s63
    %p77 = scmp.eq.s32.totalorder %s15, 1
    %p78 = por %p76, %p77
    %p80 = scmp.ne.s32.totalorder %s63, %s79
    %p81 = scmp.eq.s32.totalorder %s15, 0
    %p82 = por %p80, %p81
    %s83 = ssub.s32 %s16, %s28
    %p84 = scmp.eq.s32.totalorder %s83, 0
    %s86 = sadd.s32 %s85, 1
    %s87 = scalar_select %p84, %s85, %s86
    %p90 = pneg %p84
    %p91 = scmp.eq.s32.totalorder %s9, 1
    %p92 = por %p90, %p91
    %p93 = scmp.ne.s32.totalorder %s85, %s88
    %p94 = scmp.eq.s32.totalorder %s9, 0
    %p95 = por %p93, %p94
    %p96 = scmp.ne.s32.totalorder %s85, %s88
    %p97 = scmp.eq.s32.totalorder %s14, 1
    %p98 = por %p96, %p97
    %p99 = scmp.ne.s32.totalorder %s88, %s89
    %p100 = scmp.eq.s32.totalorder %s14, 0
    %p101 = por %p99, %p100
    %p102 = scmp.ne.s32.totalorder %s88, %s89
    %p103 = scmp.eq.s32.totalorder %s15, 1
    %p104 = por %p102, %p103
    %p106 = scmp.ne.s32.totalorder %s89, %s105
    %p107 = scmp.eq.s32.totalorder %s15, 0
    %p108 = por %p106, %p107
    %s109 = ssub.s32 %s16, %s28
    %s110 = ssub.s32 %s17, %s24
    %s111 = sor.u32 %s109, %s110
    %p112 = scmp.eq.s32.totalorder %s111, 0
    %s114 = sadd.s32 %s113, 1
    %s115 = scalar_select %p112, %s113, %s114
    %p118 = pneg %p112
    %p119 = scmp.eq.s32.totalorder %s9, 1
    %p120 = por %p118, %p119
    %p121 = scmp.ne.s32.totalorder %s113, %s116
    %p122 = scmp.eq.s32.totalorder %s9, 0
    %p123 = por %p121, %p122
    %p124 = scmp.ne.s32.totalorder %s113, %s116
    %p125 = scmp.eq.s32.totalorder %s14, 1
    %p126 = por %p124, %p125
    %p127 = scmp.ne.s32.totalorder %s116, %s117
    %p128 = scmp.eq.s32.totalorder %s14, 0
    %p129 = por %p127, %p128
    %p130 = scmp.ne.s32.totalorder %s116, %s117
    %p131 = scmp.eq.s32.totalorder %s15, 1
    %p132 = por %p130, %p131
    %p134 = scmp.ne.s32.totalorder %s117, %s133
    %p135 = scmp.eq.s32.totalorder %s15, 0
    %p136 = por %p134, %p135
    %p137 = scmp.le.s32.totalorder 1, %s9
    %p138 = scmp.lt.s32.totalorder %s9, 3
    %p139 = pnand %p137, %p138
    %p140 = pneg %p139
    // Predicated region
    $region9: #{triplet_net_forward.39} parent=5 // pred_check
      _
    $region10: #{triplet_net_forward.39} parent=5 // pred_check_branch
      %142 = sbr.rel (%p139) target = $region12
    $region11: #{triplet_net_forward.39} parent=5 // pred_region
      %s143 = ssub.s32 %s9, 1
    $region12: #{triplet_net_forward.39} parent=5 // pred_fallthru
      _
    %p144 = scmp.lt.s32.totalorder %s9, 2
    // Predicated region
    $region13: #{triplet_net_forward.39} parent=5 // pred_check
      %p145 = pneg %p144
    $region14: #{triplet_net_forward.39} parent=5 // pred_check_branch
      %147 = sbr.rel (%p145) target = $region16
    $region15: #{triplet_net_forward.39} parent=5 // pred_region
      // Predicated region
      $region17: #{triplet_net_forward.39} parent=15 // pred_check
        %p148 = pneg %p43
      $region18: #{triplet_net_forward.39} parent=15 // pred_check_branch
        %150 = sbr.rel (%p148) target = $region20
      $region19: #{triplet_net_forward.39} parent=15 // pred_region
        %s151 = smul.u32 4, %s17
        %p152 = scmp.lt.s32.totalorder %s16, 1
        %s153 = scalar_select %p152, %s16, 1
        %p154 = scmp.lt.s32.totalorder %s151, 3
        %s155 = scalar_select %p154, %s151, 3
        %s156 = smul.addr %s155, 2
        %s157 = smul.addr %s153, 8
        %s158 = sadd.s32 %s156, %s157
        %s159 = smul.addr %s158, 4
        %s160 = scalar_lea.vmem %s0, %s159
        %s161 = smul.u32 4, %s17
      $region20: #{triplet_net_forward.39} parent=15 // pred_fallthru
        _
      // Predicated region
      $region21: #{triplet_net_forward.39} parent=15 // pred_check
        %p162 = pneg %p69
      $region22: #{triplet_net_forward.39} parent=15 // pred_check_branch
        %164 = sbr.rel (%p162) target = $region24
      $region23: #{triplet_net_forward.39} parent=15 // pred_region
        %p165 = scmp.lt.s32.totalorder %s16, 1
        %s166 = scalar_select %p165, %s16, 1
        %s167 = smul.addr %s166, 128
        %s168 = smul.addr %s167, 4
        %s169 = scalar_lea.vmem %s1, %s168
      $region24: #{triplet_net_forward.39} parent=15 // pred_fallthru
        _
      // Predicated region
      $region25: #{triplet_net_forward.39} parent=15 // pred_check
        %p170 = pneg %p95
      $region26: #{triplet_net_forward.39} parent=15 // pred_check_branch
        %172 = sbr.rel (%p170) target = $region28
      $region27: #{triplet_net_forward.39} parent=15 // pred_region
        %p173 = scmp.lt.s32.totalorder %s16, 1
        %s174 = scalar_select %p173, %s16, 1
        %s175 = smul.addr %s174, 4
        %s176 = scalar_lea.vmem %s2, %s175
      $region28: #{triplet_net_forward.39} parent=15 // pred_fallthru
        _
    $region16: #{triplet_net_forward.39} parent=5 // pred_fallthru
      _
    %p177 = scmp.le.s32.totalorder 1, %s9
    %p178 = scmp.lt.s32.totalorder %s9, 3
    %p179 = pnand %p177, %p178
    %p180 = pneg %p179
    // Predicated region
    $region29: #{triplet_net_forward.39} parent=5 // pred_check
      _
    $region30: #{triplet_net_forward.39} parent=5 // pred_check_branch
      %182 = sbr.rel (%p179) target = $region32
    $region31: #{triplet_net_forward.39} parent=5 // pred_region
      %s183 = ssub.s32 %s9, 1
      %s184 = smul.u32 4, %s19
      %p185 = scmp.lt.s32.totalorder %s18, 1
      %s186 = scalar_select %p185, %s18, 1
      %p187 = scmp.lt.s32.totalorder %s184, 3
      %s188 = scalar_select %p187, %s184, 3
      %s189 = smul.addr %s188, 2
      %s190 = smul.addr %s186, 8
      %s191 = sadd.s32 %s189, %s190
      %s192 = smul.addr %s191, 4
      %s193 = scalar_lea.vmem %s0, %s192
      %p194 = pneg %p49
      %p195 = pneg %p46
      %p196 = scmp.lt.s32.totalorder %s18, 1
      %s197 = scalar_select %p196, %s18, 1
      %s198 = smul.addr %s197, 128
      %s199 = smul.addr %s198, 4
      %s200 = scalar_lea.vmem %s1, %s199
      %p201 = pneg %p75
      %p202 = pneg %p72
      %p203 = scmp.lt.s32.totalorder %s18, 1
      %s204 = scalar_select %p203, %s18, 1
      %s205 = smul.addr %s204, 4
      %s206 = scalar_lea.vmem %s2, %s205
      %p207 = pneg %p101
      %p208 = pneg %p98
      %p209 = pneg %p129
      %p210 = pneg %p126
      %s211 = smul.u32 4, %s19
      %p212 = scmp.lt.s32.totalorder %s18, 1
      %s213 = scalar_select %p212, %s18, 1
      %p214 = scmp.lt.s32.totalorder %s211, 3
      %s215 = scalar_select %p214, %s211, 3
      %s216 = smul.addr %s215, 4
      %s217 = smul.addr %s213, 16
      %s218 = sadd.s32 %s216, %s217
      %s219 = smul.addr %s218, 8
      %s220 = scalar_lea.vmem %s3, %s219
      %s221 = smul.u32 4, %s19
      %p222 = scmp.lt.s32.totalorder %s18, 1
      %s223 = scalar_select %p222, %s18, 1
      %p224 = scmp.lt.s32.totalorder %s221, 3
      %s225 = scalar_select %p224, %s221, 3
      %s226 = smul.addr %s225, 2
      %s227 = smul.addr %s223, 8
      %s228 = sadd.s32 %s226, %s227
      %s229 = smul.addr %s228, 4
      %s230 = scalar_lea.vmem %s0, %s229
      %s231 = smul.u32 4, %s19
      %p232 = scmp.lt.s32.totalorder %s18, 1
      %s233 = scalar_select %p232, %s18, 1
      %s234 = smul.addr %s233, 128
      %s235 = smul.addr %s234, 4
      %s236 = scalar_lea.vmem %s1, %s235
      %p237 = scmp.lt.s32.totalorder %s18, 1
      %s238 = scalar_select %p237, %s18, 1
      %s239 = smul.addr %s238, 4
      %s240 = scalar_lea.vmem %s2, %s239
      %s241 = smul.u32 4, %s19
      %p242 = scmp.lt.s32.totalorder %s18, 1
      %s243 = scalar_select %p242, %s18, 1
      %p244 = scmp.lt.s32.totalorder %s241, 3
      %s245 = scalar_select %p244, %s241, 3
      %s246 = smul.addr %s245, 4
      %s247 = smul.addr %s243, 16
      %s248 = sadd.s32 %s246, %s247
      %s249 = smul.addr %s248, 8
      %s250 = scalar_lea.vmem %s3, %s249
      %s251 = smul.u32 4, %s19
      %v252 = vld [vmem:[%s230] sm:$0xff]
      %v253 = vld [vmem:[%s230 + $0x8] sm:$0xff]
      %v254 = vld [vmem:[%s230 + $0x10] sm:$0xff]
      %v255 = vld [vmem:[%s230 + $0x18] sm:$0xff]
      %v256 = vld [vmem:[%s236] sm:$0xff]
      %v257 = vld [vmem:[%s236 + $0x8] sm:$0xff]
      %v258 = vld [vmem:[%s236 + $0x10] sm:$0xff]
      %v259 = vld [vmem:[%s236 + $0x18] sm:$0xff]
      %v260 = vld [vmem:[%s236 + $0x20] sm:$0xff]
      %v261 = vld [vmem:[%s236 + $0x28] sm:$0xff]
      %v262 = vld [vmem:[%s236 + $0x30] sm:$0xff]
      %v263 = vld [vmem:[%s236 + $0x38] sm:$0xff]
      %v264 = vld [vmem:[%s236 + $0x40] sm:$0xff]
      %v265 = vld [vmem:[%s236 + $0x48] sm:$0xff]
      %v266 = vld [vmem:[%s236 + $0x50] sm:$0xff]
      %v267 = vld [vmem:[%s236 + $0x58] sm:$0xff]
      %v268 = vld [vmem:[%s236 + $0x60] sm:$0xff]
      %v269 = vld [vmem:[%s236 + $0x68] sm:$0xff]
      %v270 = vld [vmem:[%s236 + $0x70] sm:$0xff]
      %v271 = vld [vmem:[%s236 + $0x78] sm:$0xff]
      %v272 = vld [vmem:[%s236 + $0x80] sm:$0xff]
      %v273 = vld [vmem:[%s236 + $0x88] sm:$0xff]
      %v274 = vld [vmem:[%s236 + $0x90] sm:$0xff]
      %v275 = vld [vmem:[%s236 + $0x98] sm:$0xff]
      %v276 = vld [vmem:[%s236 + $0xa0] sm:$0xff]
      %v277 = vld [vmem:[%s236 + $0xa8] sm:$0xff]
      %v278 = vld [vmem:[%s236 + $0xb0] sm:$0xff]
      %v279 = vld [vmem:[%s236 + $0xb8] sm:$0xff]
      %v280 = vld [vmem:[%s236 + $0xc0] sm:$0xff]
      %v281 = vld [vmem:[%s236 + $0xc8] sm:$0xff]
      %v282 = vld [vmem:[%s236 + $0xd0] sm:$0xff]
      %v283 = vld [vmem:[%s236 + $0xd8] sm:$0xff]
      %v284 = vld [vmem:[%s236 + $0xe0] sm:$0xff]
      %v285 = vld [vmem:[%s236 + $0xe8] sm:$0xff]
      %v286 = vld [vmem:[%s236 + $0xf0] sm:$0xff]
      %v287 = vld [vmem:[%s236 + $0xf8] sm:$0xff]
      %v288 = vld [vmem:[%s236 + $0x100] sm:$0xff]
      %v289 = vld [vmem:[%s236 + $0x108] sm:$0xff]
      %v290 = vld [vmem:[%s236 + $0x110] sm:$0xff]
      %v291 = vld [vmem:[%s236 + $0x118] sm:$0xff]
      %v292 = vld [vmem:[%s236 + $0x120] sm:$0xff]
      %v293 = vld [vmem:[%s236 + $0x128] sm:$0xff]
      %v294 = vld [vmem:[%s236 + $0x130] sm:$0xff]
      %v295 = vld [vmem:[%s236 + $0x138] sm:$0xff]
      %v296 = vld [vmem:[%s236 + $0x140] sm:$0xff]
      %v297 = vld [vmem:[%s236 + $0x148] sm:$0xff]
      %v298 = vld [vmem:[%s236 + $0x150] sm:$0xff]
      %v299 = vld [vmem:[%s236 + $0x158] sm:$0xff]
      %v300 = vld [vmem:[%s236 + $0x160] sm:$0xff]
      %v301 = vld [vmem:[%s236 + $0x168] sm:$0xff]
      %v302 = vld [vmem:[%s236 + $0x170] sm:$0xff]
      %v303 = vld [vmem:[%s236 + $0x178] sm:$0xff]
      %v304 = vld [vmem:[%s236 + $0x180] sm:$0xff]
      %v305 = vld [vmem:[%s236 + $0x188] sm:$0xff]
      %v306 = vld [vmem:[%s236 + $0x190] sm:$0xff]
      %v307 = vld [vmem:[%s236 + $0x198] sm:$0xff]
      %v308 = vld [vmem:[%s236 + $0x1a0] sm:$0xff]
      %v309 = vld [vmem:[%s236 + $0x1a8] sm:$0xff]
      %v310 = vld [vmem:[%s236 + $0x1b0] sm:$0xff]
      %v311 = vld [vmem:[%s236 + $0x1b8] sm:$0xff]
      %v312 = vld [vmem:[%s236 + $0x1c0] sm:$0xff]
      %v313 = vld [vmem:[%s236 + $0x1c8] sm:$0xff]
      %v314 = vld [vmem:[%s236 + $0x1d0] sm:$0xff]
      %v315 = vld [vmem:[%s236 + $0x1d8] sm:$0xff]
      %v316 = vld [vmem:[%s236 + $0x1e0] sm:$0xff]
      %v317 = vld [vmem:[%s236 + $0x1e8] sm:$0xff]
      %v318 = vld [vmem:[%s236 + $0x1f0] sm:$0xff]
      %v319 = vld [vmem:[%s236 + $0x1f8] sm:$0xff]
      %v320 = vld [vmem:[%s240] sm:$0xf]
      %v322 = vlaneseq
      %v323 = vshrl.u32 %v322, 7
      %v324 = vsub.s32 0, %v323
      %v325 = vrot.slane %v320, %v324
      %v326 = vlaneseq
      %v327 = vshrl.u32 %v326, 7
      %v328 = vsub.s32 1, %v327
      %v329 = vrot.slane %v320, %v328
      %v330 = vlaneseq
      %v331 = vshrl.u32 %v330, 7
      %v332 = vsub.s32 2, %v331
      %v333 = vrot.slane %v320, %v332
      %v334 = vlaneseq
      %v335 = vshrl.u32 %v334, 7
      %v336 = vsub.s32 3, %v335
      %v337 = vrot.slane %v320, %v336
      %v346 = vunpack.c.l.b16 %v252
      %v347 = vunpack.c.h.b16 %v252
      %v348 = vunpack.c.l.b16 %v253
      %v349 = vunpack.c.h.b16 %v253
      %v350 = vunpack.c.l.b16 %v254
      %v351 = vunpack.c.h.b16 %v254
      %v352 = vunpack.c.l.b16 %v255
      %v353 = vunpack.c.h.b16 %v255
      %v354 = vpack.c.b16 %v348, %v346
      %v355 = vpack.c.b16 %v349, %v347
      %v356 = vpack.c.b16 %v352, %v350
      %v357 = vpack.c.b16 %v353, %v351
      %v426 = vunpack.c.l.b16 %v256
      %v427 = vunpack.c.h.b16 %v256
      %v428 = vunpack.c.l.b16 %v257
      %v429 = vunpack.c.h.b16 %v257
      %v430 = vunpack.c.l.b16 %v258
      %v431 = vunpack.c.h.b16 %v258
      %v432 = vunpack.c.l.b16 %v259
      %v433 = vunpack.c.h.b16 %v259
      %v434 = vunpack.c.l.b16 %v260
      %v435 = vunpack.c.h.b16 %v260
      %v436 = vunpack.c.l.b16 %v261
      %v437 = vunpack.c.h.b16 %v261
      %v438 = vunpack.c.l.b16 %v262
      %v439 = vunpack.c.h.b16 %v262
      %v440 = vunpack.c.l.b16 %v263
      %v441 = vunpack.c.h.b16 %v263
      %v442 = vunpack.c.l.b16 %v264
      %v443 = vunpack.c.h.b16 %v264
      %v444 = vunpack.c.l.b16 %v265
      %v445 = vunpack.c.h.b16 %v265
      %v446 = vunpack.c.l.b16 %v266
      %v447 = vunpack.c.h.b16 %v266
      %v448 = vunpack.c.l.b16 %v267
      %v449 = vunpack.c.h.b16 %v267
      %v450 = vunpack.c.l.b16 %v268
      %v451 = vunpack.c.h.b16 %v268
      %v452 = vunpack.c.l.b16 %v269
      %v453 = vunpack.c.h.b16 %v269
      %v454 = vunpack.c.l.b16 %v270
      %v455 = vunpack.c.h.b16 %v270
      %v456 = vunpack.c.l.b16 %v271
      %v457 = vunpack.c.h.b16 %v271
      %v458 = vunpack.c.l.b16 %v272
      %v459 = vunpack.c.h.b16 %v272
      %v460 = vunpack.c.l.b16 %v273
      %v461 = vunpack.c.h.b16 %v273
      %v462 = vunpack.c.l.b16 %v274
      %v463 = vunpack.c.h.b16 %v274
      %v464 = vunpack.c.l.b16 %v275
      %v465 = vunpack.c.h.b16 %v275
      %v466 = vunpack.c.l.b16 %v276
      %v467 = vunpack.c.h.b16 %v276
      %v468 = vunpack.c.l.b16 %v277
      %v469 = vunpack.c.h.b16 %v277
      %v470 = vunpack.c.l.b16 %v278
      %v471 = vunpack.c.h.b16 %v278
      %v472 = vunpack.c.l.b16 %v279
      %v473 = vunpack.c.h.b16 %v279
      %v474 = vunpack.c.l.b16 %v280
      %v475 = vunpack.c.h.b16 %v280
      %v476 = vunpack.c.l.b16 %v281
      %v477 = vunpack.c.h.b16 %v281
      %v478 = vunpack.c.l.b16 %v282
      %v479 = vunpack.c.h.b16 %v282
      %v480 = vunpack.c.l.b16 %v283
      %v481 = vunpack.c.h.b16 %v283
      %v482 = vunpack.c.l.b16 %v284
      %v483 = vunpack.c.h.b16 %v284
      %v484 = vunpack.c.l.b16 %v285
      %v485 = vunpack.c.h.b16 %v285
      %v486 = vunpack.c.l.b16 %v286
      %v487 = vunpack.c.h.b16 %v286
      %v488 = vunpack.c.l.b16 %v287
      %v489 = vunpack.c.h.b16 %v287
      %v490 = vunpack.c.l.b16 %v288
      %v491 = vunpack.c.h.b16 %v288
      %v492 = vunpack.c.l.b16 %v289
      %v493 = vunpack.c.h.b16 %v289
      %v494 = vunpack.c.l.b16 %v290
      %v495 = vunpack.c.h.b16 %v290
      %v496 = vunpack.c.l.b16 %v291
      %v497 = vunpack.c.h.b16 %v291
      %v498 = vunpack.c.l.b16 %v292
      %v499 = vunpack.c.h.b16 %v292
      %v500 = vunpack.c.l.b16 %v293
      %v501 = vunpack.c.h.b16 %v293
      %v502 = vunpack.c.l.b16 %v294
      %v503 = vunpack.c.h.b16 %v294
      %v504 = vunpack.c.l.b16 %v295
      %v505 = vunpack.c.h.b16 %v295
      %v506 = vunpack.c.l.b16 %v296
      %v507 = vunpack.c.h.b16 %v296
      %v508 = vunpack.c.l.b16 %v297
      %v509 = vunpack.c.h.b16 %v297
      %v510 = vunpack.c.l.b16 %v298
      %v511 = vunpack.c.h.b16 %v298
      %v512 = vunpack.c.l.b16 %v299
      %v513 = vunpack.c.h.b16 %v299
      %v514 = vunpack.c.l.b16 %v300
      %v515 = vunpack.c.h.b16 %v300
      %v516 = vunpack.c.l.b16 %v301
      %v517 = vunpack.c.h.b16 %v301
      %v518 = vunpack.c.l.b16 %v302
      %v519 = vunpack.c.h.b16 %v302
      %v520 = vunpack.c.l.b16 %v303
      %v521 = vunpack.c.h.b16 %v303
      %v522 = vunpack.c.l.b16 %v304
      %v523 = vunpack.c.h.b16 %v304
      %v524 = vunpack.c.l.b16 %v305
      %v525 = vunpack.c.h.b16 %v305
      %v526 = vunpack.c.l.b16 %v306
      %v527 = vunpack.c.h.b16 %v306
      %v528 = vunpack.c.l.b16 %v307
      %v529 = vunpack.c.h.b16 %v307
      %v530 = vunpack.c.l.b16 %v308
      %v531 = vunpack.c.h.b16 %v308
      %v532 = vunpack.c.l.b16 %v309
      %v533 = vunpack.c.h.b16 %v309
      %v534 = vunpack.c.l.b16 %v310
      %v535 = vunpack.c.h.b16 %v310
      %v536 = vunpack.c.l.b16 %v311
      %v537 = vunpack.c.h.b16 %v311
      %v538 = vunpack.c.l.b16 %v312
      %v539 = vunpack.c.h.b16 %v312
      %v540 = vunpack.c.l.b16 %v313
      %v541 = vunpack.c.h.b16 %v313
      %v542 = vunpack.c.l.b16 %v314
      %v543 = vunpack.c.h.b16 %v314
      %v544 = vunpack.c.l.b16 %v315
      %v545 = vunpack.c.h.b16 %v315
      %v546 = vunpack.c.l.b16 %v316
      %v547 = vunpack.c.h.b16 %v316
      %v548 = vunpack.c.l.b16 %v317
      %v549 = vunpack.c.h.b16 %v317
      %v550 = vunpack.c.l.b16 %v318
      %v551 = vunpack.c.h.b16 %v318
      %v552 = vunpack.c.l.b16 %v319
      %v553 = vunpack.c.h.b16 %v319
      %v554 = vpack.c.b16 %v430, %v426
      %v555 = vpack.c.b16 %v431, %v427
      %v556 = vpack.c.b16 %v432, %v428
      %v557 = vpack.c.b16 %v433, %v429
      %v558 = vpack.c.b16 %v438, %v434
      %v559 = vpack.c.b16 %v439, %v435
      %v560 = vpack.c.b16 %v440, %v436
      %v561 = vpack.c.b16 %v441, %v437
      %v562 = vpack.c.b16 %v446, %v442
      %v563 = vpack.c.b16 %v447, %v443
      %v564 = vpack.c.b16 %v448, %v444
      %v565 = vpack.c.b16 %v449, %v445
      %v566 = vpack.c.b16 %v454, %v450
      %v567 = vpack.c.b16 %v455, %v451
      %v568 = vpack.c.b16 %v456, %v452
      %v569 = vpack.c.b16 %v457, %v453
      %v570 = vpack.c.b16 %v462, %v458
      %v571 = vpack.c.b16 %v463, %v459
      %v572 = vpack.c.b16 %v464, %v460
      %v573 = vpack.c.b16 %v465, %v461
      %v574 = vpack.c.b16 %v470, %v466
      %v575 = vpack.c.b16 %v471, %v467
      %v576 = vpack.c.b16 %v472, %v468
      %v577 = vpack.c.b16 %v473, %v469
      %v578 = vpack.c.b16 %v478, %v474
      %v579 = vpack.c.b16 %v479, %v475
      %v580 = vpack.c.b16 %v480, %v476
      %v581 = vpack.c.b16 %v481, %v477
      %v582 = vpack.c.b16 %v486, %v482
      %v583 = vpack.c.b16 %v487, %v483
      %v584 = vpack.c.b16 %v488, %v484
      %v585 = vpack.c.b16 %v489, %v485
      %v586 = vpack.c.b16 %v494, %v490
      %v587 = vpack.c.b16 %v495, %v491
      %v588 = vpack.c.b16 %v496, %v492
      %v589 = vpack.c.b16 %v497, %v493
      %v590 = vpack.c.b16 %v502, %v498
      %v591 = vpack.c.b16 %v503, %v499
      %v592 = vpack.c.b16 %v504, %v500
      %v593 = vpack.c.b16 %v505, %v501
      %v594 = vpack.c.b16 %v510, %v506
      %v595 = vpack.c.b16 %v511, %v507
      %v596 = vpack.c.b16 %v512, %v508
      %v597 = vpack.c.b16 %v513, %v509
      %v598 = vpack.c.b16 %v518, %v514
      %v599 = vpack.c.b16 %v519, %v515
      %v600 = vpack.c.b16 %v520, %v516
      %v601 = vpack.c.b16 %v521, %v517
      %v602 = vpack.c.b16 %v526, %v522
      %v603 = vpack.c.b16 %v527, %v523
      %v604 = vpack.c.b16 %v528, %v524
      %v605 = vpack.c.b16 %v529, %v525
      %v606 = vpack.c.b16 %v534, %v530
      %v607 = vpack.c.b16 %v535, %v531
      %v608 = vpack.c.b16 %v536, %v532
      %v609 = vpack.c.b16 %v537, %v533
      %v610 = vpack.c.b16 %v542, %v538
      %v611 = vpack.c.b16 %v543, %v539
      %v612 = vpack.c.b16 %v544, %v540
      %v613 = vpack.c.b16 %v545, %v541
      %v614 = vpack.c.b16 %v550, %v546
      %v615 = vpack.c.b16 %v551, %v547
      %v616 = vpack.c.b16 %v552, %v548
      %v617 = vpack.c.b16 %v553, %v549
      %682 = vmatprep.subr.bf16.mxu0 %v555
      %683 = vmatpush1.bf16.msra.mxu0 %v554
      %684 = vmatprep.subr.bf16.mxu0 %v559
      %685 = vmatpush1.bf16.msra.mxu0 %v558
      %686 = vmatprep.subr.bf16.mxu0 %v563
      %687 = vmatpush1.bf16.msra.mxu0 %v562
      %688 = vmatprep.subr.bf16.mxu0 %v567
      %689 = vmatpush1.bf16.msra.mxu0 %v566
      %690 = vmatprep.subr.bf16.mxu0 %v571
      %691 = vmatpush1.bf16.msra.mxu0 %v570
      %692 = vmatprep.subr.bf16.mxu0 %v575
      %693 = vmatpush1.bf16.msra.mxu0 %v574
      %694 = vmatprep.subr.bf16.mxu0 %v579
      %695 = vmatpush1.bf16.msra.mxu0 %v578
      %696 = vmatprep.subr.bf16.mxu0 %v583
      %697 = vmatpush1.bf16.msra.mxu0 %v582
      %698 = vmatprep.subr.bf16.mxu0 %v587
      %699 = vmatpush1.bf16.msra.mxu0 %v586
      %700 = vmatprep.subr.bf16.mxu0 %v591
      %701 = vmatpush1.bf16.msra.mxu0 %v590
      %702 = vmatprep.subr.bf16.mxu0 %v595
      %703 = vmatpush1.bf16.msra.mxu0 %v594
      %704 = vmatprep.subr.bf16.mxu0 %v599
      %705 = vmatpush1.bf16.msra.mxu0 %v598
      %706 = vmatprep.subr.bf16.mxu0 %v603
      %707 = vmatpush1.bf16.msra.mxu0 %v602
      %708 = vmatprep.subr.bf16.mxu0 %v607
      %709 = vmatpush1.bf16.msra.mxu0 %v606
      %710 = vmatprep.subr.bf16.mxu0 %v611
      %711 = vmatpush1.bf16.msra.mxu0 %v610
      %712 = vmatprep.subr.bf16.mxu0 %v615
      %713 = vmatpush1.bf16.msra.mxu0 %v614
      %714 = vmatprep.mubr.bf16.mxu0 %v355
      %715 = vmatmul.mubr.bf16.gmra.mrb[0].mxu0 %v354
      %v716 = vpop.f32.mrb[0].mxu0
      %v717 = vadd.f32 %v325, %v716
      %v718 = vpop.f32.mrb[0].mxu0
      %v719 = vadd.f32 %v329, %v718
      %v720 = vpop.f32.mrb[0].mxu0
      %v721 = vadd.f32 %v325, %v720
      %v722 = vpop.f32.mrb[0].mxu0
      %v723 = vadd.f32 %v329, %v722
      %724 = vmatprep.mubr.bf16.mxu0 %v357
      %725 = vmatmul.mubr.bf16.gmra.mrb[0].mxu0 %v356
      %v726 = vpop.f32.mrb[0].mxu0
      %v727 = vadd.f32 %v325, %v726
      %v728 = vpop.f32.mrb[0].mxu0
      %v729 = vadd.f32 %v329, %v728
      %v730 = vpop.f32.mrb[0].mxu0
      %v731 = vadd.f32 %v325, %v730
      %v732 = vpop.f32.mrb[0].mxu0
      %v733 = vadd.f32 %v329, %v732
      %734 = vdwg.mxu0
      %735 = vmatprep.subr.bf16.mxu0 %v557
      %736 = vmatpush1.bf16.msra.mxu0 %v556
      %737 = vmatprep.subr.bf16.mxu0 %v561
      %738 = vmatpush1.bf16.msra.mxu0 %v560
      %739 = vmatprep.subr.bf16.mxu0 %v565
      %740 = vmatpush1.bf16.msra.mxu0 %v564
      %741 = vmatprep.subr.bf16.mxu0 %v569
      %742 = vmatpush1.bf16.msra.mxu0 %v568
      %743 = vmatprep.subr.bf16.mxu0 %v573
      %744 = vmatpush1.bf16.msra.mxu0 %v572
      %745 = vmatprep.subr.bf16.mxu0 %v577
      %746 = vmatpush1.bf16.msra.mxu0 %v576
      %747 = vmatprep.subr.bf16.mxu0 %v581
      %748 = vmatpush1.bf16.msra.mxu0 %v580
      %749 = vmatprep.subr.bf16.mxu0 %v585
      %750 = vmatpush1.bf16.msra.mxu0 %v584
      %751 = vmatprep.subr.bf16.mxu0 %v589
      %752 = vmatpush1.bf16.msra.mxu0 %v588
      %753 = vmatprep.subr.bf16.mxu0 %v593
      %754 = vmatpush1.bf16.msra.mxu0 %v592
      %755 = vmatprep.subr.bf16.mxu0 %v597
      %756 = vmatpush1.bf16.msra.mxu0 %v596
      %757 = vmatprep.subr.bf16.mxu0 %v601
      %758 = vmatpush1.bf16.msra.mxu0 %v600
      %759 = vmatprep.subr.bf16.mxu0 %v605
      %760 = vmatpush1.bf16.msra.mxu0 %v604
      %761 = vmatprep.subr.bf16.mxu0 %v609
      %762 = vmatpush1.bf16.msra.mxu0 %v608
      %763 = vmatprep.subr.bf16.mxu0 %v613
      %764 = vmatpush1.bf16.msra.mxu0 %v612
      %765 = vmatprep.subr.bf16.mxu0 %v617
      %766 = vmatpush1.bf16.msra.mxu0 %v616
      %767 = vmatprep.mubr.bf16.mxu0 %v355
      %768 = vmatmul.mubr.bf16.gmra.mrb[0].mxu0 %v354
      %v769 = vpop.f32.mrb[0].mxu0
      %v770 = vadd.f32 %v333, %v769
      %v771 = vpop.f32.mrb[0].mxu0
      %v772 = vadd.f32 %v337, %v771
      %v773 = vpop.f32.mrb[0].mxu0
      %v774 = vadd.f32 %v333, %v773
      %v775 = vpop.f32.mrb[0].mxu0
      %v776 = vadd.f32 %v337, %v775
      %777 = vmatprep.mubr.bf16.mxu0 %v357
      %778 = vmatmul.mubr.bf16.gmra.mrb[0].mxu0 %v356
      %v779 = vpop.f32.mrb[0].mxu0
      %v780 = vadd.f32 %v333, %v779
      %v781 = vpop.f32.mrb[0].mxu0
      %v782 = vadd.f32 %v337, %v781
      %v783 = vpop.f32.mrb[0].mxu0
      %v784 = vadd.f32 %v333, %v783
      %v785 = vpop.f32.mrb[0].mxu0
      %v786 = vadd.f32 %v337, %v785
      %787 = vdwg.mxu0
      %788 = vst [vmem:[%s250] sm:$0xff] %v717
      %789 = vst [vmem:[%s250 + $0x8] sm:$0xff] %v719
      %790 = vst [vmem:[%s250 + $0x10] sm:$0xff] %v770
      %791 = vst [vmem:[%s250 + $0x18] sm:$0xff] %v772
      %792 = vst [vmem:[%s250 + $0x20] sm:$0xff] %v721
      %793 = vst [vmem:[%s250 + $0x28] sm:$0xff] %v723
      %794 = vst [vmem:[%s250 + $0x30] sm:$0xff] %v774
      %795 = vst [vmem:[%s250 + $0x38] sm:$0xff] %v776
      %796 = vst [vmem:[%s250 + $0x40] sm:$0xff] %v727
      %797 = vst [vmem:[%s250 + $0x48] sm:$0xff] %v729
      %798 = vst [vmem:[%s250 + $0x50] sm:$0xff] %v780
      %799 = vst [vmem:[%s250 + $0x58] sm:$0xff] %v782
      %800 = vst [vmem:[%s250 + $0x60] sm:$0xff] %v731
      %801 = vst [vmem:[%s250 + $0x68] sm:$0xff] %v733
      %802 = vst [vmem:[%s250 + $0x70] sm:$0xff] %v784
      %803 = vst [vmem:[%s250 + $0x78] sm:$0xff] %v786
      %s804 = smul.u32 4, %s19
      %p805 = scmp.lt.s32.totalorder %s18, 1
      %s806 = scalar_select %p805, %s18, 1
      %p807 = scmp.lt.s32.totalorder %s804, 3
      %s808 = scalar_select %p807, %s804, 3
      %s809 = smul.addr %s808, 4
      %s810 = smul.addr %s806, 16
      %s811 = sadd.s32 %s809, %s810
      %s812 = smul.addr %s811, 8
      %s813 = scalar_lea.vmem %s3, %s812
      // Predicated region
      $region33: #{triplet_net_forward.39} parent=31 // pred_check
        %p814 = pneg %p126
      $region34: #{triplet_net_forward.39} parent=31 // pred_check_branch
        %816 = sbr.rel (%p814) target = $region36
      $region35: #{triplet_net_forward.39} parent=31 // pred_region
        %s817 = smul.u32 4, %s19
      $region36: #{triplet_net_forward.39} parent=31 // pred_fallthru
        _
    $region32: #{triplet_net_forward.39} parent=5 // pred_fallthru
      _
    %p818 = scmp.le.s32.totalorder 2, %s9
    // Predicated region
    $region37: #{triplet_net_forward.39} parent=5 // pred_check
      %p819 = pneg %p818
    $region38: #{triplet_net_forward.39} parent=5 // pred_check_branch
      %821 = sbr.rel (%p819) target = $region40
    $region39: #{triplet_net_forward.39} parent=5 // pred_region
      %s822 = ssub.s32 %s9, 2
      // Predicated region
      $region41: #{triplet_net_forward.39} parent=39 // pred_check
        %p823 = pneg %p132
      $region42: #{triplet_net_forward.39} parent=39 // pred_check_branch
        %825 = sbr.rel (%p823) target = $region44
      $region43: #{triplet_net_forward.39} parent=39 // pred_region
        %s826 = smul.u32 4, %s21
        %p827 = scmp.lt.s32.totalorder %s20, 1
        %s828 = scalar_select %p827, %s20, 1
        %p829 = scmp.lt.s32.totalorder %s826, 3
        %s830 = scalar_select %p829, %s826, 3
        %s831 = smul.addr %s830, 4
        %s832 = smul.addr %s828, 16
        %s833 = sadd.s32 %s831, %s832
        %s834 = smul.addr %s833, 8
        %s835 = scalar_lea.vmem %s3, %s834
      $region44: #{triplet_net_forward.39} parent=39 // pred_fallthru
        _
    $region40: #{triplet_net_forward.39} parent=5 // pred_fallthru
      _
  $region6: #{triplet_net_forward.39} parent=0 // loop_footer
    %s13 = sadd.s32 1, %s9
  $region7: #{triplet_net_forward.39} parent=0 // loop_footer_branch
    %8 = sbr.rel target = $region3
  $region8: #{triplet_net_forward.39} parent=0 // loop_exit
    _

// kernel: triplet_net_forward.28
$region0: #{triplet_net_forward.28}
  #allocation0 [shape = 'u32[]', space=smem, size = 0x4, offset = 0x4, fixed_abs, tag = 'smem constant byte address 0x4 - core index']
  #allocation1 [shape = 'u32[144,128]{1,0:T(1,128)}', space=vmem, size = 0x12000, scoped, tag = 'internal scratch']
  %s0 = inlined_call_operand.vmem [shape: bf16[2,128,1152], index: 0, kind: input, shape index: {}]
  %s1 = inlined_call_operand.vmem [shape: bf16[2,1152,128], index: 1, kind: input, shape index: {}]
  %s2 = inlined_call_operand.vmem [shape: f32[2,1,128], index: 2, kind: input, shape index: {}]
  %s3 = inlined_call_operand.vmem [shape: f32[2,128,128], index: 3, kind: output, shape index: {}]
  %s4 = sld [smem:[#allocation0]]
  $region45: #{triplet_net_forward.28} parent=0
    _
  %s6 = ssub.s32 1, %s4
  %s7 = scalar_select 0, %s6, %s4
  loop: start=0, step=1, limit=4
  $region2: #{triplet_net_forward.28} parent=0 // loop_pre_header
    _
  $region3: #{triplet_net_forward.28} parent=0 // loop_header
    %s9 = sphi 0, %s13
    %p10 = scmp.ge.s32.totalorder %s9, 4
    %s16 = sphi 0, %s28
    %s17 = sphi 0, %s24
    %s18 = sphi 0, %s16
    %s19 = sphi 0, %s17
    %s20 = sphi 0, %s18
    %s21 = sphi 0, %s19
    %s33 = sphi 0, %s35
    %s36 = sphi 0, %s33
    %s37 = sphi 0, %s36
    %s53 = sphi 0, %s37
    %s59 = sphi 0, %s61
    %s62 = sphi 0, %s59
    %s63 = sphi 0, %s62
    %s79 = sphi 0, %s63
    %s85 = sphi 0, %s87
    %s88 = sphi 0, %s85
    %s89 = sphi 0, %s88
    %s105 = sphi 0, %s89
    %s113 = sphi 0, %s115
    %s116 = sphi 0, %s113
    %s117 = sphi 0, %s116
    %s133 = sphi 0, %s117
  $region4: #{triplet_net_forward.28} parent=0 // loop_header_branch
    %12 = sbr.rel (%p10) target = $region8
  $region5: #{triplet_net_forward.28} parent=0 // loop_body
    %s14 = ssub.s32 %s9, 1
    %s15 = ssub.s32 %s9, 2
    %s22 = sadd.s32 1, %s17
    %p23 = scmp.ge.s32.totalorder %s22, 1
    %s24 = scalar_select %p23, 0, %s22
    %s25 = sadd.s32 1, %s16
    %s26 = scalar_select %p23, %s25, %s16
    %p27 = scmp.ge.s32.totalorder %s26, 2
    %s28 = scalar_select %p27, 0, %s26
    %s29 = ssub.s32 %s16, %s28
    %s30 = ssub.s32 %s17, %s24
    %s31 = sor.u32 %s29, %s30
    %p32 = scmp.eq.s32.totalorder %s31, 0
    %s34 = sadd.s32 %s33, 1
    %s35 = scalar_select %p32, %s33, %s34
    %p38 = pneg %p32
    %p39 = scmp.eq.s32.totalorder %s9, 1
    %p40 = por %p38, %p39
    %p41 = scmp.ne.s32.totalorder %s33, %s36
    %p42 = scmp.eq.s32.totalorder %s9, 0
    %p43 = por %p41, %p42
    %p44 = scmp.ne.s32.totalorder %s33, %s36
    %p45 = scmp.eq.s32.totalorder %s14, 1
    %p46 = por %p44, %p45
    %p47 = scmp.ne.s32.totalorder %s36, %s37
    %p48 = scmp.eq.s32.totalorder %s14, 0
    %p49 = por %p47, %p48
    %p50 = scmp.ne.s32.totalorder %s36, %s37
    %p51 = scmp.eq.s32.totalorder %s15, 1
    %p52 = por %p50, %p51
    %p54 = scmp.ne.s32.totalorder %s37, %s53
    %p55 = scmp.eq.s32.totalorder %s15, 0
    %p56 = por %p54, %p55
    %s57 = ssub.s32 %s16, %s28
    %p58 = scmp.eq.s32.totalorder %s57, 0
    %s60 = sadd.s32 %s59, 1
    %s61 = scalar_select %p58, %s59, %s60
    %p64 = pneg %p58
    %p65 = scmp.eq.s32.totalorder %s9, 1
    %p66 = por %p64, %p65
    %p67 = scmp.ne.s32.totalorder %s59, %s62
    %p68 = scmp.eq.s32.totalorder %s9, 0
    %p69 = por %p67, %p68
    %p70 = scmp.ne.s32.totalorder %s59, %s62
    %p71 = scmp.eq.s32.totalorder %s14, 1
    %p72 = por %p70, %p71
    %p73 = scmp.ne.s32.totalorder %s62, %s63
    %p74 = scmp.eq.s32.totalorder %s14, 0
    %p75 = por %p73, %p74
    %p76 = scmp.ne.s32.totalorder %s62, %s63
    %p77 = scmp.eq.s32.totalorder %s15, 1
    %p78 = por %p76, %p77
    %p80 = scmp.ne.s32.totalorder %s63, %s79
    %p81 = scmp.eq.s32.totalorder %s15, 0
    %p82 = por %p80, %p81
    %s83 = ssub.s32 %s16, %s28
    %p84 = scmp.eq.s32.totalorder %s83, 0
    %s86 = sadd.s32 %s85, 1
    %s87 = scalar_select %p84, %s85, %s86
    %p90 = pneg %p84
    %p91 = scmp.eq.s32.totalorder %s9, 1
    %p92 = por %p90, %p91
    %p93 = scmp.ne.s32.totalorder %s85, %s88
    %p94 = scmp.eq.s32.totalorder %s9, 0
    %p95 = por %p93, %p94
    %p96 = scmp.ne.s32.totalorder %s85, %s88
    %p97 = scmp.eq.s32.totalorder %s14, 1
    %p98 = por %p96, %p97
    %p99 = scmp.ne.s32.totalorder %s88, %s89
    %p100 = scmp.eq.s32.totalorder %s14, 0
    %p101 = por %p99, %p100
    %p102 = scmp.ne.s32.totalorder %s88, %s89
    %p103 = scmp.eq.s32.totalorder %s15, 1
    %p104 = por %p102, %p103
    %p106 = scmp.ne.s32.totalorder %s89, %s105
    %p107 = scmp.eq.s32.totalorder %s15, 0
    %p108 = por %p106, %p107
    %s109 = ssub.s32 %s16, %s28
    %s110 = ssub.s32 %s17, %s24
    %s111 = sor.u32 %s109, %s110
    %p112 = scmp.eq.s32.totalorder %s111, 0
    %s114 = sadd.s32 %s113, 1
    %s115 = scalar_select %p112, %s113, %s114
    %p118 = pneg %p112
    %p119 = scmp.eq.s32.totalorder %s9, 1
    %p120 = por %p118, %p119
    %p121 = scmp.ne.s32.totalorder %s113, %s116
    %p122 = scmp.eq.s32.totalorder %s9, 0
    %p123 = por %p121, %p122
    %p124 = scmp.ne.s32.totalorder %s113, %s116
    %p125 = scmp.eq.s32.totalorder %s14, 1
    %p126 = por %p124, %p125
    %p127 = scmp.ne.s32.totalorder %s116, %s117
    %p128 = scmp.eq.s32.totalorder %s14, 0
    %p129 = por %p127, %p128
    %p130 = scmp.ne.s32.totalorder %s116, %s117
    %p131 = scmp.eq.s32.totalorder %s15, 1
    %p132 = por %p130, %p131
    %p134 = scmp.ne.s32.totalorder %s117, %s133
    %p135 = scmp.eq.s32.totalorder %s15, 0
    %p136 = por %p134, %p135
    %p137 = scmp.le.s32.totalorder 1, %s9
    %p138 = scmp.lt.s32.totalorder %s9, 3
    %p139 = pnand %p137, %p138
    %p140 = pneg %p139
    // Predicated region
    $region9: #{triplet_net_forward.28} parent=5 // pred_check
      _
    $region10: #{triplet_net_forward.28} parent=5 // pred_check_branch
      %142 = sbr.rel (%p139) target = $region12
    $region11: #{triplet_net_forward.28} parent=5 // pred_region
      %s143 = ssub.s32 %s9, 1
    $region12: #{triplet_net_forward.28} parent=5 // pred_fallthru
      _
    %p144 = scmp.lt.s32.totalorder %s9, 2
    // Predicated region
    $region13: #{triplet_net_forward.28} parent=5 // pred_check
      %p145 = pneg %p144
    $region14: #{triplet_net_forward.28} parent=5 // pred_check_branch
      %147 = sbr.rel (%p145) target = $region16
    $region15: #{triplet_net_forward.28} parent=5 // pred_region
      // Predicated region
      $region17: #{triplet_net_forward.28} parent=15 // pred_check
        %p148 = pneg %p43
      $region18: #{triplet_net_forward.28} parent=15 // pred_check_branch
        %150 = sbr.rel (%p148) target = $region20
      $region19: #{triplet_net_forward.28} parent=15 // pred_region
        %s151 = smul.u32 16, %s17
        %p152 = scmp.lt.s32.totalorder %s16, 1
        %s153 = scalar_select %p152, %s16, 1
        %p154 = scmp.lt.s32.totalorder %s151, 15
        %s155 = scalar_select %p154, %s151, 15
        %s156 = smul.addr %s155, 9
        %s157 = smul.addr %s153, 144
        %s158 = sadd.s32 %s156, %s157
        %s159 = smul.addr %s158, 4
        %s160 = scalar_lea.vmem %s0, %s159
        %s161 = smul.u32 16, %s17
      $region20: #{triplet_net_forward.28} parent=15 // pred_fallthru
        _
      // Predicated region
      $region21: #{triplet_net_forward.28} parent=15 // pred_check
        %p162 = pneg %p69
      $region22: #{triplet_net_forward.28} parent=15 // pred_check_branch
        %164 = sbr.rel (%p162) target = $region24
      $region23: #{triplet_net_forward.28} parent=15 // pred_region
        %p165 = scmp.lt.s32.totalorder %s16, 1
        %s166 = scalar_select %p165, %s16, 1
        %s167 = smul.addr %s166, 144
        %s168 = smul.addr %s167, 4
        %s169 = scalar_lea.vmem %s1, %s168
      $region24: #{triplet_net_forward.28} parent=15 // pred_fallthru
        _
      // Predicated region
      $region25: #{triplet_net_forward.28} parent=15 // pred_check
        %p170 = pneg %p95
      $region26: #{triplet_net_forward.28} parent=15 // pred_check_branch
        %172 = sbr.rel (%p170) target = $region28
      $region27: #{triplet_net_forward.28} parent=15 // pred_region
        %p173 = scmp.lt.s32.totalorder %s16, 1
        %s174 = scalar_select %p173, %s16, 1
        %s175 = scalar_lea.vmem %s2, %s174
      $region28: #{triplet_net_forward.28} parent=15 // pred_fallthru
        _
    $region16: #{triplet_net_forward.28} parent=5 // pred_fallthru
      _
    %p176 = scmp.le.s32.totalorder 1, %s9
    %p177 = scmp.lt.s32.totalorder %s9, 3
    %p178 = pnand %p176, %p177
    %p179 = pneg %p178
    // Predicated region
    $region29: #{triplet_net_forward.28} parent=5 // pred_check
      _
    $region30: #{triplet_net_forward.28} parent=5 // pred_check_branch
      %181 = sbr.rel (%p178) target = $region32
    $region31: #{triplet_net_forward.28} parent=5 // pred_region
      %s182 = ssub.s32 %s9, 1
      %s183 = smul.u32 16, %s19
      %p184 = scmp.lt.s32.totalorder %s18, 1
      %s185 = scalar_select %p184, %s18, 1
      %p186 = scmp.lt.s32.totalorder %s183, 15
      %s187 = scalar_select %p186, %s183, 15
      %s188 = smul.addr %s187, 9
      %s189 = smul.addr %s185, 144
      %s190 = sadd.s32 %s188, %s189
      %s191 = smul.addr %s190, 4
      %s192 = scalar_lea.vmem %s0, %s191
      %p193 = pneg %p49
      %p194 = pneg %p46
      %p195 = scmp.lt.s32.totalorder %s18, 1
      %s196 = scalar_select %p195, %s18, 1
      %s197 = smul.addr %s196, 144
      %s198 = smul.addr %s197, 4
      %s199 = scalar_lea.vmem %s1, %s198
      %p200 = pneg %p75
      %p201 = pneg %p72
      %p202 = scmp.lt.s32.totalorder %s18, 1
      %s203 = scalar_select %p202, %s18, 1
      %s204 = scalar_lea.vmem %s2, %s203
      %p205 = pneg %p101
      %p206 = pneg %p98
      %p207 = pneg %p129
      %p208 = pneg %p126
      %s209 = smul.u32 16, %s19
      %p210 = scmp.lt.s32.totalorder %s18, 1
      %s211 = scalar_select %p210, %s18, 1
      %p212 = scmp.lt.s32.totalorder %s209, 15
      %s213 = scalar_select %p212, %s209, 15
      %s214 = smul.addr %s211, 16
      %s215 = sadd.s32 %s213, %s214
      %s216 = smul.addr %s215, 8
      %s217 = scalar_lea.vmem %s3, %s216
      %s218 = smul.u32 16, %s19
      %p219 = scmp.lt.s32.totalorder %s18, 1
      %s220 = scalar_select %p219, %s18, 1
      %p221 = scmp.lt.s32.totalorder %s218, 15
      %s222 = scalar_select %p221, %s218, 15
      %s223 = smul.addr %s222, 9
      %s224 = smul.addr %s220, 144
      %s225 = sadd.s32 %s223, %s224
      %s226 = smul.addr %s225, 4
      %s227 = scalar_lea.vmem %s0, %s226
      %s228 = smul.u32 16, %s19
      %p229 = scmp.lt.s32.totalorder %s18, 1
      %s230 = scalar_select %p229, %s18, 1
      %s231 = smul.addr %s230, 144
      %s232 = smul.addr %s231, 4
      %s233 = scalar_lea.vmem %s1, %s232
      %p234 = scmp.lt.s32.totalorder %s18, 1
      %s235 = scalar_select %p234, %s18, 1
      %s236 = scalar_lea.vmem %s2, %s235
      %s237 = smul.u32 16, %s19
      %p238 = scmp.lt.s32.totalorder %s18, 1
      %s239 = scalar_select %p238, %s18, 1
      %p240 = scmp.lt.s32.totalorder %s237, 15
      %s241 = scalar_select %p240, %s237, 15
      %s242 = smul.addr %s239, 16
      %s243 = sadd.s32 %s241, %s242
      %s244 = smul.addr %s243, 8
      %s245 = scalar_lea.vmem %s3, %s244
      %s246 = smul.u32 16, %s19
      %v248 = vld [vmem:[%s227] sm:$0xff]
      %v249 = vld [vmem:[%s227 + $0x8] sm:$0xff]
      %v250 = vld [vmem:[%s227 + $0x10] sm:$0xff]
      %v251 = vld [vmem:[%s227 + $0x18] sm:$0xff]
      %v252 = vld [vmem:[%s227 + $0x20] sm:$0xf]
      %v253 = vld [vmem:[%s227 + $0x24] sm:$0xff]
      %v254 = vld [vmem:[%s227 + $0x2c] sm:$0xff]
      %v255 = vld [vmem:[%s227 + $0x34] sm:$0xff]
      %v256 = vld [vmem:[%s227 + $0x3c] sm:$0xff]
      %v257 = vld [vmem:[%s227 + $0x44] sm:$0xf]
      %v258 = vld [vmem:[%s227 + $0x48] sm:$0xff]
      %v259 = vld [vmem:[%s227 + $0x50] sm:$0xff]
      %v260 = vld [vmem:[%s227 + $0x58] sm:$0xff]
      %v261 = vld [vmem:[%s227 + $0x60] sm:$0xff]
      %v262 = vld [vmem:[%s227 + $0x68] sm:$0xf]
      %v263 = vld [vmem:[%s227 + $0x6c] sm:$0xff]
      %v264 = vld [vmem:[%s227 + $0x74] sm:$0xff]
      %v265 = vld [vmem:[%s227 + $0x7c] sm:$0xff]
      %v266 = vld [vmem:[%s227 + $0x84] sm:$0xff]
      %v267 = vld [vmem:[%s227 + $0x8c] sm:$0xf]
      %v268 = vld [vmem:[%s227 + $0x90] sm:$0xff]
      %v269 = vld [vmem:[%s227 + $0x98] sm:$0xff]
      %v270 = vld [vmem:[%s227 + $0xa0] sm:$0xff]
      %v271 = vld [vmem:[%s227 + $0xa8] sm:$0xff]
      %v272 = vld [vmem:[%s227 + $0xb0] sm:$0xf]
      %v273 = vld [vmem:[%s227 + $0xb4] sm:$0xff]
      %v274 = vld [vmem:[%s227 + $0xbc] sm:$0xff]
      %v275 = vld [vmem:[%s227 + $0xc4] sm:$0xff]
      %v276 = vld [vmem:[%s227 + $0xcc] sm:$0xff]
      %v277 = vld [vmem:[%s227 + $0xd4] sm:$0xf]
      %v278 = vld [vmem:[%s227 + $0xd8] sm:$0xff]
      %v279 = vld [vmem:[%s227 + $0xe0] sm:$0xff]
      %v280 = vld [vmem:[%s227 + $0xe8] sm:$0xff]
      %v281 = vld [vmem:[%s227 + $0xf0] sm:$0xff]
      %v282 = vld [vmem:[%s227 + $0xf8] sm:$0xf]
      %v283 = vld [vmem:[%s227 + $0xfc] sm:$0xff]
      %v284 = vld [vmem:[%s227 + $0x104] sm:$0xff]
      %v285 = vld [vmem:[%s227 + $0x10c] sm:$0xff]
      %v286 = vld [vmem:[%s227 + $0x114] sm:$0xff]
      %v287 = vld [vmem:[%s227 + $0x11c] sm:$0xf]
      %v288 = vld [vmem:[%s227 + $0x120] sm:$0xff]
      %v289 = vld [vmem:[%s227 + $0x128] sm:$0xff]
      %v290 = vld [vmem:[%s227 + $0x130] sm:$0xff]
      %v291 = vld [vmem:[%s227 + $0x138] sm:$0xff]
      %v292 = vld [vmem:[%s227 + $0x140] sm:$0xf]
      %v293 = vld [vmem:[%s227 + $0x144] sm:$0xff]
      %v294 = vld [vmem:[%s227 + $0x14c] sm:$0xff]
      %v295 = vld [vmem:[%s227 + $0x154] sm:$0xff]
      %v296 = vld [vmem:[%s227 + $0x15c] sm:$0xff]
      %v297 = vld [vmem:[%s227 + $0x164] sm:$0xf]
      %v298 = vld [vmem:[%s227 + $0x168] sm:$0xff]
      %v299 = vld [vmem:[%s227 + $0x170] sm:$0xff]
      %v300 = vld [vmem:[%s227 + $0x178] sm:$0xff]
      %v301 = vld [vmem:[%s227 + $0x180] sm:$0xff]
      %v302 = vld [vmem:[%s227 + $0x188] sm:$0xf]
      %v303 = vld [vmem:[%s227 + $0x18c] sm:$0xff]
      %v304 = vld [vmem:[%s227 + $0x194] sm:$0xff]
      %v305 = vld [vmem:[%s227 + $0x19c] sm:$0xff]
      %v306 = vld [vmem:[%s227 + $0x1a4] sm:$0xff]
      %v307 = vld [vmem:[%s227 + $0x1ac] sm:$0xf]
      %v308 = vld [vmem:[%s227 + $0x1b0] sm:$0xff]
      %v309 = vld [vmem:[%s227 + $0x1b8] sm:$0xff]
      %v310 = vld [vmem:[%s227 + $0x1c0] sm:$0xff]
      %v311 = vld [vmem:[%s227 + $0x1c8] sm:$0xff]
      %v312 = vld [vmem:[%s227 + $0x1d0] sm:$0xf]
      %v313 = vld [vmem:[%s227 + $0x1d4] sm:$0xff]
      %v314 = vld [vmem:[%s227 + $0x1dc] sm:$0xff]
      %v315 = vld [vmem:[%s227 + $0x1e4] sm:$0xff]
      %v316 = vld [vmem:[%s227 + $0x1ec] sm:$0xff]
      %v317 = vld [vmem:[%s227 + $0x1f4] sm:$0xf]
      %v318 = vld [vmem:[%s227 + $0x1f8] sm:$0xff]
      %v319 = vld [vmem:[%s227 + $0x200] sm:$0xff]
      %v320 = vld [vmem:[%s227 + $0x208] sm:$0xff]
      %v321 = vld [vmem:[%s227 + $0x210] sm:$0xff]
      %v322 = vld [vmem:[%s227 + $0x218] sm:$0xf]
      %v323 = vld [vmem:[%s227 + $0x21c] sm:$0xff]
      %v324 = vld [vmem:[%s227 + $0x224] sm:$0xff]
      %v325 = vld [vmem:[%s227 + $0x22c] sm:$0xff]
      %v326 = vld [vmem:[%s227 + $0x234] sm:$0xff]
      %v327 = vld [vmem:[%s227 + $0x23c] sm:$0xf]
      %v328 = vld [vmem:[%s233] sm:$0xf]
      %v329 = vld [vmem:[%s233 + $0x4] sm:$0xf]
      %v330 = vld [vmem:[%s233 + $0x8] sm:$0xf]
      %v331 = vld [vmem:[%s233 + $0xc] sm:$0xf]
      %v332 = vld [vmem:[%s233 + $0x10] sm:$0xf]
      %v333 = vld [vmem:[%s233 + $0x14] sm:$0xf]
      %v334 = vld [vmem:[%s233 + $0x18] sm:$0xf]
      %v335 = vld [vmem:[%s233 + $0x1c] sm:$0xf]
      %v336 = vld [vmem:[%s233 + $0x20] sm:$0xf]
      %v337 = vld [vmem:[%s233 + $0x24] sm:$0xf]
      %v338 = vld [vmem:[%s233 + $0x28] sm:$0xf]
      %v339 = vld [vmem:[%s233 + $0x2c] sm:$0xf]
      %v340 = vld [vmem:[%s233 + $0x30] sm:$0xf]
      %v341 = vld [vmem:[%s233 + $0x34] sm:$0xf]
      %v342 = vld [vmem:[%s233 + $0x38] sm:$0xf]
      %v343 = vld [vmem:[%s233 + $0x3c] sm:$0xf]
      %v344 = vld [vmem:[%s233 + $0x40] sm:$0xf]
      %v345 = vld [vmem:[%s233 + $0x44] sm:$0xf]
      %v346 = vld [vmem:[%s233 + $0x48] sm:$0xf]
      %v347 = vld [vmem:[%s233 + $0x4c] sm:$0xf]
      %v348 = vld [vmem:[%s233 + $0x50] sm:$0xf]
      %v349 = vld [vmem:[%s233 + $0x54] sm:$0xf]
      %v350 = vld [vmem:[%s233 + $0x58] sm:$0xf]
      %v351 = vld [vmem:[%s233 + $0x5c] sm:$0xf]
      %v352 = vld [vmem:[%s233 + $0x60] sm:$0xf]
      %v353 = vld [vmem:[%s233 + $0x64] sm:$0xf]
      %v354 = vld [vmem:[%s233 + $0x68] sm:$0xf]
      %v355 = vld [vmem:[%s233 + $0x6c] sm:$0xf]
      %v356 = vld [vmem:[%s233 + $0x70] sm:$0xf]
      %v357 = vld [vmem:[%s233 + $0x74] sm:$0xf]
      %v358 = vld [vmem:[%s233 + $0x78] sm:$0xf]
      %v359 = vld [vmem:[%s233 + $0x7c] sm:$0xf]
      %v360 = vld [vmem:[%s233 + $0x80] sm:$0xf]
      %v361 = vld [vmem:[%s233 + $0x84] sm:$0xf]
      %v362 = vld [vmem:[%s233 + $0x88] sm:$0xf]
      %v363 = vld [vmem:[%s233 + $0x8c] sm:$0xf]
      %v364 = vld [vmem:[%s233 + $0x90] sm:$0xf]
      %v365 = vld [vmem:[%s233 + $0x94] sm:$0xf]
      %v366 = vld [vmem:[%s233 + $0x98] sm:$0xf]
      %v367 = vld [vmem:[%s233 + $0x9c] sm:$0xf]
      %v368 = vld [vmem:[%s233 + $0xa0] sm:$0xf]
      %v369 = vld [vmem:[%s233 + $0xa4] sm:$0xf]
      %v370 = vld [vmem:[%s233 + $0xa8] sm:$0xf]
      %v371 = vld [vmem:[%s233 + $0xac] sm:$0xf]
      %v372 = vld [vmem:[%s233 + $0xb0] sm:$0xf]
      %v373 = vld [vmem:[%s233 + $0xb4] sm:$0xf]
      %v374 = vld [vmem:[%s233 + $0xb8] sm:$0xf]
      %v375 = vld [vmem:[%s233 + $0xbc] sm:$0xf]
      %v376 = vld [vmem:[%s233 + $0xc0] sm:$0xf]
      %v377 = vld [vmem:[%s233 + $0xc4] sm:$0xf]
      %v378 = vld [vmem:[%s233 + $0xc8] sm:$0xf]
      %v379 = vld [vmem:[%s233 + $0xcc] sm:$0xf]
      %v380 = vld [vmem:[%s233 + $0xd0] sm:$0xf]
      %v381 = vld [vmem:[%s233 + $0xd4] sm:$0xf]
      %v382 = vld [vmem:[%s233 + $0xd8] sm:$0xf]
      %v383 = vld [vmem:[%s233 + $0xdc] sm:$0xf]
      %v384 = vld [vmem:[%s233 + $0xe0] sm:$0xf]
      %v385 = vld [vmem:[%s233 + $0xe4] sm:$0xf]
      %v386 = vld [vmem:[%s233 + $0xe8] sm:$0xf]
      %v387 = vld [vmem:[%s233 + $0xec] sm:$0xf]
      %v388 = vld [vmem:[%s233 + $0xf0] sm:$0xf]
      %v389 = vld [vmem:[%s233 + $0xf4] sm:$0xf]
      %v390 = vld [vmem:[%s233 + $0xf8] sm:$0xf]
      %v391 = vld [vmem:[%s233 + $0xfc] sm:$0xf]
      %v392 = vld [vmem:[%s233 + $0x100] sm:$0xf]
      %v393 = vld [vmem:[%s233 + $0x104] sm:$0xf]
      %v394 = vld [vmem:[%s233 + $0x108] sm:$0xf]
      %v395 = vld [vmem:[%s233 + $0x10c] sm:$0xf]
      %v396 = vld [vmem:[%s233 + $0x110] sm:$0xf]
      %v397 = vld [vmem:[%s233 + $0x114] sm:$0xf]
      %v398 = vld [vmem:[%s233 + $0x118] sm:$0xf]
      %v399 = vld [vmem:[%s233 + $0x11c] sm:$0xf]
      %v400 = vld [vmem:[%s233 + $0x120] sm:$0xf]
      %v401 = vld [vmem:[%s233 + $0x124] sm:$0xf]
      %v402 = vld [vmem:[%s233 + $0x128] sm:$0xf]
      %v403 = vld [vmem:[%s233 + $0x12c] sm:$0xf]
      %v404 = vld [vmem:[%s233 + $0x130] sm:$0xf]
      %v405 = vld [vmem:[%s233 + $0x134] sm:$0xf]
      %v406 = vld [vmem:[%s233 + $0x138] sm:$0xf]
      %v407 = vld [vmem:[%s233 + $0x13c] sm:$0xf]
      %v408 = vld [vmem:[%s233 + $0x140] sm:$0xf]
      %v409 = vld [vmem:[%s233 + $0x144] sm:$0xf]
      %v410 = vld [vmem:[%s233 + $0x148] sm:$0xf]
      %v411 = vld [vmem:[%s233 + $0x14c] sm:$0xf]
      %v412 = vld [vmem:[%s233 + $0x150] sm:$0xf]
      %v413 = vld [vmem:[%s233 + $0x154] sm:$0xf]
      %v414 = vld [vmem:[%s233 + $0x158] sm:$0xf]
      %v415 = vld [vmem:[%s233 + $0x15c] sm:$0xf]
      %v416 = vld [vmem:[%s233 + $0x160] sm:$0xf]
      %v417 = vld [vmem:[%s233 + $0x164] sm:$0xf]
      %v418 = vld [vmem:[%s233 + $0x168] sm:$0xf]
      %v419 = vld [vmem:[%s233 + $0x16c] sm:$0xf]
      %v420 = vld [vmem:[%s233 + $0x170] sm:$0xf]
      %v421 = vld [vmem:[%s233 + $0x174] sm:$0xf]
      %v422 = vld [vmem:[%s233 + $0x178] sm:$0xf]
      %v423 = vld [vmem:[%s233 + $0x17c] sm:$0xf]
      %v424 = vld [vmem:[%s233 + $0x180] sm:$0xf]
      %v425 = vld [vmem:[%s233 + $0x184] sm:$0xf]
      %v426 = vld [vmem:[%s233 + $0x188] sm:$0xf]
      %v427 = vld [vmem:[%s233 + $0x18c] sm:$0xf]
      %v428 = vld [vmem:[%s233 + $0x190] sm:$0xf]
      %v429 = vld [vmem:[%s233 + $0x194] sm:$0xf]
      %v430 = vld [vmem:[%s233 + $0x198] sm:$0xf]
      %v431 = vld [vmem:[%s233 + $0x19c] sm:$0xf]
      %v432 = vld [vmem:[%s233 + $0x1a0] sm:$0xf]
      %v433 = vld [vmem:[%s233 + $0x1a4] sm:$0xf]
      %v434 = vld [vmem:[%s233 + $0x1a8] sm:$0xf]
      %v435 = vld [vmem:[%s233 + $0x1ac] sm:$0xf]
      %v436 = vld [vmem:[%s233 + $0x1b0] sm:$0xf]
      %v437 = vld [vmem:[%s233 + $0x1b4] sm:$0xf]
      %v438 = vld [vmem:[%s233 + $0x1b8] sm:$0xf]
      %v439 = vld [vmem:[%s233 + $0x1bc] sm:$0xf]
      %v440 = vld [vmem:[%s233 + $0x1c0] sm:$0xf]
      %v441 = vld [vmem:[%s233 + $0x1c4] sm:$0xf]
      %v442 = vld [vmem:[%s233 + $0x1c8] sm:$0xf]
      %v443 = vld [vmem:[%s233 + $0x1cc] sm:$0xf]
      %v444 = vld [vmem:[%s233 + $0x1d0] sm:$0xf]
      %v445 = vld [vmem:[%s233 + $0x1d4] sm:$0xf]
      %v446 = vld [vmem:[%s233 + $0x1d8] sm:$0xf]
      %v447 = vld [vmem:[%s233 + $0x1dc] sm:$0xf]
      %v448 = vld [vmem:[%s233 + $0x1e0] sm:$0xf]
      %v449 = vld [vmem:[%s233 + $0x1e4] sm:$0xf]
      %v450 = vld [vmem:[%s233 + $0x1e8] sm:$0xf]
      %v451 = vld [vmem:[%s233 + $0x1ec] sm:$0xf]
      %v452 = vld [vmem:[%s233 + $0x1f0] sm:$0xf]
      %v453 = vld [vmem:[%s233 + $0x1f4] sm:$0xf]
      %v454 = vld [vmem:[%s233 + $0x1f8] sm:$0xf]
      %v455 = vld [vmem:[%s233 + $0x1fc] sm:$0xf]
      %v456 = vld [vmem:[%s233 + $0x200] sm:$0xf]
      %v457 = vld [vmem:[%s233 + $0x204] sm:$0xf]
      %v458 = vld [vmem:[%s233 + $0x208] sm:$0xf]
      %v459 = vld [vmem:[%s233 + $0x20c] sm:$0xf]
      %v460 = vld [vmem:[%s233 + $0x210] sm:$0xf]
      %v461 = vld [vmem:[%s233 + $0x214] sm:$0xf]
      %v462 = vld [vmem:[%s233 + $0x218] sm:$0xf]
      %v463 = vld [vmem:[%s233 + $0x21c] sm:$0xf]
      %v464 = vld [vmem:[%s233 + $0x220] sm:$0xf]
      %v465 = vld [vmem:[%s233 + $0x224] sm:$0xf]
      %v466 = vld [vmem:[%s233 + $0x228] sm:$0xf]
      %v467 = vld [vmem:[%s233 + $0x22c] sm:$0xf]
      %v468 = vld [vmem:[%s233 + $0x230] sm:$0xf]
      %v469 = vld [vmem:[%s233 + $0x234] sm:$0xf]
      %v470 = vld [vmem:[%s233 + $0x238] sm:$0xf]
      %v471 = vld [vmem:[%s233 + $0x23c] sm:$0xf]
      %v472 = vld [vmem:[%s236] sm:$0x1]
      %v474 = vlaneseq
      %v475 = vshrl.u32 %v474, 7
      %v476 = vsub.s32 0, %v475
      %v477 = vrot.slane %v472, %v476
      %v559 = vunpack.c.l.b16 %v248
      %v560 = vunpack.c.h.b16 %v248
      %v561 = vunpack.c.l.b16 %v249
      %v562 = vunpack.c.h.b16 %v249
      %v563 = vunpack.c.l.b16 %v250
      %v564 = vunpack.c.h.b16 %v250
      %v565 = vunpack.c.l.b16 %v251
      %v566 = vunpack.c.h.b16 %v251
      %v567 = vunpack.c.l.b16 %v252
      %v568 = vunpack.c.l.b16 %v253
      %v569 = vunpack.c.h.b16 %v253
      %v570 = vunpack.c.l.b16 %v254
      %v571 = vunpack.c.h.b16 %v254
      %v572 = vunpack.c.l.b16 %v255
      %v573 = vunpack.c.h.b16 %v255
      %v574 = vunpack.c.l.b16 %v256
      %v575 = vunpack.c.h.b16 %v256
      %v576 = vunpack.c.l.b16 %v257
      %v577 = vunpack.c.l.b16 %v258
      %v578 = vunpack.c.h.b16 %v258
      %v579 = vunpack.c.l.b16 %v259
      %v580 = vunpack.c.h.b16 %v259
      %v581 = vunpack.c.l.b16 %v260
      %v582 = vunpack.c.h.b16 %v260
      %v583 = vunpack.c.l.b16 %v261
      %v584 = vunpack.c.h.b16 %v261
      %v585 = vunpack.c.l.b16 %v262
      %v586 = vunpack.c.l.b16 %v263
      %v587 = vunpack.c.h.b16 %v263
      %v588 = vunpack.c.l.b16 %v264
      %v589 = vunpack.c.h.b16 %v264
      %v590 = vunpack.c.l.b16 %v265
      %v591 = vunpack.c.h.b16 %v265
      %v592 = vunpack.c.l.b16 %v266
      %v593 = vunpack.c.h.b16 %v266
      %v594 = vunpack.c.l.b16 %v267
      %v595 = vunpack.c.l.b16 %v268
      %v596 = vunpack.c.h.b16 %v268
      %v597 = vunpack.c.l.b16 %v269
      %v598 = vunpack.c.h.b16 %v269
      %v599 = vunpack.c.l.b16 %v270
      %v600 = vunpack.c.h.b16 %v270
      %v601 = vunpack.c.l.b16 %v271
      %v602 = vunpack.c.h.b16 %v271
      %v603 = vunpack.c.l.b16 %v272
      %v604 = vunpack.c.l.b16 %v273
      %v605 = vunpack.c.h.b16 %v273
      %v606 = vunpack.c.l.b16 %v274
      %v607 = vunpack.c.h.b16 %v274
      %v608 = vunpack.c.l.b16 %v275
      %v609 = vunpack.c.h.b16 %v275
      %v610 = vunpack.c.l.b16 %v276
      %v611 = vunpack.c.h.b16 %v276
      %v612 = vunpack.c.l.b16 %v277
      %v613 = vunpack.c.l.b16 %v278
      %v614 = vunpack.c.h.b16 %v278
      %v615 = vunpack.c.l.b16 %v279
      %v616 = vunpack.c.h.b16 %v279
      %v617 = vunpack.c.l.b16 %v280
      %v618 = vunpack.c.h.b16 %v280
      %v619 = vunpack.c.l.b16 %v281
      %v620 = vunpack.c.h.b16 %v281
      %v621 = vunpack.c.l.b16 %v282
      %v622 = vunpack.c.l.b16 %v283
      %v623 = vunpack.c.h.b16 %v283
      %v624 = vunpack.c.l.b16 %v284
      %v625 = vunpack.c.h.b16 %v284
      %v626 = vunpack.c.l.b16 %v285
      %v627 = vunpack.c.h.b16 %v285
      %v628 = vunpack.c.l.b16 %v286
      %v629 = vunpack.c.h.b16 %v286
      %v630 = vunpack.c.l.b16 %v287
      %v631 = vunpack.c.l.b16 %v288
      %v632 = vunpack.c.h.b16 %v288
      %v633 = vunpack.c.l.b16 %v289
      %v634 = vunpack.c.h.b16 %v289
      %v635 = vunpack.c.l.b16 %v290
      %v636 = vunpack.c.h.b16 %v290
      %v637 = vunpack.c.l.b16 %v291
      %v638 = vunpack.c.h.b16 %v291
      %v639 = vunpack.c.l.b16 %v292
      %v640 = vunpack.c.l.b16 %v293
      %v641 = vunpack.c.h.b16 %v293
      %v642 = vunpack.c.l.b16 %v294
      %v643 = vunpack.c.h.b16 %v294
      %v644 = vunpack.c.l.b16 %v295
      %v645 = vunpack.c.h.b16 %v295
      %v646 = vunpack.c.l.b16 %v296
      %v647 = vunpack.c.h.b16 %v296
      %v648 = vunpack.c.l.b16 %v297
      %v649 = vunpack.c.l.b16 %v298
      %v650 = vunpack.c.h.b16 %v298
      %v651 = vunpack.c.l.b16 %v299
      %v652 = vunpack.c.h.b16 %v299
      %v653 = vunpack.c.l.b16 %v300
      %v654 = vunpack.c.h.b16 %v300
      %v655 = vunpack.c.l.b16 %v301
      %v656 = vunpack.c.h.b16 %v301
      %v657 = vunpack.c.l.b16 %v302
      %v658 = vunpack.c.l.b16 %v303
      %v659 = vunpack.c.h.b16 %v303
      %v660 = vunpack.c.l.b16 %v304
      %v661 = vunpack.c.h.b16 %v304
      %v662 = vunpack.c.l.b16 %v305
      %v663 = vunpack.c.h.b16 %v305
      %v664 = vunpack.c.l.b16 %v306
      %v665 = vunpack.c.h.b16 %v306
      %v666 = vunpack.c.l.b16 %v307
      %v667 = vunpack.c.l.b16 %v308
      %v668 = vunpack.c.h.b16 %v308
      %v669 = vunpack.c.l.b16 %v309
      %v670 = vunpack.c.h.b16 %v309
      %v671 = vunpack.c.l.b16 %v310
      %v672 = vunpack.c.h.b16 %v310
      %v673 = vunpack.c.l.b16 %v311
      %v674 = vunpack.c.h.b16 %v311
      %v675 = vunpack.c.l.b16 %v312
      %v676 = vunpack.c.l.b16 %v313
      %v677 = vunpack.c.h.b16 %v313
      %v678 = vunpack.c.l.b16 %v314
      %v679 = vunpack.c.h.b16 %v314
      %v680 = vunpack.c.l.b16 %v315
      %v681 = vunpack.c.h.b16 %v315
      %v682 = vunpack.c.l.b16 %v316
      %v683 = vunpack.c.h.b16 %v316
      %v684 = vunpack.c.l.b16 %v317
      %v685 = vunpack.c.l.b16 %v318
      %v686 = vunpack.c.h.b16 %v318
      %v687 = vunpack.c.l.b16 %v319
      %v688 = vunpack.c.h.b16 %v319
      %v689 = vunpack.c.l.b16 %v320
      %v690 = vunpack.c.h.b16 %v320
      %v691 = vunpack.c.l.b16 %v321
      %v692 = vunpack.c.h.b16 %v321
      %v693 = vunpack.c.l.b16 %v322
      %v694 = vunpack.c.l.b16 %v323
      %v695 = vunpack.c.h.b16 %v323
      %v696 = vunpack.c.l.b16 %v324
      %v697 = vunpack.c.h.b16 %v324
      %v698 = vunpack.c.l.b16 %v325
      %v699 = vunpack.c.h.b16 %v325
      %v700 = vunpack.c.l.b16 %v326
      %v701 = vunpack.c.h.b16 %v326
      %v702 = vunpack.c.l.b16 %v327
      %v703 = vpack.c.b16 %v568, %v559
      %v704 = vpack.c.b16 %v569, %v560
      %v705 = vpack.c.b16 %v570, %v561
      %v706 = vpack.c.b16 %v571, %v562
      %v707 = vpack.c.b16 %v572, %v563
      %v708 = vpack.c.b16 %v573, %v564
      %v709 = vpack.c.b16 %v574, %v565
      %v710 = vpack.c.b16 %v575, %v566
      %v711 = vpack.c.b16 %v576, %v567
      %v712 = vpack.c.b16 %v586, %v577
      %v713 = vpack.c.b16 %v587, %v578
      %v714 = vpack.c.b16 %v588, %v579
      %v715 = vpack.c.b16 %v589, %v580
      %v716 = vpack.c.b16 %v590, %v581
      %v717 = vpack.c.b16 %v591, %v582
      %v718 = vpack.c.b16 %v592, %v583
      %v719 = vpack.c.b16 %v593, %v584
      %v720 = vpack.c.b16 %v594, %v585
      %v721 = vpack.c.b16 %v604, %v595
      %v722 = vpack.c.b16 %v605, %v596
      %v723 = vpack.c.b16 %v606, %v597
      %v724 = vpack.c.b16 %v607, %v598
      %v725 = vpack.c.b16 %v608, %v599
      %v726 = vpack.c.b16 %v609, %v600
      %v727 = vpack.c.b16 %v610, %v601
      %v728 = vpack.c.b16 %v611, %v602
      %v729 = vpack.c.b16 %v612, %v603
      %v730 = vpack.c.b16 %v622, %v613
      %v731 = vpack.c.b16 %v623, %v614
      %v732 = vpack.c.b16 %v624, %v615
      %v733 = vpack.c.b16 %v625, %v616
      %v734 = vpack.c.b16 %v626, %v617
      %v735 = vpack.c.b16 %v627, %v618
      %v736 = vpack.c.b16 %v628, %v619
      %v737 = vpack.c.b16 %v629, %v620
      %v738 = vpack.c.b16 %v630, %v621
      %v739 = vpack.c.b16 %v640, %v631
      %v740 = vpack.c.b16 %v641, %v632
      %v741 = vpack.c.b16 %v642, %v633
      %v742 = vpack.c.b16 %v643, %v634
      %v743 = vpack.c.b16 %v644, %v635
      %v744 = vpack.c.b16 %v645, %v636
      %v745 = vpack.c.b16 %v646, %v637
      %v746 = vpack.c.b16 %v647, %v638
      %v747 = vpack.c.b16 %v648, %v639
      %v748 = vpack.c.b16 %v658, %v649
      %v749 = vpack.c.b16 %v659, %v650
      %v750 = vpack.c.b16 %v660, %v651
      %v751 = vpack.c.b16 %v661, %v652
      %v752 = vpack.c.b16 %v662, %v653
      %v753 = vpack.c.b16 %v663, %v654
      %v754 = vpack.c.b16 %v664, %v655
      %v755 = vpack.c.b16 %v665, %v656
      %v756 = vpack.c.b16 %v666, %v657
      %v757 = vpack.c.b16 %v676, %v667
      %v758 = vpack.c.b16 %v677, %v668
      %v759 = vpack.c.b16 %v678, %v669
      %v760 = vpack.c.b16 %v679, %v670
      %v761 = vpack.c.b16 %v680, %v671
      %v762 = vpack.c.b16 %v681, %v672
      %v763 = vpack.c.b16 %v682, %v673
      %v764 = vpack.c.b16 %v683, %v674
      %v765 = vpack.c.b16 %v684, %v675
      %v766 = vpack.c.b16 %v694, %v685
      %v767 = vpack.c.b16 %v695, %v686
      %v768 = vpack.c.b16 %v696, %v687
      %v769 = vpack.c.b16 %v697, %v688
      %v770 = vpack.c.b16 %v698, %v689
      %v771 = vpack.c.b16 %v699, %v690
      %v772 = vpack.c.b16 %v700, %v691
      %v773 = vpack.c.b16 %v701, %v692
      %v774 = vpack.c.b16 %v702, %v693
      %v991 = vunpack.c.l.b16 %v328
      %v992 = vunpack.c.l.b16 %v329
      %v993 = vunpack.c.l.b16 %v330
      %v994 = vunpack.c.l.b16 %v331
      %v995 = vunpack.c.l.b16 %v332
      %v996 = vunpack.c.l.b16 %v333
      %v997 = vunpack.c.l.b16 %v334
      %v998 = vunpack.c.l.b16 %v335
      %v999 = vunpack.c.l.b16 %v336
      %v1000 = vunpack.c.l.b16 %v337
      %v1001 = vunpack.c.l.b16 %v338
      %v1002 = vunpack.c.l.b16 %v339
      %v1003 = vunpack.c.l.b16 %v340
      %v1004 = vunpack.c.l.b16 %v341
      %v1005 = vunpack.c.l.b16 %v342
      %v1006 = vunpack.c.l.b16 %v343
      %v1007 = vunpack.c.l.b16 %v344
      %v1008 = vunpack.c.l.b16 %v345
      %v1009 = vunpack.c.l.b16 %v346
      %v1010 = vunpack.c.l.b16 %v347
      %v1011 = vunpack.c.l.b16 %v348
      %v1012 = vunpack.c.l.b16 %v349
      %v1013 = vunpack.c.l.b16 %v350
      %v1014 = vunpack.c.l.b16 %v351
      %v1015 = vunpack.c.l.b16 %v352
      %v1016 = vunpack.c.l.b16 %v353
      %v1017 = vunpack.c.l.b16 %v354
      %v1018 = vunpack.c.l.b16 %v355
      %v1019 = vunpack.c.l.b16 %v356
      %v1020 = vunpack.c.l.b16 %v357
      %v1021 = vunpack.c.l.b16 %v358
      %v1022 = vunpack.c.l.b16 %v359
      %v1023 = vunpack.c.l.b16 %v360
      %v1024 = vunpack.c.l.b16 %v361
      %v1025 = vunpack.c.l.b16 %v362
      %v1026 = vunpack.c.l.b16 %v363
      %v1027 = vunpack.c.l.b16 %v364
      %v1028 = vunpack.c.l.b16 %v365
      %v1029 = vunpack.c.l.b16 %v366
      %v1030 = vunpack.c.l.b16 %v367
      %v1031 = vunpack.c.l.b16 %v368
      %v1032 = vunpack.c.l.b16 %v369
      %v1033 = vunpack.c.l.b16 %v370
      %v1034 = vunpack.c.l.b16 %v371
      %v1035 = vunpack.c.l.b16 %v372
      %v1036 = vunpack.c.l.b16 %v373
      %v1037 = vunpack.c.l.b16 %v374
      %v1038 = vunpack.c.l.b16 %v375
      %v1039 = vunpack.c.l.b16 %v376
      %v1040 = vunpack.c.l.b16 %v377
      %v1041 = vunpack.c.l.b16 %v378
      %v1042 = vunpack.c.l.b16 %v379
      %v1043 = vunpack.c.l.b16 %v380
      %v1044 = vunpack.c.l.b16 %v381
      %v1045 = vunpack.c.l.b16 %v382
      %v1046 = vunpack.c.l.b16 %v383
      %v1047 = vunpack.c.l.b16 %v384
      %v1048 = vunpack.c.l.b16 %v385
      %v1049 = vunpack.c.l.b16 %v386
      %v1050 = vunpack.c.l.b16 %v387
      %v1051 = vunpack.c.l.b16 %v388
      %v1052 = vunpack.c.l.b16 %v389
      %v1053 = vunpack.c.l.b16 %v390
      %v1054 = vunpack.c.l.b16 %v391
      %v1055 = vunpack.c.l.b16 %v392
      %v1056 = vunpack.c.l.b16 %v393
      %v1057 = vunpack.c.l.b16 %v394
      %v1058 = vunpack.c.l.b16 %v395
      %v1059 = vunpack.c.l.b16 %v396
      %v1060 = vunpack.c.l.b16 %v397
      %v1061 = vunpack.c.l.b16 %v398
      %v1062 = vunpack.c.l.b16 %v399
      %v1063 = vunpack.c.l.b16 %v400
      %v1064 = vunpack.c.l.b16 %v401
      %v1065 = vunpack.c.l.b16 %v402
      %v1066 = vunpack.c.l.b16 %v403
      %v1067 = vunpack.c.l.b16 %v404
      %v1068 = vunpack.c.l.b16 %v405
      %v1069 = vunpack.c.l.b16 %v406
      %v1070 = vunpack.c.l.b16 %v407
      %v1071 = vunpack.c.l.b16 %v408
      %v1072 = vunpack.c.l.b16 %v409
      %v1073 = vunpack.c.l.b16 %v410
      %v1074 = vunpack.c.l.b16 %v411
      %v1075 = vunpack.c.l.b16 %v412
      %v1076 = vunpack.c.l.b16 %v413
      %v1077 = vunpack.c.l.b16 %v414
      %v1078 = vunpack.c.l.b16 %v415
      %v1079 = vunpack.c.l.b16 %v416
      %v1080 = vunpack.c.l.b16 %v417
      %v1081 = vunpack.c.l.b16 %v418
      %v1082 = vunpack.c.l.b16 %v419
      %v1083 = vunpack.c.l.b16 %v420
      %v1084 = vunpack.c.l.b16 %v421
      %v1085 = vunpack.c.l.b16 %v422
      %v1086 = vunpack.c.l.b16 %v423
      %v1087 = vunpack.c.l.b16 %v424
      %v1088 = vunpack.c.l.b16 %v425
      %v1089 = vunpack.c.l.b16 %v426
      %v1090 = vunpack.c.l.b16 %v427
      %v1091 = vunpack.c.l.b16 %v428
      %v1092 = vunpack.c.l.b16 %v429
      %v1093 = vunpack.c.l.b16 %v430
      %v1094 = vunpack.c.l.b16 %v431
      %v1095 = vunpack.c.l.b16 %v432
      %v1096 = vunpack.c.l.b16 %v433
      %v1097 = vunpack.c.l.b16 %v434
      %v1098 = vunpack.c.l.b16 %v435
      %v1099 = vunpack.c.l.b16 %v436
      %v1100 = vunpack.c.l.b16 %v437
      %v1101 = vunpack.c.l.b16 %v438
      %v1102 = vunpack.c.l.b16 %v439
      %v1103 = vunpack.c.l.b16 %v440
      %v1104 = vunpack.c.l.b16 %v441
      %v1105 = vunpack.c.l.b16 %v442
      %v1106 = vunpack.c.l.b16 %v443
      %v1107 = vunpack.c.l.b16 %v444
      %v1108 = vunpack.c.l.b16 %v445
      %v1109 = vunpack.c.l.b16 %v446
      %v1110 = vunpack.c.l.b16 %v447
      %v1111 = vunpack.c.l.b16 %v448
      %v1112 = vunpack.c.l.b16 %v449
      %v1113 = vunpack.c.l.b16 %v450
      %v1114 = vunpack.c.l.b16 %v451
      %v1115 = vunpack.c.l.b16 %v452
      %v1116 = vunpack.c.l.b16 %v453
      %v1117 = vunpack.c.l.b16 %v454
      %v1118 = vunpack.c.l.b16 %v455
      %v1119 = vunpack.c.l.b16 %v456
      %v1120 = vunpack.c.l.b16 %v457
      %v1121 = vunpack.c.l.b16 %v458
      %v1122 = vunpack.c.l.b16 %v459
      %v1123 = vunpack.c.l.b16 %v460
      %v1124 = vunpack.c.l.b16 %v461
      %v1125 = vunpack.c.l.b16 %v462
      %v1126 = vunpack.c.l.b16 %v463
      %v1127 = vunpack.c.l.b16 %v464
      %v1128 = vunpack.c.l.b16 %v465
      %v1129 = vunpack.c.l.b16 %v466
      %v1130 = vunpack.c.l.b16 %v467
      %v1131 = vunpack.c.l.b16 %v468
      %v1132 = vunpack.c.l.b16 %v469
      %v1133 = vunpack.c.l.b16 %v470
      %v1134 = vunpack.c.l.b16 %v471
      %v1135 = vpack.c.b16 %v992, %v991
      %v1136 = vpack.c.b16 %v994, %v993
      %v1137 = vpack.c.b16 %v996, %v995
      %v1138 = vpack.c.b16 %v998, %v997
      %v1139 = vpack.c.b16 %v1000, %v999
      %v1140 = vpack.c.b16 %v1002, %v1001
      %v1141 = vpack.c.b16 %v1004, %v1003
      %v1142 = vpack.c.b16 %v1006, %v1005
      %v1143 = vpack.c.b16 %v1008, %v1007
      %v1144 = vpack.c.b16 %v1010, %v1009
      %v1145 = vpack.c.b16 %v1012, %v1011
      %v1146 = vpack.c.b16 %v1014, %v1013
      %v1147 = vpack.c.b16 %v1016, %v1015
      %v1148 = vpack.c.b16 %v1018, %v1017
      %v1149 = vpack.c.b16 %v1020, %v1019
      %v1150 = vpack.c.b16 %v1022, %v1021
      %v1151 = vpack.c.b16 %v1024, %v1023
      %v1152 = vpack.c.b16 %v1026, %v1025
      %v1153 = vpack.c.b16 %v1028, %v1027
      %v1154 = vpack.c.b16 %v1030, %v1029
      %v1155 = vpack.c.b16 %v1032, %v1031
      %v1156 = vpack.c.b16 %v1034, %v1033
      %v1157 = vpack.c.b16 %v1036, %v1035
      %v1158 = vpack.c.b16 %v1038, %v1037
      %v1159 = vpack.c.b16 %v1040, %v1039
      %v1160 = vpack.c.b16 %v1042, %v1041
      %v1161 = vpack.c.b16 %v1044, %v1043
      %v1162 = vpack.c.b16 %v1046, %v1045
      %v1163 = vpack.c.b16 %v1048, %v1047
      %v1164 = vpack.c.b16 %v1050, %v1049
      %v1165 = vpack.c.b16 %v1052, %v1051
      %v1166 = vpack.c.b16 %v1054, %v1053
      %v1167 = vpack.c.b16 %v1056, %v1055
      %v1168 = vpack.c.b16 %v1058, %v1057
      %v1169 = vpack.c.b16 %v1060, %v1059
      %v1170 = vpack.c.b16 %v1062, %v1061
      %v1171 = vpack.c.b16 %v1064, %v1063
      %v1172 = vpack.c.b16 %v1066, %v1065
      %v1173 = vpack.c.b16 %v1068, %v1067
      %v1174 = vpack.c.b16 %v1070, %v1069
      %v1175 = vpack.c.b16 %v1072, %v1071
      %v1176 = vpack.c.b16 %v1074, %v1073
      %v1177 = vpack.c.b16 %v1076, %v1075
      %v1178 = vpack.c.b16 %v1078, %v1077
      %v1179 = vpack.c.b16 %v1080, %v1079
      %v1180 = vpack.c.b16 %v1082, %v1081
      %v1181 = vpack.c.b16 %v1084, %v1083
      %v1182 = vpack.c.b16 %v1086, %v1085
      %v1183 = vpack.c.b16 %v1088, %v1087
      %v1184 = vpack.c.b16 %v1090, %v1089
      %v1185 = vpack.c.b16 %v1092, %v1091
      %v1186 = vpack.c.b16 %v1094, %v1093
      %v1187 = vpack.c.b16 %v1096, %v1095
      %v1188 = vpack.c.b16 %v1098, %v1097
      %v1189 = vpack.c.b16 %v1100, %v1099
      %v1190 = vpack.c.b16 %v1102, %v1101
      %v1191 = vpack.c.b16 %v1104, %v1103
      %v1192 = vpack.c.b16 %v1106, %v1105
      %v1193 = vpack.c.b16 %v1108, %v1107
      %v1194 = vpack.c.b16 %v1110, %v1109
      %v1195 = vpack.c.b16 %v1112, %v1111
      %v1196 = vpack.c.b16 %v1114, %v1113
      %v1197 = vpack.c.b16 %v1116, %v1115
      %v1198 = vpack.c.b16 %v1118, %v1117
      %v1199 = vpack.c.b16 %v1120, %v1119
      %v1200 = vpack.c.b16 %v1122, %v1121
      %v1201 = vpack.c.b16 %v1124, %v1123
      %v1202 = vpack.c.b16 %v1126, %v1125
      %v1203 = vpack.c.b16 %v1128, %v1127
      %v1204 = vpack.c.b16 %v1130, %v1129
      %v1205 = vpack.c.b16 %v1132, %v1131
      %v1206 = vpack.c.b16 %v1134, %v1133
      %1279 = vmatprep.subr.bf16.mxu0 0
      %1280 = vmatpush1.bf16.msra.mxu0 %v1135
      %1281 = vmatprep.subr.bf16.mxu0 0
      %1282 = vmatpush1.bf16.msra.mxu0 %v1136
      %1283 = vmatprep.subr.bf16.mxu0 0
      %1284 = vmatpush1.bf16.msra.mxu0 %v1137
      %1285 = vmatprep.subr.bf16.mxu0 0
      %1286 = vmatpush1.bf16.msra.mxu0 %v1138
      %1287 = vmatprep.subr.bf16.mxu0 0
      %1288 = vmatpush1.bf16.msra.mxu0 %v1139
      %1289 = vmatprep.subr.bf16.mxu0 0
      %1290 = vmatpush1.bf16.msra.mxu0 %v1140
      %1291 = vmatprep.subr.bf16.mxu0 0
      %1292 = vmatpush1.bf16.msra.mxu0 %v1141
      %1293 = vmatprep.subr.bf16.mxu0 0
      %1294 = vmatpush1.bf16.msra.mxu0 %v1142
      %1295 = vmatprep.subr.bf16.mxu0 0
      %1296 = vmatpush1.bf16.msra.mxu0 %v1143
      %1297 = vmatprep.subr.bf16.mxu0 0
      %1298 = vmatpush1.bf16.msra.mxu0 %v1144
      %1299 = vmatprep.subr.bf16.mxu0 0
      %1300 = vmatpush1.bf16.msra.mxu0 %v1145
      %1301 = vmatprep.subr.bf16.mxu0 0
      %1302 = vmatpush1.bf16.msra.mxu0 %v1146
      %1303 = vmatprep.subr.bf16.mxu0 0
      %1304 = vmatpush1.bf16.msra.mxu0 %v1147
      %1305 = vmatprep.subr.bf16.mxu0 0
      %1306 = vmatpush1.bf16.msra.mxu0 %v1148
      %1307 = vmatprep.subr.bf16.mxu0 0
      %1308 = vmatpush1.bf16.msra.mxu0 %v1149
      %1309 = vmatprep.subr.bf16.mxu0 0
      %1310 = vmatpush1.bf16.msra.mxu0 %v1150
      %1311 = vmatprep.mubr.bf16.mxu0 %v704
      %1312 = vmatmul.mubr.bf16.gmra.mrb[0].mxu0 %v703
      %v1313 = vpop.f32.mrb[0].mxu0
      %v1314 = vadd.f32 %v477, %v1313
      %v1315 = vpop.f32.mrb[0].mxu0
      %v1316 = vpop.f32.mrb[0].mxu0
      %v1317 = vadd.f32 %v477, %v1316
      %v1318 = vpop.f32.mrb[0].mxu0
      %1319 = vmatprep.mubr.bf16.mxu0 %v713
      %1320 = vmatmul.mubr.bf16.gmra.mrb[0].mxu0 %v712
      %v1321 = vpop.f32.mrb[0].mxu0
      %v1322 = vadd.f32 %v477, %v1321
      %v1323 = vpop.f32.mrb[0].mxu0
      %v1324 = vpop.f32.mrb[0].mxu0
      %v1325 = vadd.f32 %v477, %v1324
      %v1326 = vpop.f32.mrb[0].mxu0
      %1327 = vmatprep.mubr.bf16.mxu0 %v722
      %1328 = vmatmul.mubr.bf16.gmra.mrb[0].mxu0 %v721
      %v1329 = vpop.f32.mrb[0].mxu0
      %v1330 = vadd.f32 %v477, %v1329
      %v1331 = vpop.f32.mrb[0].mxu0
      %v1332 = vpop.f32.mrb[0].mxu0
      %v1333 = vadd.f32 %v477, %v1332
      %v1334 = vpop.f32.mrb[0].mxu0
      %1335 = vmatprep.mubr.bf16.mxu0 %v731
      %1336 = vmatmul.mubr.bf16.gmra.mrb[0].mxu0 %v730
      %v1337 = vpop.f32.mrb[0].mxu0
      %v1338 = vadd.f32 %v477, %v1337
      %v1339 = vpop.f32.mrb[0].mxu0
      %v1340 = vpop.f32.mrb[0].mxu0
      %v1341 = vadd.f32 %v477, %v1340
      %v1342 = vpop.f32.mrb[0].mxu0
      %1343 = vmatprep.mubr.bf16.mxu0 %v740
      %1344 = vmatmul.mubr.bf16.gmra.mrb[0].mxu0 %v739
      %v1345 = vpop.f32.mrb[0].mxu0
      %v1346 = vadd.f32 %v477, %v1345
      %v1347 = vpop.f32.mrb[0].mxu0
      %v1348 = vpop.f32.mrb[0].mxu0
      %v1349 = vadd.f32 %v477, %v1348
      %v1350 = vpop.f32.mrb[0].mxu0
      %1351 = vmatprep.mubr.bf16.mxu0 %v749
      %1352 = vmatmul.mubr.bf16.gmra.mrb[0].mxu0 %v748
      %v1353 = vpop.f32.mrb[0].mxu0
      %v1354 = vadd.f32 %v477, %v1353
      %v1355 = vpop.f32.mrb[0].mxu0
      %v1356 = vpop.f32.mrb[0].mxu0
      %v1357 = vadd.f32 %v477, %v1356
      %v1358 = vpop.f32.mrb[0].mxu0
      %1359 = vmatprep.mubr.bf16.mxu0 %v758
      %1360 = vmatmul.mubr.bf16.gmra.mrb[0].mxu0 %v757
      %v1361 = vpop.f32.mrb[0].mxu0
      %v1362 = vadd.f32 %v477, %v1361
      %v1363 = vpop.f32.mrb[0].mxu0
      %v1364 = vpop.f32.mrb[0].mxu0
      %v1365 = vadd.f32 %v477, %v1364
      %v1366 = vpop.f32.mrb[0].mxu0
      %1367 = vmatprep.mubr.bf16.mxu0 %v767
      %1368 = vmatmul.mubr.bf16.gmra.mrb[0].mxu0 %v766
      %v1369 = vpop.f32.mrb[0].mxu0
      %v1370 = vadd.f32 %v477, %v1369
      %v1371 = vpop.f32.mrb[0].mxu0
      %v1372 = vpop.f32.mrb[0].mxu0
      %v1373 = vadd.f32 %v477, %v1372
      %v1374 = vpop.f32.mrb[0].mxu0
      %1375 = vdwg.mxu0
      %1376 = vmatprep.subr.bf16.mxu0 0
      %1377 = vmatpush1.bf16.msra.mxu0 %v1151
      %1378 = vmatprep.subr.bf16.mxu0 0
      %1379 = vmatpush1.bf16.msra.mxu0 %v1152
      %1380 = vmatprep.subr.bf16.mxu0 0
      %1381 = vmatpush1.bf16.msra.mxu0 %v1153
      %1382 = vmatprep.subr.bf16.mxu0 0
      %1383 = vmatpush1.bf16.msra.mxu0 %v1154
      %1384 = vmatprep.subr.bf16.mxu0 0
      %1385 = vmatpush1.bf16.msra.mxu0 %v1155
      %1386 = vmatprep.subr.bf16.mxu0 0
      %1387 = vmatpush1.bf16.msra.mxu0 %v1156
      %1388 = vmatprep.subr.bf16.mxu0 0
      %1389 = vmatpush1.bf16.msra.mxu0 %v1157
      %1390 = vmatprep.subr.bf16.mxu0 0
      %1391 = vmatpush1.bf16.msra.mxu0 %v1158
      %1392 = vmatprep.subr.bf16.mxu0 0
      %1393 = vmatpush1.bf16.msra.mxu0 %v1159
      %1394 = vmatprep.subr.bf16.mxu0 0
      %1395 = vmatpush1.bf16.msra.mxu0 %v1160
      %1396 = vmatprep.subr.bf16.mxu0 0
      %1397 = vmatpush1.bf16.msra.mxu0 %v1161
      %1398 = vmatprep.subr.bf16.mxu0 0
      %1399 = vmatpush1.bf16.msra.mxu0 %v1162
      %1400 = vmatprep.subr.bf16.mxu0 0
      %1401 = vmatpush1.bf16.msra.mxu0 %v1163
      %1402 = vmatprep.subr.bf16.mxu0 0
      %1403 = vmatpush1.bf16.msra.mxu0 %v1164
      %1404 = vmatprep.subr.bf16.mxu0 0
      %1405 = vmatpush1.bf16.msra.mxu0 %v1165
      %1406 = vmatprep.subr.bf16.mxu0 0
      %1407 = vmatpush1.bf16.msra.mxu0 %v1166
      %1408 = vmatprep.mubr.bf16.mxu0 %v706
      %1409 = vmatmul.mubr.bf16.gmra.mrb[0].mxu0 %v705
      %v1410 = vpop.f32.mrb[0].mxu0
      %v1411 = vadd.f32 %v1314, %v1410
      %v1412 = vpop.f32.mrb[0].mxu0
      %v1413 = vpop.f32.mrb[0].mxu0
      %v1414 = vadd.f32 %v1317, %v1413
      %v1415 = vpop.f32.mrb[0].mxu0
      %1416 = vmatprep.mubr.bf16.mxu0 %v715
      %1417 = vmatmul.mubr.bf16.gmra.mrb[0].mxu0 %v714
      %v1418 = vpop.f32.mrb[0].mxu0
      %v1419 = vadd.f32 %v1322, %v1418
      %v1420 = vpop.f32.mrb[0].mxu0
      %v1421 = vpop.f32.mrb[0].mxu0
      %v1422 = vadd.f32 %v1325, %v1421
      %v1423 = vpop.f32.mrb[0].mxu0
      %1424 = vmatprep.mubr.bf16.mxu0 %v724
      %1425 = vmatmul.mubr.bf16.gmra.mrb[0].mxu0 %v723
      %v1426 = vpop.f32.mrb[0].mxu0
      %v1427 = vadd.f32 %v1330, %v1426
      %v1428 = vpop.f32.mrb[0].mxu0
      %v1429 = vpop.f32.mrb[0].mxu0
      %v1430 = vadd.f32 %v1333, %v1429
      %v1431 = vpop.f32.mrb[0].mxu0
      %1432 = vmatprep.mubr.bf16.mxu0 %v733
      %1433 = vmatmul.mubr.bf16.gmra.mrb[0].mxu0 %v732
      %v1434 = vpop.f32.mrb[0].mxu0
      %v1435 = vadd.f32 %v1338, %v1434
      %v1436 = vpop.f32.mrb[0].mxu0
      %v1437 = vpop.f32.mrb[0].mxu0
      %v1438 = vadd.f32 %v1341, %v1437
      %v1439 = vpop.f32.mrb[0].mxu0
      %1440 = vmatprep.mubr.bf16.mxu0 %v742
      %1441 = vmatmul.mubr.bf16.gmra.mrb[0].mxu0 %v741
      %v1442 = vpop.f32.mrb[0].mxu0
      %v1443 = vadd.f32 %v1346, %v1442
      %v1444 = vpop.f32.mrb[0].mxu0
      %v1445 = vpop.f32.mrb[0].mxu0
      %v1446 = vadd.f32 %v1349, %v1445
      %v1447 = vpop.f32.mrb[0].mxu0
      %1448 = vmatprep.mubr.bf16.mxu0 %v751
      %1449 = vmatmul.mubr.bf16.gmra.mrb[0].mxu0 %v750
      %v1450 = vpop.f32.mrb[0].mxu0
      %v1451 = vadd.f32 %v1354, %v1450
      %v1452 = vpop.f32.mrb[0].mxu0
      %v1453 = vpop.f32.mrb[0].mxu0
      %v1454 = vadd.f32 %v1357, %v1453
      %v1455 = vpop.f32.mrb[0].mxu0
      %1456 = vmatprep.mubr.bf16.mxu0 %v760
      %1457 = vmatmul.mubr.bf16.gmra.mrb[0].mxu0 %v759
      %v1458 = vpop.f32.mrb[0].mxu0
      %v1459 = vadd.f32 %v1362, %v1458
      %v1460 = vpop.f32.mrb[0].mxu0
      %v1461 = vpop.f32.mrb[0].mxu0
      %v1462 = vadd.f32 %v1365, %v1461
      %v1463 = vpop.f32.mrb[0].mxu0
      %1464 = vmatprep.mubr.bf16.mxu0 %v769
      %1465 = vmatmul.mubr.bf16.gmra.mrb[0].mxu0 %v768
      %v1466 = vpop.f32.mrb[0].mxu0
      %v1467 = vadd.f32 %v1370, %v1466
      %v1468 = vpop.f32.mrb[0].mxu0
      %v1469 = vpop.f32.mrb[0].mxu0
      %v1470 = vadd.f32 %v1373, %v1469
      %v1471 = vpop.f32.mrb[0].mxu0
      %1472 = vdwg.mxu0
      %1473 = vmatprep.subr.bf16.mxu0 0
      %1474 = vmatpush1.bf16.msra.mxu0 %v1167
      %1475 = vmatprep.subr.bf16.mxu0 0
      %1476 = vmatpush1.bf16.msra.mxu0 %v1168
      %1477 = vmatprep.subr.bf16.mxu0 0
      %1478 = vmatpush1.bf16.msra.mxu0 %v1169
      %1479 = vmatprep.subr.bf16.mxu0 0
      %1480 = vmatpush1.bf16.msra.mxu0 %v1170
      %1481 = vmatprep.subr.bf16.mxu0 0
      %1482 = vmatpush1.bf16.msra.mxu0 %v1171
      %1483 = vmatprep.subr.bf16.mxu0 0
      %1484 = vmatpush1.bf16.msra.mxu0 %v1172
      %1485 = vmatprep.subr.bf16.mxu0 0
      %1486 = vmatpush1.bf16.msra.mxu0 %v1173
      %1487 = vmatprep.subr.bf16.mxu0 0
      %1488 = vmatpush1.bf16.msra.mxu0 %v1174
      %1489 = vmatprep.subr.bf16.mxu0 0
      %1490 = vmatpush1.bf16.msra.mxu0 %v1175
      %1491 = vmatprep.subr.bf16.mxu0 0
      %1492 = vmatpush1.bf16.msra.mxu0 %v1176
      %1493 = vmatprep.subr.bf16.mxu0 0
      %1494 = vmatpush1.bf16.msra.mxu0 %v1177
      %1495 = vmatprep.subr.bf16.mxu0 0
      %1496 = vmatpush1.bf16.msra.mxu0 %v1178
      %1497 = vmatprep.subr.bf16.mxu0 0
      %1498 = vmatpush1.bf16.msra.mxu0 %v1179
      %1499 = vmatprep.subr.bf16.mxu0 0
      %1500 = vmatpush1.bf16.msra.mxu0 %v1180
      %1501 = vmatprep.subr.bf16.mxu0 0
      %1502 = vmatpush1.bf16.msra.mxu0 %v1181
      %1503 = vmatprep.subr.bf16.mxu0 0
      %1504 = vmatpush1.bf16.msra.mxu0 %v1182
      %1505 = vmatprep.mubr.bf16.mxu0 %v708
      %1506 = vmatmul.mubr.bf16.gmra.mrb[0].mxu0 %v707
      %v1507 = vpop.f32.mrb[0].mxu0
      %v1508 = vadd.f32 %v1411, %v1507
      %v1509 = vpop.f32.mrb[0].mxu0
      %v1510 = vpop.f32.mrb[0].mxu0
      %v1511 = vadd.f32 %v1414, %v1510
      %v1512 = vpop.f32.mrb[0].mxu0
      %1513 = vmatprep.mubr.bf16.mxu0 %v717
      %1514 = vmatmul.mubr.bf16.gmra.mrb[0].mxu0 %v716
      %v1515 = vpop.f32.mrb[0].mxu0
      %v1516 = vadd.f32 %v1419, %v1515
      %v1517 = vpop.f32.mrb[0].mxu0
      %v1518 = vpop.f32.mrb[0].mxu0
      %v1519 = vadd.f32 %v1422, %v1518
      %v1520 = vpop.f32.mrb[0].mxu0
      %1521 = vmatprep.mubr.bf16.mxu0 %v726
      %1522 = vmatmul.mubr.bf16.gmra.mrb[0].mxu0 %v725
      %v1523 = vpop.f32.mrb[0].mxu0
      %v1524 = vadd.f32 %v1427, %v1523
      %v1525 = vpop.f32.mrb[0].mxu0
      %v1526 = vpop.f32.mrb[0].mxu0
      %v1527 = vadd.f32 %v1430, %v1526
      %v1528 = vpop.f32.mrb[0].mxu0
      %1529 = vmatprep.mubr.bf16.mxu0 %v735
      %1530 = vmatmul.mubr.bf16.gmra.mrb[0].mxu0 %v734
      %v1531 = vpop.f32.mrb[0].mxu0
      %v1532 = vadd.f32 %v1435, %v1531
      %v1533 = vpop.f32.mrb[0].mxu0
      %v1534 = vpop.f32.mrb[0].mxu0
      %v1535 = vadd.f32 %v1438, %v1534
      %v1536 = vpop.f32.mrb[0].mxu0
      %1537 = vmatprep.mubr.bf16.mxu0 %v744
      %1538 = vmatmul.mubr.bf16.gmra.mrb[0].mxu0 %v743
      %v1539 = vpop.f32.mrb[0].mxu0
      %v1540 = vadd.f32 %v1443, %v1539
      %v1541 = vpop.f32.mrb[0].mxu0
      %v1542 = vpop.f32.mrb[0].mxu0
      %v1543 = vadd.f32 %v1446, %v1542
      %v1544 = vpop.f32.mrb[0].mxu0
      %1545 = vmatprep.mubr.bf16.mxu0 %v753
      %1546 = vmatmul.mubr.bf16.gmra.mrb[0].mxu0 %v752
      %v1547 = vpop.f32.mrb[0].mxu0
      %v1548 = vadd.f32 %v1451, %v1547
      %v1549 = vpop.f32.mrb[0].mxu0
      %v1550 = vpop.f32.mrb[0].mxu0
      %v1551 = vadd.f32 %v1454, %v1550
      %v1552 = vpop.f32.mrb[0].mxu0
      %1553 = vmatprep.mubr.bf16.mxu0 %v762
      %1554 = vmatmul.mubr.bf16.gmra.mrb[0].mxu0 %v761
      %v1555 = vpop.f32.mrb[0].mxu0
      %v1556 = vadd.f32 %v1459, %v1555
      %v1557 = vpop.f32.mrb[0].mxu0
      %v1558 = vpop.f32.mrb[0].mxu0
      %v1559 = vadd.f32 %v1462, %v1558
      %v1560 = vpop.f32.mrb[0].mxu0
      %1561 = vmatprep.mubr.bf16.mxu0 %v771
      %1562 = vmatmul.mubr.bf16.gmra.mrb[0].mxu0 %v770
      %v1563 = vpop.f32.mrb[0].mxu0
      %v1564 = vadd.f32 %v1467, %v1563
      %v1565 = vpop.f32.mrb[0].mxu0
      %v1566 = vpop.f32.mrb[0].mxu0
      %v1567 = vadd.f32 %v1470, %v1566
      %v1568 = vpop.f32.mrb[0].mxu0
      %1569 = vdwg.mxu0
      %1570 = vmatprep.subr.bf16.mxu0 0
      %1571 = vmatpush1.bf16.msra.mxu0 %v1183
      %1572 = vmatprep.subr.bf16.mxu0 0
      %1573 = vmatpush1.bf16.msra.mxu0 %v1184
      %1574 = vmatprep.subr.bf16.mxu0 0
      %1575 = vmatpush1.bf16.msra.mxu0 %v1185
      %1576 = vmatprep.subr.bf16.mxu0 0
      %1577 = vmatpush1.bf16.msra.mxu0 %v1186
      %1578 = vmatprep.subr.bf16.mxu0 0
      %1579 = vmatpush1.bf16.msra.mxu0 %v1187
      %1580 = vmatprep.subr.bf16.mxu0 0
      %1581 = vmatpush1.bf16.msra.mxu0 %v1188
      %1582 = vmatprep.subr.bf16.mxu0 0
      %1583 = vmatpush1.bf16.msra.mxu0 %v1189
      %1584 = vmatprep.subr.bf16.mxu0 0
      %1585 = vmatpush1.bf16.msra.mxu0 %v1190
      %1586 = vmatprep.subr.bf16.mxu0 0
      %1587 = vmatpush1.bf16.msra.mxu0 %v1191
      %1588 = vmatprep.subr.bf16.mxu0 0
      %1589 = vmatpush1.bf16.msra.mxu0 %v1192
      %1590 = vmatprep.subr.bf16.mxu0 0
      %1591 = vmatpush1.bf16.msra.mxu0 %v1193
      %1592 = vmatprep.subr.bf16.mxu0 0
      %1593 = vmatpush1.bf16.msra.mxu0 %v1194
      %1594 = vmatprep.subr.bf16.mxu0 0
      %1595 = vmatpush1.bf16.msra.mxu0 %v1195
      %1596 = vmatprep.subr.bf16.mxu0 0
      %1597 = vmatpush1.bf16.msra.mxu0 %v1196
      %1598 = vmatprep.subr.bf16.mxu0 0
      %1599 = vmatpush1.bf16.msra.mxu0 %v1197
      %1600 = vmatprep.subr.bf16.mxu0 0
      %1601 = vmatpush1.bf16.msra.mxu0 %v1198
      %1602 = vmatprep.mubr.bf16.mxu0 %v710
      %1603 = vmatmul.mubr.bf16.gmra.mrb[0].mxu0 %v709
      %v1604 = vpop.f32.mrb[0].mxu0
      %v1605 = vadd.f32 %v1508, %v1604
      %v1606 = vpop.f32.mrb[0].mxu0
      %v1607 = vpop.f32.mrb[0].mxu0
      %v1608 = vadd.f32 %v1511, %v1607
      %v1609 = vpop.f32.mrb[0].mxu0
      %1610 = vmatprep.mubr.bf16.mxu0 %v719
      %1611 = vmatmul.mubr.bf16.gmra.mrb[0].mxu0 %v718
      %v1612 = vpop.f32.mrb[0].mxu0
      %v1613 = vadd.f32 %v1516, %v1612
      %v1614 = vpop.f32.mrb[0].mxu0
      %v1615 = vpop.f32.mrb[0].mxu0
      %v1616 = vadd.f32 %v1519, %v1615
      %v1617 = vpop.f32.mrb[0].mxu0
      %1618 = vmatprep.mubr.bf16.mxu0 %v728
      %1619 = vmatmul.mubr.bf16.gmra.mrb[0].mxu0 %v727
      %v1620 = vpop.f32.mrb[0].mxu0
      %v1621 = vadd.f32 %v1524, %v1620
      %v1622 = vpop.f32.mrb[0].mxu0
      %v1623 = vpop.f32.mrb[0].mxu0
      %v1624 = vadd.f32 %v1527, %v1623
      %v1625 = vpop.f32.mrb[0].mxu0
      %1626 = vmatprep.mubr.bf16.mxu0 %v737
      %1627 = vmatmul.mubr.bf16.gmra.mrb[0].mxu0 %v736
      %v1628 = vpop.f32.mrb[0].mxu0
      %v1629 = vadd.f32 %v1532, %v1628
      %v1630 = vpop.f32.mrb[0].mxu0
      %v1631 = vpop.f32.mrb[0].mxu0
      %v1632 = vadd.f32 %v1535, %v1631
      %v1633 = vpop.f32.mrb[0].mxu0
      %1634 = vmatprep.mubr.bf16.mxu0 %v746
      %1635 = vmatmul.mubr.bf16.gmra.mrb[0].mxu0 %v745
      %v1636 = vpop.f32.mrb[0].mxu0
      %v1637 = vadd.f32 %v1540, %v1636
      %v1638 = vpop.f32.mrb[0].mxu0
      %v1639 = vpop.f32.mrb[0].mxu0
      %v1640 = vadd.f32 %v1543, %v1639
      %v1641 = vpop.f32.mrb[0].mxu0
      %1642 = vmatprep.mubr.bf16.mxu0 %v755
      %1643 = vmatmul.mubr.bf16.gmra.mrb[0].mxu0 %v754
      %v1644 = vpop.f32.mrb[0].mxu0
      %v1645 = vadd.f32 %v1548, %v1644
      %v1646 = vpop.f32.mrb[0].mxu0
      %v1647 = vpop.f32.mrb[0].mxu0
      %v1648 = vadd.f32 %v1551, %v1647
      %v1649 = vpop.f32.mrb[0].mxu0
      %1650 = vmatprep.mubr.bf16.mxu0 %v764
      %1651 = vmatmul.mubr.bf16.gmra.mrb[0].mxu0 %v763
      %v1652 = vpop.f32.mrb[0].mxu0
      %v1653 = vadd.f32 %v1556, %v1652
      %v1654 = vpop.f32.mrb[0].mxu0
      %v1655 = vpop.f32.mrb[0].mxu0
      %v1656 = vadd.f32 %v1559, %v1655
      %v1657 = vpop.f32.mrb[0].mxu0
      %1658 = vmatprep.mubr.bf16.mxu0 %v773
      %1659 = vmatmul.mubr.bf16.gmra.mrb[0].mxu0 %v772
      %v1660 = vpop.f32.mrb[0].mxu0
      %v1661 = vadd.f32 %v1564, %v1660
      %v1662 = vpop.f32.mrb[0].mxu0
      %v1663 = vpop.f32.mrb[0].mxu0
      %v1664 = vadd.f32 %v1567, %v1663
      %v1665 = vpop.f32.mrb[0].mxu0
      %1666 = vdwg.mxu0
      %1667 = vmatprep.subr.bf16.mxu0 0
      %1668 = vmatpush1.bf16.msra.mxu0 %v1199
      %1669 = vmatprep.subr.bf16.mxu0 0
      %1670 = vmatpush1.bf16.msra.mxu0 %v1200
      %1671 = vmatprep.subr.bf16.mxu0 0
      %1672 = vmatpush1.bf16.msra.mxu0 %v1201
      %1673 = vmatprep.subr.bf16.mxu0 0
      %1674 = vmatpush1.bf16.msra.mxu0 %v1202
      %1675 = vmatprep.subr.bf16.mxu0 0
      %1676 = vmatpush1.bf16.msra.mxu0 %v1203
      %1677 = vmatprep.subr.bf16.mxu0 0
      %1678 = vmatpush1.bf16.msra.mxu0 %v1204
      %1679 = vmatprep.subr.bf16.mxu0 0
      %1680 = vmatpush1.bf16.msra.mxu0 %v1205
      %1681 = vmatprep.subr.bf16.mxu0 0
      %1682 = vmatpush1.bf16.msra.mxu0 %v1206
      %1683 = vmatprep.subr.bf16.mxu0 0
      %1684 = vmatpush1.bf16.msra.mxu0 0
      %1685 = vmatprep.subr.bf16.mxu0 0
      %1686 = vmatpush1.bf16.msra.mxu0 0
      %1687 = vmatprep.subr.bf16.mxu0 0
      %1688 = vmatpush1.bf16.msra.mxu0 0
      %1689 = vmatprep.subr.bf16.mxu0 0
      %1690 = vmatpush1.bf16.msra.mxu0 0
      %1691 = vmatprep.subr.bf16.mxu0 0
      %1692 = vmatpush1.bf16.msra.mxu0 0
      %1693 = vmatprep.subr.bf16.mxu0 0
      %1694 = vmatpush1.bf16.msra.mxu0 0
      %1695 = vmatprep.subr.bf16.mxu0 0
      %1696 = vmatpush1.bf16.msra.mxu0 0
      %1697 = vmatprep.subr.bf16.mxu0 0
      %1698 = vmatpush1.bf16.msra.mxu0 0
      %1699 = vmatprep.mubr.bf16.mxu0 0
      %1700 = vmatmul.mubr.bf16.gmra.mrb[0].mxu0 %v711
      %v1701 = vpop.f32.mrb[0].mxu0
      %v1702 = vadd.f32 %v1605, %v1701
      %v1703 = vpop.f32.mrb[0].mxu0
      %v1704 = vpop.f32.mrb[0].mxu0
      %v1705 = vadd.f32 %v1608, %v1704
      %v1706 = vpop.f32.mrb[0].mxu0
      %1707 = vmatprep.mubr.bf16.mxu0 0
      %1708 = vmatmul.mubr.bf16.gmra.mrb[0].mxu0 %v720
      %v1709 = vpop.f32.mrb[0].mxu0
      %v1710 = vadd.f32 %v1613, %v1709
      %v1711 = vpop.f32.mrb[0].mxu0
      %v1712 = vpop.f32.mrb[0].mxu0
      %v1713 = vadd.f32 %v1616, %v1712
      %v1714 = vpop.f32.mrb[0].mxu0
      %1715 = vmatprep.mubr.bf16.mxu0 0
      %1716 = vmatmul.mubr.bf16.gmra.mrb[0].mxu0 %v729
      %v1717 = vpop.f32.mrb[0].mxu0
      %v1718 = vadd.f32 %v1621, %v1717
      %v1719 = vpop.f32.mrb[0].mxu0
      %v1720 = vpop.f32.mrb[0].mxu0
      %v1721 = vadd.f32 %v1624, %v1720
      %v1722 = vpop.f32.mrb[0].mxu0
      %1723 = vmatprep.mubr.bf16.mxu0 0
      %1724 = vmatmul.mubr.bf16.gmra.mrb[0].mxu0 %v738
      %v1725 = vpop.f32.mrb[0].mxu0
      %v1726 = vadd.f32 %v1629, %v1725
      %v1727 = vpop.f32.mrb[0].mxu0
      %v1728 = vpop.f32.mrb[0].mxu0
      %v1729 = vadd.f32 %v1632, %v1728
      %v1730 = vpop.f32.mrb[0].mxu0
      %1731 = vmatprep.mubr.bf16.mxu0 0
      %1732 = vmatmul.mubr.bf16.gmra.mrb[0].mxu0 %v747
      %v1733 = vpop.f32.mrb[0].mxu0
      %v1734 = vadd.f32 %v1637, %v1733
      %v1735 = vpop.f32.mrb[0].mxu0
      %v1736 = vpop.f32.mrb[0].mxu0
      %v1737 = vadd.f32 %v1640, %v1736
      %v1738 = vpop.f32.mrb[0].mxu0
      %1739 = vmatprep.mubr.bf16.mxu0 0
      %1740 = vmatmul.mubr.bf16.gmra.mrb[0].mxu0 %v756
      %v1741 = vpop.f32.mrb[0].mxu0
      %v1742 = vadd.f32 %v1645, %v1741
      %v1743 = vpop.f32.mrb[0].mxu0
      %v1744 = vpop.f32.mrb[0].mxu0
      %v1745 = vadd.f32 %v1648, %v1744
      %v1746 = vpop.f32.mrb[0].mxu0
      %1747 = vmatprep.mubr.bf16.mxu0 0
      %1748 = vmatmul.mubr.bf16.gmra.mrb[0].mxu0 %v765
      %v1749 = vpop.f32.mrb[0].mxu0
      %v1750 = vadd.f32 %v1653, %v1749
      %v1751 = vpop.f32.mrb[0].mxu0
      %v1752 = vpop.f32.mrb[0].mxu0
      %v1753 = vadd.f32 %v1656, %v1752
      %v1754 = vpop.f32.mrb[0].mxu0
      %1755 = vmatprep.mubr.bf16.mxu0 0
      %1756 = vmatmul.mubr.bf16.gmra.mrb[0].mxu0 %v774
      %v1757 = vpop.f32.mrb[0].mxu0
      %v1758 = vadd.f32 %v1661, %v1757
      %v1759 = vpop.f32.mrb[0].mxu0
      %v1760 = vpop.f32.mrb[0].mxu0
      %v1761 = vadd.f32 %v1664, %v1760
      %v1762 = vpop.f32.mrb[0].mxu0
      %1763 = vdwg.mxu0
      %v1764 = vmax.f32 %v1702, 0.0
      %v1765 = vmax.f32 %v1705, 0.0
      %v1766 = vmax.f32 %v1710, 0.0
      %v1767 = vmax.f32 %v1713, 0.0
      %v1768 = vmax.f32 %v1718, 0.0
      %v1769 = vmax.f32 %v1721, 0.0
      %v1770 = vmax.f32 %v1726, 0.0
      %v1771 = vmax.f32 %v1729, 0.0
      %v1772 = vmax.f32 %v1734, 0.0
      %v1773 = vmax.f32 %v1737, 0.0
      %v1774 = vmax.f32 %v1742, 0.0
      %v1775 = vmax.f32 %v1745, 0.0
      %v1776 = vmax.f32 %v1750, 0.0
      %v1777 = vmax.f32 %v1753, 0.0
      %v1778 = vmax.f32 %v1758, 0.0
      %v1779 = vmax.f32 %v1761, 0.0
      %1780 = vst [vmem:[%s245] sm:$0xff] %v1764
      %1781 = vst [vmem:[%s245 + $0x8] sm:$0xff] %v1765
      %1782 = vst [vmem:[%s245 + $0x10] sm:$0xff] %v1766
      %1783 = vst [vmem:[%s245 + $0x18] sm:$0xff] %v1767
      %1784 = vst [vmem:[%s245 + $0x20] sm:$0xff] %v1768
      %1785 = vst [vmem:[%s245 + $0x28] sm:$0xff] %v1769
      %1786 = vst [vmem:[%s245 + $0x30] sm:$0xff] %v1770
      %1787 = vst [vmem:[%s245 + $0x38] sm:$0xff] %v1771
      %1788 = vst [vmem:[%s245 + $0x40] sm:$0xff] %v1772
      %1789 = vst [vmem:[%s245 + $0x48] sm:$0xff] %v1773
      %1790 = vst [vmem:[%s245 + $0x50] sm:$0xff] %v1774
      %1791 = vst [vmem:[%s245 + $0x58] sm:$0xff] %v1775
      %1792 = vst [vmem:[%s245 + $0x60] sm:$0xff] %v1776
      %1793 = vst [vmem:[%s245 + $0x68] sm:$0xff] %v1777
      %1794 = vst [vmem:[%s245 + $0x70] sm:$0xff] %v1778
      %1795 = vst [vmem:[%s245 + $0x78] sm:$0xff] %v1779
      %s1796 = smul.u32 16, %s19
      %p1797 = scmp.lt.s32.totalorder %s18, 1
      %s1798 = scalar_select %p1797, %s18, 1
      %p1799 = scmp.lt.s32.totalorder %s1796, 15
      %s1800 = scalar_select %p1799, %s1796, 15
      %s1801 = smul.addr %s1798, 16
      %s1802 = sadd.s32 %s1800, %s1801
      %s1803 = smul.addr %s1802, 8
      %s1804 = scalar_lea.vmem %s3, %s1803
      // Predicated region
      $region33: #{triplet_net_forward.28} parent=31 // pred_check
        %p1805 = pneg %p126
      $region34: #{triplet_net_forward.28} parent=31 // pred_check_branch
        %1807 = sbr.rel (%p1805) target = $region36
      $region35: #{triplet_net_forward.28} parent=31 // pred_region
        %s1808 = smul.u32 16, %s19
      $region36: #{triplet_net_forward.28} parent=31 // pred_fallthru
        _
    $region32: #{triplet_net_forward.28} parent=5 // pred_fallthru
      _
    %p1809 = scmp.le.s32.totalorder 2, %s9
    // Predicated region
    $region37: #{triplet_net_forward.28} parent=5 // pred_check
      %p1810 = pneg %p1809
    $region38: #{triplet_net_forward.28} parent=5 // pred_check_branch
      %1812 = sbr.rel (%p1810) target = $region40
    $region39: #{triplet_net_forward.28} parent=5 // pred_region
      %s1813 = ssub.s32 %s9, 2
      // Predicated region
      $region41: #{triplet_net_forward.28} parent=39 // pred_check
        %p1814 = pneg %p132
      $region42: #{triplet_net_forward.28} parent=39 // pred_check_branch
        %1816 = sbr.rel (%p1814) target = $region44
      $region43: #{triplet_net_forward.28} parent=39 // pred_region
        %s1817 = smul.u32 16, %s21
        %p1818 = scmp.lt.s32.totalorder %s20, 1
        %s1819 = scalar_select %p1818, %s20, 1
        %p1820 = scmp.lt.s32.totalorder %s1817, 15
        %s1821 = scalar_select %p1820, %s1817, 15
        %s1822 = smul.addr %s1819, 16
        %s1823 = sadd.s32 %s1821, %s1822
        %s1824 = smul.addr %s1823, 8
        %s1825 = scalar_lea.vmem %s3, %s1824
      $region44: #{triplet_net_forward.28} parent=39 // pred_fallthru
        _
    $region40: #{triplet_net_forward.28} parent=5 // pred_fallthru
      _
  $region6: #{triplet_net_forward.28} parent=0 // loop_footer
    %s13 = sadd.s32 1, %s9
  $region7: #{triplet_net_forward.28} parent=0 // loop_footer_branch
    %8 = sbr.rel target = $region3
  $region8: #{triplet_net_forward.28} parent=0 // loop_exit
    _

// kernel: triplet_net_forward.40
$region0: #{triplet_net_forward.40}
  #allocation0 [shape = 'u32[]', space=smem, size = 0x4, offset = 0x4, fixed_abs, tag = 'smem constant byte address 0x4 - core index']
  #allocation1 [shape = 'u32[144,128]{1,0:T(1,128)}', space=vmem, size = 0x12000, scoped, tag = 'internal scratch']
  %s0 = inlined_call_operand.vmem [shape: bf16[2,32,128], index: 0, kind: input, shape index: {}]
  %s1 = inlined_call_operand.vmem [shape: bf16[2,128,512], index: 1, kind: input, shape index: {}]
  %s2 = inlined_call_operand.vmem [shape: f32[2,1,512], index: 2, kind: input, shape index: {}]
  %s3 = inlined_call_operand.vmem [shape: f32[2,32,512], index: 3, kind: input, shape index: {}]
  %s4 = inlined_call_operand.vmem [shape: f32[2,32,512], index: 4, kind: output, shape index: {}]
  %s5 = sld [smem:[#allocation0]]
  $region49: #{triplet_net_forward.40} parent=0
    _
  %s7 = ssub.s32 1, %s5
  %s8 = scalar_select 0, %s7, %s5
  loop: start=0, step=1, limit=4
  $region2: #{triplet_net_forward.40} parent=0 // loop_pre_header
    _
  $region3: #{triplet_net_forward.40} parent=0 // loop_header
    %s10 = sphi 0, %s14
    %p11 = scmp.ge.s32.totalorder %s10, 4
    %s17 = sphi 0, %s29
    %s18 = sphi 0, %s25
    %s19 = sphi 0, %s17
    %s20 = sphi 0, %s18
    %s21 = sphi 0, %s19
    %s22 = sphi 0, %s20
    %s34 = sphi 0, %s36
    %s37 = sphi 0, %s34
    %s38 = sphi 0, %s37
    %s54 = sphi 0, %s38
    %s60 = sphi 0, %s62
    %s63 = sphi 0, %s60
    %s64 = sphi 0, %s63
    %s80 = sphi 0, %s64
    %s86 = sphi 0, %s88
    %s89 = sphi 0, %s86
    %s90 = sphi 0, %s89
    %s106 = sphi 0, %s90
    %s114 = sphi 0, %s116
    %s117 = sphi 0, %s114
    %s118 = sphi 0, %s117
    %s134 = sphi 0, %s118
    %s142 = sphi 0, %s144
    %s145 = sphi 0, %s142
    %s146 = sphi 0, %s145
    %s162 = sphi 0, %s146
  $region4: #{triplet_net_forward.40} parent=0 // loop_header_branch
    %13 = sbr.rel (%p11) target = $region8
  $region5: #{triplet_net_forward.40} parent=0 // loop_body
    %s15 = ssub.s32 %s10, 1
    %s16 = ssub.s32 %s10, 2
    %s23 = sadd.s32 1, %s18
    %p24 = scmp.ge.s32.totalorder %s23, 1
    %s25 = scalar_select %p24, 0, %s23
    %s26 = sadd.s32 1, %s17
    %s27 = scalar_select %p24, %s26, %s17
    %p28 = scmp.ge.s32.totalorder %s27, 2
    %s29 = scalar_select %p28, 0, %s27
    %s30 = ssub.s32 %s17, %s29
    %s31 = ssub.s32 %s18, %s25
    %s32 = sor.u32 %s30, %s31
    %p33 = scmp.eq.s32.totalorder %s32, 0
    %s35 = sadd.s32 %s34, 1
    %s36 = scalar_select %p33, %s34, %s35
    %p39 = pneg %p33
    %p40 = scmp.eq.s32.totalorder %s10, 1
    %p41 = por %p39, %p40
    %p42 = scmp.ne.s32.totalorder %s34, %s37
    %p43 = scmp.eq.s32.totalorder %s10, 0
    %p44 = por %p42, %p43
    %p45 = scmp.ne.s32.totalorder %s34, %s37
    %p46 = scmp.eq.s32.totalorder %s15, 1
    %p47 = por %p45, %p46
    %p48 = scmp.ne.s32.totalorder %s37, %s38
    %p49 = scmp.eq.s32.totalorder %s15, 0
    %p50 = por %p48, %p49
    %p51 = scmp.ne.s32.totalorder %s37, %s38
    %p52 = scmp.eq.s32.totalorder %s16, 1
    %p53 = por %p51, %p52
    %p55 = scmp.ne.s32.totalorder %s38, %s54
    %p56 = scmp.eq.s32.totalorder %s16, 0
    %p57 = por %p55, %p56
    %s58 = ssub.s32 %s17, %s29
    %p59 = scmp.eq.s32.totalorder %s58, 0
    %s61 = sadd.s32 %s60, 1
    %s62 = scalar_select %p59, %s60, %s61
    %p65 = pneg %p59
    %p66 = scmp.eq.s32.totalorder %s10, 1
    %p67 = por %p65, %p66
    %p68 = scmp.ne.s32.totalorder %s60, %s63
    %p69 = scmp.eq.s32.totalorder %s10, 0
    %p70 = por %p68, %p69
    %p71 = scmp.ne.s32.totalorder %s60, %s63
    %p72 = scmp.eq.s32.totalorder %s15, 1
    %p73 = por %p71, %p72
    %p74 = scmp.ne.s32.totalorder %s63, %s64
    %p75 = scmp.eq.s32.totalorder %s15, 0
    %p76 = por %p74, %p75
    %p77 = scmp.ne.s32.totalorder %s63, %s64
    %p78 = scmp.eq.s32.totalorder %s16, 1
    %p79 = por %p77, %p78
    %p81 = scmp.ne.s32.totalorder %s64, %s80
    %p82 = scmp.eq.s32.totalorder %s16, 0
    %p83 = por %p81, %p82
    %s84 = ssub.s32 %s17, %s29
    %p85 = scmp.eq.s32.totalorder %s84, 0
    %s87 = sadd.s32 %s86, 1
    %s88 = scalar_select %p85, %s86, %s87
    %p91 = pneg %p85
    %p92 = scmp.eq.s32.totalorder %s10, 1
    %p93 = por %p91, %p92
    %p94 = scmp.ne.s32.totalorder %s86, %s89
    %p95 = scmp.eq.s32.totalorder %s10, 0
    %p96 = por %p94, %p95
    %p97 = scmp.ne.s32.totalorder %s86, %s89
    %p98 = scmp.eq.s32.totalorder %s15, 1
    %p99 = por %p97, %p98
    %p100 = scmp.ne.s32.totalorder %s89, %s90
    %p101 = scmp.eq.s32.totalorder %s15, 0
    %p102 = por %p100, %p101
    %p103 = scmp.ne.s32.totalorder %s89, %s90
    %p104 = scmp.eq.s32.totalorder %s16, 1
    %p105 = por %p103, %p104
    %p107 = scmp.ne.s32.totalorder %s90, %s106
    %p108 = scmp.eq.s32.totalorder %s16, 0
    %p109 = por %p107, %p108
    %s110 = ssub.s32 %s17, %s29
    %s111 = ssub.s32 %s18, %s25
    %s112 = sor.u32 %s110, %s111
    %p113 = scmp.eq.s32.totalorder %s112, 0
    %s115 = sadd.s32 %s114, 1
    %s116 = scalar_select %p113, %s114, %s115
    %p119 = pneg %p113
    %p120 = scmp.eq.s32.totalorder %s10, 1
    %p121 = por %p119, %p120
    %p122 = scmp.ne.s32.totalorder %s114, %s117
    %p123 = scmp.eq.s32.totalorder %s10, 0
    %p124 = por %p122, %p123
    %p125 = scmp.ne.s32.totalorder %s114, %s117
    %p126 = scmp.eq.s32.totalorder %s15, 1
    %p127 = por %p125, %p126
    %p128 = scmp.ne.s32.totalorder %s117, %s118
    %p129 = scmp.eq.s32.totalorder %s15, 0
    %p130 = por %p128, %p129
    %p131 = scmp.ne.s32.totalorder %s117, %s118
    %p132 = scmp.eq.s32.totalorder %s16, 1
    %p133 = por %p131, %p132
    %p135 = scmp.ne.s32.totalorder %s118, %s134
    %p136 = scmp.eq.s32.totalorder %s16, 0
    %p137 = por %p135, %p136
    %s138 = ssub.s32 %s17, %s29
    %s139 = ssub.s32 %s18, %s25
    %s140 = sor.u32 %s138, %s139
    %p141 = scmp.eq.s32.totalorder %s140, 0
    %s143 = sadd.s32 %s142, 1
    %s144 = scalar_select %p141, %s142, %s143
    %p147 = pneg %p141
    %p148 = scmp.eq.s32.totalorder %s10, 1
    %p149 = por %p147, %p148
    %p150 = scmp.ne.s32.totalorder %s142, %s145
    %p151 = scmp.eq.s32.totalorder %s10, 0
    %p152 = por %p150, %p151
    %p153 = scmp.ne.s32.totalorder %s142, %s145
    %p154 = scmp.eq.s32.totalorder %s15, 1
    %p155 = por %p153, %p154
    %p156 = scmp.ne.s32.totalorder %s145, %s146
    %p157 = scmp.eq.s32.totalorder %s15, 0
    %p158 = por %p156, %p157
    %p159 = scmp.ne.s32.totalorder %s145, %s146
    %p160 = scmp.eq.s32.totalorder %s16, 1
    %p161 = por %p159, %p160
    %p163 = scmp.ne.s32.totalorder %s146, %s162
    %p164 = scmp.eq.s32.totalorder %s16, 0
    %p165 = por %p163, %p164
    %p166 = scmp.le.s32.totalorder 1, %s10
    %p167 = scmp.lt.s32.totalorder %s10, 3
    %p168 = pnand %p166, %p167
    %p169 = pneg %p168
    // Predicated region
    $region9: #{triplet_net_forward.40} parent=5 // pred_check
      _
    $region10: #{triplet_net_forward.40} parent=5 // pred_check_branch
      %171 = sbr.rel (%p168) target = $region12
    $region11: #{triplet_net_forward.40} parent=5 // pred_region
      %s172 = ssub.s32 %s10, 1
    $region12: #{triplet_net_forward.40} parent=5 // pred_fallthru
      _
    %p173 = scmp.lt.s32.totalorder %s10, 2
    // Predicated region
    $region13: #{triplet_net_forward.40} parent=5 // pred_check
      %p174 = pneg %p173
    $region14: #{triplet_net_forward.40} parent=5 // pred_check_branch
      %176 = sbr.rel (%p174) target = $region16
    $region15: #{triplet_net_forward.40} parent=5 // pred_region
      // Predicated region
      $region17: #{triplet_net_forward.40} parent=15 // pred_check
        %p177 = pneg %p44
      $region18: #{triplet_net_forward.40} parent=15 // pred_check_branch
        %179 = sbr.rel (%p177) target = $region20
      $region19: #{triplet_net_forward.40} parent=15 // pred_region
        %s180 = smul.u32 4, %s18
        %p181 = scmp.lt.s32.totalorder %s17, 1
        %s182 = scalar_select %p181, %s17, 1
        %p183 = scmp.lt.s32.totalorder %s180, 3
        %s184 = scalar_select %p183, %s180, 3
        %s185 = smul.addr %s182, 4
        %s186 = sadd.s32 %s184, %s185
        %s187 = smul.addr %s186, 4
        %s188 = scalar_lea.vmem %s0, %s187
        %s189 = smul.u32 4, %s18
      $region20: #{triplet_net_forward.40} parent=15 // pred_fallthru
        _
      // Predicated region
      $region21: #{triplet_net_forward.40} parent=15 // pred_check
        %p190 = pneg %p70
      $region22: #{triplet_net_forward.40} parent=15 // pred_check_branch
        %192 = sbr.rel (%p190) target = $region24
      $region23: #{triplet_net_forward.40} parent=15 // pred_region
        %p193 = scmp.lt.s32.totalorder %s17, 1
        %s194 = scalar_select %p193, %s17, 1
        %s195 = smul.addr %s194, 64
        %s196 = smul.addr %s195, 4
        %s197 = scalar_lea.vmem %s1, %s196
      $region24: #{triplet_net_forward.40} parent=15 // pred_fallthru
        _
      // Predicated region
      $region25: #{triplet_net_forward.40} parent=15 // pred_check
        %p198 = pneg %p96
      $region26: #{triplet_net_forward.40} parent=15 // pred_check_branch
        %200 = sbr.rel (%p198) target = $region28
      $region27: #{triplet_net_forward.40} parent=15 // pred_region
        %p201 = scmp.lt.s32.totalorder %s17, 1
        %s202 = scalar_select %p201, %s17, 1
        %s203 = smul.addr %s202, 4
        %s204 = scalar_lea.vmem %s2, %s203
      $region28: #{triplet_net_forward.40} parent=15 // pred_fallthru
        _
      // Predicated region
      $region29: #{triplet_net_forward.40} parent=15 // pred_check
        %p205 = pneg %p124
      $region30: #{triplet_net_forward.40} parent=15 // pred_check_branch
        %207 = sbr.rel (%p205) target = $region32
      $region31: #{triplet_net_forward.40} parent=15 // pred_region
        %s208 = smul.u32 4, %s18
        %p209 = scmp.lt.s32.totalorder %s17, 1
        %s210 = scalar_select %p209, %s17, 1
        %p211 = scmp.lt.s32.totalorder %s208, 3
        %s212 = scalar_select %p211, %s208, 3
        %s213 = smul.addr %s212, 4
        %s214 = smul.addr %s210, 16
        %s215 = sadd.s32 %s213, %s214
        %s216 = smul.addr %s215, 8
        %s217 = scalar_lea.vmem %s3, %s216
        %s218 = smul.u32 4, %s18
      $region32: #{triplet_net_forward.40} parent=15 // pred_fallthru
        _
    $region16: #{triplet_net_forward.40} parent=5 // pred_fallthru
      _
    %p219 = scmp.le.s32.totalorder 1, %s10
    %p220 = scmp.lt.s32.totalorder %s10, 3
    %p221 = pnand %p219, %p220
    %p222 = pneg %p221
    // Predicated region
    $region33: #{triplet_net_forward.40} parent=5 // pred_check
      _
    $region34: #{triplet_net_forward.40} parent=5 // pred_check_branch
      %224 = sbr.rel (%p221) target = $region36
    $region35: #{triplet_net_forward.40} parent=5 // pred_region
      %s225 = ssub.s32 %s10, 1
      %s226 = smul.u32 4, %s20
      %p227 = scmp.lt.s32.totalorder %s19, 1
      %s228 = scalar_select %p227, %s19, 1
      %p229 = scmp.lt.s32.totalorder %s226, 3
      %s230 = scalar_select %p229, %s226, 3
      %s231 = smul.addr %s228, 4
      %s232 = sadd.s32 %s230, %s231
      %s233 = smul.addr %s232, 4
      %s234 = scalar_lea.vmem %s0, %s233
      %p235 = pneg %p50
      %p236 = pneg %p47
      %p237 = scmp.lt.s32.totalorder %s19, 1
      %s238 = scalar_select %p237, %s19, 1
      %s239 = smul.addr %s238, 64
      %s240 = smul.addr %s239, 4
      %s241 = scalar_lea.vmem %s1, %s240
      %p242 = pneg %p76
      %p243 = pneg %p73
      %p244 = scmp.lt.s32.totalorder %s19, 1
      %s245 = scalar_select %p244, %s19, 1
      %s246 = smul.addr %s245, 4
      %s247 = scalar_lea.vmem %s2, %s246
      %p248 = pneg %p102
      %p249 = pneg %p99
      %s250 = smul.u32 4, %s20
      %p251 = scmp.lt.s32.totalorder %s19, 1
      %s252 = scalar_select %p251, %s19, 1
      %p253 = scmp.lt.s32.totalorder %s250, 3
      %s254 = scalar_select %p253, %s250, 3
      %s255 = smul.addr %s254, 4
      %s256 = smul.addr %s252, 16
      %s257 = sadd.s32 %s255, %s256
      %s258 = smul.addr %s257, 8
      %s259 = scalar_lea.vmem %s3, %s258
      %p260 = pneg %p130
      %p261 = pneg %p127
      %p262 = pneg %p158
      %p263 = pneg %p155
      %s264 = smul.u32 4, %s20
      %p265 = scmp.lt.s32.totalorder %s19, 1
      %s266 = scalar_select %p265, %s19, 1
      %p267 = scmp.lt.s32.totalorder %s264, 3
      %s268 = scalar_select %p267, %s264, 3
      %s269 = smul.addr %s268, 4
      %s270 = smul.addr %s266, 16
      %s271 = sadd.s32 %s269, %s270
      %s272 = smul.addr %s271, 8
      %s273 = scalar_lea.vmem %s4, %s272
      %s274 = smul.u32 4, %s20
      %p275 = scmp.lt.s32.totalorder %s19, 1
      %s276 = scalar_select %p275, %s19, 1
      %p277 = scmp.lt.s32.totalorder %s274, 3
      %s278 = scalar_select %p277, %s274, 3
      %s279 = smul.addr %s276, 4
      %s280 = sadd.s32 %s278, %s279
      %s281 = smul.addr %s280, 4
      %s282 = scalar_lea.vmem %s0, %s281
      %s283 = smul.u32 4, %s20
      %p284 = scmp.lt.s32.totalorder %s19, 1
      %s285 = scalar_select %p284, %s19, 1
      %s286 = smul.addr %s285, 64
      %s287 = smul.addr %s286, 4
      %s288 = scalar_lea.vmem %s1, %s287
      %p289 = scmp.lt.s32.totalorder %s19, 1
      %s290 = scalar_select %p289, %s19, 1
      %s291 = smul.addr %s290, 4
      %s292 = scalar_lea.vmem %s2, %s291
      %s293 = smul.u32 4, %s20
      %p294 = scmp.lt.s32.totalorder %s19, 1
      %s295 = scalar_select %p294, %s19, 1
      %p296 = scmp.lt.s32.totalorder %s293, 3
      %s297 = scalar_select %p296, %s293, 3
      %s298 = smul.addr %s297, 4
      %s299 = smul.addr %s295, 16
      %s300 = sadd.s32 %s298, %s299
      %s301 = smul.addr %s300, 8
      %s302 = scalar_lea.vmem %s3, %s301
      %s303 = smul.u32 4, %s20
      %s304 = smul.u32 4, %s20
      %p305 = scmp.lt.s32.totalorder %s19, 1
      %s306 = scalar_select %p305, %s19, 1
      %p307 = scmp.lt.s32.totalorder %s304, 3
      %s308 = scalar_select %p307, %s304, 3
      %s309 = smul.addr %s308, 4
      %s310 = smul.addr %s306, 16
      %s311 = sadd.s32 %s309, %s310
      %s312 = smul.addr %s311, 8
      %s313 = scalar_lea.vmem %s4, %s312
      %s314 = smul.u32 4, %s20
      %v316 = vld [vmem:[%s282] sm:$0xf]
      %v317 = vld [vmem:[%s282 + $0x4] sm:$0xf]
      %v318 = vld [vmem:[%s282 + $0x8] sm:$0xf]
      %v319 = vld [vmem:[%s282 + $0xc] sm:$0xf]
      %v320 = vld [vmem:[%s288] sm:$0xff]
      %v321 = vld [vmem:[%s288 + $0x8] sm:$0xff]
      %v322 = vld [vmem:[%s288 + $0x10] sm:$0xff]
      %v323 = vld [vmem:[%s288 + $0x18] sm:$0xff]
      %v324 = vld [vmem:[%s288 + $0x20] sm:$0xff]
      %v325 = vld [vmem:[%s288 + $0x28] sm:$0xff]
      %v326 = vld [vmem:[%s288 + $0x30] sm:$0xff]
      %v327 = vld [vmem:[%s288 + $0x38] sm:$0xff]
      %v328 = vld [vmem:[%s288 + $0x40] sm:$0xff]
      %v329 = vld [vmem:[%s288 + $0x48] sm:$0xff]
      %v330 = vld [vmem:[%s288 + $0x50] sm:$0xff]
      %v331 = vld [vmem:[%s288 + $0x58] sm:$0xff]
      %v332 = vld [vmem:[%s288 + $0x60] sm:$0xff]
      %v333 = vld [vmem:[%s288 + $0x68] sm:$0xff]
      %v334 = vld [vmem:[%s288 + $0x70] sm:$0xff]
      %v335 = vld [vmem:[%s288 + $0x78] sm:$0xff]
      %v336 = vld [vmem:[%s288 + $0x80] sm:$0xff]
      %v337 = vld [vmem:[%s288 + $0x88] sm:$0xff]
      %v338 = vld [vmem:[%s288 + $0x90] sm:$0xff]
      %v339 = vld [vmem:[%s288 + $0x98] sm:$0xff]
      %v340 = vld [vmem:[%s288 + $0xa0] sm:$0xff]
      %v341 = vld [vmem:[%s288 + $0xa8] sm:$0xff]
      %v342 = vld [vmem:[%s288 + $0xb0] sm:$0xff]
      %v343 = vld [vmem:[%s288 + $0xb8] sm:$0xff]
      %v344 = vld [vmem:[%s288 + $0xc0] sm:$0xff]
      %v345 = vld [vmem:[%s288 + $0xc8] sm:$0xff]
      %v346 = vld [vmem:[%s288 + $0xd0] sm:$0xff]
      %v347 = vld [vmem:[%s288 + $0xd8] sm:$0xff]
      %v348 = vld [vmem:[%s288 + $0xe0] sm:$0xff]
      %v349 = vld [vmem:[%s288 + $0xe8] sm:$0xff]
      %v350 = vld [vmem:[%s288 + $0xf0] sm:$0xff]
      %v351 = vld [vmem:[%s288 + $0xf8] sm:$0xff]
      %v352 = vld [vmem:[%s292] sm:$0xf]
      %v354 = vlaneseq
      %v355 = vshrl.u32 %v354, 7
      %v356 = vsub.s32 0, %v355
      %v357 = vrot.slane %v352, %v356
      %v358 = vlaneseq
      %v359 = vshrl.u32 %v358, 7
      %v360 = vsub.s32 1, %v359
      %v361 = vrot.slane %v352, %v360
      %v362 = vlaneseq
      %v363 = vshrl.u32 %v362, 7
      %v364 = vsub.s32 2, %v363
      %v365 = vrot.slane %v352, %v364
      %v366 = vlaneseq
      %v367 = vshrl.u32 %v366, 7
      %v368 = vsub.s32 3, %v367
      %v369 = vrot.slane %v352, %v368
      %v378 = vunpack.c.l.b16 %v316
      %v379 = vunpack.c.l.b16 %v317
      %v380 = vunpack.c.l.b16 %v318
      %v381 = vunpack.c.l.b16 %v319
      %v382 = vpack.c.b16 %v379, %v378
      %v383 = vpack.c.b16 %v381, %v380
      %v418 = vunpack.c.l.b16 %v320
      %v419 = vunpack.c.h.b16 %v320
      %v420 = vunpack.c.l.b16 %v321
      %v421 = vunpack.c.h.b16 %v321
      %v422 = vunpack.c.l.b16 %v322
      %v423 = vunpack.c.h.b16 %v322
      %v424 = vunpack.c.l.b16 %v323
      %v425 = vunpack.c.h.b16 %v323
      %v426 = vunpack.c.l.b16 %v324
      %v427 = vunpack.c.h.b16 %v324
      %v428 = vunpack.c.l.b16 %v325
      %v429 = vunpack.c.h.b16 %v325
      %v430 = vunpack.c.l.b16 %v326
      %v431 = vunpack.c.h.b16 %v326
      %v432 = vunpack.c.l.b16 %v327
      %v433 = vunpack.c.h.b16 %v327
      %v434 = vunpack.c.l.b16 %v328
      %v435 = vunpack.c.h.b16 %v328
      %v436 = vunpack.c.l.b16 %v329
      %v437 = vunpack.c.h.b16 %v329
      %v438 = vunpack.c.l.b16 %v330
      %v439 = vunpack.c.h.b16 %v330
      %v440 = vunpack.c.l.b16 %v331
      %v441 = vunpack.c.h.b16 %v331
      %v442 = vunpack.c.l.b16 %v332
      %v443 = vunpack.c.h.b16 %v332
      %v444 = vunpack.c.l.b16 %v333
      %v445 = vunpack.c.h.b16 %v333
      %v446 = vunpack.c.l.b16 %v334
      %v447 = vunpack.c.h.b16 %v334
      %v448 = vunpack.c.l.b16 %v335
      %v449 = vunpack.c.h.b16 %v335
      %v450 = vunpack.c.l.b16 %v336
      %v451 = vunpack.c.h.b16 %v336
      %v452 = vunpack.c.l.b16 %v337
      %v453 = vunpack.c.h.b16 %v337
      %v454 = vunpack.c.l.b16 %v338
      %v455 = vunpack.c.h.b16 %v338
      %v456 = vunpack.c.l.b16 %v339
      %v457 = vunpack.c.h.b16 %v339
      %v458 = vunpack.c.l.b16 %v340
      %v459 = vunpack.c.h.b16 %v340
      %v460 = vunpack.c.l.b16 %v341
      %v461 = vunpack.c.h.b16 %v341
      %v462 = vunpack.c.l.b16 %v342
      %v463 = vunpack.c.h.b16 %v342
      %v464 = vunpack.c.l.b16 %v343
      %v465 = vunpack.c.h.b16 %v343
      %v466 = vunpack.c.l.b16 %v344
      %v467 = vunpack.c.h.b16 %v344
      %v468 = vunpack.c.l.b16 %v345
      %v469 = vunpack.c.h.b16 %v345
      %v470 = vunpack.c.l.b16 %v346
      %v471 = vunpack.c.h.b16 %v346
      %v472 = vunpack.c.l.b16 %v347
      %v473 = vunpack.c.h.b16 %v347
      %v474 = vunpack.c.l.b16 %v348
      %v475 = vunpack.c.h.b16 %v348
      %v476 = vunpack.c.l.b16 %v349
      %v477 = vunpack.c.h.b16 %v349
      %v478 = vunpack.c.l.b16 %v350
      %v479 = vunpack.c.h.b16 %v350
      %v480 = vunpack.c.l.b16 %v351
      %v481 = vunpack.c.h.b16 %v351
      %v482 = vpack.c.b16 %v422, %v418
      %v483 = vpack.c.b16 %v423, %v419
      %v484 = vpack.c.b16 %v424, %v420
      %v485 = vpack.c.b16 %v425, %v421
      %v486 = vpack.c.b16 %v430, %v426
      %v487 = vpack.c.b16 %v431, %v427
      %v488 = vpack.c.b16 %v432, %v428
      %v489 = vpack.c.b16 %v433, %v429
      %v490 = vpack.c.b16 %v438, %v434
      %v491 = vpack.c.b16 %v439, %v435
      %v492 = vpack.c.b16 %v440, %v436
      %v493 = vpack.c.b16 %v441, %v437
      %v494 = vpack.c.b16 %v446, %v442
      %v495 = vpack.c.b16 %v447, %v443
      %v496 = vpack.c.b16 %v448, %v444
      %v497 = vpack.c.b16 %v449, %v445
      %v498 = vpack.c.b16 %v454, %v450
      %v499 = vpack.c.b16 %v455, %v451
      %v500 = vpack.c.b16 %v456, %v452
      %v501 = vpack.c.b16 %v457, %v453
      %v502 = vpack.c.b16 %v462, %v458
      %v503 = vpack.c.b16 %v463, %v459
      %v504 = vpack.c.b16 %v464, %v460
      %v505 = vpack.c.b16 %v465, %v461
      %v506 = vpack.c.b16 %v470, %v466
      %v507 = vpack.c.b16 %v471, %v467
      %v508 = vpack.c.b16 %v472, %v468
      %v509 = vpack.c.b16 %v473, %v469
      %v510 = vpack.c.b16 %v478, %v474
      %v511 = vpack.c.b16 %v479, %v475
      %v512 = vpack.c.b16 %v480, %v476
      %v513 = vpack.c.b16 %v481, %v477
      %546 = vmatprep.subr.bf16.mxu0 %v483
      %547 = vmatpush1.bf16.msra.mxu0 %v482
      %548 = vmatprep.subr.bf16.mxu0 %v487
      %549 = vmatpush1.bf16.msra.mxu0 %v486
      %550 = vmatprep.subr.bf16.mxu0 %v491
      %551 = vmatpush1.bf16.msra.mxu0 %v490
      %552 = vmatprep.subr.bf16.mxu0 %v495
      %553 = vmatpush1.bf16.msra.mxu0 %v494
      %554 = vmatprep.subr.bf16.mxu0 %v499
      %555 = vmatpush1.bf16.msra.mxu0 %v498
      %556 = vmatprep.subr.bf16.mxu0 %v503
      %557 = vmatpush1.bf16.msra.mxu0 %v502
      %558 = vmatprep.subr.bf16.mxu0 %v507
      %559 = vmatpush1.bf16.msra.mxu0 %v506
      %560 = vmatprep.subr.bf16.mxu0 %v511
      %561 = vmatpush1.bf16.msra.mxu0 %v510
      %562 = vmatprep.subr.bf16.mxu0 0
      %563 = vmatpush1.bf16.msra.mxu0 0
      %564 = vmatprep.subr.bf16.mxu0 0
      %565 = vmatpush1.bf16.msra.mxu0 0
      %566 = vmatprep.subr.bf16.mxu0 0
      %567 = vmatpush1.bf16.msra.mxu0 0
      %568 = vmatprep.subr.bf16.mxu0 0
      %569 = vmatpush1.bf16.msra.mxu0 0
      %570 = vmatprep.subr.bf16.mxu0 0
      %571 = vmatpush1.bf16.msra.mxu0 0
      %572 = vmatprep.subr.bf16.mxu0 0
      %573 = vmatpush1.bf16.msra.mxu0 0
      %574 = vmatprep.subr.bf16.mxu0 0
      %575 = vmatpush1.bf16.msra.mxu0 0
      %576 = vmatprep.subr.bf16.mxu0 0
      %577 = vmatpush1.bf16.msra.mxu0 0
      %578 = vmatprep.mubr.bf16.mxu0 0
      %579 = vmatmul.mubr.bf16.gmra.mrb[0].mxu0 %v382
      %v580 = vpop.f32.mrb[0].mxu0
      %v581 = vadd.f32 %v357, %v580
      %v582 = vpop.f32.mrb[0].mxu0
      %v583 = vadd.f32 %v361, %v582
      %v584 = vpop.f32.mrb[0].mxu0
      %v585 = vadd.f32 %v357, %v584
      %v586 = vpop.f32.mrb[0].mxu0
      %v587 = vadd.f32 %v361, %v586
      %588 = vmatprep.mubr.bf16.mxu0 0
      %589 = vmatmul.mubr.bf16.gmra.mrb[0].mxu0 %v383
      %v590 = vpop.f32.mrb[0].mxu0
      %v591 = vadd.f32 %v357, %v590
      %v592 = vpop.f32.mrb[0].mxu0
      %v593 = vadd.f32 %v361, %v592
      %v594 = vpop.f32.mrb[0].mxu0
      %v595 = vadd.f32 %v357, %v594
      %v596 = vpop.f32.mrb[0].mxu0
      %v597 = vadd.f32 %v361, %v596
      %598 = vdwg.mxu0
      %599 = vmatprep.subr.bf16.mxu0 %v485
      %600 = vmatpush1.bf16.msra.mxu0 %v484
      %601 = vmatprep.subr.bf16.mxu0 %v489
      %602 = vmatpush1.bf16.msra.mxu0 %v488
      %603 = vmatprep.subr.bf16.mxu0 %v493
      %604 = vmatpush1.bf16.msra.mxu0 %v492
      %605 = vmatprep.subr.bf16.mxu0 %v497
      %606 = vmatpush1.bf16.msra.mxu0 %v496
      %607 = vmatprep.subr.bf16.mxu0 %v501
      %608 = vmatpush1.bf16.msra.mxu0 %v500
      %609 = vmatprep.subr.bf16.mxu0 %v505
      %610 = vmatpush1.bf16.msra.mxu0 %v504
      %611 = vmatprep.subr.bf16.mxu0 %v509
      %612 = vmatpush1.bf16.msra.mxu0 %v508
      %613 = vmatprep.subr.bf16.mxu0 %v513
      %614 = vmatpush1.bf16.msra.mxu0 %v512
      %615 = vmatprep.subr.bf16.mxu0 0
      %616 = vmatpush1.bf16.msra.mxu0 0
      %617 = vmatprep.subr.bf16.mxu0 0
      %618 = vmatpush1.bf16.msra.mxu0 0
      %619 = vmatprep.subr.bf16.mxu0 0
      %620 = vmatpush1.bf16.msra.mxu0 0
      %621 = vmatprep.subr.bf16.mxu0 0
      %622 = vmatpush1.bf16.msra.mxu0 0
      %623 = vmatprep.subr.bf16.mxu0 0
      %624 = vmatpush1.bf16.msra.mxu0 0
      %625 = vmatprep.subr.bf16.mxu0 0
      %626 = vmatpush1.bf16.msra.mxu0 0
      %627 = vmatprep.subr.bf16.mxu0 0
      %628 = vmatpush1.bf16.msra.mxu0 0
      %629 = vmatprep.subr.bf16.mxu0 0
      %630 = vmatpush1.bf16.msra.mxu0 0
      %631 = vmatprep.mubr.bf16.mxu0 0
      %632 = vmatmul.mubr.bf16.gmra.mrb[0].mxu0 %v382
      %v633 = vpop.f32.mrb[0].mxu0
      %v634 = vadd.f32 %v365, %v633
      %v635 = vpop.f32.mrb[0].mxu0
      %v636 = vadd.f32 %v369, %v635
      %v637 = vpop.f32.mrb[0].mxu0
      %v638 = vadd.f32 %v365, %v637
      %v639 = vpop.f32.mrb[0].mxu0
      %v640 = vadd.f32 %v369, %v639
      %641 = vmatprep.mubr.bf16.mxu0 0
      %642 = vmatmul.mubr.bf16.gmra.mrb[0].mxu0 %v383
      %v643 = vpop.f32.mrb[0].mxu0
      %v644 = vadd.f32 %v365, %v643
      %v645 = vpop.f32.mrb[0].mxu0
      %v646 = vadd.f32 %v369, %v645
      %v647 = vpop.f32.mrb[0].mxu0
      %v648 = vadd.f32 %v365, %v647
      %v649 = vpop.f32.mrb[0].mxu0
      %v650 = vadd.f32 %v369, %v649
      %651 = vdwg.mxu0
      %v652 = vld [vmem:[%s302] sm:$0xff]
      %v653 = vld [vmem:[%s302 + $0x8] sm:$0xff]
      %v654 = vld [vmem:[%s302 + $0x10] sm:$0xff]
      %v655 = vld [vmem:[%s302 + $0x18] sm:$0xff]
      %v656 = vld [vmem:[%s302 + $0x20] sm:$0xff]
      %v657 = vld [vmem:[%s302 + $0x28] sm:$0xff]
      %v658 = vld [vmem:[%s302 + $0x30] sm:$0xff]
      %v659 = vld [vmem:[%s302 + $0x38] sm:$0xff]
      %v660 = vld [vmem:[%s302 + $0x40] sm:$0xff]
      %v661 = vld [vmem:[%s302 + $0x48] sm:$0xff]
      %v662 = vld [vmem:[%s302 + $0x50] sm:$0xff]
      %v663 = vld [vmem:[%s302 + $0x58] sm:$0xff]
      %v664 = vld [vmem:[%s302 + $0x60] sm:$0xff]
      %v665 = vld [vmem:[%s302 + $0x68] sm:$0xff]
      %v666 = vld [vmem:[%s302 + $0x70] sm:$0xff]
      %v667 = vld [vmem:[%s302 + $0x78] sm:$0xff]
      %v668 = vadd.f32 %v581, %v652
      %v669 = vadd.f32 %v583, %v653
      %v670 = vadd.f32 %v634, %v654
      %v671 = vadd.f32 %v636, %v655
      %v672 = vadd.f32 %v585, %v656
      %v673 = vadd.f32 %v587, %v657
      %v674 = vadd.f32 %v638, %v658
      %v675 = vadd.f32 %v640, %v659
      %v676 = vadd.f32 %v591, %v660
      %v677 = vadd.f32 %v593, %v661
      %v678 = vadd.f32 %v644, %v662
      %v679 = vadd.f32 %v646, %v663
      %v680 = vadd.f32 %v595, %v664
      %v681 = vadd.f32 %v597, %v665
      %v682 = vadd.f32 %v648, %v666
      %v683 = vadd.f32 %v650, %v667
      %v684 = vmax.f32 %v668, 0.0
      %v685 = vmax.f32 %v669, 0.0
      %v686 = vmax.f32 %v670, 0.0
      %v687 = vmax.f32 %v671, 0.0
      %v688 = vmax.f32 %v672, 0.0
      %v689 = vmax.f32 %v673, 0.0
      %v690 = vmax.f32 %v674, 0.0
      %v691 = vmax.f32 %v675, 0.0
      %v692 = vmax.f32 %v676, 0.0
      %v693 = vmax.f32 %v677, 0.0
      %v694 = vmax.f32 %v678, 0.0
      %v695 = vmax.f32 %v679, 0.0
      %v696 = vmax.f32 %v680, 0.0
      %v697 = vmax.f32 %v681, 0.0
      %v698 = vmax.f32 %v682, 0.0
      %v699 = vmax.f32 %v683, 0.0
      %700 = vst [vmem:[%s313] sm:$0xff] %v684
      %701 = vst [vmem:[%s313 + $0x8] sm:$0xff] %v685
      %702 = vst [vmem:[%s313 + $0x10] sm:$0xff] %v686
      %703 = vst [vmem:[%s313 + $0x18] sm:$0xff] %v687
      %704 = vst [vmem:[%s313 + $0x20] sm:$0xff] %v688
      %705 = vst [vmem:[%s313 + $0x28] sm:$0xff] %v689
      %706 = vst [vmem:[%s313 + $0x30] sm:$0xff] %v690
      %707 = vst [vmem:[%s313 + $0x38] sm:$0xff] %v691
      %708 = vst [vmem:[%s313 + $0x40] sm:$0xff] %v692
      %709 = vst [vmem:[%s313 + $0x48] sm:$0xff] %v693
      %710 = vst [vmem:[%s313 + $0x50] sm:$0xff] %v694
      %711 = vst [vmem:[%s313 + $0x58] sm:$0xff] %v695
      %712 = vst [vmem:[%s313 + $0x60] sm:$0xff] %v696
      %713 = vst [vmem:[%s313 + $0x68] sm:$0xff] %v697
      %714 = vst [vmem:[%s313 + $0x70] sm:$0xff] %v698
      %715 = vst [vmem:[%s313 + $0x78] sm:$0xff] %v699
      %s716 = smul.u32 4, %s20
      %p717 = scmp.lt.s32.totalorder %s19, 1
      %s718 = scalar_select %p717, %s19, 1
      %p719 = scmp.lt.s32.totalorder %s716, 3
      %s720 = scalar_select %p719, %s716, 3
      %s721 = smul.addr %s720, 4
      %s722 = smul.addr %s718, 16
      %s723 = sadd.s32 %s721, %s722
      %s724 = smul.addr %s723, 8
      %s725 = scalar_lea.vmem %s4, %s724
      // Predicated region
      $region37: #{triplet_net_forward.40} parent=35 // pred_check
        %p726 = pneg %p155
      $region38: #{triplet_net_forward.40} parent=35 // pred_check_branch
        %728 = sbr.rel (%p726) target = $region40
      $region39: #{triplet_net_forward.40} parent=35 // pred_region
        %s729 = smul.u32 4, %s20
      $region40: #{triplet_net_forward.40} parent=35 // pred_fallthru
        _
    $region36: #{triplet_net_forward.40} parent=5 // pred_fallthru
      _
    %p730 = scmp.le.s32.totalorder 2, %s10
    // Predicated region
    $region41: #{triplet_net_forward.40} parent=5 // pred_check
      %p731 = pneg %p730
    $region42: #{triplet_net_forward.40} parent=5 // pred_check_branch
      %733 = sbr.rel (%p731) target = $region44
    $region43: #{triplet_net_forward.40} parent=5 // pred_region
      %s734 = ssub.s32 %s10, 2
      // Predicated region
      $region45: #{triplet_net_forward.40} parent=43 // pred_check
        %p735 = pneg %p161
      $region46: #{triplet_net_forward.40} parent=43 // pred_check_branch
        %737 = sbr.rel (%p735) target = $region48
      $region47: #{triplet_net_forward.40} parent=43 // pred_region
        %s738 = smul.u32 4, %s22
        %p739 = scmp.lt.s32.totalorder %s21, 1
        %s740 = scalar_select %p739, %s21, 1
        %p741 = scmp.lt.s32.totalorder %s738, 3
        %s742 = scalar_select %p741, %s738, 3
        %s743 = smul.addr %s742, 4
        %s744 = smul.addr %s740, 16
        %s745 = sadd.s32 %s743, %s744
        %s746 = smul.addr %s745, 8
        %s747 = scalar_lea.vmem %s4, %s746
      $region48: #{triplet_net_forward.40} parent=43 // pred_fallthru
        _
    $region44: #{triplet_net_forward.40} parent=5 // pred_fallthru
      _
  $region6: #{triplet_net_forward.40} parent=0 // loop_footer
    %s14 = sadd.s32 1, %s10
  $region7: #{triplet_net_forward.40} parent=0 // loop_footer_branch
    %9 = sbr.rel target = $region3
  $region8: #{triplet_net_forward.40} parent=0 // loop_exit
    _

// kernel: triplet_net_forward.41
$region0: #{triplet_net_forward.41}
  #allocation0 [shape = 'u32[]', space=smem, size = 0x4, offset = 0x4, fixed_abs, tag = 'smem constant byte address 0x4 - core index']
  #allocation1 [shape = 'u32[144,128]{1,0:T(1,128)}', space=vmem, size = 0x12000, scoped, tag = 'internal scratch']
  %s0 = inlined_call_operand.vmem [shape: bf16[2,32,512], index: 0, kind: input, shape index: {}]
  %s1 = inlined_call_operand.vmem [shape: bf16[2,512,128], index: 1, kind: input, shape index: {}]
  %s2 = inlined_call_operand.vmem [shape: f32[2,1,128], index: 2, kind: input, shape index: {}]
  %s3 = inlined_call_operand.vmem [shape: f32[2,32,128], index: 3, kind: output, shape index: {}]
  %s4 = sld [smem:[#allocation0]]
  $region45: #{triplet_net_forward.41} parent=0
    _
  %s6 = ssub.s32 1, %s4
  %s7 = scalar_select 0, %s6, %s4
  loop: start=0, step=1, limit=4
  $region2: #{triplet_net_forward.41} parent=0 // loop_pre_header
    _
  $region3: #{triplet_net_forward.41} parent=0 // loop_header
    %s9 = sphi 0, %s13
    %p10 = scmp.ge.s32.totalorder %s9, 4
    %s16 = sphi 0, %s28
    %s17 = sphi 0, %s24
    %s18 = sphi 0, %s16
    %s19 = sphi 0, %s17
    %s20 = sphi 0, %s18
    %s21 = sphi 0, %s19
    %s33 = sphi 0, %s35
    %s36 = sphi 0, %s33
    %s37 = sphi 0, %s36
    %s53 = sphi 0, %s37
    %s59 = sphi 0, %s61
    %s62 = sphi 0, %s59
    %s63 = sphi 0, %s62
    %s79 = sphi 0, %s63
    %s85 = sphi 0, %s87
    %s88 = sphi 0, %s85
    %s89 = sphi 0, %s88
    %s105 = sphi 0, %s89
    %s113 = sphi 0, %s115
    %s116 = sphi 0, %s113
    %s117 = sphi 0, %s116
    %s133 = sphi 0, %s117
  $region4: #{triplet_net_forward.41} parent=0 // loop_header_branch
    %12 = sbr.rel (%p10) target = $region8
  $region5: #{triplet_net_forward.41} parent=0 // loop_body
    %s14 = ssub.s32 %s9, 1
    %s15 = ssub.s32 %s9, 2
    %s22 = sadd.s32 1, %s17
    %p23 = scmp.ge.s32.totalorder %s22, 1
    %s24 = scalar_select %p23, 0, %s22
    %s25 = sadd.s32 1, %s16
    %s26 = scalar_select %p23, %s25, %s16
    %p27 = scmp.ge.s32.totalorder %s26, 2
    %s28 = scalar_select %p27, 0, %s26
    %s29 = ssub.s32 %s16, %s28
    %s30 = ssub.s32 %s17, %s24
    %s31 = sor.u32 %s29, %s30
    %p32 = scmp.eq.s32.totalorder %s31, 0
    %s34 = sadd.s32 %s33, 1
    %s35 = scalar_select %p32, %s33, %s34
    %p38 = pneg %p32
    %p39 = scmp.eq.s32.totalorder %s9, 1
    %p40 = por %p38, %p39
    %p41 = scmp.ne.s32.totalorder %s33, %s36
    %p42 = scmp.eq.s32.totalorder %s9, 0
    %p43 = por %p41, %p42
    %p44 = scmp.ne.s32.totalorder %s33, %s36
    %p45 = scmp.eq.s32.totalorder %s14, 1
    %p46 = por %p44, %p45
    %p47 = scmp.ne.s32.totalorder %s36, %s37
    %p48 = scmp.eq.s32.totalorder %s14, 0
    %p49 = por %p47, %p48
    %p50 = scmp.ne.s32.totalorder %s36, %s37
    %p51 = scmp.eq.s32.totalorder %s15, 1
    %p52 = por %p50, %p51
    %p54 = scmp.ne.s32.totalorder %s37, %s53
    %p55 = scmp.eq.s32.totalorder %s15, 0
    %p56 = por %p54, %p55
    %s57 = ssub.s32 %s16, %s28
    %p58 = scmp.eq.s32.totalorder %s57, 0
    %s60 = sadd.s32 %s59, 1
    %s61 = scalar_select %p58, %s59, %s60
    %p64 = pneg %p58
    %p65 = scmp.eq.s32.totalorder %s9, 1
    %p66 = por %p64, %p65
    %p67 = scmp.ne.s32.totalorder %s59, %s62
    %p68 = scmp.eq.s32.totalorder %s9, 0
    %p69 = por %p67, %p68
    %p70 = scmp.ne.s32.totalorder %s59, %s62
    %p71 = scmp.eq.s32.totalorder %s14, 1
    %p72 = por %p70, %p71
    %p73 = scmp.ne.s32.totalorder %s62, %s63
    %p74 = scmp.eq.s32.totalorder %s14, 0
    %p75 = por %p73, %p74
    %p76 = scmp.ne.s32.totalorder %s62, %s63
    %p77 = scmp.eq.s32.totalorder %s15, 1
    %p78 = por %p76, %p77
    %p80 = scmp.ne.s32.totalorder %s63, %s79
    %p81 = scmp.eq.s32.totalorder %s15, 0
    %p82 = por %p80, %p81
    %s83 = ssub.s32 %s16, %s28
    %p84 = scmp.eq.s32.totalorder %s83, 0
    %s86 = sadd.s32 %s85, 1
    %s87 = scalar_select %p84, %s85, %s86
    %p90 = pneg %p84
    %p91 = scmp.eq.s32.totalorder %s9, 1
    %p92 = por %p90, %p91
    %p93 = scmp.ne.s32.totalorder %s85, %s88
    %p94 = scmp.eq.s32.totalorder %s9, 0
    %p95 = por %p93, %p94
    %p96 = scmp.ne.s32.totalorder %s85, %s88
    %p97 = scmp.eq.s32.totalorder %s14, 1
    %p98 = por %p96, %p97
    %p99 = scmp.ne.s32.totalorder %s88, %s89
    %p100 = scmp.eq.s32.totalorder %s14, 0
    %p101 = por %p99, %p100
    %p102 = scmp.ne.s32.totalorder %s88, %s89
    %p103 = scmp.eq.s32.totalorder %s15, 1
    %p104 = por %p102, %p103
    %p106 = scmp.ne.s32.totalorder %s89, %s105
    %p107 = scmp.eq.s32.totalorder %s15, 0
    %p108 = por %p106, %p107
    %s109 = ssub.s32 %s16, %s28
    %s110 = ssub.s32 %s17, %s24
    %s111 = sor.u32 %s109, %s110
    %p112 = scmp.eq.s32.totalorder %s111, 0
    %s114 = sadd.s32 %s113, 1
    %s115 = scalar_select %p112, %s113, %s114
    %p118 = pneg %p112
    %p119 = scmp.eq.s32.totalorder %s9, 1
    %p120 = por %p118, %p119
    %p121 = scmp.ne.s32.totalorder %s113, %s116
    %p122 = scmp.eq.s32.totalorder %s9, 0
    %p123 = por %p121, %p122
    %p124 = scmp.ne.s32.totalorder %s113, %s116
    %p125 = scmp.eq.s32.totalorder %s14, 1
    %p126 = por %p124, %p125
    %p127 = scmp.ne.s32.totalorder %s116, %s117
    %p128 = scmp.eq.s32.totalorder %s14, 0
    %p129 = por %p127, %p128
    %p130 = scmp.ne.s32.totalorder %s116, %s117
    %p131 = scmp.eq.s32.totalorder %s15, 1
    %p132 = por %p130, %p131
    %p134 = scmp.ne.s32.totalorder %s117, %s133
    %p135 = scmp.eq.s32.totalorder %s15, 0
    %p136 = por %p134, %p135
    %p137 = scmp.le.s32.totalorder 1, %s9
    %p138 = scmp.lt.s32.totalorder %s9, 3
    %p139 = pnand %p137, %p138
    %p140 = pneg %p139
    // Predicated region
    $region9: #{triplet_net_forward.41} parent=5 // pred_check
      _
    $region10: #{triplet_net_forward.41} parent=5 // pred_check_branch
      %142 = sbr.rel (%p139) target = $region12
    $region11: #{triplet_net_forward.41} parent=5 // pred_region
      %s143 = ssub.s32 %s9, 1
    $region12: #{triplet_net_forward.41} parent=5 // pred_fallthru
      _
    %p144 = scmp.lt.s32.totalorder %s9, 2
    // Predicated region
    $region13: #{triplet_net_forward.41} parent=5 // pred_check
      %p145 = pneg %p144
    $region14: #{triplet_net_forward.41} parent=5 // pred_check_branch
      %147 = sbr.rel (%p145) target = $region16
    $region15: #{triplet_net_forward.41} parent=5 // pred_region
      // Predicated region
      $region17: #{triplet_net_forward.41} parent=15 // pred_check
        %p148 = pneg %p43
      $region18: #{triplet_net_forward.41} parent=15 // pred_check_branch
        %150 = sbr.rel (%p148) target = $region20
      $region19: #{triplet_net_forward.41} parent=15 // pred_region
        %s151 = smul.u32 4, %s17
        %p152 = scmp.lt.s32.totalorder %s16, 1
        %s153 = scalar_select %p152, %s16, 1
        %p154 = scmp.lt.s32.totalorder %s151, 3
        %s155 = scalar_select %p154, %s151, 3
        %s156 = smul.addr %s155, 4
        %s157 = smul.addr %s153, 16
        %s158 = sadd.s32 %s156, %s157
        %s159 = smul.addr %s158, 4
        %s160 = scalar_lea.vmem %s0, %s159
        %s161 = smul.u32 4, %s17
      $region20: #{triplet_net_forward.41} parent=15 // pred_fallthru
        _
      // Predicated region
      $region21: #{triplet_net_forward.41} parent=15 // pred_check
        %p162 = pneg %p69
      $region22: #{triplet_net_forward.41} parent=15 // pred_check_branch
        %164 = sbr.rel (%p162) target = $region24
      $region23: #{triplet_net_forward.41} parent=15 // pred_region
        %p165 = scmp.lt.s32.totalorder %s16, 1
        %s166 = scalar_select %p165, %s16, 1
        %s167 = smul.addr %s166, 64
        %s168 = smul.addr %s167, 4
        %s169 = scalar_lea.vmem %s1, %s168
      $region24: #{triplet_net_forward.41} parent=15 // pred_fallthru
        _
      // Predicated region
      $region25: #{triplet_net_forward.41} parent=15 // pred_check
        %p170 = pneg %p95
      $region26: #{triplet_net_forward.41} parent=15 // pred_check_branch
        %172 = sbr.rel (%p170) target = $region28
      $region27: #{triplet_net_forward.41} parent=15 // pred_region
        %p173 = scmp.lt.s32.totalorder %s16, 1
        %s174 = scalar_select %p173, %s16, 1
        %s175 = scalar_lea.vmem %s2, %s174
      $region28: #{triplet_net_forward.41} parent=15 // pred_fallthru
        _
    $region16: #{triplet_net_forward.41} parent=5 // pred_fallthru
      _
    %p176 = scmp.le.s32.totalorder 1, %s9
    %p177 = scmp.lt.s32.totalorder %s9, 3
    %p178 = pnand %p176, %p177
    %p179 = pneg %p178
    // Predicated region
    $region29: #{triplet_net_forward.41} parent=5 // pred_check
      _
    $region30: #{triplet_net_forward.41} parent=5 // pred_check_branch
      %181 = sbr.rel (%p178) target = $region32
    $region31: #{triplet_net_forward.41} parent=5 // pred_region
      %s182 = ssub.s32 %s9, 1
      %s183 = smul.u32 4, %s19
      %p184 = scmp.lt.s32.totalorder %s18, 1
      %s185 = scalar_select %p184, %s18, 1
      %p186 = scmp.lt.s32.totalorder %s183, 3
      %s187 = scalar_select %p186, %s183, 3
      %s188 = smul.addr %s187, 4
      %s189 = smul.addr %s185, 16
      %s190 = sadd.s32 %s188, %s189
      %s191 = smul.addr %s190, 4
      %s192 = scalar_lea.vmem %s0, %s191
      %p193 = pneg %p49
      %p194 = pneg %p46
      %p195 = scmp.lt.s32.totalorder %s18, 1
      %s196 = scalar_select %p195, %s18, 1
      %s197 = smul.addr %s196, 64
      %s198 = smul.addr %s197, 4
      %s199 = scalar_lea.vmem %s1, %s198
      %p200 = pneg %p75
      %p201 = pneg %p72
      %p202 = scmp.lt.s32.totalorder %s18, 1
      %s203 = scalar_select %p202, %s18, 1
      %s204 = scalar_lea.vmem %s2, %s203
      %p205 = pneg %p101
      %p206 = pneg %p98
      %p207 = pneg %p129
      %p208 = pneg %p126
      %s209 = smul.u32 4, %s19
      %p210 = scmp.lt.s32.totalorder %s18, 1
      %s211 = scalar_select %p210, %s18, 1
      %p212 = scmp.lt.s32.totalorder %s209, 3
      %s213 = scalar_select %p212, %s209, 3
      %s214 = smul.addr %s211, 4
      %s215 = sadd.s32 %s213, %s214
      %s216 = smul.addr %s215, 8
      %s217 = scalar_lea.vmem %s3, %s216
      %s218 = smul.u32 4, %s19
      %p219 = scmp.lt.s32.totalorder %s18, 1
      %s220 = scalar_select %p219, %s18, 1
      %p221 = scmp.lt.s32.totalorder %s218, 3
      %s222 = scalar_select %p221, %s218, 3
      %s223 = smul.addr %s222, 4
      %s224 = smul.addr %s220, 16
      %s225 = sadd.s32 %s223, %s224
      %s226 = smul.addr %s225, 4
      %s227 = scalar_lea.vmem %s0, %s226
      %s228 = smul.u32 4, %s19
      %p229 = scmp.lt.s32.totalorder %s18, 1
      %s230 = scalar_select %p229, %s18, 1
      %s231 = smul.addr %s230, 64
      %s232 = smul.addr %s231, 4
      %s233 = scalar_lea.vmem %s1, %s232
      %p234 = scmp.lt.s32.totalorder %s18, 1
      %s235 = scalar_select %p234, %s18, 1
      %s236 = scalar_lea.vmem %s2, %s235
      %s237 = smul.u32 4, %s19
      %p238 = scmp.lt.s32.totalorder %s18, 1
      %s239 = scalar_select %p238, %s18, 1
      %p240 = scmp.lt.s32.totalorder %s237, 3
      %s241 = scalar_select %p240, %s237, 3
      %s242 = smul.addr %s239, 4
      %s243 = sadd.s32 %s241, %s242
      %s244 = smul.addr %s243, 8
      %s245 = scalar_lea.vmem %s3, %s244
      %s246 = smul.u32 4, %s19
      %v248 = vld [vmem:[%s227] sm:$0xff]
      %v249 = vld [vmem:[%s227 + $0x8] sm:$0xff]
      %v250 = vld [vmem:[%s227 + $0x10] sm:$0xff]
      %v251 = vld [vmem:[%s227 + $0x18] sm:$0xff]
      %v252 = vld [vmem:[%s227 + $0x20] sm:$0xff]
      %v253 = vld [vmem:[%s227 + $0x28] sm:$0xff]
      %v254 = vld [vmem:[%s227 + $0x30] sm:$0xff]
      %v255 = vld [vmem:[%s227 + $0x38] sm:$0xff]
      %v256 = vld [vmem:[%s233] sm:$0xf]
      %v257 = vld [vmem:[%s233 + $0x4] sm:$0xf]
      %v258 = vld [vmem:[%s233 + $0x8] sm:$0xf]
      %v259 = vld [vmem:[%s233 + $0xc] sm:$0xf]
      %v260 = vld [vmem:[%s233 + $0x10] sm:$0xf]
      %v261 = vld [vmem:[%s233 + $0x14] sm:$0xf]
      %v262 = vld [vmem:[%s233 + $0x18] sm:$0xf]
      %v263 = vld [vmem:[%s233 + $0x1c] sm:$0xf]
      %v264 = vld [vmem:[%s233 + $0x20] sm:$0xf]
      %v265 = vld [vmem:[%s233 + $0x24] sm:$0xf]
      %v266 = vld [vmem:[%s233 + $0x28] sm:$0xf]
      %v267 = vld [vmem:[%s233 + $0x2c] sm:$0xf]
      %v268 = vld [vmem:[%s233 + $0x30] sm:$0xf]
      %v269 = vld [vmem:[%s233 + $0x34] sm:$0xf]
      %v270 = vld [vmem:[%s233 + $0x38] sm:$0xf]
      %v271 = vld [vmem:[%s233 + $0x3c] sm:$0xf]
      %v272 = vld [vmem:[%s233 + $0x40] sm:$0xf]
      %v273 = vld [vmem:[%s233 + $0x44] sm:$0xf]
      %v274 = vld [vmem:[%s233 + $0x48] sm:$0xf]
      %v275 = vld [vmem:[%s233 + $0x4c] sm:$0xf]
      %v276 = vld [vmem:[%s233 + $0x50] sm:$0xf]
      %v277 = vld [vmem:[%s233 + $0x54] sm:$0xf]
      %v278 = vld [vmem:[%s233 + $0x58] sm:$0xf]
      %v279 = vld [vmem:[%s233 + $0x5c] sm:$0xf]
      %v280 = vld [vmem:[%s233 + $0x60] sm:$0xf]
      %v281 = vld [vmem:[%s233 + $0x64] sm:$0xf]
      %v282 = vld [vmem:[%s233 + $0x68] sm:$0xf]
      %v283 = vld [vmem:[%s233 + $0x6c] sm:$0xf]
      %v284 = vld [vmem:[%s233 + $0x70] sm:$0xf]
      %v285 = vld [vmem:[%s233 + $0x74] sm:$0xf]
      %v286 = vld [vmem:[%s233 + $0x78] sm:$0xf]
      %v287 = vld [vmem:[%s233 + $0x7c] sm:$0xf]
      %v288 = vld [vmem:[%s233 + $0x80] sm:$0xf]
      %v289 = vld [vmem:[%s233 + $0x84] sm:$0xf]
      %v290 = vld [vmem:[%s233 + $0x88] sm:$0xf]
      %v291 = vld [vmem:[%s233 + $0x8c] sm:$0xf]
      %v292 = vld [vmem:[%s233 + $0x90] sm:$0xf]
      %v293 = vld [vmem:[%s233 + $0x94] sm:$0xf]
      %v294 = vld [vmem:[%s233 + $0x98] sm:$0xf]
      %v295 = vld [vmem:[%s233 + $0x9c] sm:$0xf]
      %v296 = vld [vmem:[%s233 + $0xa0] sm:$0xf]
      %v297 = vld [vmem:[%s233 + $0xa4] sm:$0xf]
      %v298 = vld [vmem:[%s233 + $0xa8] sm:$0xf]
      %v299 = vld [vmem:[%s233 + $0xac] sm:$0xf]
      %v300 = vld [vmem:[%s233 + $0xb0] sm:$0xf]
      %v301 = vld [vmem:[%s233 + $0xb4] sm:$0xf]
      %v302 = vld [vmem:[%s233 + $0xb8] sm:$0xf]
      %v303 = vld [vmem:[%s233 + $0xbc] sm:$0xf]
      %v304 = vld [vmem:[%s233 + $0xc0] sm:$0xf]
      %v305 = vld [vmem:[%s233 + $0xc4] sm:$0xf]
      %v306 = vld [vmem:[%s233 + $0xc8] sm:$0xf]
      %v307 = vld [vmem:[%s233 + $0xcc] sm:$0xf]
      %v308 = vld [vmem:[%s233 + $0xd0] sm:$0xf]
      %v309 = vld [vmem:[%s233 + $0xd4] sm:$0xf]
      %v310 = vld [vmem:[%s233 + $0xd8] sm:$0xf]
      %v311 = vld [vmem:[%s233 + $0xdc] sm:$0xf]
      %v312 = vld [vmem:[%s233 + $0xe0] sm:$0xf]
      %v313 = vld [vmem:[%s233 + $0xe4] sm:$0xf]
      %v314 = vld [vmem:[%s233 + $0xe8] sm:$0xf]
      %v315 = vld [vmem:[%s233 + $0xec] sm:$0xf]
      %v316 = vld [vmem:[%s233 + $0xf0] sm:$0xf]
      %v317 = vld [vmem:[%s233 + $0xf4] sm:$0xf]
      %v318 = vld [vmem:[%s233 + $0xf8] sm:$0xf]
      %v319 = vld [vmem:[%s233 + $0xfc] sm:$0xf]
      %v320 = vld [vmem:[%s236] sm:$0x1]
      %v322 = vlaneseq
      %v323 = vshrl.u32 %v322, 7
      %v324 = vsub.s32 0, %v323
      %v325 = vrot.slane %v320, %v324
      %v335 = vunpack.c.l.b16 %v248
      %v336 = vunpack.c.h.b16 %v248
      %v337 = vunpack.c.l.b16 %v249
      %v338 = vunpack.c.h.b16 %v249
      %v339 = vunpack.c.l.b16 %v250
      %v340 = vunpack.c.h.b16 %v250
      %v341 = vunpack.c.l.b16 %v251
      %v342 = vunpack.c.h.b16 %v251
      %v343 = vunpack.c.l.b16 %v252
      %v344 = vunpack.c.h.b16 %v252
      %v345 = vunpack.c.l.b16 %v253
      %v346 = vunpack.c.h.b16 %v253
      %v347 = vunpack.c.l.b16 %v254
      %v348 = vunpack.c.h.b16 %v254
      %v349 = vunpack.c.l.b16 %v255
      %v350 = vunpack.c.h.b16 %v255
      %v351 = vpack.c.b16 %v339, %v335
      %v352 = vpack.c.b16 %v340, %v336
      %v353 = vpack.c.b16 %v341, %v337
      %v354 = vpack.c.b16 %v342, %v338
      %v355 = vpack.c.b16 %v347, %v343
      %v356 = vpack.c.b16 %v348, %v344
      %v357 = vpack.c.b16 %v349, %v345
      %v358 = vpack.c.b16 %v350, %v346
      %v431 = vunpack.c.l.b16 %v256
      %v432 = vunpack.c.l.b16 %v257
      %v433 = vunpack.c.l.b16 %v258
      %v434 = vunpack.c.l.b16 %v259
      %v435 = vunpack.c.l.b16 %v260
      %v436 = vunpack.c.l.b16 %v261
      %v437 = vunpack.c.l.b16 %v262
      %v438 = vunpack.c.l.b16 %v263
      %v439 = vunpack.c.l.b16 %v264
      %v440 = vunpack.c.l.b16 %v265
      %v441 = vunpack.c.l.b16 %v266
      %v442 = vunpack.c.l.b16 %v267
      %v443 = vunpack.c.l.b16 %v268
      %v444 = vunpack.c.l.b16 %v269
      %v445 = vunpack.c.l.b16 %v270
      %v446 = vunpack.c.l.b16 %v271
      %v447 = vunpack.c.l.b16 %v272
      %v448 = vunpack.c.l.b16 %v273
      %v449 = vunpack.c.l.b16 %v274
      %v450 = vunpack.c.l.b16 %v275
      %v451 = vunpack.c.l.b16 %v276
      %v452 = vunpack.c.l.b16 %v277
      %v453 = vunpack.c.l.b16 %v278
      %v454 = vunpack.c.l.b16 %v279
      %v455 = vunpack.c.l.b16 %v280
      %v456 = vunpack.c.l.b16 %v281
      %v457 = vunpack.c.l.b16 %v282
      %v458 = vunpack.c.l.b16 %v283
      %v459 = vunpack.c.l.b16 %v284
      %v460 = vunpack.c.l.b16 %v285
      %v461 = vunpack.c.l.b16 %v286
      %v462 = vunpack.c.l.b16 %v287
      %v463 = vunpack.c.l.b16 %v288
      %v464 = vunpack.c.l.b16 %v289
      %v465 = vunpack.c.l.b16 %v290
      %v466 = vunpack.c.l.b16 %v291
      %v467 = vunpack.c.l.b16 %v292
      %v468 = vunpack.c.l.b16 %v293
      %v469 = vunpack.c.l.b16 %v294
      %v470 = vunpack.c.l.b16 %v295
      %v471 = vunpack.c.l.b16 %v296
      %v472 = vunpack.c.l.b16 %v297
      %v473 = vunpack.c.l.b16 %v298
      %v474 = vunpack.c.l.b16 %v299
      %v475 = vunpack.c.l.b16 %v300
      %v476 = vunpack.c.l.b16 %v301
      %v477 = vunpack.c.l.b16 %v302
      %v478 = vunpack.c.l.b16 %v303
      %v479 = vunpack.c.l.b16 %v304
      %v480 = vunpack.c.l.b16 %v305
      %v481 = vunpack.c.l.b16 %v306
      %v482 = vunpack.c.l.b16 %v307
      %v483 = vunpack.c.l.b16 %v308
      %v484 = vunpack.c.l.b16 %v309
      %v485 = vunpack.c.l.b16 %v310
      %v486 = vunpack.c.l.b16 %v311
      %v487 = vunpack.c.l.b16 %v312
      %v488 = vunpack.c.l.b16 %v313
      %v489 = vunpack.c.l.b16 %v314
      %v490 = vunpack.c.l.b16 %v315
      %v491 = vunpack.c.l.b16 %v316
      %v492 = vunpack.c.l.b16 %v317
      %v493 = vunpack.c.l.b16 %v318
      %v494 = vunpack.c.l.b16 %v319
      %v495 = vpack.c.b16 %v432, %v431
      %v496 = vpack.c.b16 %v434, %v433
      %v497 = vpack.c.b16 %v436, %v435
      %v498 = vpack.c.b16 %v438, %v437
      %v499 = vpack.c.b16 %v440, %v439
      %v500 = vpack.c.b16 %v442, %v441
      %v501 = vpack.c.b16 %v444, %v443
      %v502 = vpack.c.b16 %v446, %v445
      %v503 = vpack.c.b16 %v448, %v447
      %v504 = vpack.c.b16 %v450, %v449
      %v505 = vpack.c.b16 %v452, %v451
      %v506 = vpack.c.b16 %v454, %v453
      %v507 = vpack.c.b16 %v456, %v455
      %v508 = vpack.c.b16 %v458, %v457
      %v509 = vpack.c.b16 %v460, %v459
      %v510 = vpack.c.b16 %v462, %v461
      %v511 = vpack.c.b16 %v464, %v463
      %v512 = vpack.c.b16 %v466, %v465
      %v513 = vpack.c.b16 %v468, %v467
      %v514 = vpack.c.b16 %v470, %v469
      %v515 = vpack.c.b16 %v472, %v471
      %v516 = vpack.c.b16 %v474, %v473
      %v517 = vpack.c.b16 %v476, %v475
      %v518 = vpack.c.b16 %v478, %v477
      %v519 = vpack.c.b16 %v480, %v479
      %v520 = vpack.c.b16 %v482, %v481
      %v521 = vpack.c.b16 %v484, %v483
      %v522 = vpack.c.b16 %v486, %v485
      %v523 = vpack.c.b16 %v488, %v487
      %v524 = vpack.c.b16 %v490, %v489
      %v525 = vpack.c.b16 %v492, %v491
      %v526 = vpack.c.b16 %v494, %v493
      %559 = vmatprep.subr.bf16.mxu0 0
      %560 = vmatpush1.bf16.msra.mxu0 %v495
      %561 = vmatprep.subr.bf16.mxu0 0
      %562 = vmatpush1.bf16.msra.mxu0 %v496
      %563 = vmatprep.subr.bf16.mxu0 0
      %564 = vmatpush1.bf16.msra.mxu0 %v497
      %565 = vmatprep.subr.bf16.mxu0 0
      %566 = vmatpush1.bf16.msra.mxu0 %v498
      %567 = vmatprep.subr.bf16.mxu0 0
      %568 = vmatpush1.bf16.msra.mxu0 %v499
      %569 = vmatprep.subr.bf16.mxu0 0
      %570 = vmatpush1.bf16.msra.mxu0 %v500
      %571 = vmatprep.subr.bf16.mxu0 0
      %572 = vmatpush1.bf16.msra.mxu0 %v501
      %573 = vmatprep.subr.bf16.mxu0 0
      %574 = vmatpush1.bf16.msra.mxu0 %v502
      %575 = vmatprep.subr.bf16.mxu0 0
      %576 = vmatpush1.bf16.msra.mxu0 %v503
      %577 = vmatprep.subr.bf16.mxu0 0
      %578 = vmatpush1.bf16.msra.mxu0 %v504
      %579 = vmatprep.subr.bf16.mxu0 0
      %580 = vmatpush1.bf16.msra.mxu0 %v505
      %581 = vmatprep.subr.bf16.mxu0 0
      %582 = vmatpush1.bf16.msra.mxu0 %v506
      %583 = vmatprep.subr.bf16.mxu0 0
      %584 = vmatpush1.bf16.msra.mxu0 %v507
      %585 = vmatprep.subr.bf16.mxu0 0
      %586 = vmatpush1.bf16.msra.mxu0 %v508
      %587 = vmatprep.subr.bf16.mxu0 0
      %588 = vmatpush1.bf16.msra.mxu0 %v509
      %589 = vmatprep.subr.bf16.mxu0 0
      %590 = vmatpush1.bf16.msra.mxu0 %v510
      %591 = vmatprep.mubr.bf16.mxu0 %v352
      %592 = vmatmul.mubr.bf16.gmra.mrb[0].mxu0 %v351
      %v593 = vpop.f32.mrb[0].mxu0
      %v594 = vadd.f32 %v325, %v593
      %v595 = vpop.f32.mrb[0].mxu0
      %v596 = vpop.f32.mrb[0].mxu0
      %v597 = vadd.f32 %v325, %v596
      %v598 = vpop.f32.mrb[0].mxu0
      %599 = vmatprep.mubr.bf16.mxu0 %v356
      %600 = vmatmul.mubr.bf16.gmra.mrb[0].mxu0 %v355
      %v601 = vpop.f32.mrb[0].mxu0
      %v602 = vadd.f32 %v325, %v601
      %v603 = vpop.f32.mrb[0].mxu0
      %v604 = vpop.f32.mrb[0].mxu0
      %v605 = vadd.f32 %v325, %v604
      %v606 = vpop.f32.mrb[0].mxu0
      %607 = vdwg.mxu0
      %608 = vmatprep.subr.bf16.mxu0 0
      %609 = vmatpush1.bf16.msra.mxu0 %v511
      %610 = vmatprep.subr.bf16.mxu0 0
      %611 = vmatpush1.bf16.msra.mxu0 %v512
      %612 = vmatprep.subr.bf16.mxu0 0
      %613 = vmatpush1.bf16.msra.mxu0 %v513
      %614 = vmatprep.subr.bf16.mxu0 0
      %615 = vmatpush1.bf16.msra.mxu0 %v514
      %616 = vmatprep.subr.bf16.mxu0 0
      %617 = vmatpush1.bf16.msra.mxu0 %v515
      %618 = vmatprep.subr.bf16.mxu0 0
      %619 = vmatpush1.bf16.msra.mxu0 %v516
      %620 = vmatprep.subr.bf16.mxu0 0
      %621 = vmatpush1.bf16.msra.mxu0 %v517
      %622 = vmatprep.subr.bf16.mxu0 0
      %623 = vmatpush1.bf16.msra.mxu0 %v518
      %624 = vmatprep.subr.bf16.mxu0 0
      %625 = vmatpush1.bf16.msra.mxu0 %v519
      %626 = vmatprep.subr.bf16.mxu0 0
      %627 = vmatpush1.bf16.msra.mxu0 %v520
      %628 = vmatprep.subr.bf16.mxu0 0
      %629 = vmatpush1.bf16.msra.mxu0 %v521
      %630 = vmatprep.subr.bf16.mxu0 0
      %631 = vmatpush1.bf16.msra.mxu0 %v522
      %632 = vmatprep.subr.bf16.mxu0 0
      %633 = vmatpush1.bf16.msra.mxu0 %v523
      %634 = vmatprep.subr.bf16.mxu0 0
      %635 = vmatpush1.bf16.msra.mxu0 %v524
      %636 = vmatprep.subr.bf16.mxu0 0
      %637 = vmatpush1.bf16.msra.mxu0 %v525
      %638 = vmatprep.subr.bf16.mxu0 0
      %639 = vmatpush1.bf16.msra.mxu0 %v526
      %640 = vmatprep.mubr.bf16.mxu0 %v354
      %641 = vmatmul.mubr.bf16.gmra.mrb[0].mxu0 %v353
      %v642 = vpop.f32.mrb[0].mxu0
      %v643 = vadd.f32 %v594, %v642
      %v644 = vpop.f32.mrb[0].mxu0
      %v645 = vpop.f32.mrb[0].mxu0
      %v646 = vadd.f32 %v597, %v645
      %v647 = vpop.f32.mrb[0].mxu0
      %648 = vmatprep.mubr.bf16.mxu0 %v358
      %649 = vmatmul.mubr.bf16.gmra.mrb[0].mxu0 %v357
      %v650 = vpop.f32.mrb[0].mxu0
      %v651 = vadd.f32 %v602, %v650
      %v652 = vpop.f32.mrb[0].mxu0
      %v653 = vpop.f32.mrb[0].mxu0
      %v654 = vadd.f32 %v605, %v653
      %v655 = vpop.f32.mrb[0].mxu0
      %656 = vdwg.mxu0
      %v657 = vmax.f32 %v643, 0.0
      %v658 = vmax.f32 %v646, 0.0
      %v659 = vmax.f32 %v651, 0.0
      %v660 = vmax.f32 %v654, 0.0
      %661 = vst [vmem:[%s245] sm:$0xff] %v657
      %662 = vst [vmem:[%s245 + $0x8] sm:$0xff] %v658
      %663 = vst [vmem:[%s245 + $0x10] sm:$0xff] %v659
      %664 = vst [vmem:[%s245 + $0x18] sm:$0xff] %v660
      %s665 = smul.u32 4, %s19
      %p666 = scmp.lt.s32.totalorder %s18, 1
      %s667 = scalar_select %p666, %s18, 1
      %p668 = scmp.lt.s32.totalorder %s665, 3
      %s669 = scalar_select %p668, %s665, 3
      %s670 = smul.addr %s667, 4
      %s671 = sadd.s32 %s669, %s670
      %s672 = smul.addr %s671, 8
      %s673 = scalar_lea.vmem %s3, %s672
      // Predicated region
      $region33: #{triplet_net_forward.41} parent=31 // pred_check
        %p674 = pneg %p126
      $region34: #{triplet_net_forward.41} parent=31 // pred_check_branch
        %676 = sbr.rel (%p674) target = $region36
      $region35: #{triplet_net_forward.41} parent=31 // pred_region
        %s677 = smul.u32 4, %s19
      $region36: #{triplet_net_forward.41} parent=31 // pred_fallthru
        _
    $region32: #{triplet_net_forward.41} parent=5 // pred_fallthru
      _
    %p678 = scmp.le.s32.totalorder 2, %s9
    // Predicated region
    $region37: #{triplet_net_forward.41} parent=5 // pred_check
      %p679 = pneg %p678
    $region38: #{triplet_net_forward.41} parent=5 // pred_check_branch
      %681 = sbr.rel (%p679) target = $region40
    $region39: #{triplet_net_forward.41} parent=5 // pred_region
      %s682 = ssub.s32 %s9, 2
      // Predicated region
      $region41: #{triplet_net_forward.41} parent=39 // pred_check
        %p683 = pneg %p132
      $region42: #{triplet_net_forward.41} parent=39 // pred_check_branch
        %685 = sbr.rel (%p683) target = $region44
      $region43: #{triplet_net_forward.41} parent=39 // pred_region
        %s686 = smul.u32 4, %s21
        %p687 = scmp.lt.s32.totalorder %s20, 1
        %s688 = scalar_select %p687, %s20, 1
        %p689 = scmp.lt.s32.totalorder %s686, 3
        %s690 = scalar_select %p689, %s686, 3
        %s691 = smul.addr %s688, 4
        %s692 = sadd.s32 %s690, %s691
        %s693 = smul.addr %s692, 8
        %s694 = scalar_lea.vmem %s3, %s693
      $region44: #{triplet_net_forward.41} parent=39 // pred_fallthru
        _
    $region40: #{triplet_net_forward.41} parent=5 // pred_fallthru
      _
  $region6: #{triplet_net_forward.41} parent=0 // loop_footer
    %s13 = sadd.s32 1, %s9
  $region7: #{triplet_net_forward.41} parent=0 // loop_footer_branch
    %8 = sbr.rel target = $region3
  $region8: #{triplet_net_forward.41} parent=0 // loop_exit
    _

// kernel: triplet_net_forward.38
$region0: #{triplet_net_forward.38}
  #allocation0 [shape = 'u32[]', space=smem, size = 0x4, offset = 0x4, fixed_abs, tag = 'smem constant byte address 0x4 - core index']
  #allocation1 [shape = 'u32[144,128]{1,0:T(1,128)}', space=vmem, size = 0x12000, scoped, tag = 'internal scratch']
  %s0 = inlined_call_operand.vmem [shape: bf16[2,32,1152], index: 0, kind: input, shape index: {}]
  %s1 = inlined_call_operand.vmem [shape: bf16[2,1152,128], index: 1, kind: input, shape index: {}]
  %s2 = inlined_call_operand.vmem [shape: f32[2,1,128], index: 2, kind: input, shape index: {}]
  %s3 = inlined_call_operand.vmem [shape: f32[2,32,128], index: 3, kind: output, shape index: {}]
  %s4 = sld [smem:[#allocation0]]
  $region45: #{triplet_net_forward.38} parent=0
    _
  %s6 = ssub.s32 1, %s4
  %s7 = scalar_select 0, %s6, %s4
  loop: start=0, step=1, limit=4
  $region2: #{triplet_net_forward.38} parent=0 // loop_pre_header
    _
  $region3: #{triplet_net_forward.38} parent=0 // loop_header
    %s9 = sphi 0, %s13
    %p10 = scmp.ge.s32.totalorder %s9, 4
    %s16 = sphi 0, %s28
    %s17 = sphi 0, %s24
    %s18 = sphi 0, %s16
    %s19 = sphi 0, %s17
    %s20 = sphi 0, %s18
    %s21 = sphi 0, %s19
    %s33 = sphi 0, %s35
    %s36 = sphi 0, %s33
    %s37 = sphi 0, %s36
    %s53 = sphi 0, %s37
    %s59 = sphi 0, %s61
    %s62 = sphi 0, %s59
    %s63 = sphi 0, %s62
    %s79 = sphi 0, %s63
    %s85 = sphi 0, %s87
    %s88 = sphi 0, %s85
    %s89 = sphi 0, %s88
    %s105 = sphi 0, %s89
    %s113 = sphi 0, %s115
    %s116 = sphi 0, %s113
    %s117 = sphi 0, %s116
    %s133 = sphi 0, %s117
  $region4: #{triplet_net_forward.38} parent=0 // loop_header_branch
    %12 = sbr.rel (%p10) target = $region8
  $region5: #{triplet_net_forward.38} parent=0 // loop_body
    %s14 = ssub.s32 %s9, 1
    %s15 = ssub.s32 %s9, 2
    %s22 = sadd.s32 1, %s17
    %p23 = scmp.ge.s32.totalorder %s22, 1
    %s24 = scalar_select %p23, 0, %s22
    %s25 = sadd.s32 1, %s16
    %s26 = scalar_select %p23, %s25, %s16
    %p27 = scmp.ge.s32.totalorder %s26, 2
    %s28 = scalar_select %p27, 0, %s26
    %s29 = ssub.s32 %s16, %s28
    %s30 = ssub.s32 %s17, %s24
    %s31 = sor.u32 %s29, %s30
    %p32 = scmp.eq.s32.totalorder %s31, 0
    %s34 = sadd.s32 %s33, 1
    %s35 = scalar_select %p32, %s33, %s34
    %p38 = pneg %p32
    %p39 = scmp.eq.s32.totalorder %s9, 1
    %p40 = por %p38, %p39
    %p41 = scmp.ne.s32.totalorder %s33, %s36
    %p42 = scmp.eq.s32.totalorder %s9, 0
    %p43 = por %p41, %p42
    %p44 = scmp.ne.s32.totalorder %s33, %s36
    %p45 = scmp.eq.s32.totalorder %s14, 1
    %p46 = por %p44, %p45
    %p47 = scmp.ne.s32.totalorder %s36, %s37
    %p48 = scmp.eq.s32.totalorder %s14, 0
    %p49 = por %p47, %p48
    %p50 = scmp.ne.s32.totalorder %s36, %s37
    %p51 = scmp.eq.s32.totalorder %s15, 1
    %p52 = por %p50, %p51
    %p54 = scmp.ne.s32.totalorder %s37, %s53
    %p55 = scmp.eq.s32.totalorder %s15, 0
    %p56 = por %p54, %p55
    %s57 = ssub.s32 %s16, %s28
    %p58 = scmp.eq.s32.totalorder %s57, 0
    %s60 = sadd.s32 %s59, 1
    %s61 = scalar_select %p58, %s59, %s60
    %p64 = pneg %p58
    %p65 = scmp.eq.s32.totalorder %s9, 1
    %p66 = por %p64, %p65
    %p67 = scmp.ne.s32.totalorder %s59, %s62
    %p68 = scmp.eq.s32.totalorder %s9, 0
    %p69 = por %p67, %p68
    %p70 = scmp.ne.s32.totalorder %s59, %s62
    %p71 = scmp.eq.s32.totalorder %s14, 1
    %p72 = por %p70, %p71
    %p73 = scmp.ne.s32.totalorder %s62, %s63
    %p74 = scmp.eq.s32.totalorder %s14, 0
    %p75 = por %p73, %p74
    %p76 = scmp.ne.s32.totalorder %s62, %s63
    %p77 = scmp.eq.s32.totalorder %s15, 1
    %p78 = por %p76, %p77
    %p80 = scmp.ne.s32.totalorder %s63, %s79
    %p81 = scmp.eq.s32.totalorder %s15, 0
    %p82 = por %p80, %p81
    %s83 = ssub.s32 %s16, %s28
    %p84 = scmp.eq.s32.totalorder %s83, 0
    %s86 = sadd.s32 %s85, 1
    %s87 = scalar_select %p84, %s85, %s86
    %p90 = pneg %p84
    %p91 = scmp.eq.s32.totalorder %s9, 1
    %p92 = por %p90, %p91
    %p93 = scmp.ne.s32.totalorder %s85, %s88
    %p94 = scmp.eq.s32.totalorder %s9, 0
    %p95 = por %p93, %p94
    %p96 = scmp.ne.s32.totalorder %s85, %s88
    %p97 = scmp.eq.s32.totalorder %s14, 1
    %p98 = por %p96, %p97
    %p99 = scmp.ne.s32.totalorder %s88, %s89
    %p100 = scmp.eq.s32.totalorder %s14, 0
    %p101 = por %p99, %p100
    %p102 = scmp.ne.s32.totalorder %s88, %s89
    %p103 = scmp.eq.s32.totalorder %s15, 1
    %p104 = por %p102, %p103
    %p106 = scmp.ne.s32.totalorder %s89, %s105
    %p107 = scmp.eq.s32.totalorder %s15, 0
    %p108 = por %p106, %p107
    %s109 = ssub.s32 %s16, %s28
    %s110 = ssub.s32 %s17, %s24
    %s111 = sor.u32 %s109, %s110
    %p112 = scmp.eq.s32.totalorder %s111, 0
    %s114 = sadd.s32 %s113, 1
    %s115 = scalar_select %p112, %s113, %s114
    %p118 = pneg %p112
    %p119 = scmp.eq.s32.totalorder %s9, 1
    %p120 = por %p118, %p119
    %p121 = scmp.ne.s32.totalorder %s113, %s116
    %p122 = scmp.eq.s32.totalorder %s9, 0
    %p123 = por %p121, %p122
    %p124 = scmp.ne.s32.totalorder %s113, %s116
    %p125 = scmp.eq.s32.totalorder %s14, 1
    %p126 = por %p124, %p125
    %p127 = scmp.ne.s32.totalorder %s116, %s117
    %p128 = scmp.eq.s32.totalorder %s14, 0
    %p129 = por %p127, %p128
    %p130 = scmp.ne.s32.totalorder %s116, %s117
    %p131 = scmp.eq.s32.totalorder %s15, 1
    %p132 = por %p130, %p131
    %p134 = scmp.ne.s32.totalorder %s117, %s133
    %p135 = scmp.eq.s32.totalorder %s15, 0
    %p136 = por %p134, %p135
    %p137 = scmp.le.s32.totalorder 1, %s9
    %p138 = scmp.lt.s32.totalorder %s9, 3
    %p139 = pnand %p137, %p138
    %p140 = pneg %p139
    // Predicated region
    $region9: #{triplet_net_forward.38} parent=5 // pred_check
      _
    $region10: #{triplet_net_forward.38} parent=5 // pred_check_branch
      %142 = sbr.rel (%p139) target = $region12
    $region11: #{triplet_net_forward.38} parent=5 // pred_region
      %s143 = ssub.s32 %s9, 1
    $region12: #{triplet_net_forward.38} parent=5 // pred_fallthru
      _
    %p144 = scmp.lt.s32.totalorder %s9, 2
    // Predicated region
    $region13: #{triplet_net_forward.38} parent=5 // pred_check
      %p145 = pneg %p144
    $region14: #{triplet_net_forward.38} parent=5 // pred_check_branch
      %147 = sbr.rel (%p145) target = $region16
    $region15: #{triplet_net_forward.38} parent=5 // pred_region
      // Predicated region
      $region17: #{triplet_net_forward.38} parent=15 // pred_check
        %p148 = pneg %p43
      $region18: #{triplet_net_forward.38} parent=15 // pred_check_branch
        %150 = sbr.rel (%p148) target = $region20
      $region19: #{triplet_net_forward.38} parent=15 // pred_region
        %s151 = smul.u32 4, %s17
        %p152 = scmp.lt.s32.totalorder %s16, 1
        %s153 = scalar_select %p152, %s16, 1
        %p154 = scmp.lt.s32.totalorder %s151, 3
        %s155 = scalar_select %p154, %s151, 3
        %s156 = smul.addr %s155, 9
        %s157 = smul.addr %s153, 36
        %s158 = sadd.s32 %s156, %s157
        %s159 = smul.addr %s158, 4
        %s160 = scalar_lea.vmem %s0, %s159
        %s161 = smul.u32 4, %s17
      $region20: #{triplet_net_forward.38} parent=15 // pred_fallthru
        _
      // Predicated region
      $region21: #{triplet_net_forward.38} parent=15 // pred_check
        %p162 = pneg %p69
      $region22: #{triplet_net_forward.38} parent=15 // pred_check_branch
        %164 = sbr.rel (%p162) target = $region24
      $region23: #{triplet_net_forward.38} parent=15 // pred_region
        %p165 = scmp.lt.s32.totalorder %s16, 1
        %s166 = scalar_select %p165, %s16, 1
        %s167 = smul.addr %s166, 144
        %s168 = smul.addr %s167, 4
        %s169 = scalar_lea.vmem %s1, %s168
      $region24: #{triplet_net_forward.38} parent=15 // pred_fallthru
        _
      // Predicated region
      $region25: #{triplet_net_forward.38} parent=15 // pred_check
        %p170 = pneg %p95
      $region26: #{triplet_net_forward.38} parent=15 // pred_check_branch
        %172 = sbr.rel (%p170) target = $region28
      $region27: #{triplet_net_forward.38} parent=15 // pred_region
        %p173 = scmp.lt.s32.totalorder %s16, 1
        %s174 = scalar_select %p173, %s16, 1
        %s175 = scalar_lea.vmem %s2, %s174
      $region28: #{triplet_net_forward.38} parent=15 // pred_fallthru
        _
    $region16: #{triplet_net_forward.38} parent=5 // pred_fallthru
      _
    %p176 = scmp.le.s32.totalorder 1, %s9
    %p177 = scmp.lt.s32.totalorder %s9, 3
    %p178 = pnand %p176, %p177
    %p179 = pneg %p178
    // Predicated region
    $region29: #{triplet_net_forward.38} parent=5 // pred_check
      _
    $region30: #{triplet_net_forward.38} parent=5 // pred_check_branch
      %181 = sbr.rel (%p178) target = $region32
    $region31: #{triplet_net_forward.38} parent=5 // pred_region
      %s182 = ssub.s32 %s9, 1
      %s183 = smul.u32 4, %s19
      %p184 = scmp.lt.s32.totalorder %s18, 1
      %s185 = scalar_select %p184, %s18, 1
      %p186 = scmp.lt.s32.totalorder %s183, 3
      %s187 = scalar_select %p186, %s183, 3
      %s188 = smul.addr %s187, 9
      %s189 = smul.addr %s185, 36
      %s190 = sadd.s32 %s188, %s189
      %s191 = smul.addr %s190, 4
      %s192 = scalar_lea.vmem %s0, %s191
      %p193 = pneg %p49
      %p194 = pneg %p46
      %p195 = scmp.lt.s32.totalorder %s18, 1
      %s196 = scalar_select %p195, %s18, 1
      %s197 = smul.addr %s196, 144
      %s198 = smul.addr %s197, 4
      %s199 = scalar_lea.vmem %s1, %s198
      %p200 = pneg %p75
      %p201 = pneg %p72
      %p202 = scmp.lt.s32.totalorder %s18, 1
      %s203 = scalar_select %p202, %s18, 1
      %s204 = scalar_lea.vmem %s2, %s203
      %p205 = pneg %p101
      %p206 = pneg %p98
      %p207 = pneg %p129
      %p208 = pneg %p126
      %s209 = smul.u32 4, %s19
      %p210 = scmp.lt.s32.totalorder %s18, 1
      %s211 = scalar_select %p210, %s18, 1
      %p212 = scmp.lt.s32.totalorder %s209, 3
      %s213 = scalar_select %p212, %s209, 3
      %s214 = smul.addr %s211, 4
      %s215 = sadd.s32 %s213, %s214
      %s216 = smul.addr %s215, 8
      %s217 = scalar_lea.vmem %s3, %s216
      %s218 = smul.u32 4, %s19
      %p219 = scmp.lt.s32.totalorder %s18, 1
      %s220 = scalar_select %p219, %s18, 1
      %p221 = scmp.lt.s32.totalorder %s218, 3
      %s222 = scalar_select %p221, %s218, 3
      %s223 = smul.addr %s222, 9
      %s224 = smul.addr %s220, 36
      %s225 = sadd.s32 %s223, %s224
      %s226 = smul.addr %s225, 4
      %s227 = scalar_lea.vmem %s0, %s226
      %s228 = smul.u32 4, %s19
      %p229 = scmp.lt.s32.totalorder %s18, 1
      %s230 = scalar_select %p229, %s18, 1
      %s231 = smul.addr %s230, 144
      %s232 = smul.addr %s231, 4
      %s233 = scalar_lea.vmem %s1, %s232
      %p234 = scmp.lt.s32.totalorder %s18, 1
      %s235 = scalar_select %p234, %s18, 1
      %s236 = scalar_lea.vmem %s2, %s235
      %s237 = smul.u32 4, %s19
      %p238 = scmp.lt.s32.totalorder %s18, 1
      %s239 = scalar_select %p238, %s18, 1
      %p240 = scmp.lt.s32.totalorder %s237, 3
      %s241 = scalar_select %p240, %s237, 3
      %s242 = smul.addr %s239, 4
      %s243 = sadd.s32 %s241, %s242
      %s244 = smul.addr %s243, 8
      %s245 = scalar_lea.vmem %s3, %s244
      %s246 = smul.u32 4, %s19
      %v248 = vld [vmem:[%s227] sm:$0xff]
      %v249 = vld [vmem:[%s227 + $0x8] sm:$0xff]
      %v250 = vld [vmem:[%s227 + $0x10] sm:$0xff]
      %v251 = vld [vmem:[%s227 + $0x18] sm:$0xff]
      %v252 = vld [vmem:[%s227 + $0x20] sm:$0xf]
      %v253 = vld [vmem:[%s227 + $0x24] sm:$0xff]
      %v254 = vld [vmem:[%s227 + $0x2c] sm:$0xff]
      %v255 = vld [vmem:[%s227 + $0x34] sm:$0xff]
      %v256 = vld [vmem:[%s227 + $0x3c] sm:$0xff]
      %v257 = vld [vmem:[%s227 + $0x44] sm:$0xf]
      %v258 = vld [vmem:[%s227 + $0x48] sm:$0xff]
      %v259 = vld [vmem:[%s227 + $0x50] sm:$0xff]
      %v260 = vld [vmem:[%s227 + $0x58] sm:$0xff]
      %v261 = vld [vmem:[%s227 + $0x60] sm:$0xff]
      %v262 = vld [vmem:[%s227 + $0x68] sm:$0xf]
      %v263 = vld [vmem:[%s227 + $0x6c] sm:$0xff]
      %v264 = vld [vmem:[%s227 + $0x74] sm:$0xff]
      %v265 = vld [vmem:[%s227 + $0x7c] sm:$0xff]
      %v266 = vld [vmem:[%s227 + $0x84] sm:$0xff]
      %v267 = vld [vmem:[%s227 + $0x8c] sm:$0xf]
      %v268 = vld [vmem:[%s233] sm:$0xf]
      %v269 = vld [vmem:[%s233 + $0x4] sm:$0xf]
      %v270 = vld [vmem:[%s233 + $0x8] sm:$0xf]
      %v271 = vld [vmem:[%s233 + $0xc] sm:$0xf]
      %v272 = vld [vmem:[%s233 + $0x10] sm:$0xf]
      %v273 = vld [vmem:[%s233 + $0x14] sm:$0xf]
      %v274 = vld [vmem:[%s233 + $0x18] sm:$0xf]
      %v275 = vld [vmem:[%s233 + $0x1c] sm:$0xf]
      %v276 = vld [vmem:[%s233 + $0x20] sm:$0xf]
      %v277 = vld [vmem:[%s233 + $0x24] sm:$0xf]
      %v278 = vld [vmem:[%s233 + $0x28] sm:$0xf]
      %v279 = vld [vmem:[%s233 + $0x2c] sm:$0xf]
      %v280 = vld [vmem:[%s233 + $0x30] sm:$0xf]
      %v281 = vld [vmem:[%s233 + $0x34] sm:$0xf]
      %v282 = vld [vmem:[%s233 + $0x38] sm:$0xf]
      %v283 = vld [vmem:[%s233 + $0x3c] sm:$0xf]
      %v284 = vld [vmem:[%s233 + $0x40] sm:$0xf]
      %v285 = vld [vmem:[%s233 + $0x44] sm:$0xf]
      %v286 = vld [vmem:[%s233 + $0x48] sm:$0xf]
      %v287 = vld [vmem:[%s233 + $0x4c] sm:$0xf]
      %v288 = vld [vmem:[%s233 + $0x50] sm:$0xf]
      %v289 = vld [vmem:[%s233 + $0x54] sm:$0xf]
      %v290 = vld [vmem:[%s233 + $0x58] sm:$0xf]
      %v291 = vld [vmem:[%s233 + $0x5c] sm:$0xf]
      %v292 = vld [vmem:[%s233 + $0x60] sm:$0xf]
      %v293 = vld [vmem:[%s233 + $0x64] sm:$0xf]
      %v294 = vld [vmem:[%s233 + $0x68] sm:$0xf]
      %v295 = vld [vmem:[%s233 + $0x6c] sm:$0xf]
      %v296 = vld [vmem:[%s233 + $0x70] sm:$0xf]
      %v297 = vld [vmem:[%s233 + $0x74] sm:$0xf]
      %v298 = vld [vmem:[%s233 + $0x78] sm:$0xf]
      %v299 = vld [vmem:[%s233 + $0x7c] sm:$0xf]
      %v300 = vld [vmem:[%s233 + $0x80] sm:$0xf]
      %v301 = vld [vmem:[%s233 + $0x84] sm:$0xf]
      %v302 = vld [vmem:[%s233 + $0x88] sm:$0xf]
      %v303 = vld [vmem:[%s233 + $0x8c] sm:$0xf]
      %v304 = vld [vmem:[%s233 + $0x90] sm:$0xf]
      %v305 = vld [vmem:[%s233 + $0x94] sm:$0xf]
      %v306 = vld [vmem:[%s233 + $0x98] sm:$0xf]
      %v307 = vld [vmem:[%s233 + $0x9c] sm:$0xf]
      %v308 = vld [vmem:[%s233 + $0xa0] sm:$0xf]
      %v309 = vld [vmem:[%s233 + $0xa4] sm:$0xf]
      %v310 = vld [vmem:[%s233 + $0xa8] sm:$0xf]
      %v311 = vld [vmem:[%s233 + $0xac] sm:$0xf]
      %v312 = vld [vmem:[%s233 + $0xb0] sm:$0xf]
      %v313 = vld [vmem:[%s233 + $0xb4] sm:$0xf]
      %v314 = vld [vmem:[%s233 + $0xb8] sm:$0xf]
      %v315 = vld [vmem:[%s233 + $0xbc] sm:$0xf]
      %v316 = vld [vmem:[%s233 + $0xc0] sm:$0xf]
      %v317 = vld [vmem:[%s233 + $0xc4] sm:$0xf]
      %v318 = vld [vmem:[%s233 + $0xc8] sm:$0xf]
      %v319 = vld [vmem:[%s233 + $0xcc] sm:$0xf]
      %v320 = vld [vmem:[%s233 + $0xd0] sm:$0xf]
      %v321 = vld [vmem:[%s233 + $0xd4] sm:$0xf]
      %v322 = vld [vmem:[%s233 + $0xd8] sm:$0xf]
      %v323 = vld [vmem:[%s233 + $0xdc] sm:$0xf]
      %v324 = vld [vmem:[%s233 + $0xe0] sm:$0xf]
      %v325 = vld [vmem:[%s233 + $0xe4] sm:$0xf]
      %v326 = vld [vmem:[%s233 + $0xe8] sm:$0xf]
      %v327 = vld [vmem:[%s233 + $0xec] sm:$0xf]
      %v328 = vld [vmem:[%s233 + $0xf0] sm:$0xf]
      %v329 = vld [vmem:[%s233 + $0xf4] sm:$0xf]
      %v330 = vld [vmem:[%s233 + $0xf8] sm:$0xf]
      %v331 = vld [vmem:[%s233 + $0xfc] sm:$0xf]
      %v332 = vld [vmem:[%s233 + $0x100] sm:$0xf]
      %v333 = vld [vmem:[%s233 + $0x104] sm:$0xf]
      %v334 = vld [vmem:[%s233 + $0x108] sm:$0xf]
      %v335 = vld [vmem:[%s233 + $0x10c] sm:$0xf]
      %v336 = vld [vmem:[%s233 + $0x110] sm:$0xf]
      %v337 = vld [vmem:[%s233 + $0x114] sm:$0xf]
      %v338 = vld [vmem:[%s233 + $0x118] sm:$0xf]
      %v339 = vld [vmem:[%s233 + $0x11c] sm:$0xf]
      %v340 = vld [vmem:[%s233 + $0x120] sm:$0xf]
      %v341 = vld [vmem:[%s233 + $0x124] sm:$0xf]
      %v342 = vld [vmem:[%s233 + $0x128] sm:$0xf]
      %v343 = vld [vmem:[%s233 + $0x12c] sm:$0xf]
      %v344 = vld [vmem:[%s233 + $0x130] sm:$0xf]
      %v345 = vld [vmem:[%s233 + $0x134] sm:$0xf]
      %v346 = vld [vmem:[%s233 + $0x138] sm:$0xf]
      %v347 = vld [vmem:[%s233 + $0x13c] sm:$0xf]
      %v348 = vld [vmem:[%s233 + $0x140] sm:$0xf]
      %v349 = vld [vmem:[%s233 + $0x144] sm:$0xf]
      %v350 = vld [vmem:[%s233 + $0x148] sm:$0xf]
      %v351 = vld [vmem:[%s233 + $0x14c] sm:$0xf]
      %v352 = vld [vmem:[%s233 + $0x150] sm:$0xf]
      %v353 = vld [vmem:[%s233 + $0x154] sm:$0xf]
      %v354 = vld [vmem:[%s233 + $0x158] sm:$0xf]
      %v355 = vld [vmem:[%s233 + $0x15c] sm:$0xf]
      %v356 = vld [vmem:[%s233 + $0x160] sm:$0xf]
      %v357 = vld [vmem:[%s233 + $0x164] sm:$0xf]
      %v358 = vld [vmem:[%s233 + $0x168] sm:$0xf]
      %v359 = vld [vmem:[%s233 + $0x16c] sm:$0xf]
      %v360 = vld [vmem:[%s233 + $0x170] sm:$0xf]
      %v361 = vld [vmem:[%s233 + $0x174] sm:$0xf]
      %v362 = vld [vmem:[%s233 + $0x178] sm:$0xf]
      %v363 = vld [vmem:[%s233 + $0x17c] sm:$0xf]
      %v364 = vld [vmem:[%s233 + $0x180] sm:$0xf]
      %v365 = vld [vmem:[%s233 + $0x184] sm:$0xf]
      %v366 = vld [vmem:[%s233 + $0x188] sm:$0xf]
      %v367 = vld [vmem:[%s233 + $0x18c] sm:$0xf]
      %v368 = vld [vmem:[%s233 + $0x190] sm:$0xf]
      %v369 = vld [vmem:[%s233 + $0x194] sm:$0xf]
      %v370 = vld [vmem:[%s233 + $0x198] sm:$0xf]
      %v371 = vld [vmem:[%s233 + $0x19c] sm:$0xf]
      %v372 = vld [vmem:[%s233 + $0x1a0] sm:$0xf]
      %v373 = vld [vmem:[%s233 + $0x1a4] sm:$0xf]
      %v374 = vld [vmem:[%s233 + $0x1a8] sm:$0xf]
      %v375 = vld [vmem:[%s233 + $0x1ac] sm:$0xf]
      %v376 = vld [vmem:[%s233 + $0x1b0] sm:$0xf]
      %v377 = vld [vmem:[%s233 + $0x1b4] sm:$0xf]
      %v378 = vld [vmem:[%s233 + $0x1b8] sm:$0xf]
      %v379 = vld [vmem:[%s233 + $0x1bc] sm:$0xf]
      %v380 = vld [vmem:[%s233 + $0x1c0] sm:$0xf]
      %v381 = vld [vmem:[%s233 + $0x1c4] sm:$0xf]
      %v382 = vld [vmem:[%s233 + $0x1c8] sm:$0xf]
      %v383 = vld [vmem:[%s233 + $0x1cc] sm:$0xf]
      %v384 = vld [vmem:[%s233 + $0x1d0] sm:$0xf]
      %v385 = vld [vmem:[%s233 + $0x1d4] sm:$0xf]
      %v386 = vld [vmem:[%s233 + $0x1d8] sm:$0xf]
      %v387 = vld [vmem:[%s233 + $0x1dc] sm:$0xf]
      %v388 = vld [vmem:[%s233 + $0x1e0] sm:$0xf]
      %v389 = vld [vmem:[%s233 + $0x1e4] sm:$0xf]
      %v390 = vld [vmem:[%s233 + $0x1e8] sm:$0xf]
      %v391 = vld [vmem:[%s233 + $0x1ec] sm:$0xf]
      %v392 = vld [vmem:[%s233 + $0x1f0] sm:$0xf]
      %v393 = vld [vmem:[%s233 + $0x1f4] sm:$0xf]
      %v394 = vld [vmem:[%s233 + $0x1f8] sm:$0xf]
      %v395 = vld [vmem:[%s233 + $0x1fc] sm:$0xf]
      %v396 = vld [vmem:[%s233 + $0x200] sm:$0xf]
      %v397 = vld [vmem:[%s233 + $0x204] sm:$0xf]
      %v398 = vld [vmem:[%s233 + $0x208] sm:$0xf]
      %v399 = vld [vmem:[%s233 + $0x20c] sm:$0xf]
      %v400 = vld [vmem:[%s233 + $0x210] sm:$0xf]
      %v401 = vld [vmem:[%s233 + $0x214] sm:$0xf]
      %v402 = vld [vmem:[%s233 + $0x218] sm:$0xf]
      %v403 = vld [vmem:[%s233 + $0x21c] sm:$0xf]
      %v404 = vld [vmem:[%s233 + $0x220] sm:$0xf]
      %v405 = vld [vmem:[%s233 + $0x224] sm:$0xf]
      %v406 = vld [vmem:[%s233 + $0x228] sm:$0xf]
      %v407 = vld [vmem:[%s233 + $0x22c] sm:$0xf]
      %v408 = vld [vmem:[%s233 + $0x230] sm:$0xf]
      %v409 = vld [vmem:[%s233 + $0x234] sm:$0xf]
      %v410 = vld [vmem:[%s233 + $0x238] sm:$0xf]
      %v411 = vld [vmem:[%s233 + $0x23c] sm:$0xf]
      %v412 = vld [vmem:[%s236] sm:$0x1]
      %v414 = vlaneseq
      %v415 = vshrl.u32 %v414, 7
      %v416 = vsub.s32 0, %v415
      %v417 = vrot.slane %v412, %v416
      %v439 = vunpack.c.l.b16 %v248
      %v440 = vunpack.c.h.b16 %v248
      %v441 = vunpack.c.l.b16 %v249
      %v442 = vunpack.c.h.b16 %v249
      %v443 = vunpack.c.l.b16 %v250
      %v444 = vunpack.c.h.b16 %v250
      %v445 = vunpack.c.l.b16 %v251
      %v446 = vunpack.c.h.b16 %v251
      %v447 = vunpack.c.l.b16 %v252
      %v448 = vunpack.c.l.b16 %v253
      %v449 = vunpack.c.h.b16 %v253
      %v450 = vunpack.c.l.b16 %v254
      %v451 = vunpack.c.h.b16 %v254
      %v452 = vunpack.c.l.b16 %v255
      %v453 = vunpack.c.h.b16 %v255
      %v454 = vunpack.c.l.b16 %v256
      %v455 = vunpack.c.h.b16 %v256
      %v456 = vunpack.c.l.b16 %v257
      %v457 = vunpack.c.l.b16 %v258
      %v458 = vunpack.c.h.b16 %v258
      %v459 = vunpack.c.l.b16 %v259
      %v460 = vunpack.c.h.b16 %v259
      %v461 = vunpack.c.l.b16 %v260
      %v462 = vunpack.c.h.b16 %v260
      %v463 = vunpack.c.l.b16 %v261
      %v464 = vunpack.c.h.b16 %v261
      %v465 = vunpack.c.l.b16 %v262
      %v466 = vunpack.c.l.b16 %v263
      %v467 = vunpack.c.h.b16 %v263
      %v468 = vunpack.c.l.b16 %v264
      %v469 = vunpack.c.h.b16 %v264
      %v470 = vunpack.c.l.b16 %v265
      %v471 = vunpack.c.h.b16 %v265
      %v472 = vunpack.c.l.b16 %v266
      %v473 = vunpack.c.h.b16 %v266
      %v474 = vunpack.c.l.b16 %v267
      %v475 = vpack.c.b16 %v448, %v439
      %v476 = vpack.c.b16 %v449, %v440
      %v477 = vpack.c.b16 %v450, %v441
      %v478 = vpack.c.b16 %v451, %v442
      %v479 = vpack.c.b16 %v452, %v443
      %v480 = vpack.c.b16 %v453, %v444
      %v481 = vpack.c.b16 %v454, %v445
      %v482 = vpack.c.b16 %v455, %v446
      %v483 = vpack.c.b16 %v456, %v447
      %v484 = vpack.c.b16 %v466, %v457
      %v485 = vpack.c.b16 %v467, %v458
      %v486 = vpack.c.b16 %v468, %v459
      %v487 = vpack.c.b16 %v469, %v460
      %v488 = vpack.c.b16 %v470, %v461
      %v489 = vpack.c.b16 %v471, %v462
      %v490 = vpack.c.b16 %v472, %v463
      %v491 = vpack.c.b16 %v473, %v464
      %v492 = vpack.c.b16 %v474, %v465
      %v655 = vunpack.c.l.b16 %v268
      %v656 = vunpack.c.l.b16 %v269
      %v657 = vunpack.c.l.b16 %v270
      %v658 = vunpack.c.l.b16 %v271
      %v659 = vunpack.c.l.b16 %v272
      %v660 = vunpack.c.l.b16 %v273
      %v661 = vunpack.c.l.b16 %v274
      %v662 = vunpack.c.l.b16 %v275
      %v663 = vunpack.c.l.b16 %v276
      %v664 = vunpack.c.l.b16 %v277
      %v665 = vunpack.c.l.b16 %v278
      %v666 = vunpack.c.l.b16 %v279
      %v667 = vunpack.c.l.b16 %v280
      %v668 = vunpack.c.l.b16 %v281
      %v669 = vunpack.c.l.b16 %v282
      %v670 = vunpack.c.l.b16 %v283
      %v671 = vunpack.c.l.b16 %v284
      %v672 = vunpack.c.l.b16 %v285
      %v673 = vunpack.c.l.b16 %v286
      %v674 = vunpack.c.l.b16 %v287
      %v675 = vunpack.c.l.b16 %v288
      %v676 = vunpack.c.l.b16 %v289
      %v677 = vunpack.c.l.b16 %v290
      %v678 = vunpack.c.l.b16 %v291
      %v679 = vunpack.c.l.b16 %v292
      %v680 = vunpack.c.l.b16 %v293
      %v681 = vunpack.c.l.b16 %v294
      %v682 = vunpack.c.l.b16 %v295
      %v683 = vunpack.c.l.b16 %v296
      %v684 = vunpack.c.l.b16 %v297
      %v685 = vunpack.c.l.b16 %v298
      %v686 = vunpack.c.l.b16 %v299
      %v687 = vunpack.c.l.b16 %v300
      %v688 = vunpack.c.l.b16 %v301
      %v689 = vunpack.c.l.b16 %v302
      %v690 = vunpack.c.l.b16 %v303
      %v691 = vunpack.c.l.b16 %v304
      %v692 = vunpack.c.l.b16 %v305
      %v693 = vunpack.c.l.b16 %v306
      %v694 = vunpack.c.l.b16 %v307
      %v695 = vunpack.c.l.b16 %v308
      %v696 = vunpack.c.l.b16 %v309
      %v697 = vunpack.c.l.b16 %v310
      %v698 = vunpack.c.l.b16 %v311
      %v699 = vunpack.c.l.b16 %v312
      %v700 = vunpack.c.l.b16 %v313
      %v701 = vunpack.c.l.b16 %v314
      %v702 = vunpack.c.l.b16 %v315
      %v703 = vunpack.c.l.b16 %v316
      %v704 = vunpack.c.l.b16 %v317
      %v705 = vunpack.c.l.b16 %v318
      %v706 = vunpack.c.l.b16 %v319
      %v707 = vunpack.c.l.b16 %v320
      %v708 = vunpack.c.l.b16 %v321
      %v709 = vunpack.c.l.b16 %v322
      %v710 = vunpack.c.l.b16 %v323
      %v711 = vunpack.c.l.b16 %v324
      %v712 = vunpack.c.l.b16 %v325
      %v713 = vunpack.c.l.b16 %v326
      %v714 = vunpack.c.l.b16 %v327
      %v715 = vunpack.c.l.b16 %v328
      %v716 = vunpack.c.l.b16 %v329
      %v717 = vunpack.c.l.b16 %v330
      %v718 = vunpack.c.l.b16 %v331
      %v719 = vunpack.c.l.b16 %v332
      %v720 = vunpack.c.l.b16 %v333
      %v721 = vunpack.c.l.b16 %v334
      %v722 = vunpack.c.l.b16 %v335
      %v723 = vunpack.c.l.b16 %v336
      %v724 = vunpack.c.l.b16 %v337
      %v725 = vunpack.c.l.b16 %v338
      %v726 = vunpack.c.l.b16 %v339
      %v727 = vunpack.c.l.b16 %v340
      %v728 = vunpack.c.l.b16 %v341
      %v729 = vunpack.c.l.b16 %v342
      %v730 = vunpack.c.l.b16 %v343
      %v731 = vunpack.c.l.b16 %v344
      %v732 = vunpack.c.l.b16 %v345
      %v733 = vunpack.c.l.b16 %v346
      %v734 = vunpack.c.l.b16 %v347
      %v735 = vunpack.c.l.b16 %v348
      %v736 = vunpack.c.l.b16 %v349
      %v737 = vunpack.c.l.b16 %v350
      %v738 = vunpack.c.l.b16 %v351
      %v739 = vunpack.c.l.b16 %v352
      %v740 = vunpack.c.l.b16 %v353
      %v741 = vunpack.c.l.b16 %v354
      %v742 = vunpack.c.l.b16 %v355
      %v743 = vunpack.c.l.b16 %v356
      %v744 = vunpack.c.l.b16 %v357
      %v745 = vunpack.c.l.b16 %v358
      %v746 = vunpack.c.l.b16 %v359
      %v747 = vunpack.c.l.b16 %v360
      %v748 = vunpack.c.l.b16 %v361
      %v749 = vunpack.c.l.b16 %v362
      %v750 = vunpack.c.l.b16 %v363
      %v751 = vunpack.c.l.b16 %v364
      %v752 = vunpack.c.l.b16 %v365
      %v753 = vunpack.c.l.b16 %v366
      %v754 = vunpack.c.l.b16 %v367
      %v755 = vunpack.c.l.b16 %v368
      %v756 = vunpack.c.l.b16 %v369
      %v757 = vunpack.c.l.b16 %v370
      %v758 = vunpack.c.l.b16 %v371
      %v759 = vunpack.c.l.b16 %v372
      %v760 = vunpack.c.l.b16 %v373
      %v761 = vunpack.c.l.b16 %v374
      %v762 = vunpack.c.l.b16 %v375
      %v763 = vunpack.c.l.b16 %v376
      %v764 = vunpack.c.l.b16 %v377
      %v765 = vunpack.c.l.b16 %v378
      %v766 = vunpack.c.l.b16 %v379
      %v767 = vunpack.c.l.b16 %v380
      %v768 = vunpack.c.l.b16 %v381
      %v769 = vunpack.c.l.b16 %v382
      %v770 = vunpack.c.l.b16 %v383
      %v771 = vunpack.c.l.b16 %v384
      %v772 = vunpack.c.l.b16 %v385
      %v773 = vunpack.c.l.b16 %v386
      %v774 = vunpack.c.l.b16 %v387
      %v775 = vunpack.c.l.b16 %v388
      %v776 = vunpack.c.l.b16 %v389
      %v777 = vunpack.c.l.b16 %v390
      %v778 = vunpack.c.l.b16 %v391
      %v779 = vunpack.c.l.b16 %v392
      %v780 = vunpack.c.l.b16 %v393
      %v781 = vunpack.c.l.b16 %v394
      %v782 = vunpack.c.l.b16 %v395
      %v783 = vunpack.c.l.b16 %v396
      %v784 = vunpack.c.l.b16 %v397
      %v785 = vunpack.c.l.b16 %v398
      %v786 = vunpack.c.l.b16 %v399
      %v787 = vunpack.c.l.b16 %v400
      %v788 = vunpack.c.l.b16 %v401
      %v789 = vunpack.c.l.b16 %v402
      %v790 = vunpack.c.l.b16 %v403
      %v791 = vunpack.c.l.b16 %v404
      %v792 = vunpack.c.l.b16 %v405
      %v793 = vunpack.c.l.b16 %v406
      %v794 = vunpack.c.l.b16 %v407
      %v795 = vunpack.c.l.b16 %v408
      %v796 = vunpack.c.l.b16 %v409
      %v797 = vunpack.c.l.b16 %v410
      %v798 = vunpack.c.l.b16 %v411
      %v799 = vpack.c.b16 %v656, %v655
      %v800 = vpack.c.b16 %v658, %v657
      %v801 = vpack.c.b16 %v660, %v659
      %v802 = vpack.c.b16 %v662, %v661
      %v803 = vpack.c.b16 %v664, %v663
      %v804 = vpack.c.b16 %v666, %v665
      %v805 = vpack.c.b16 %v668, %v667
      %v806 = vpack.c.b16 %v670, %v669
      %v807 = vpack.c.b16 %v672, %v671
      %v808 = vpack.c.b16 %v674, %v673
      %v809 = vpack.c.b16 %v676, %v675
      %v810 = vpack.c.b16 %v678, %v677
      %v811 = vpack.c.b16 %v680, %v679
      %v812 = vpack.c.b16 %v682, %v681
      %v813 = vpack.c.b16 %v684, %v683
      %v814 = vpack.c.b16 %v686, %v685
      %v815 = vpack.c.b16 %v688, %v687
      %v816 = vpack.c.b16 %v690, %v689
      %v817 = vpack.c.b16 %v692, %v691
      %v818 = vpack.c.b16 %v694, %v693
      %v819 = vpack.c.b16 %v696, %v695
      %v820 = vpack.c.b16 %v698, %v697
      %v821 = vpack.c.b16 %v700, %v699
      %v822 = vpack.c.b16 %v702, %v701
      %v823 = vpack.c.b16 %v704, %v703
      %v824 = vpack.c.b16 %v706, %v705
      %v825 = vpack.c.b16 %v708, %v707
      %v826 = vpack.c.b16 %v710, %v709
      %v827 = vpack.c.b16 %v712, %v711
      %v828 = vpack.c.b16 %v714, %v713
      %v829 = vpack.c.b16 %v716, %v715
      %v830 = vpack.c.b16 %v718, %v717
      %v831 = vpack.c.b16 %v720, %v719
      %v832 = vpack.c.b16 %v722, %v721
      %v833 = vpack.c.b16 %v724, %v723
      %v834 = vpack.c.b16 %v726, %v725
      %v835 = vpack.c.b16 %v728, %v727
      %v836 = vpack.c.b16 %v730, %v729
      %v837 = vpack.c.b16 %v732, %v731
      %v838 = vpack.c.b16 %v734, %v733
      %v839 = vpack.c.b16 %v736, %v735
      %v840 = vpack.c.b16 %v738, %v737
      %v841 = vpack.c.b16 %v740, %v739
      %v842 = vpack.c.b16 %v742, %v741
      %v843 = vpack.c.b16 %v744, %v743
      %v844 = vpack.c.b16 %v746, %v745
      %v845 = vpack.c.b16 %v748, %v747
      %v846 = vpack.c.b16 %v750, %v749
      %v847 = vpack.c.b16 %v752, %v751
      %v848 = vpack.c.b16 %v754, %v753
      %v849 = vpack.c.b16 %v756, %v755
      %v850 = vpack.c.b16 %v758, %v757
      %v851 = vpack.c.b16 %v760, %v759
      %v852 = vpack.c.b16 %v762, %v761
      %v853 = vpack.c.b16 %v764, %v763
      %v854 = vpack.c.b16 %v766, %v765
      %v855 = vpack.c.b16 %v768, %v767
      %v856 = vpack.c.b16 %v770, %v769
      %v857 = vpack.c.b16 %v772, %v771
      %v858 = vpack.c.b16 %v774, %v773
      %v859 = vpack.c.b16 %v776, %v775
      %v860 = vpack.c.b16 %v778, %v777
      %v861 = vpack.c.b16 %v780, %v779
      %v862 = vpack.c.b16 %v782, %v781
      %v863 = vpack.c.b16 %v784, %v783
      %v864 = vpack.c.b16 %v786, %v785
      %v865 = vpack.c.b16 %v788, %v787
      %v866 = vpack.c.b16 %v790, %v789
      %v867 = vpack.c.b16 %v792, %v791
      %v868 = vpack.c.b16 %v794, %v793
      %v869 = vpack.c.b16 %v796, %v795
      %v870 = vpack.c.b16 %v798, %v797
      %943 = vmatprep.subr.bf16.mxu0 0
      %944 = vmatpush1.bf16.msra.mxu0 %v799
      %945 = vmatprep.subr.bf16.mxu0 0
      %946 = vmatpush1.bf16.msra.mxu0 %v800
      %947 = vmatprep.subr.bf16.mxu0 0
      %948 = vmatpush1.bf16.msra.mxu0 %v801
      %949 = vmatprep.subr.bf16.mxu0 0
      %950 = vmatpush1.bf16.msra.mxu0 %v802
      %951 = vmatprep.subr.bf16.mxu0 0
      %952 = vmatpush1.bf16.msra.mxu0 %v803
      %953 = vmatprep.subr.bf16.mxu0 0
      %954 = vmatpush1.bf16.msra.mxu0 %v804
      %955 = vmatprep.subr.bf16.mxu0 0
      %956 = vmatpush1.bf16.msra.mxu0 %v805
      %957 = vmatprep.subr.bf16.mxu0 0
      %958 = vmatpush1.bf16.msra.mxu0 %v806
      %959 = vmatprep.subr.bf16.mxu0 0
      %960 = vmatpush1.bf16.msra.mxu0 %v807
      %961 = vmatprep.subr.bf16.mxu0 0
      %962 = vmatpush1.bf16.msra.mxu0 %v808
      %963 = vmatprep.subr.bf16.mxu0 0
      %964 = vmatpush1.bf16.msra.mxu0 %v809
      %965 = vmatprep.subr.bf16.mxu0 0
      %966 = vmatpush1.bf16.msra.mxu0 %v810
      %967 = vmatprep.subr.bf16.mxu0 0
      %968 = vmatpush1.bf16.msra.mxu0 %v811
      %969 = vmatprep.subr.bf16.mxu0 0
      %970 = vmatpush1.bf16.msra.mxu0 %v812
      %971 = vmatprep.subr.bf16.mxu0 0
      %972 = vmatpush1.bf16.msra.mxu0 %v813
      %973 = vmatprep.subr.bf16.mxu0 0
      %974 = vmatpush1.bf16.msra.mxu0 %v814
      %975 = vmatprep.mubr.bf16.mxu0 %v476
      %976 = vmatmul.mubr.bf16.gmra.mrb[0].mxu0 %v475
      %v977 = vpop.f32.mrb[0].mxu0
      %v978 = vadd.f32 %v417, %v977
      %v979 = vpop.f32.mrb[0].mxu0
      %v980 = vpop.f32.mrb[0].mxu0
      %v981 = vadd.f32 %v417, %v980
      %v982 = vpop.f32.mrb[0].mxu0
      %983 = vmatprep.mubr.bf16.mxu0 %v485
      %984 = vmatmul.mubr.bf16.gmra.mrb[0].mxu0 %v484
      %v985 = vpop.f32.mrb[0].mxu0
      %v986 = vadd.f32 %v417, %v985
      %v987 = vpop.f32.mrb[0].mxu0
      %v988 = vpop.f32.mrb[0].mxu0
      %v989 = vadd.f32 %v417, %v988
      %v990 = vpop.f32.mrb[0].mxu0
      %991 = vdwg.mxu0
      %992 = vmatprep.subr.bf16.mxu0 0
      %993 = vmatpush1.bf16.msra.mxu0 %v815
      %994 = vmatprep.subr.bf16.mxu0 0
      %995 = vmatpush1.bf16.msra.mxu0 %v816
      %996 = vmatprep.subr.bf16.mxu0 0
      %997 = vmatpush1.bf16.msra.mxu0 %v817
      %998 = vmatprep.subr.bf16.mxu0 0
      %999 = vmatpush1.bf16.msra.mxu0 %v818
      %1000 = vmatprep.subr.bf16.mxu0 0
      %1001 = vmatpush1.bf16.msra.mxu0 %v819
      %1002 = vmatprep.subr.bf16.mxu0 0
      %1003 = vmatpush1.bf16.msra.mxu0 %v820
      %1004 = vmatprep.subr.bf16.mxu0 0
      %1005 = vmatpush1.bf16.msra.mxu0 %v821
      %1006 = vmatprep.subr.bf16.mxu0 0
      %1007 = vmatpush1.bf16.msra.mxu0 %v822
      %1008 = vmatprep.subr.bf16.mxu0 0
      %1009 = vmatpush1.bf16.msra.mxu0 %v823
      %1010 = vmatprep.subr.bf16.mxu0 0
      %1011 = vmatpush1.bf16.msra.mxu0 %v824
      %1012 = vmatprep.subr.bf16.mxu0 0
      %1013 = vmatpush1.bf16.msra.mxu0 %v825
      %1014 = vmatprep.subr.bf16.mxu0 0
      %1015 = vmatpush1.bf16.msra.mxu0 %v826
      %1016 = vmatprep.subr.bf16.mxu0 0
      %1017 = vmatpush1.bf16.msra.mxu0 %v827
      %1018 = vmatprep.subr.bf16.mxu0 0
      %1019 = vmatpush1.bf16.msra.mxu0 %v828
      %1020 = vmatprep.subr.bf16.mxu0 0
      %1021 = vmatpush1.bf16.msra.mxu0 %v829
      %1022 = vmatprep.subr.bf16.mxu0 0
      %1023 = vmatpush1.bf16.msra.mxu0 %v830
      %1024 = vmatprep.mubr.bf16.mxu0 %v478
      %1025 = vmatmul.mubr.bf16.gmra.mrb[0].mxu0 %v477
      %v1026 = vpop.f32.mrb[0].mxu0
      %v1027 = vadd.f32 %v978, %v1026
      %v1028 = vpop.f32.mrb[0].mxu0
      %v1029 = vpop.f32.mrb[0].mxu0
      %v1030 = vadd.f32 %v981, %v1029
      %v1031 = vpop.f32.mrb[0].mxu0
      %1032 = vmatprep.mubr.bf16.mxu0 %v487
      %1033 = vmatmul.mubr.bf16.gmra.mrb[0].mxu0 %v486
      %v1034 = vpop.f32.mrb[0].mxu0
      %v1035 = vadd.f32 %v986, %v1034
      %v1036 = vpop.f32.mrb[0].mxu0
      %v1037 = vpop.f32.mrb[0].mxu0
      %v1038 = vadd.f32 %v989, %v1037
      %v1039 = vpop.f32.mrb[0].mxu0
      %1040 = vdwg.mxu0
      %1041 = vmatprep.subr.bf16.mxu0 0
      %1042 = vmatpush1.bf16.msra.mxu0 %v831
      %1043 = vmatprep.subr.bf16.mxu0 0
      %1044 = vmatpush1.bf16.msra.mxu0 %v832
      %1045 = vmatprep.subr.bf16.mxu0 0
      %1046 = vmatpush1.bf16.msra.mxu0 %v833
      %1047 = vmatprep.subr.bf16.mxu0 0
      %1048 = vmatpush1.bf16.msra.mxu0 %v834
      %1049 = vmatprep.subr.bf16.mxu0 0
      %1050 = vmatpush1.bf16.msra.mxu0 %v835
      %1051 = vmatprep.subr.bf16.mxu0 0
      %1052 = vmatpush1.bf16.msra.mxu0 %v836
      %1053 = vmatprep.subr.bf16.mxu0 0
      %1054 = vmatpush1.bf16.msra.mxu0 %v837
      %1055 = vmatprep.subr.bf16.mxu0 0
      %1056 = vmatpush1.bf16.msra.mxu0 %v838
      %1057 = vmatprep.subr.bf16.mxu0 0
      %1058 = vmatpush1.bf16.msra.mxu0 %v839
      %1059 = vmatprep.subr.bf16.mxu0 0
      %1060 = vmatpush1.bf16.msra.mxu0 %v840
      %1061 = vmatprep.subr.bf16.mxu0 0
      %1062 = vmatpush1.bf16.msra.mxu0 %v841
      %1063 = vmatprep.subr.bf16.mxu0 0
      %1064 = vmatpush1.bf16.msra.mxu0 %v842
      %1065 = vmatprep.subr.bf16.mxu0 0
      %1066 = vmatpush1.bf16.msra.mxu0 %v843
      %1067 = vmatprep.subr.bf16.mxu0 0
      %1068 = vmatpush1.bf16.msra.mxu0 %v844
      %1069 = vmatprep.subr.bf16.mxu0 0
      %1070 = vmatpush1.bf16.msra.mxu0 %v845
      %1071 = vmatprep.subr.bf16.mxu0 0
      %1072 = vmatpush1.bf16.msra.mxu0 %v846
      %1073 = vmatprep.mubr.bf16.mxu0 %v480
      %1074 = vmatmul.mubr.bf16.gmra.mrb[0].mxu0 %v479
      %v1075 = vpop.f32.mrb[0].mxu0
      %v1076 = vadd.f32 %v1027, %v1075
      %v1077 = vpop.f32.mrb[0].mxu0
      %v1078 = vpop.f32.mrb[0].mxu0
      %v1079 = vadd.f32 %v1030, %v1078
      %v1080 = vpop.f32.mrb[0].mxu0
      %1081 = vmatprep.mubr.bf16.mxu0 %v489
      %1082 = vmatmul.mubr.bf16.gmra.mrb[0].mxu0 %v488
      %v1083 = vpop.f32.mrb[0].mxu0
      %v1084 = vadd.f32 %v1035, %v1083
      %v1085 = vpop.f32.mrb[0].mxu0
      %v1086 = vpop.f32.mrb[0].mxu0
      %v1087 = vadd.f32 %v1038, %v1086
      %v1088 = vpop.f32.mrb[0].mxu0
      %1089 = vdwg.mxu0
      %1090 = vmatprep.subr.bf16.mxu0 0
      %1091 = vmatpush1.bf16.msra.mxu0 %v847
      %1092 = vmatprep.subr.bf16.mxu0 0
      %1093 = vmatpush1.bf16.msra.mxu0 %v848
      %1094 = vmatprep.subr.bf16.mxu0 0
      %1095 = vmatpush1.bf16.msra.mxu0 %v849
      %1096 = vmatprep.subr.bf16.mxu0 0
      %1097 = vmatpush1.bf16.msra.mxu0 %v850
      %1098 = vmatprep.subr.bf16.mxu0 0
      %1099 = vmatpush1.bf16.msra.mxu0 %v851
      %1100 = vmatprep.subr.bf16.mxu0 0
      %1101 = vmatpush1.bf16.msra.mxu0 %v852
      %1102 = vmatprep.subr.bf16.mxu0 0
      %1103 = vmatpush1.bf16.msra.mxu0 %v853
      %1104 = vmatprep.subr.bf16.mxu0 0
      %1105 = vmatpush1.bf16.msra.mxu0 %v854
      %1106 = vmatprep.subr.bf16.mxu0 0
      %1107 = vmatpush1.bf16.msra.mxu0 %v855
      %1108 = vmatprep.subr.bf16.mxu0 0
      %1109 = vmatpush1.bf16.msra.mxu0 %v856
      %1110 = vmatprep.subr.bf16.mxu0 0
      %1111 = vmatpush1.bf16.msra.mxu0 %v857
      %1112 = vmatprep.subr.bf16.mxu0 0
      %1113 = vmatpush1.bf16.msra.mxu0 %v858
      %1114 = vmatprep.subr.bf16.mxu0 0
      %1115 = vmatpush1.bf16.msra.mxu0 %v859
      %1116 = vmatprep.subr.bf16.mxu0 0
      %1117 = vmatpush1.bf16.msra.mxu0 %v860
      %1118 = vmatprep.subr.bf16.mxu0 0
      %1119 = vmatpush1.bf16.msra.mxu0 %v861
      %1120 = vmatprep.subr.bf16.mxu0 0
      %1121 = vmatpush1.bf16.msra.mxu0 %v862
      %1122 = vmatprep.mubr.bf16.mxu0 %v482
      %1123 = vmatmul.mubr.bf16.gmra.mrb[0].mxu0 %v481
      %v1124 = vpop.f32.mrb[0].mxu0
      %v1125 = vadd.f32 %v1076, %v1124
      %v1126 = vpop.f32.mrb[0].mxu0
      %v1127 = vpop.f32.mrb[0].mxu0
      %v1128 = vadd.f32 %v1079, %v1127
      %v1129 = vpop.f32.mrb[0].mxu0
      %1130 = vmatprep.mubr.bf16.mxu0 %v491
      %1131 = vmatmul.mubr.bf16.gmra.mrb[0].mxu0 %v490
      %v1132 = vpop.f32.mrb[0].mxu0
      %v1133 = vadd.f32 %v1084, %v1132
      %v1134 = vpop.f32.mrb[0].mxu0
      %v1135 = vpop.f32.mrb[0].mxu0
      %v1136 = vadd.f32 %v1087, %v1135
      %v1137 = vpop.f32.mrb[0].mxu0
      %1138 = vdwg.mxu0
      %1139 = vmatprep.subr.bf16.mxu0 0
      %1140 = vmatpush1.bf16.msra.mxu0 %v863
      %1141 = vmatprep.subr.bf16.mxu0 0
      %1142 = vmatpush1.bf16.msra.mxu0 %v864
      %1143 = vmatprep.subr.bf16.mxu0 0
      %1144 = vmatpush1.bf16.msra.mxu0 %v865
      %1145 = vmatprep.subr.bf16.mxu0 0
      %1146 = vmatpush1.bf16.msra.mxu0 %v866
      %1147 = vmatprep.subr.bf16.mxu0 0
      %1148 = vmatpush1.bf16.msra.mxu0 %v867
      %1149 = vmatprep.subr.bf16.mxu0 0
      %1150 = vmatpush1.bf16.msra.mxu0 %v868
      %1151 = vmatprep.subr.bf16.mxu0 0
      %1152 = vmatpush1.bf16.msra.mxu0 %v869
      %1153 = vmatprep.subr.bf16.mxu0 0
      %1154 = vmatpush1.bf16.msra.mxu0 %v870
      %1155 = vmatprep.subr.bf16.mxu0 0
      %1156 = vmatpush1.bf16.msra.mxu0 0
      %1157 = vmatprep.subr.bf16.mxu0 0
      %1158 = vmatpush1.bf16.msra.mxu0 0
      %1159 = vmatprep.subr.bf16.mxu0 0
      %1160 = vmatpush1.bf16.msra.mxu0 0
      %1161 = vmatprep.subr.bf16.mxu0 0
      %1162 = vmatpush1.bf16.msra.mxu0 0
      %1163 = vmatprep.subr.bf16.mxu0 0
      %1164 = vmatpush1.bf16.msra.mxu0 0
      %1165 = vmatprep.subr.bf16.mxu0 0
      %1166 = vmatpush1.bf16.msra.mxu0 0
      %1167 = vmatprep.subr.bf16.mxu0 0
      %1168 = vmatpush1.bf16.msra.mxu0 0
      %1169 = vmatprep.subr.bf16.mxu0 0
      %1170 = vmatpush1.bf16.msra.mxu0 0
      %1171 = vmatprep.mubr.bf16.mxu0 0
      %1172 = vmatmul.mubr.bf16.gmra.mrb[0].mxu0 %v483
      %v1173 = vpop.f32.mrb[0].mxu0
      %v1174 = vadd.f32 %v1125, %v1173
      %v1175 = vpop.f32.mrb[0].mxu0
      %v1176 = vpop.f32.mrb[0].mxu0
      %v1177 = vadd.f32 %v1128, %v1176
      %v1178 = vpop.f32.mrb[0].mxu0
      %1179 = vmatprep.mubr.bf16.mxu0 0
      %1180 = vmatmul.mubr.bf16.gmra.mrb[0].mxu0 %v492
      %v1181 = vpop.f32.mrb[0].mxu0
      %v1182 = vadd.f32 %v1133, %v1181
      %v1183 = vpop.f32.mrb[0].mxu0
      %v1184 = vpop.f32.mrb[0].mxu0
      %v1185 = vadd.f32 %v1136, %v1184
      %v1186 = vpop.f32.mrb[0].mxu0
      %1187 = vdwg.mxu0
      %v1188 = vmax.f32 %v1174, 0.0
      %v1189 = vmax.f32 %v1177, 0.0
      %v1190 = vmax.f32 %v1182, 0.0
      %v1191 = vmax.f32 %v1185, 0.0
      %1192 = vst [vmem:[%s245] sm:$0xff] %v1188
      %1193 = vst [vmem:[%s245 + $0x8] sm:$0xff] %v1189
      %1194 = vst [vmem:[%s245 + $0x10] sm:$0xff] %v1190
      %1195 = vst [vmem:[%s245 + $0x18] sm:$0xff] %v1191
      %s1196 = smul.u32 4, %s19
      %p1197 = scmp.lt.s32.totalorder %s18, 1
      %s1198 = scalar_select %p1197, %s18, 1
      %p1199 = scmp.lt.s32.totalorder %s1196, 3
      %s1200 = scalar_select %p1199, %s1196, 3
      %s1201 = smul.addr %s1198, 4
      %s1202 = sadd.s32 %s1200, %s1201
      %s1203 = smul.addr %s1202, 8
      %s1204 = scalar_lea.vmem %s3, %s1203
      // Predicated region
      $region33: #{triplet_net_forward.38} parent=31 // pred_check
        %p1205 = pneg %p126
      $region34: #{triplet_net_forward.38} parent=31 // pred_check_branch
        %1207 = sbr.rel (%p1205) target = $region36
      $region35: #{triplet_net_forward.38} parent=31 // pred_region
        %s1208 = smul.u32 4, %s19
      $region36: #{triplet_net_forward.38} parent=31 // pred_fallthru
        _
    $region32: #{triplet_net_forward.38} parent=5 // pred_fallthru
      _
    %p1209 = scmp.le.s32.totalorder 2, %s9
    // Predicated region
    $region37: #{triplet_net_forward.38} parent=5 // pred_check
      %p1210 = pneg %p1209
    $region38: #{triplet_net_forward.38} parent=5 // pred_check_branch
      %1212 = sbr.rel (%p1210) target = $region40
    $region39: #{triplet_net_forward.38} parent=5 // pred_region
      %s1213 = ssub.s32 %s9, 2
      // Predicated region
      $region41: #{triplet_net_forward.38} parent=39 // pred_check
        %p1214 = pneg %p132
      $region42: #{triplet_net_forward.38} parent=39 // pred_check_branch
        %1216 = sbr.rel (%p1214) target = $region44
      $region43: #{triplet_net_forward.38} parent=39 // pred_region
        %s1217 = smul.u32 4, %s21
        %p1218 = scmp.lt.s32.totalorder %s20, 1
        %s1219 = scalar_select %p1218, %s20, 1
        %p1220 = scmp.lt.s32.totalorder %s1217, 3
        %s1221 = scalar_select %p1220, %s1217, 3
        %s1222 = smul.addr %s1219, 4
        %s1223 = sadd.s32 %s1221, %s1222
        %s1224 = smul.addr %s1223, 8
        %s1225 = scalar_lea.vmem %s3, %s1224
      $region44: #{triplet_net_forward.38} parent=39 // pred_fallthru
        _
    $region40: #{triplet_net_forward.38} parent=5 // pred_fallthru
      _
  $region6: #{triplet_net_forward.38} parent=0 // loop_footer
    %s13 = sadd.s32 1, %s9
  $region7: #{triplet_net_forward.38} parent=0 // loop_footer_branch
    %8 = sbr.rel target = $region3
  $region8: #{triplet_net_forward.38} parent=0 // loop_exit
    _

</llo_original>
